<compile_context>
chip_gen: v7x
topology: tpu7x:2x2x1
jax: 0.10.0
libtpu: 0.0.40
codegen_flags: <defaults>
</compile_context>

<pallas_src>
from functools import partial

import jax
import jax.numpy as jnp
from jax.experimental import pallas as pl
from jax.experimental.pallas import tpu as pltpu


def resblock133_kernel(x_ref, w1_ref, w2_ref, w3_ref, b_ref, m_ref, *rest,
                       Wg, Lc, Cout, same_channels):
    if same_channels:
        o_ref, h_scr = rest
    else:
        wd_ref, o_ref, h_scr = rest
    roff = 2 * Wg + 2                       # flat offset of image pixel (0,0)

    x = x_ref[0]                            # (Cin, Lg), channel-major, batch in lanes

    # ---- conv1 (1x1) + bias + leaky_relu; mask zeroes the halo so the result behaves
    #      like a zero-padded intermediate for conv2.
    a1 = jnp.dot(w1_ref[...], x, preferred_element_type=jnp.float32) + b_ref[:, 0:1]
    h_scr[...] = jnp.maximum(a1, 0.2 * a1) * m_ref[...]          # h1: (Cout, Lg)

    # ---- conv2 (3x3): direct 9-tap accumulation (no im2col slab)
    a2 = None
    for kh in range(3):
        for kw in range(3):
            j = kh * 3 + kw
            d = kh * Wg + kw
            t = jnp.dot(w2_ref[j], h_scr[:, d:d + Lc],
                        preferred_element_type=jnp.float32)
            a2 = t if a2 is None else a2 + t
    a2 = a2 + b_ref[:, 1:2]
    # mask for conv2's output grid = conv1 mask shifted by (1,1)
    h2 = jnp.maximum(a2, 0.2 * a2) * m_ref[:, Wg + 1:Wg + 1 + Lc]  # (Cout, Lc)

    # ---- residual (1x1 downsample iff in_channels != out_channels), read from input
    xres = x_ref[0, :, roff:roff + Lc]
    if same_channels:
        res = xres
    else:
        res = jnp.dot(wd_ref[...], xres, preferred_element_type=jnp.float32)

    # reuse h_scr for h2 (h2 is a finished value -> all reads of h1 precede this store)
    h_scr[:, :Lc] = h2

    # ---- conv3 (3x3): direct 9-tap accumulation
    a3 = None
    for kh in range(3):
        for kw in range(3):
            j = kh * 3 + kw
            d = kh * Wg + kw
            t = jnp.dot(w3_ref[j], h_scr[:, d:d + Lc],
                        preferred_element_type=jnp.float32)
            a3 = t if a3 is None else a3 + t

    z = a3 + b_ref[:, 2:3] + res            # b3 (+ bd) folded into one packed column
    o_ref[0, :, :Lc] = jnp.maximum(z, 0.2 * z).astype(o_ref.dtype)  # lane-dense store


def resblock133_forward(x_nchw, params, *, num_groups=1):
    """x_nchw: (B, Cin, H, W) float32. Returns (B, Cout, H, W).

    num_groups=1 -> whole batch in one grid step (best on v5e/v6e).
    num_groups=2 -> one fat step per TensorCore (best on v7x)."""
    B, Cin, H, W = x_nchw.shape
    Cout = params["w1"].shape[-1]
    same = (Cin == Cout)

    G = num_groups if (num_groups > 0 and B % num_groups == 0) else 1
    Bg = B // G

    # padded per-image grid: image pixels sit at rows/cols [2, 2+H) / [2, 2+W)
    Wg = ((W + 3 + 7) // 8) * 8          # >= W+3, multiple of 8
    Hgb = H + 6                          # 2 halo rows above, 4 below (tap reach <= 2)
    L = Hgb * Wg                         # flat length of one image block
    Lg = Bg * L                          # flat length per grid step (batch in lanes)
    Lc = Lg - 2 * Wg - 2                 # computable flat length (max tap offset)

    # input: pad each image, stack images along rows, channel-major flat lanes
    xp = jnp.pad(x_nchw, ((0, 0), (0, 0), (2, Hgb - H - 2), (2, Wg - W - 2)))
    x_flat = (xp.reshape(G, Bg, Cin, Hgb, Wg)
                .transpose(0, 2, 1, 3, 4)
                .reshape(G, Cin, Lg))

    # weights: (Cout, Cin) for 1x1; (9, Cout, Cin=Cout) tap-major for 3x3
    w1 = params["w1"].T
    w2 = params["w2"].transpose(0, 1, 3, 2).reshape(9, Cout, Cout)
    w3 = params["w3"].transpose(0, 1, 3, 2).reshape(9, Cout, Cout)
    b3eff = params["b3"] if same else params["b3"] + params["bd"]
    b_packed = jnp.stack([params["b1"], params["b2"], b3eff], axis=1)  # (Cout, 3)

    # single {0,1} mask over one image block, tiled across the batch lanes
    r = jnp.arange(Hgb)[:, None]
    c = jnp.arange(Wg)[None, :]
    keep = ((r >= 2) & (r < 2 + H) & (c >= 2) & (c < 2 + W)).astype(jnp.float32)
    m1 = jnp.tile(keep.reshape(1, L), (1, Bg))                         # (1, Lg)

    inputs = [x_flat, w1, w2, w3, b_packed, m1]
    in_specs = [
        pl.BlockSpec((1, Cin, Lg), lambda g: (g, 0, 0)),
        pl.BlockSpec((Cout, Cin), lambda g: (0, 0)),
        pl.BlockSpec((9, Cout, Cout), lambda g: (0, 0, 0)),
        pl.BlockSpec((9, Cout, Cout), lambda g: (0, 0, 0)),
        pl.BlockSpec((Cout, 3), lambda g: (0, 0)),
        pl.BlockSpec((1, Lg), lambda g: (0, 0)),
    ]
    if not same:
        inputs.append(params["wd"].T)
        in_specs.append(pl.BlockSpec((Cout, Cin), lambda g: (0, 0)))

    kern = partial(resblock133_kernel, Wg=Wg, Lc=Lc, Cout=Cout, same_channels=same)

    out_flat = pl.pallas_call(
        kern,
        out_shape=jax.ShapeDtypeStruct((G, Cout, Lg), x_nchw.dtype),
        grid_spec=pltpu.PrefetchScalarGridSpec(
            num_scalar_prefetch=0,
            grid=(G,),
            in_specs=in_specs,
            out_specs=pl.BlockSpec((1, Cout, Lg), lambda g: (g, 0, 0)),
            scratch_shapes=[pltpu.VMEM((Cout, Lg), jnp.float32)]),   # reused h1/h2
        compiler_params=pltpu.CompilerParams(
            dimension_semantics=("parallel",)),
    )(*inputs)

    out = (out_flat.reshape(G, Cout, Bg, Hgb, Wg)
                   .transpose(0, 2, 1, 3, 4)
                   .reshape(B, Cout, Hgb, Wg))
    return out[:, :, :H, :W]


def make_params(key, in_channels, out_channels):
    ks = jax.random.split(key, 8)
    s = 0.1
    return {
        "w1": s * jax.random.normal(ks[0], (in_channels, out_channels), jnp.float32),
        "b1": s * jax.random.normal(ks[1], (out_channels,), jnp.float32),
        "w2": s * jax.random.normal(ks[2], (3, 3, out_channels, out_channels), jnp.float32),
        "b2": s * jax.random.normal(ks[3], (out_channels,), jnp.float32),
        "w3": s * jax.random.normal(ks[4], (3, 3, out_channels, out_channels), jnp.float32),
        "b3": s * jax.random.normal(ks[5], (out_channels,), jnp.float32),
        "wd": s * jax.random.normal(ks[6], (in_channels, out_channels), jnp.float32),
        "bd": s * jax.random.normal(ks[7], (out_channels,), jnp.float32),
    }


def ref_forward(x_nchw, params):
    """Pure-JAX reference matching PyTorch ResBlock_133 semantics."""
    x = jnp.transpose(x_nchw, (0, 2, 3, 1))
    Cin = x.shape[-1]
    Cout = params["w1"].shape[-1]

    def lrelu(v):
        return jnp.where(v > 0, v, 0.2 * v)

    def conv3x3(h, w, b):
        y = jax.lax.conv_general_dilated(
            h, w, (1, 1), "SAME",
            dimension_numbers=("NHWC", "HWIO", "NHWC"))
        return y + b.reshape(1, 1, 1, -1)

    h = jnp.einsum("bhwc,cd->bhwd", x, params["w1"]) + params["b1"].reshape(1, 1, 1, -1)
    h = lrelu(h)
    h = lrelu(conv3x3(h, params["w2"], params["b2"]))
    h = conv3x3(h, params["w3"], params["b3"])
    res = x
    if Cin != Cout:
        res = jnp.einsum("bhwc,cd->bhwd", x, params["wd"]) \
            + params["bd"].reshape(1, 1, 1, -1)
    out = lrelu(h + res)
    return jnp.transpose(out, (0, 3, 1, 2))


if __name__ == "__main__":
    key = jax.random.PRNGKey(0)
    k_x, k_p, k_x2, k_p2 = jax.random.split(key, 4)

    # main test: in_channels != out_channels (downsample path), whole batch in 1 step
    B, Cin, Cout, H, W = 2, 4, 8, 16, 16
    x = jax.random.normal(k_x, (B, Cin, H, W), jnp.float32)
    params = make_params(k_p, Cin, Cout)
    out = jax.block_until_ready(resblock133_forward(x, params))
    ref = ref_forward(x, params)
    assert out.shape == (B, Cout, H, W)
    err = jnp.max(jnp.abs(out - ref))
    assert jnp.allclose(out, ref, atol=2e-3, rtol=2e-3), f"max abs err {err}"

    # secondary test: in_channels == out_channels (identity residual), non-square image
    B2, C2, H2, W2 = 2, 8, 8, 12
    x2 = jax.random.normal(k_x2, (B2, C2, H2, W2), jnp.float32)
    params2 = make_params(k_p2, C2, C2)
    out2 = jax.block_until_ready(resblock133_forward(x2, params2, num_groups=2))
    ref2 = ref_forward(x2, params2)
    err2 = jnp.max(jnp.abs(out2 - ref2))
    assert jnp.allclose(out2, ref2, atol=2e-3, rtol=2e-3), f"max abs err {err2}"

    print("KERNEL_OK")
</pallas_src>

<mosaic_0001>
module attributes {stable_mosaic.version = 11 : i64} {
  func.func @resblock133_kernel(%arg0: i32, %arg1: memref<1x4x1056xf32, #tpu.memory_space<vmem>>, %arg2: memref<8x4xf32, #tpu.memory_space<vmem>>, %arg3: memref<9x8x8xf32, #tpu.memory_space<vmem>>, %arg4: memref<9x8x8xf32, #tpu.memory_space<vmem>>, %arg5: memref<8x3xf32, #tpu.memory_space<vmem>>, %arg6: memref<1x1056xf32, #tpu.memory_space<vmem>>, %arg7: memref<8x4xf32, #tpu.memory_space<vmem>>, %arg8: memref<1x8x1056xf32, #tpu.memory_space<vmem>>, %arg9: memref<8x1056xf32, #tpu.memory_space<vmem>>) attributes {dimension_semantics = [#tpu.dimension_semantics<parallel>], iteration_bounds = array<i64: 1>, scalar_prefetch = 0 : i64, scratch_operands = 1 : i64, tpu.core_type = #tpu.core_type<tc>, window_params = [{transform_indices = @transform_0, window_bounds = array<i64: 1, 4, 1056>}, {pipeline_mode = #tpu.pipeline_mode<synchronous>, transform_indices = @transform_1, window_bounds = array<i64: 8, 4>}, {pipeline_mode = #tpu.pipeline_mode<synchronous>, transform_indices = @transform_2, window_bounds = array<i64: 9, 8, 8>}, {pipeline_mode = #tpu.pipeline_mode<synchronous>, transform_indices = @transform_3, window_bounds = array<i64: 9, 8, 8>}, {pipeline_mode = #tpu.pipeline_mode<synchronous>, transform_indices = @transform_4, window_bounds = array<i64: 8, 3>}, {pipeline_mode = #tpu.pipeline_mode<synchronous>, transform_indices = @transform_5, window_bounds = array<i64: 1, 1056>}, {pipeline_mode = #tpu.pipeline_mode<synchronous>, transform_indices = @transform_6, window_bounds = array<i64: 8, 4>}, {transform_indices = @transform_7, window_bounds = array<i64: 1, 8, 1056>}]} {
    %c0 = arith.constant 0 : index
    %c0_0 = arith.constant 0 : index
    %c0_1 = arith.constant 0 : index
    %0 = vector.load %arg1[%c0, %c0_0, %c0_1] : memref<1x4x1056xf32, #tpu.memory_space<vmem>>, vector<1x4x1056xf32>
    %1 = vector.shape_cast %0 : vector<1x4x1056xf32> to vector<4x1056xf32>
    %c0_2 = arith.constant 0 : index
    %c0_3 = arith.constant 0 : index
    %2 = vector.load %arg2[%c0_2, %c0_3] : memref<8x4xf32, #tpu.memory_space<vmem>>, vector<8x4xf32>
    %cst = arith.constant dense<0.000000e+00> : vector<8x1056xf32>
    %3 = tpu.matmul %2, %1, %cst {dimension_numbers = #tpu.dot_dimension_numbers<[1], [0], [0], [1], [0, 0, 1, 1], [], []>} : vector<8x4xf32>, vector<4x1056xf32>, vector<8x1056xf32> -> vector<8x1056xf32>
    %c0_4 = arith.constant 0 : index
    %c0_5 = arith.constant 0 : index
    %4 = vector.load %arg5[%c0_4, %c0_5] : memref<8x3xf32, #tpu.memory_space<vmem>>, vector<8x1xf32>
    %5 = vector.broadcast %4 : vector<8x1xf32> to vector<8x1056xf32>
    %6 = arith.addf %3, %5 : vector<8x1056xf32>
    %cst_6 = arith.constant 2.000000e-01 : f32
    %7 = vector.broadcast %cst_6 : f32 to vector<8x1056xf32>
    %8 = arith.mulf %7, %6 : vector<8x1056xf32>
    %9 = arith.maximumf %6, %8 : vector<8x1056xf32>
    %c0_7 = arith.constant 0 : index
    %c0_8 = arith.constant 0 : index
    %10 = vector.load %arg6[%c0_7, %c0_8] : memref<1x1056xf32, #tpu.memory_space<vmem>>, vector<1x1056xf32>
    %11 = vector.broadcast %10 : vector<1x1056xf32> to vector<8x1056xf32>
    %12 = arith.mulf %9, %11 : vector<8x1056xf32>
    %c0_9 = arith.constant 0 : index
    %c0_10 = arith.constant 0 : index
    %13 = vector.load %arg9[%c0_9, %c0_10] : memref<8x1056xf32, #tpu.memory_space<vmem>>, vector<8x1056xf32>
    tpu.vector_store %arg9[%c0_9, %c0_10], %12 {strides = array<i32>} : memref<8x1056xf32, #tpu.memory_space<vmem>>, vector<8x1056xf32>,
    %c0_11 = arith.constant 0 : index
    %c0_12 = arith.constant 0 : index
    %c0_13 = arith.constant 0 : index
    %14 = vector.load %arg3[%c0_11, %c0_12, %c0_13] : memref<9x8x8xf32, #tpu.memory_space<vmem>>, vector<1x8x8xf32>
    %15 = vector.shape_cast %14 : vector<1x8x8xf32> to vector<8x8xf32>
    %c0_14 = arith.constant 0 : index
    %c0_15 = arith.constant 0 : index
    %16 = vector.load %arg9[%c0_14, %c0_15] : memref<8x1056xf32, #tpu.memory_space<vmem>>, vector<8x1006xf32>
    %cst_16 = arith.constant dense<0.000000e+00> : vector<8x1006xf32>
    %17 = tpu.matmul %15, %16, %cst_16 {dimension_numbers = #tpu.dot_dimension_numbers<[1], [0], [0], [1], [0, 0, 1, 1], [], []>} : vector<8x8xf32>, vector<8x1006xf32>, vector<8x1006xf32> -> vector<8x1006xf32>
    %c1 = arith.constant 1 : index
    %c0_17 = arith.constant 0 : index
    %c0_18 = arith.constant 0 : index
    %18 = vector.load %arg3[%c1, %c0_17, %c0_18] : memref<9x8x8xf32, #tpu.memory_space<vmem>>, vector<1x8x8xf32>
    %19 = vector.shape_cast %18 : vector<1x8x8xf32> to vector<8x8xf32>
    %c0_19 = arith.constant 0 : index
    %c1_20 = arith.constant 1 : index
    %20 = vector.load %arg9[%c0_19, %c1_20] : memref<8x1056xf32, #tpu.memory_space<vmem>>, vector<8x1006xf32>
    %cst_21 = arith.constant dense<0.000000e+00> : vector<8x1006xf32>
    %21 = tpu.matmul %19, %20, %cst_21 {dimension_numbers = #tpu.dot_dimension_numbers<[1], [0], [0], [1], [0, 0, 1, 1], [], []>} : vector<8x8xf32>, vector<8x1006xf32>, vector<8x1006xf32> -> vector<8x1006xf32>
    %22 = arith.addf %17, %21 : vector<8x1006xf32>
    %c2 = arith.constant 2 : index
    %c0_22 = arith.constant 0 : index
    %c0_23 = arith.constant 0 : index
    %23 = vector.load %arg3[%c2, %c0_22, %c0_23] : memref<9x8x8xf32, #tpu.memory_space<vmem>>, vector<1x8x8xf32>
    %24 = vector.shape_cast %23 : vector<1x8x8xf32> to vector<8x8xf32>
    %c0_24 = arith.constant 0 : index
    %c2_25 = arith.constant 2 : index
    %25 = vector.load %arg9[%c0_24, %c2_25] : memref<8x1056xf32, #tpu.memory_space<vmem>>, vector<8x1006xf32>
    %cst_26 = arith.constant dense<0.000000e+00> : vector<8x1006xf32>
    %26 = tpu.matmul %24, %25, %cst_26 {dimension_numbers = #tpu.dot_dimension_numbers<[1], [0], [0], [1], [0, 0, 1, 1], [], []>} : vector<8x8xf32>, vector<8x1006xf32>, vector<8x1006xf32> -> vector<8x1006xf32>
    %27 = arith.addf %22, %26 : vector<8x1006xf32>
    %c3 = arith.constant 3 : index
    %c0_27 = arith.constant 0 : index
    %c0_28 = arith.constant 0 : index
    %28 = vector.load %arg3[%c3, %c0_27, %c0_28] : memref<9x8x8xf32, #tpu.memory_space<vmem>>, vector<1x8x8xf32>
    %29 = vector.shape_cast %28 : vector<1x8x8xf32> to vector<8x8xf32>
    %c0_29 = arith.constant 0 : index
    %c24 = arith.constant 24 : index
    %30 = vector.load %arg9[%c0_29, %c24] : memref<8x1056xf32, #tpu.memory_space<vmem>>, vector<8x1006xf32>
    %cst_30 = arith.constant dense<0.000000e+00> : vector<8x1006xf32>
    %31 = tpu.matmul %29, %30, %cst_30 {dimension_numbers = #tpu.dot_dimension_numbers<[1], [0], [0], [1], [0, 0, 1, 1], [], []>} : vector<8x8xf32>, vector<8x1006xf32>, vector<8x1006xf32> -> vector<8x1006xf32>
    %32 = arith.addf %27, %31 : vector<8x1006xf32>
    %c4 = arith.constant 4 : index
    %c0_31 = arith.constant 0 : index
    %c0_32 = arith.constant 0 : index
    %33 = vector.load %arg3[%c4, %c0_31, %c0_32] : memref<9x8x8xf32, #tpu.memory_space<vmem>>, vector<1x8x8xf32>
    %34 = vector.shape_cast %33 : vector<1x8x8xf32> to vector<8x8xf32>
    %c0_33 = arith.constant 0 : index
    %c25 = arith.constant 25 : index
    %35 = vector.load %arg9[%c0_33, %c25] : memref<8x1056xf32, #tpu.memory_space<vmem>>, vector<8x1006xf32>
    %cst_34 = arith.constant dense<0.000000e+00> : vector<8x1006xf32>
    %36 = tpu.matmul %34, %35, %cst_34 {dimension_numbers = #tpu.dot_dimension_numbers<[1], [0], [0], [1], [0, 0, 1, 1], [], []>} : vector<8x8xf32>, vector<8x1006xf32>, vector<8x1006xf32> -> vector<8x1006xf32>
    %37 = arith.addf %32, %36 : vector<8x1006xf32>
    %c5 = arith.constant 5 : index
    %c0_35 = arith.constant 0 : index
    %c0_36 = arith.constant 0 : index
    %38 = vector.load %arg3[%c5, %c0_35, %c0_36] : memref<9x8x8xf32, #tpu.memory_space<vmem>>, vector<1x8x8xf32>
    %39 = vector.shape_cast %38 : vector<1x8x8xf32> to vector<8x8xf32>
    %c0_37 = arith.constant 0 : index
    %c26 = arith.constant 26 : index
    %40 = vector.load %arg9[%c0_37, %c26] : memref<8x1056xf32, #tpu.memory_space<vmem>>, vector<8x1006xf32>
    %cst_38 = arith.constant dense<0.000000e+00> : vector<8x1006xf32>
    %41 = tpu.matmul %39, %40, %cst_38 {dimension_numbers = #tpu.dot_dimension_numbers<[1], [0], [0], [1], [0, 0, 1, 1], [], []>} : vector<8x8xf32>, vector<8x1006xf32>, vector<8x1006xf32> -> vector<8x1006xf32>
    %42 = arith.addf %37, %41 : vector<8x1006xf32>
    %c6 = arith.constant 6 : index
    %c0_39 = arith.constant 0 : index
    %c0_40 = arith.constant 0 : index
    %43 = vector.load %arg3[%c6, %c0_39, %c0_40] : memref<9x8x8xf32, #tpu.memory_space<vmem>>, vector<1x8x8xf32>
    %44 = vector.shape_cast %43 : vector<1x8x8xf32> to vector<8x8xf32>
    %c0_41 = arith.constant 0 : index
    %c48 = arith.constant 48 : index
    %45 = vector.load %arg9[%c0_41, %c48] : memref<8x1056xf32, #tpu.memory_space<vmem>>, vector<8x1006xf32>
    %cst_42 = arith.constant dense<0.000000e+00> : vector<8x1006xf32>
    %46 = tpu.matmul %44, %45, %cst_42 {dimension_numbers = #tpu.dot_dimension_numbers<[1], [0], [0], [1], [0, 0, 1, 1], [], []>} : vector<8x8xf32>, vector<8x1006xf32>, vector<8x1006xf32> -> vector<8x1006xf32>
    %47 = arith.addf %42, %46 : vector<8x1006xf32>
    %c7 = arith.constant 7 : index
    %c0_43 = arith.constant 0 : index
    %c0_44 = arith.constant 0 : index
    %48 = vector.load %arg3[%c7, %c0_43, %c0_44] : memref<9x8x8xf32, #tpu.memory_space<vmem>>, vector<1x8x8xf32>
    %49 = vector.shape_cast %48 : vector<1x8x8xf32> to vector<8x8xf32>
    %c0_45 = arith.constant 0 : index
    %c49 = arith.constant 49 : index
    %50 = vector.load %arg9[%c0_45, %c49] : memref<8x1056xf32, #tpu.memory_space<vmem>>, vector<8x1006xf32>
    %cst_46 = arith.constant dense<0.000000e+00> : vector<8x1006xf32>
    %51 = tpu.matmul %49, %50, %cst_46 {dimension_numbers = #tpu.dot_dimension_numbers<[1], [0], [0], [1], [0, 0, 1, 1], [], []>} : vector<8x8xf32>, vector<8x1006xf32>, vector<8x1006xf32> -> vector<8x1006xf32>
    %52 = arith.addf %47, %51 : vector<8x1006xf32>
    %c8 = arith.constant 8 : index
    %c0_47 = arith.constant 0 : index
    %c0_48 = arith.constant 0 : index
    %53 = vector.load %arg3[%c8, %c0_47, %c0_48] : memref<9x8x8xf32, #tpu.memory_space<vmem>>, vector<1x8x8xf32>
    %54 = vector.shape_cast %53 : vector<1x8x8xf32> to vector<8x8xf32>
    %c0_49 = arith.constant 0 : index
    %c50 = arith.constant 50 : index
    %55 = vector.load %arg9[%c0_49, %c50] : memref<8x1056xf32, #tpu.memory_space<vmem>>, vector<8x1006xf32>
    %cst_50 = arith.constant dense<0.000000e+00> : vector<8x1006xf32>
    %56 = tpu.matmul %54, %55, %cst_50 {dimension_numbers = #tpu.dot_dimension_numbers<[1], [0], [0], [1], [0, 0, 1, 1], [], []>} : vector<8x8xf32>, vector<8x1006xf32>, vector<8x1006xf32> -> vector<8x1006xf32>
    %57 = arith.addf %52, %56 : vector<8x1006xf32>
    %c0_51 = arith.constant 0 : index
    %c1_52 = arith.constant 1 : index
    %58 = vector.load %arg5[%c0_51, %c1_52] : memref<8x3xf32, #tpu.memory_space<vmem>>, vector<8x1xf32>
    %59 = vector.broadcast %58 : vector<8x1xf32> to vector<8x1006xf32>
    %60 = arith.addf %57, %59 : vector<8x1006xf32>
    %cst_53 = arith.constant 2.000000e-01 : f32
    %61 = vector.broadcast %cst_53 : f32 to vector<8x1006xf32>
    %62 = arith.mulf %61, %60 : vector<8x1006xf32>
    %63 = arith.maximumf %60, %62 : vector<8x1006xf32>
    %c0_54 = arith.constant 0 : index
    %c25_55 = arith.constant 25 : index
    %64 = vector.load %arg6[%c0_54, %c25_55] : memref<1x1056xf32, #tpu.memory_space<vmem>>, vector<1x1006xf32>
    %65 = vector.broadcast %64 : vector<1x1006xf32> to vector<8x1006xf32>
    %66 = arith.mulf %63, %65 : vector<8x1006xf32>
    %c0_56 = arith.constant 0 : index
    %c0_57 = arith.constant 0 : index
    %c50_58 = arith.constant 50 : index
    %67 = vector.load %arg1[%c0_56, %c0_57, %c50_58] : memref<1x4x1056xf32, #tpu.memory_space<vmem>>, vector<1x4x1006xf32>
    %68 = vector.shape_cast %67 : vector<1x4x1006xf32> to vector<4x1006xf32>
    %c0_59 = arith.constant 0 : index
    %c0_60 = arith.constant 0 : index
    %69 = vector.load %arg7[%c0_59, %c0_60] : memref<8x4xf32, #tpu.memory_space<vmem>>, vector<8x4xf32>
    %cst_61 = arith.constant dense<0.000000e+00> : vector<8x1006xf32>
    %70 = tpu.matmul %69, %68, %cst_61 {dimension_numbers = #tpu.dot_dimension_numbers<[1], [0], [0], [1], [0, 0, 1, 1], [], []>} : vector<8x4xf32>, vector<4x1006xf32>, vector<8x1006xf32> -> vector<8x1006xf32>
    %c0_62 = arith.constant 0 : index
    %c0_63 = arith.constant 0 : index
    %71 = vector.load %arg9[%c0_62, %c0_63] : memref<8x1056xf32, #tpu.memory_space<vmem>>, vector<8x1006xf32>
    tpu.vector_store %arg9[%c0_62, %c0_63], %66 {strides = array<i32>} : memref<8x1056xf32, #tpu.memory_space<vmem>>, vector<8x1006xf32>,
    %c0_64 = arith.constant 0 : index
    %c0_65 = arith.constant 0 : index
    %c0_66 = arith.constant 0 : index
    %72 = vector.load %arg4[%c0_64, %c0_65, %c0_66] : memref<9x8x8xf32, #tpu.memory_space<vmem>>, vector<1x8x8xf32>
    %73 = vector.shape_cast %72 : vector<1x8x8xf32> to vector<8x8xf32>
    %c0_67 = arith.constant 0 : index
    %c0_68 = arith.constant 0 : index
    %74 = vector.load %arg9[%c0_67, %c0_68] : memref<8x1056xf32, #tpu.memory_space<vmem>>, vector<8x1006xf32>
    %cst_69 = arith.constant dense<0.000000e+00> : vector<8x1006xf32>
    %75 = tpu.matmul %73, %74, %cst_69 {dimension_numbers = #tpu.dot_dimension_numbers<[1], [0], [0], [1], [0, 0, 1, 1], [], []>} : vector<8x8xf32>, vector<8x1006xf32>, vector<8x1006xf32> -> vector<8x1006xf32>
    %c1_70 = arith.constant 1 : index
    %c0_71 = arith.constant 0 : index
    %c0_72 = arith.constant 0 : index
    %76 = vector.load %arg4[%c1_70, %c0_71, %c0_72] : memref<9x8x8xf32, #tpu.memory_space<vmem>>, vector<1x8x8xf32>
    %77 = vector.shape_cast %76 : vector<1x8x8xf32> to vector<8x8xf32>
    %c0_73 = arith.constant 0 : index
    %c1_74 = arith.constant 1 : index
    %78 = vector.load %arg9[%c0_73, %c1_74] : memref<8x1056xf32, #tpu.memory_space<vmem>>, vector<8x1006xf32>
    %cst_75 = arith.constant dense<0.000000e+00> : vector<8x1006xf32>
    %79 = tpu.matmul %77, %78, %cst_75 {dimension_numbers = #tpu.dot_dimension_numbers<[1], [0], [0], [1], [0, 0, 1, 1], [], []>} : vector<8x8xf32>, vector<8x1006xf32>, vector<8x1006xf32> -> vector<8x1006xf32>
    %80 = arith.addf %75, %79 : vector<8x1006xf32>
    %c2_76 = arith.constant 2 : index
    %c0_77 = arith.constant 0 : index
    %c0_78 = arith.constant 0 : index
    %81 = vector.load %arg4[%c2_76, %c0_77, %c0_78] : memref<9x8x8xf32, #tpu.memory_space<vmem>>, vector<1x8x8xf32>
    %82 = vector.shape_cast %81 : vector<1x8x8xf32> to vector<8x8xf32>
    %c0_79 = arith.constant 0 : index
    %c2_80 = arith.constant 2 : index
    %83 = vector.load %arg9[%c0_79, %c2_80] : memref<8x1056xf32, #tpu.memory_space<vmem>>, vector<8x1006xf32>
    %cst_81 = arith.constant dense<0.000000e+00> : vector<8x1006xf32>
    %84 = tpu.matmul %82, %83, %cst_81 {dimension_numbers = #tpu.dot_dimension_numbers<[1], [0], [0], [1], [0, 0, 1, 1], [], []>} : vector<8x8xf32>, vector<8x1006xf32>, vector<8x1006xf32> -> vector<8x1006xf32>
    %85 = arith.addf %80, %84 : vector<8x1006xf32>
    %c3_82 = arith.constant 3 : index
    %c0_83 = arith.constant 0 : index
    %c0_84 = arith.constant 0 : index
    %86 = vector.load %arg4[%c3_82, %c0_83, %c0_84] : memref<9x8x8xf32, #tpu.memory_space<vmem>>, vector<1x8x8xf32>
    %87 = vector.shape_cast %86 : vector<1x8x8xf32> to vector<8x8xf32>
    %c0_85 = arith.constant 0 : index
    %c24_86 = arith.constant 24 : index
    %88 = vector.load %arg9[%c0_85, %c24_86] : memref<8x1056xf32, #tpu.memory_space<vmem>>, vector<8x1006xf32>
    %cst_87 = arith.constant dense<0.000000e+00> : vector<8x1006xf32>
    %89 = tpu.matmul %87, %88, %cst_87 {dimension_numbers = #tpu.dot_dimension_numbers<[1], [0], [0], [1], [0, 0, 1, 1], [], []>} : vector<8x8xf32>, vector<8x1006xf32>, vector<8x1006xf32> -> vector<8x1006xf32>
    %90 = arith.addf %85, %89 : vector<8x1006xf32>
    %c4_88 = arith.constant 4 : index
    %c0_89 = arith.constant 0 : index
    %c0_90 = arith.constant 0 : index
    %91 = vector.load %arg4[%c4_88, %c0_89, %c0_90] : memref<9x8x8xf32, #tpu.memory_space<vmem>>, vector<1x8x8xf32>
    %92 = vector.shape_cast %91 : vector<1x8x8xf32> to vector<8x8xf32>
    %c0_91 = arith.constant 0 : index
    %c25_92 = arith.constant 25 : index
    %93 = vector.load %arg9[%c0_91, %c25_92] : memref<8x1056xf32, #tpu.memory_space<vmem>>, vector<8x1006xf32>
    %cst_93 = arith.constant dense<0.000000e+00> : vector<8x1006xf32>
    %94 = tpu.matmul %92, %93, %cst_93 {dimension_numbers = #tpu.dot_dimension_numbers<[1], [0], [0], [1], [0, 0, 1, 1], [], []>} : vector<8x8xf32>, vector<8x1006xf32>, vector<8x1006xf32> -> vector<8x1006xf32>
    %95 = arith.addf %90, %94 : vector<8x1006xf32>
    %c5_94 = arith.constant 5 : index
    %c0_95 = arith.constant 0 : index
    %c0_96 = arith.constant 0 : index
    %96 = vector.load %arg4[%c5_94, %c0_95, %c0_96] : memref<9x8x8xf32, #tpu.memory_space<vmem>>, vector<1x8x8xf32>
    %97 = vector.shape_cast %96 : vector<1x8x8xf32> to vector<8x8xf32>
    %c0_97 = arith.constant 0 : index
    %c26_98 = arith.constant 26 : index
    %98 = vector.load %arg9[%c0_97, %c26_98] : memref<8x1056xf32, #tpu.memory_space<vmem>>, vector<8x1006xf32>
    %cst_99 = arith.constant dense<0.000000e+00> : vector<8x1006xf32>
    %99 = tpu.matmul %97, %98, %cst_99 {dimension_numbers = #tpu.dot_dimension_numbers<[1], [0], [0], [1], [0, 0, 1, 1], [], []>} : vector<8x8xf32>, vector<8x1006xf32>, vector<8x1006xf32> -> vector<8x1006xf32>
    %100 = arith.addf %95, %99 : vector<8x1006xf32>
    %c6_100 = arith.constant 6 : index
    %c0_101 = arith.constant 0 : index
    %c0_102 = arith.constant 0 : index
    %101 = vector.load %arg4[%c6_100, %c0_101, %c0_102] : memref<9x8x8xf32, #tpu.memory_space<vmem>>, vector<1x8x8xf32>
    %102 = vector.shape_cast %101 : vector<1x8x8xf32> to vector<8x8xf32>
    %c0_103 = arith.constant 0 : index
    %c48_104 = arith.constant 48 : index
    %103 = vector.load %arg9[%c0_103, %c48_104] : memref<8x1056xf32, #tpu.memory_space<vmem>>, vector<8x1006xf32>
    %cst_105 = arith.constant dense<0.000000e+00> : vector<8x1006xf32>
    %104 = tpu.matmul %102, %103, %cst_105 {dimension_numbers = #tpu.dot_dimension_numbers<[1], [0], [0], [1], [0, 0, 1, 1], [], []>} : vector<8x8xf32>, vector<8x1006xf32>, vector<8x1006xf32> -> vector<8x1006xf32>
    %105 = arith.addf %100, %104 : vector<8x1006xf32>
    %c7_106 = arith.constant 7 : index
    %c0_107 = arith.constant 0 : index
    %c0_108 = arith.constant 0 : index
    %106 = vector.load %arg4[%c7_106, %c0_107, %c0_108] : memref<9x8x8xf32, #tpu.memory_space<vmem>>, vector<1x8x8xf32>
    %107 = vector.shape_cast %106 : vector<1x8x8xf32> to vector<8x8xf32>
    %c0_109 = arith.constant 0 : index
    %c49_110 = arith.constant 49 : index
    %108 = vector.load %arg9[%c0_109, %c49_110] : memref<8x1056xf32, #tpu.memory_space<vmem>>, vector<8x1006xf32>
    %cst_111 = arith.constant dense<0.000000e+00> : vector<8x1006xf32>
    %109 = tpu.matmul %107, %108, %cst_111 {dimension_numbers = #tpu.dot_dimension_numbers<[1], [0], [0], [1], [0, 0, 1, 1], [], []>} : vector<8x8xf32>, vector<8x1006xf32>, vector<8x1006xf32> -> vector<8x1006xf32>
    %110 = arith.addf %105, %109 : vector<8x1006xf32>
    %c8_112 = arith.constant 8 : index
    %c0_113 = arith.constant 0 : index
    %c0_114 = arith.constant 0 : index
    %111 = vector.load %arg4[%c8_112, %c0_113, %c0_114] : memref<9x8x8xf32, #tpu.memory_space<vmem>>, vector<1x8x8xf32>
    %112 = vector.shape_cast %111 : vector<1x8x8xf32> to vector<8x8xf32>
    %c0_115 = arith.constant 0 : index
    %c50_116 = arith.constant 50 : index
    %113 = vector.load %arg9[%c0_115, %c50_116] : memref<8x1056xf32, #tpu.memory_space<vmem>>, vector<8x1006xf32>
    %cst_117 = arith.constant dense<0.000000e+00> : vector<8x1006xf32>
    %114 = tpu.matmul %112, %113, %cst_117 {dimension_numbers = #tpu.dot_dimension_numbers<[1], [0], [0], [1], [0, 0, 1, 1], [], []>} : vector<8x8xf32>, vector<8x1006xf32>, vector<8x1006xf32> -> vector<8x1006xf32>
    %115 = arith.addf %110, %114 : vector<8x1006xf32>
    %c0_118 = arith.constant 0 : index
    %c2_119 = arith.constant 2 : index
    %116 = vector.load %arg5[%c0_118, %c2_119] : memref<8x3xf32, #tpu.memory_space<vmem>>, vector<8x1xf32>
    %117 = vector.broadcast %116 : vector<8x1xf32> to vector<8x1006xf32>
    %118 = arith.addf %115, %117 : vector<8x1006xf32>
    %119 = arith.addf %118, %70 : vector<8x1006xf32>
    %cst_120 = arith.constant 2.000000e-01 : f32
    %120 = vector.broadcast %cst_120 : f32 to vector<8x1006xf32>
    %121 = arith.mulf %120, %119 : vector<8x1006xf32>
    %122 = arith.maximumf %119, %121 : vector<8x1006xf32>
    %c0_121 = arith.constant 0 : index
    %c0_122 = arith.constant 0 : index
    %c0_123 = arith.constant 0 : index
    %123 = vector.load %arg8[%c0_121, %c0_122, %c0_123] : memref<1x8x1056xf32, #tpu.memory_space<vmem>>, vector<1x8x1006xf32>
    %124 = vector.shape_cast %123 : vector<1x8x1006xf32> to vector<8x1006xf32>
    %125 = vector.shape_cast %122 : vector<8x1006xf32> to vector<1x8x1006xf32>
    tpu.vector_store %arg8[%c0_121, %c0_122, %c0_123], %125 {strides = array<i32>} : memref<1x8x1056xf32, #tpu.memory_space<vmem>>, vector<1x8x1006xf32>,
    return
  }
  func.func @transform_0(%arg0: i32) -> (i32, i32, i32) {
    %c0_i32 = arith.constant 0 : i32
    %c0_i32_0 = arith.constant 0 : i32
    %c0_i32_1 = arith.constant 0 : i32
    return %arg0, %c0_i32, %c0_i32_0 : i32, i32, i32
  }
  func.func @transform_1(%arg0: i32) -> (i32, i32) {
    %c0_i32 = arith.constant 0 : i32
    %c0_i32_0 = arith.constant 0 : i32
    %c0_i32_1 = arith.constant 0 : i32
    return %c0_i32, %c0_i32_0 : i32, i32
  }
  func.func @transform_2(%arg0: i32) -> (i32, i32, i32) {
    %c0_i32 = arith.constant 0 : i32
    %c0_i32_0 = arith.constant 0 : i32
    %c0_i32_1 = arith.constant 0 : i32
    %c0_i32_2 = arith.constant 0 : i32
    return %c0_i32, %c0_i32_0, %c0_i32_1 : i32, i32, i32
  }
  func.func @transform_3(%arg0: i32) -> (i32, i32, i32) {
    %c0_i32 = arith.constant 0 : i32
    %c0_i32_0 = arith.constant 0 : i32
    %c0_i32_1 = arith.constant 0 : i32
    %c0_i32_2 = arith.constant 0 : i32
    return %c0_i32, %c0_i32_0, %c0_i32_1 : i32, i32, i32
  }
  func.func @transform_4(%arg0: i32) -> (i32, i32) {
    %c0_i32 = arith.constant 0 : i32
    %c0_i32_0 = arith.constant 0 : i32
    %c0_i32_1 = arith.constant 0 : i32
    return %c0_i32, %c0_i32_0 : i32, i32
  }
  func.func @transform_5(%arg0: i32) -> (i32, i32) {
    %c0_i32 = arith.constant 0 : i32
    %c0_i32_0 = arith.constant 0 : i32
    %c0_i32_1 = arith.constant 0 : i32
    return %c0_i32, %c0_i32_0 : i32, i32
  }
  func.func @transform_6(%arg0: i32) -> (i32, i32) {
    %c0_i32 = arith.constant 0 : i32
    %c0_i32_0 = arith.constant 0 : i32
    %c0_i32_1 = arith.constant 0 : i32
    return %c0_i32, %c0_i32_0 : i32, i32
  }
  func.func @transform_7(%arg0: i32) -> (i32, i32, i32) {
    %c0_i32 = arith.constant 0 : i32
    %c0_i32_0 = arith.constant 0 : i32
    %c0_i32_1 = arith.constant 0 : i32
    return %arg0, %c0_i32, %c0_i32_0 : i32, i32, i32
  }
}

</mosaic_0001>

<llo_original>
// kernel: tpu_custom_call.1
$region0: #{tpu_custom_call.1}
  #allocation0 [shape = 'u32[]', space=smem, size = 0x4, offset = 0x4, fixed_abs, tag = 'smem constant byte address 0x4 - core index']
  #allocation1 [shape = 'u32[144,128]{1,0:T(1,128)}', space=vmem, size = 0x12000, scoped, tag = 'internal scratch']
  #allocation2 [shape = 'f32[8,1056]{1,0:T(8,128)}', space=vmem, size = 0x9000, scoped, tag = 'scratch operand']
  %s0 = inlined_call_operand.vmem [shape: f32[1,4,1056], index: 0, kind: input, shape index: {}]
  %s1 = inlined_call_operand.vmem [shape: f32[8,4], index: 1, kind: input, shape index: {}]
  %s2 = inlined_call_operand.vmem [shape: f32[9,8,8], index: 2, kind: input, shape index: {}]
  %s3 = inlined_call_operand.vmem [shape: f32[9,8,8], index: 3, kind: input, shape index: {}]
  %s4 = inlined_call_operand.vmem [shape: f32[8,3], index: 4, kind: input, shape index: {}]
  %s5 = inlined_call_operand.vmem [shape: f32[1,1056], index: 5, kind: input, shape index: {}]
  %s6 = inlined_call_operand.vmem [shape: f32[8,4], index: 6, kind: input, shape index: {}]
  %s7 = inlined_call_operand.hbm [shape: f32[1,8,1056], index: 7, kind: output, shape index: {}]
  %s8 = sld [smem:[#allocation0]]
  $region38: #{tpu_custom_call.1} parent=0
    _
  %s10 = ssub.s32 1, %s8
  %s11 = scalar_select 0, %s10, %s8
  $region1: #{tpu_custom_call.1} parent=0
    #allocation3 [shape = 'u8[36864]{0}', space=vmem, size = 0x9000, scoped, tag = 'output window, operand 0, single buffered']
    #allocation4 [shape = 's32[1]{0}', space=sflag, size = 0x4, scoped, tag = 'scoped memory for tpu_custom_call.1']
    %12 = vsyncpa [#allocation4], 0
    // Predicated region
    $region2: #{tpu_custom_call.1} parent=1 // pred_check
      _
    $region3: #{tpu_custom_call.1} parent=1 // pred_check_branch
      %14 = sbr.rel (0) target = $region5
    $region4: #{tpu_custom_call.1} parent=1 // pred_region
      _
    $region5: #{tpu_custom_call.1} parent=1 // pred_fallthru
      _
    // Predicated region
    $region6: #{tpu_custom_call.1} parent=1 // pred_check
      _
    $region7: #{tpu_custom_call.1} parent=1 // pred_check_branch
      %16 = sbr.rel (0) target = $region9
    $region8: #{tpu_custom_call.1} parent=1 // pred_region
      _
    $region9: #{tpu_custom_call.1} parent=1 // pred_fallthru
      _
    // Predicated region
    $region10: #{tpu_custom_call.1} parent=1 // pred_check
      _
    $region11: #{tpu_custom_call.1} parent=1 // pred_check_branch
      %18 = sbr.rel (0) target = $region13
    $region12: #{tpu_custom_call.1} parent=1 // pred_region
      _
    $region13: #{tpu_custom_call.1} parent=1 // pred_fallthru
      _
    // Predicated region
    $region14: #{tpu_custom_call.1} parent=1 // pred_check
      _
    $region15: #{tpu_custom_call.1} parent=1 // pred_check_branch
      %20 = sbr.rel (0) target = $region17
    $region16: #{tpu_custom_call.1} parent=1 // pred_region
      _
    $region17: #{tpu_custom_call.1} parent=1 // pred_fallthru
      _
    // Predicated region
    $region18: #{tpu_custom_call.1} parent=1 // pred_check
      _
    $region19: #{tpu_custom_call.1} parent=1 // pred_check_branch
      %22 = sbr.rel (0) target = $region21
    $region20: #{tpu_custom_call.1} parent=1 // pred_region
      _
    $region21: #{tpu_custom_call.1} parent=1 // pred_fallthru
      _
    // Predicated region
    $region22: #{tpu_custom_call.1} parent=1 // pred_check
      _
    $region23: #{tpu_custom_call.1} parent=1 // pred_check_branch
      %24 = sbr.rel (0) target = $region25
    $region24: #{tpu_custom_call.1} parent=1 // pred_region
      _
    $region25: #{tpu_custom_call.1} parent=1 // pred_fallthru
      _
    // Predicated region
    $region26: #{tpu_custom_call.1} parent=1 // pred_check
      _
    $region27: #{tpu_custom_call.1} parent=1 // pred_check_branch
      %26 = sbr.rel (0) target = $region29
    $region28: #{tpu_custom_call.1} parent=1 // pred_region
      _
    $region29: #{tpu_custom_call.1} parent=1 // pred_fallthru
      _
    %v27 = vld [vmem:[%s0] sm:$0xff]
    %v28 = vld [vmem:[%s0 + $0x8] sm:$0xff]
    %v29 = vld [vmem:[%s0 + $0x10] sm:$0xff]
    %v30 = vld [vmem:[%s0 + $0x18] sm:$0xff]
    %v31 = vld [vmem:[%s0 + $0x20] sm:$0xf]
    %v32 = vld [vmem:[%s1] sm:$0xff]
    %v33 = vld [vmem:[%s4] sm:$0xff]
    %35 = vset.pattern.permute.xlu0 0
    %36 = vperm.xlu0 %35, %v33
    %v37 = vpop.permute.xlu0 %36
    %v44 = vcombine.high %v27, %v27
    %v45 = vcombine.high %v28, %v28
    %v46 = vcombine.high %v29, %v29
    %v47 = vcombine.high %v30, %v30
    %vm48 = vcmask 31744
    %v50 = vsel %vm48, %v32, 0
    %vm52 = vcmask 1043456
    %v53 = vsel %vm52, %v27, 0
    %v55 = vsel %vm52, %v44, 0
    %v57 = vsel %vm52, %v28, 0
    %v59 = vsel %vm52, %v45, 0
    %v61 = vsel %vm52, %v29, 0
    %v63 = vsel %vm52, %v46, 0
    %v65 = vsel %vm52, %v30, 0
    %v67 = vsel %vm52, %v47, 0
    %v69 = vsel %vm52, %v31, 0
    %71 = vmatprep.subr.mxu0 %v55
    %72 = vmatpush1.msra.mxu0 %v53
    %73 = vmatprep.subr.mxu0 0.0
    %74 = vmatpush1.msra.mxu0 0.0
    %75 = vmatprep.subr.mxu0 0.0
    %76 = vmatpush1.msra.mxu0 0.0
    %77 = vmatprep.subr.mxu0 0.0
    %78 = vmatpush1.msra.mxu0 0.0
    %79 = vmatprep.subr.mxu0 0.0
    %80 = vmatpush1.msra.mxu0 0.0
    %81 = vmatprep.subr.mxu0 0.0
    %82 = vmatpush1.msra.mxu0 0.0
    %83 = vmatprep.subr.mxu0 0.0
    %84 = vmatpush1.msra.mxu0 0.0
    %85 = vmatprep.subr.mxu0 0.0
    %86 = vmatpush1.msra.mxu0 0.0
    %87 = vmatprep.subr.mxu0 0.0
    %88 = vmatpush1.msra.mxu0 0.0
    %89 = vmatprep.subr.mxu0 0.0
    %90 = vmatpush1.msra.mxu0 0.0
    %91 = vmatprep.subr.mxu0 0.0
    %92 = vmatpush1.msra.mxu0 0.0
    %93 = vmatprep.subr.mxu0 0.0
    %94 = vmatpush1.msra.mxu0 0.0
    %95 = vmatprep.subr.mxu0 0.0
    %96 = vmatpush1.msra.mxu0 0.0
    %97 = vmatprep.subr.mxu0 0.0
    %98 = vmatpush1.msra.mxu0 0.0
    %99 = vmatprep.subr.mxu0 0.0
    %100 = vmatpush1.msra.mxu0 0.0
    %101 = vmatprep.subr.mxu0 0.0
    %102 = vmatpush1.msra.mxu0 0.0
    %103 = vmatprep.subr.mxu0 0.0
    %104 = vmatpush1.msra.mxu0 0.0
    %105 = vmatprep.subr.mxu0 0.0
    %106 = vmatpush1.msra.mxu0 0.0
    %107 = vmatprep.subr.mxu0 0.0
    %108 = vmatpush1.msra.mxu0 0.0
    %109 = vmatprep.subr.mxu0 0.0
    %110 = vmatpush1.msra.mxu0 0.0
    %111 = vmatprep.subr.mxu0 0.0
    %112 = vmatpush1.msra.mxu0 0.0
    %113 = vmatprep.subr.mxu0 0.0
    %114 = vmatpush1.msra.mxu0 0.0
    %115 = vmatprep.subr.mxu0 0.0
    %116 = vmatpush1.msra.mxu0 0.0
    %117 = vmatprep.subr.mxu0 0.0
    %118 = vmatpush1.msra.mxu0 0.0
    %119 = vmatprep.subr.mxu0 0.0
    %120 = vmatpush1.msra.mxu0 0.0
    %121 = vmatprep.subr.mxu0 0.0
    %122 = vmatpush1.msra.mxu0 0.0
    %123 = vmatprep.subr.mxu0 0.0
    %124 = vmatpush1.msra.mxu0 0.0
    %125 = vmatprep.subr.mxu0 0.0
    %126 = vmatpush1.msra.mxu0 0.0
    %127 = vmatprep.subr.mxu0 0.0
    %128 = vmatpush1.msra.mxu0 0.0
    %129 = vmatprep.subr.mxu0 0.0
    %130 = vmatpush1.msra.mxu0 0.0
    %131 = vmatprep.subr.mxu0 0.0
    %132 = vmatpush1.msra.mxu0 0.0
    %133 = vmatprep.subr.mxu0 0.0
    %134 = vmatpush1.msra.mxu0 0.0
    %135 = vmatprep.mubr.f32.mxu0 0.0
    %136 = vmatmul.mubr.f32.gmra.mrb[0].mxu0 %v50
    %v137 = vpop.f32.mrb[0].mxu0
    %v138 = vadd.f32 %v37, %v137
    %v139 = vpop.f32.mrb[0].mxu0
    %v140 = vadd.f32 %v37, %v139
    %141 = vdwg.mxu0
    %142 = vmatprep.subr.mxu0 %v59
    %143 = vmatpush1.msra.mxu0 %v57
    %144 = vmatprep.subr.mxu0 0.0
    %145 = vmatpush1.msra.mxu0 0.0
    %146 = vmatprep.subr.mxu0 0.0
    %147 = vmatpush1.msra.mxu0 0.0
    %148 = vmatprep.subr.mxu0 0.0
    %149 = vmatpush1.msra.mxu0 0.0
    %150 = vmatprep.subr.mxu0 0.0
    %151 = vmatpush1.msra.mxu0 0.0
    %152 = vmatprep.subr.mxu0 0.0
    %153 = vmatpush1.msra.mxu0 0.0
    %154 = vmatprep.subr.mxu0 0.0
    %155 = vmatpush1.msra.mxu0 0.0
    %156 = vmatprep.subr.mxu0 0.0
    %157 = vmatpush1.msra.mxu0 0.0
    %158 = vmatprep.subr.mxu0 0.0
    %159 = vmatpush1.msra.mxu0 0.0
    %160 = vmatprep.subr.mxu0 0.0
    %161 = vmatpush1.msra.mxu0 0.0
    %162 = vmatprep.subr.mxu0 0.0
    %163 = vmatpush1.msra.mxu0 0.0
    %164 = vmatprep.subr.mxu0 0.0
    %165 = vmatpush1.msra.mxu0 0.0
    %166 = vmatprep.subr.mxu0 0.0
    %167 = vmatpush1.msra.mxu0 0.0
    %168 = vmatprep.subr.mxu0 0.0
    %169 = vmatpush1.msra.mxu0 0.0
    %170 = vmatprep.subr.mxu0 0.0
    %171 = vmatpush1.msra.mxu0 0.0
    %172 = vmatprep.subr.mxu0 0.0
    %173 = vmatpush1.msra.mxu0 0.0
    %174 = vmatprep.subr.mxu0 0.0
    %175 = vmatpush1.msra.mxu0 0.0
    %176 = vmatprep.subr.mxu0 0.0
    %177 = vmatpush1.msra.mxu0 0.0
    %178 = vmatprep.subr.mxu0 0.0
    %179 = vmatpush1.msra.mxu0 0.0
    %180 = vmatprep.subr.mxu0 0.0
    %181 = vmatpush1.msra.mxu0 0.0
    %182 = vmatprep.subr.mxu0 0.0
    %183 = vmatpush1.msra.mxu0 0.0
    %184 = vmatprep.subr.mxu0 0.0
    %185 = vmatpush1.msra.mxu0 0.0
    %186 = vmatprep.subr.mxu0 0.0
    %187 = vmatpush1.msra.mxu0 0.0
    %188 = vmatprep.subr.mxu0 0.0
    %189 = vmatpush1.msra.mxu0 0.0
    %190 = vmatprep.subr.mxu0 0.0
    %191 = vmatpush1.msra.mxu0 0.0
    %192 = vmatprep.subr.mxu0 0.0
    %193 = vmatpush1.msra.mxu0 0.0
    %194 = vmatprep.subr.mxu0 0.0
    %195 = vmatpush1.msra.mxu0 0.0
    %196 = vmatprep.subr.mxu0 0.0
    %197 = vmatpush1.msra.mxu0 0.0
    %198 = vmatprep.subr.mxu0 0.0
    %199 = vmatpush1.msra.mxu0 0.0
    %200 = vmatprep.subr.mxu0 0.0
    %201 = vmatpush1.msra.mxu0 0.0
    %202 = vmatprep.subr.mxu0 0.0
    %203 = vmatpush1.msra.mxu0 0.0
    %204 = vmatprep.subr.mxu0 0.0
    %205 = vmatpush1.msra.mxu0 0.0
    %206 = vmatprep.mubr.f32.mxu0 0.0
    %207 = vmatmul.mubr.f32.gmra.mrb[0].mxu0 %v50
    %v208 = vpop.f32.mrb[0].mxu0
    %v209 = vadd.f32 %v37, %v208
    %v210 = vpop.f32.mrb[0].mxu0
    %v211 = vadd.f32 %v37, %v210
    %212 = vdwg.mxu0
    %213 = vmatprep.subr.mxu0 %v63
    %214 = vmatpush1.msra.mxu0 %v61
    %215 = vmatprep.subr.mxu0 0.0
    %216 = vmatpush1.msra.mxu0 0.0
    %217 = vmatprep.subr.mxu0 0.0
    %218 = vmatpush1.msra.mxu0 0.0
    %219 = vmatprep.subr.mxu0 0.0
    %220 = vmatpush1.msra.mxu0 0.0
    %221 = vmatprep.subr.mxu0 0.0
    %222 = vmatpush1.msra.mxu0 0.0
    %223 = vmatprep.subr.mxu0 0.0
    %224 = vmatpush1.msra.mxu0 0.0
    %225 = vmatprep.subr.mxu0 0.0
    %226 = vmatpush1.msra.mxu0 0.0
    %227 = vmatprep.subr.mxu0 0.0
    %228 = vmatpush1.msra.mxu0 0.0
    %229 = vmatprep.subr.mxu0 0.0
    %230 = vmatpush1.msra.mxu0 0.0
    %231 = vmatprep.subr.mxu0 0.0
    %232 = vmatpush1.msra.mxu0 0.0
    %233 = vmatprep.subr.mxu0 0.0
    %234 = vmatpush1.msra.mxu0 0.0
    %235 = vmatprep.subr.mxu0 0.0
    %236 = vmatpush1.msra.mxu0 0.0
    %237 = vmatprep.subr.mxu0 0.0
    %238 = vmatpush1.msra.mxu0 0.0
    %239 = vmatprep.subr.mxu0 0.0
    %240 = vmatpush1.msra.mxu0 0.0
    %241 = vmatprep.subr.mxu0 0.0
    %242 = vmatpush1.msra.mxu0 0.0
    %243 = vmatprep.subr.mxu0 0.0
    %244 = vmatpush1.msra.mxu0 0.0
    %245 = vmatprep.subr.mxu0 0.0
    %246 = vmatpush1.msra.mxu0 0.0
    %247 = vmatprep.subr.mxu0 0.0
    %248 = vmatpush1.msra.mxu0 0.0
    %249 = vmatprep.subr.mxu0 0.0
    %250 = vmatpush1.msra.mxu0 0.0
    %251 = vmatprep.subr.mxu0 0.0
    %252 = vmatpush1.msra.mxu0 0.0
    %253 = vmatprep.subr.mxu0 0.0
    %254 = vmatpush1.msra.mxu0 0.0
    %255 = vmatprep.subr.mxu0 0.0
    %256 = vmatpush1.msra.mxu0 0.0
    %257 = vmatprep.subr.mxu0 0.0
    %258 = vmatpush1.msra.mxu0 0.0
    %259 = vmatprep.subr.mxu0 0.0
    %260 = vmatpush1.msra.mxu0 0.0
    %261 = vmatprep.subr.mxu0 0.0
    %262 = vmatpush1.msra.mxu0 0.0
    %263 = vmatprep.subr.mxu0 0.0
    %264 = vmatpush1.msra.mxu0 0.0
    %265 = vmatprep.subr.mxu0 0.0
    %266 = vmatpush1.msra.mxu0 0.0
    %267 = vmatprep.subr.mxu0 0.0
    %268 = vmatpush1.msra.mxu0 0.0
    %269 = vmatprep.subr.mxu0 0.0
    %270 = vmatpush1.msra.mxu0 0.0
    %271 = vmatprep.subr.mxu0 0.0
    %272 = vmatpush1.msra.mxu0 0.0
    %273 = vmatprep.subr.mxu0 0.0
    %274 = vmatpush1.msra.mxu0 0.0
    %275 = vmatprep.subr.mxu0 0.0
    %276 = vmatpush1.msra.mxu0 0.0
    %277 = vmatprep.mubr.f32.mxu0 0.0
    %278 = vmatmul.mubr.f32.gmra.mrb[0].mxu0 %v50
    %v279 = vpop.f32.mrb[0].mxu0
    %v280 = vadd.f32 %v37, %v279
    %v281 = vpop.f32.mrb[0].mxu0
    %v282 = vadd.f32 %v37, %v281
    %283 = vdwg.mxu0
    %284 = vmatprep.subr.mxu0 %v67
    %285 = vmatpush1.msra.mxu0 %v65
    %286 = vmatprep.subr.mxu0 0.0
    %287 = vmatpush1.msra.mxu0 0.0
    %288 = vmatprep.subr.mxu0 0.0
    %289 = vmatpush1.msra.mxu0 0.0
    %290 = vmatprep.subr.mxu0 0.0
    %291 = vmatpush1.msra.mxu0 0.0
    %292 = vmatprep.subr.mxu0 0.0
    %293 = vmatpush1.msra.mxu0 0.0
    %294 = vmatprep.subr.mxu0 0.0
    %295 = vmatpush1.msra.mxu0 0.0
    %296 = vmatprep.subr.mxu0 0.0
    %297 = vmatpush1.msra.mxu0 0.0
    %298 = vmatprep.subr.mxu0 0.0
    %299 = vmatpush1.msra.mxu0 0.0
    %300 = vmatprep.subr.mxu0 0.0
    %301 = vmatpush1.msra.mxu0 0.0
    %302 = vmatprep.subr.mxu0 0.0
    %303 = vmatpush1.msra.mxu0 0.0
    %304 = vmatprep.subr.mxu0 0.0
    %305 = vmatpush1.msra.mxu0 0.0
    %306 = vmatprep.subr.mxu0 0.0
    %307 = vmatpush1.msra.mxu0 0.0
    %308 = vmatprep.subr.mxu0 0.0
    %309 = vmatpush1.msra.mxu0 0.0
    %310 = vmatprep.subr.mxu0 0.0
    %311 = vmatpush1.msra.mxu0 0.0
    %312 = vmatprep.subr.mxu0 0.0
    %313 = vmatpush1.msra.mxu0 0.0
    %314 = vmatprep.subr.mxu0 0.0
    %315 = vmatpush1.msra.mxu0 0.0
    %316 = vmatprep.subr.mxu0 0.0
    %317 = vmatpush1.msra.mxu0 0.0
    %318 = vmatprep.subr.mxu0 0.0
    %319 = vmatpush1.msra.mxu0 0.0
    %320 = vmatprep.subr.mxu0 0.0
    %321 = vmatpush1.msra.mxu0 0.0
    %322 = vmatprep.subr.mxu0 0.0
    %323 = vmatpush1.msra.mxu0 0.0
    %324 = vmatprep.subr.mxu0 0.0
    %325 = vmatpush1.msra.mxu0 0.0
    %326 = vmatprep.subr.mxu0 0.0
    %327 = vmatpush1.msra.mxu0 0.0
    %328 = vmatprep.subr.mxu0 0.0
    %329 = vmatpush1.msra.mxu0 0.0
    %330 = vmatprep.subr.mxu0 0.0
    %331 = vmatpush1.msra.mxu0 0.0
    %332 = vmatprep.subr.mxu0 0.0
    %333 = vmatpush1.msra.mxu0 0.0
    %334 = vmatprep.subr.mxu0 0.0
    %335 = vmatpush1.msra.mxu0 0.0
    %336 = vmatprep.subr.mxu0 0.0
    %337 = vmatpush1.msra.mxu0 0.0
    %338 = vmatprep.subr.mxu0 0.0
    %339 = vmatpush1.msra.mxu0 0.0
    %340 = vmatprep.subr.mxu0 0.0
    %341 = vmatpush1.msra.mxu0 0.0
    %342 = vmatprep.subr.mxu0 0.0
    %343 = vmatpush1.msra.mxu0 0.0
    %344 = vmatprep.subr.mxu0 0.0
    %345 = vmatpush1.msra.mxu0 0.0
    %346 = vmatprep.subr.mxu0 0.0
    %347 = vmatpush1.msra.mxu0 0.0
    %348 = vmatprep.mubr.f32.mxu0 0.0
    %349 = vmatmul.mubr.f32.gmra.mrb[0].mxu0 %v50
    %v350 = vpop.f32.mrb[0].mxu0
    %v351 = vadd.f32 %v37, %v350
    %v352 = vpop.f32.mrb[0].mxu0
    %v353 = vadd.f32 %v37, %v352
    %354 = vdwg.mxu0
    %355 = vmatprep.subr.mxu0 0.0
    %356 = vmatpush1.msra.mxu0 %v69
    %357 = vmatprep.subr.mxu0 0.0
    %358 = vmatpush1.msra.mxu0 0.0
    %359 = vmatprep.subr.mxu0 0.0
    %360 = vmatpush1.msra.mxu0 0.0
    %361 = vmatprep.subr.mxu0 0.0
    %362 = vmatpush1.msra.mxu0 0.0
    %363 = vmatprep.subr.mxu0 0.0
    %364 = vmatpush1.msra.mxu0 0.0
    %365 = vmatprep.subr.mxu0 0.0
    %366 = vmatpush1.msra.mxu0 0.0
    %367 = vmatprep.subr.mxu0 0.0
    %368 = vmatpush1.msra.mxu0 0.0
    %369 = vmatprep.subr.mxu0 0.0
    %370 = vmatpush1.msra.mxu0 0.0
    %371 = vmatprep.subr.mxu0 0.0
    %372 = vmatpush1.msra.mxu0 0.0
    %373 = vmatprep.subr.mxu0 0.0
    %374 = vmatpush1.msra.mxu0 0.0
    %375 = vmatprep.subr.mxu0 0.0
    %376 = vmatpush1.msra.mxu0 0.0
    %377 = vmatprep.subr.mxu0 0.0
    %378 = vmatpush1.msra.mxu0 0.0
    %379 = vmatprep.subr.mxu0 0.0
    %380 = vmatpush1.msra.mxu0 0.0
    %381 = vmatprep.subr.mxu0 0.0
    %382 = vmatpush1.msra.mxu0 0.0
    %383 = vmatprep.subr.mxu0 0.0
    %384 = vmatpush1.msra.mxu0 0.0
    %385 = vmatprep.subr.mxu0 0.0
    %386 = vmatpush1.msra.mxu0 0.0
    %387 = vmatprep.subr.mxu0 0.0
    %388 = vmatpush1.msra.mxu0 0.0
    %389 = vmatprep.subr.mxu0 0.0
    %390 = vmatpush1.msra.mxu0 0.0
    %391 = vmatprep.subr.mxu0 0.0
    %392 = vmatpush1.msra.mxu0 0.0
    %393 = vmatprep.subr.mxu0 0.0
    %394 = vmatpush1.msra.mxu0 0.0
    %395 = vmatprep.subr.mxu0 0.0
    %396 = vmatpush1.msra.mxu0 0.0
    %397 = vmatprep.subr.mxu0 0.0
    %398 = vmatpush1.msra.mxu0 0.0
    %399 = vmatprep.subr.mxu0 0.0
    %400 = vmatpush1.msra.mxu0 0.0
    %401 = vmatprep.subr.mxu0 0.0
    %402 = vmatpush1.msra.mxu0 0.0
    %403 = vmatprep.subr.mxu0 0.0
    %404 = vmatpush1.msra.mxu0 0.0
    %405 = vmatprep.subr.mxu0 0.0
    %406 = vmatpush1.msra.mxu0 0.0
    %407 = vmatprep.subr.mxu0 0.0
    %408 = vmatpush1.msra.mxu0 0.0
    %409 = vmatprep.subr.mxu0 0.0
    %410 = vmatpush1.msra.mxu0 0.0
    %411 = vmatprep.subr.mxu0 0.0
    %412 = vmatpush1.msra.mxu0 0.0
    %413 = vmatprep.subr.mxu0 0.0
    %414 = vmatpush1.msra.mxu0 0.0
    %415 = vmatprep.subr.mxu0 0.0
    %416 = vmatpush1.msra.mxu0 0.0
    %417 = vmatprep.subr.mxu0 0.0
    %418 = vmatpush1.msra.mxu0 0.0
    %419 = vmatprep.mubr.f32.mxu0 0.0
    %420 = vmatmul.mubr.f32.gmra.mrb[0].mxu0 %v50
    %v421 = vpop.f32.mrb[0].mxu0
    %v422 = vadd.f32 %v37, %v421
    %v423 = vpop.f32.mrb[0].mxu0
    %424 = vdwg.mxu0
    %v425 = vmul.f32 %v138, 0.2
    %v426 = vmul.f32 %v140, 0.2
    %v427 = vmul.f32 %v209, 0.2
    %v428 = vmul.f32 %v211, 0.2
    %v429 = vmul.f32 %v280, 0.2
    %v430 = vmul.f32 %v282, 0.2
    %v431 = vmul.f32 %v351, 0.2
    %v432 = vmul.f32 %v353, 0.2
    %v433 = vmul.f32 %v422, 0.2
    %v434 = vmax.f32 %v138, %v425
    %v435 = vmax.f32 %v140, %v426
    %v436 = vmax.f32 %v209, %v427
    %v437 = vmax.f32 %v211, %v428
    %v438 = vmax.f32 %v280, %v429
    %v439 = vmax.f32 %v282, %v430
    %v440 = vmax.f32 %v351, %v431
    %v441 = vmax.f32 %v353, %v432
    %v442 = vmax.f32 %v422, %v433
    %v443 = vld [vmem:[%s5] sm:$0xff]
    %v444 = vld [vmem:[%s5 + $0x8] sm:$0x1]
    %v447 = vlaneseq
    %v448 = vshrl.u32 %v447, 7
    %v449 = vsub.s32 0, %v448
    %v450 = vrot.slane %v443, %v449
    %v451 = vlaneseq
    %v452 = vshrl.u32 %v451, 7
    %v453 = vsub.s32 1, %v452
    %v454 = vrot.slane %v443, %v453
    %v455 = vlaneseq
    %v456 = vshrl.u32 %v455, 7
    %v457 = vsub.s32 2, %v456
    %v458 = vrot.slane %v443, %v457
    %v459 = vlaneseq
    %v460 = vshrl.u32 %v459, 7
    %v461 = vsub.s32 3, %v460
    %v462 = vrot.slane %v443, %v461
    %v463 = vlaneseq
    %v464 = vshrl.u32 %v463, 7
    %v465 = vsub.s32 4, %v464
    %v466 = vrot.slane %v443, %v465
    %v467 = vlaneseq
    %v468 = vshrl.u32 %v467, 7
    %v469 = vsub.s32 5, %v468
    %v470 = vrot.slane %v443, %v469
    %v471 = vlaneseq
    %v472 = vshrl.u32 %v471, 7
    %v473 = vsub.s32 6, %v472
    %v474 = vrot.slane %v443, %v473
    %v475 = vlaneseq
    %v476 = vshrl.u32 %v475, 7
    %v477 = vsub.s32 7, %v476
    %v478 = vrot.slane %v443, %v477
    %v479 = vlaneseq
    %v480 = vshrl.u32 %v479, 7
    %v481 = vsub.s32 0, %v480
    %v482 = vrot.slane %v444, %v481
    %v492 = vmul.f32 %v434, %v450
    %v493 = vmul.f32 %v435, %v454
    %v494 = vmul.f32 %v436, %v458
    %v495 = vmul.f32 %v437, %v462
    %v496 = vmul.f32 %v438, %v466
    %v497 = vmul.f32 %v439, %v470
    %v498 = vmul.f32 %v440, %v474
    %v499 = vmul.f32 %v441, %v478
    %v500 = vmul.f32 %v442, %v482
    %501 = vst [vmem:[#allocation2] sm:$0xff] %v492
    %502 = vst [vmem:[#allocation2 + $0x8] sm:$0xff] %v493
    %503 = vst [vmem:[#allocation2 + $0x10] sm:$0xff] %v494
    %504 = vst [vmem:[#allocation2 + $0x18] sm:$0xff] %v495
    %505 = vst [vmem:[#allocation2 + $0x20] sm:$0xff] %v496
    %506 = vst [vmem:[#allocation2 + $0x28] sm:$0xff] %v497
    %507 = vst [vmem:[#allocation2 + $0x30] sm:$0xff] %v498
    %508 = vst [vmem:[#allocation2 + $0x38] sm:$0xff] %v499
    %vm509 = vcmask 261120
    %510 = vst.msk [vmem:[#allocation2 + $0x40] sm:$0xff] %vm509, %v500
    %v511 = vld [vmem:[%s2] sm:$0xff]
    %v512 = vld [vmem:[#allocation2] sm:$0xff]
    %v513 = vld [vmem:[#allocation2 + $0x8] sm:$0xff]
    %v514 = vld [vmem:[#allocation2 + $0x10] sm:$0xff]
    %v515 = vld [vmem:[#allocation2 + $0x18] sm:$0xff]
    %v516 = vld [vmem:[#allocation2 + $0x20] sm:$0xff]
    %v517 = vld [vmem:[#allocation2 + $0x28] sm:$0xff]
    %v518 = vld [vmem:[#allocation2 + $0x30] sm:$0xff]
    %v519 = vld [vmem:[#allocation2 + $0x38] sm:$0xff]
    %s520 = scalar_lea.vmem %s2, 8
    %v521 = vld [vmem:[%s520] sm:$0xff]
    %530 = vrot.lane.b32.xlu0 %v512, 127
    %v531 = vpop.permute.xlu0 %530
    %532 = vrot.lane.b32.xlu0 %v513, 127
    %v533 = vpop.permute.xlu0 %532
    %534 = vrot.lane.b32.xlu0 %v514, 127
    %v535 = vpop.permute.xlu0 %534
    %536 = vrot.lane.b32.xlu0 %v515, 127
    %v537 = vpop.permute.xlu0 %536
    %538 = vrot.lane.b32.xlu0 %v516, 127
    %v539 = vpop.permute.xlu0 %538
    %540 = vrot.lane.b32.xlu0 %v517, 127
    %v541 = vpop.permute.xlu0 %540
    %542 = vrot.lane.b32.xlu0 %v518, 127
    %v543 = vpop.permute.xlu0 %542
    %544 = vrot.lane.b32.xlu0 %v519, 127
    %v545 = vpop.permute.xlu0 %544
    %vm546 = vcmask 1039360
    %v547 = vsel %vm546, %v531, %v533
    %v548 = vsel %vm546, %v533, %v535
    %v549 = vsel %vm546, %v535, %v537
    %v550 = vsel %vm546, %v537, %v539
    %v551 = vsel %vm546, %v539, %v541
    %v552 = vsel %vm546, %v541, %v543
    %v553 = vsel %vm546, %v543, %v545
    %vm562 = vcmask 64512
    %v564 = vsel %vm562, %v521, 0
    %566 = vmatprep.subr.mxu0 %v548
    %567 = vmatpush1.msra.mxu0 %v547
    %568 = vmatprep.subr.mxu0 0.0
    %569 = vmatpush1.msra.mxu0 0.0
    %570 = vmatprep.subr.mxu0 0.0
    %571 = vmatpush1.msra.mxu0 0.0
    %572 = vmatprep.subr.mxu0 0.0
    %573 = vmatpush1.msra.mxu0 0.0
    %574 = vmatprep.subr.mxu0 0.0
    %575 = vmatpush1.msra.mxu0 0.0
    %576 = vmatprep.subr.mxu0 0.0
    %577 = vmatpush1.msra.mxu0 0.0
    %578 = vmatprep.subr.mxu0 0.0
    %579 = vmatpush1.msra.mxu0 0.0
    %580 = vmatprep.subr.mxu0 0.0
    %581 = vmatpush1.msra.mxu0 0.0
    %582 = vmatprep.subr.mxu0 0.0
    %583 = vmatpush1.msra.mxu0 0.0
    %584 = vmatprep.subr.mxu0 0.0
    %585 = vmatpush1.msra.mxu0 0.0
    %586 = vmatprep.subr.mxu0 0.0
    %587 = vmatpush1.msra.mxu0 0.0
    %588 = vmatprep.subr.mxu0 0.0
    %589 = vmatpush1.msra.mxu0 0.0
    %590 = vmatprep.subr.mxu0 0.0
    %591 = vmatpush1.msra.mxu0 0.0
    %592 = vmatprep.subr.mxu0 0.0
    %593 = vmatpush1.msra.mxu0 0.0
    %594 = vmatprep.subr.mxu0 0.0
    %595 = vmatpush1.msra.mxu0 0.0
    %596 = vmatprep.subr.mxu0 0.0
    %597 = vmatpush1.msra.mxu0 0.0
    %598 = vmatprep.subr.mxu0 0.0
    %599 = vmatpush1.msra.mxu0 0.0
    %600 = vmatprep.subr.mxu0 0.0
    %601 = vmatpush1.msra.mxu0 0.0
    %602 = vmatprep.subr.mxu0 0.0
    %603 = vmatpush1.msra.mxu0 0.0
    %604 = vmatprep.subr.mxu0 0.0
    %605 = vmatpush1.msra.mxu0 0.0
    %606 = vmatprep.subr.mxu0 0.0
    %607 = vmatpush1.msra.mxu0 0.0
    %608 = vmatprep.subr.mxu0 0.0
    %609 = vmatpush1.msra.mxu0 0.0
    %610 = vmatprep.subr.mxu0 0.0
    %611 = vmatpush1.msra.mxu0 0.0
    %612 = vmatprep.subr.mxu0 0.0
    %613 = vmatpush1.msra.mxu0 0.0
    %614 = vmatprep.subr.mxu0 0.0
    %615 = vmatpush1.msra.mxu0 0.0
    %616 = vmatprep.subr.mxu0 0.0
    %617 = vmatpush1.msra.mxu0 0.0
    %618 = vmatprep.subr.mxu0 0.0
    %619 = vmatpush1.msra.mxu0 0.0
    %620 = vmatprep.subr.mxu0 0.0
    %621 = vmatpush1.msra.mxu0 0.0
    %622 = vmatprep.subr.mxu0 0.0
    %623 = vmatpush1.msra.mxu0 0.0
    %624 = vmatprep.subr.mxu0 0.0
    %625 = vmatpush1.msra.mxu0 0.0
    %626 = vmatprep.subr.mxu0 0.0
    %627 = vmatpush1.msra.mxu0 0.0
    %628 = vmatprep.subr.mxu0 0.0
    %629 = vmatpush1.msra.mxu0 0.0
    %630 = vmatprep.mubr.f32.mxu0 0.0
    %631 = vmatmul.mubr.f32.gmra.mrb[0].mxu0 %v564
    %v632 = vpop.f32.mrb[0].mxu0
    %v633 = vadd.f32 0.0, %v632
    %v634 = vpop.f32.mrb[0].mxu0
    %v635 = vadd.f32 0.0, %v634
    %636 = vdwg.mxu0
    %637 = vmatprep.subr.mxu0 %v550
    %638 = vmatpush1.msra.mxu0 %v549
    %639 = vmatprep.subr.mxu0 0.0
    %640 = vmatpush1.msra.mxu0 0.0
    %641 = vmatprep.subr.mxu0 0.0
    %642 = vmatpush1.msra.mxu0 0.0
    %643 = vmatprep.subr.mxu0 0.0
    %644 = vmatpush1.msra.mxu0 0.0
    %645 = vmatprep.subr.mxu0 0.0
    %646 = vmatpush1.msra.mxu0 0.0
    %647 = vmatprep.subr.mxu0 0.0
    %648 = vmatpush1.msra.mxu0 0.0
    %649 = vmatprep.subr.mxu0 0.0
    %650 = vmatpush1.msra.mxu0 0.0
    %651 = vmatprep.subr.mxu0 0.0
    %652 = vmatpush1.msra.mxu0 0.0
    %653 = vmatprep.subr.mxu0 0.0
    %654 = vmatpush1.msra.mxu0 0.0
    %655 = vmatprep.subr.mxu0 0.0
    %656 = vmatpush1.msra.mxu0 0.0
    %657 = vmatprep.subr.mxu0 0.0
    %658 = vmatpush1.msra.mxu0 0.0
    %659 = vmatprep.subr.mxu0 0.0
    %660 = vmatpush1.msra.mxu0 0.0
    %661 = vmatprep.subr.mxu0 0.0
    %662 = vmatpush1.msra.mxu0 0.0
    %663 = vmatprep.subr.mxu0 0.0
    %664 = vmatpush1.msra.mxu0 0.0
    %665 = vmatprep.subr.mxu0 0.0
    %666 = vmatpush1.msra.mxu0 0.0
    %667 = vmatprep.subr.mxu0 0.0
    %668 = vmatpush1.msra.mxu0 0.0
    %669 = vmatprep.subr.mxu0 0.0
    %670 = vmatpush1.msra.mxu0 0.0
    %671 = vmatprep.subr.mxu0 0.0
    %672 = vmatpush1.msra.mxu0 0.0
    %673 = vmatprep.subr.mxu0 0.0
    %674 = vmatpush1.msra.mxu0 0.0
    %675 = vmatprep.subr.mxu0 0.0
    %676 = vmatpush1.msra.mxu0 0.0
    %677 = vmatprep.subr.mxu0 0.0
    %678 = vmatpush1.msra.mxu0 0.0
    %679 = vmatprep.subr.mxu0 0.0
    %680 = vmatpush1.msra.mxu0 0.0
    %681 = vmatprep.subr.mxu0 0.0
    %682 = vmatpush1.msra.mxu0 0.0
    %683 = vmatprep.subr.mxu0 0.0
    %684 = vmatpush1.msra.mxu0 0.0
    %685 = vmatprep.subr.mxu0 0.0
    %686 = vmatpush1.msra.mxu0 0.0
    %687 = vmatprep.subr.mxu0 0.0
    %688 = vmatpush1.msra.mxu0 0.0
    %689 = vmatprep.subr.mxu0 0.0
    %690 = vmatpush1.msra.mxu0 0.0
    %691 = vmatprep.subr.mxu0 0.0
    %692 = vmatpush1.msra.mxu0 0.0
    %693 = vmatprep.subr.mxu0 0.0
    %694 = vmatpush1.msra.mxu0 0.0
    %695 = vmatprep.subr.mxu0 0.0
    %696 = vmatpush1.msra.mxu0 0.0
    %697 = vmatprep.subr.mxu0 0.0
    %698 = vmatpush1.msra.mxu0 0.0
    %699 = vmatprep.subr.mxu0 0.0
    %700 = vmatpush1.msra.mxu0 0.0
    %701 = vmatprep.mubr.f32.mxu0 0.0
    %702 = vmatmul.mubr.f32.gmra.mrb[0].mxu0 %v564
    %v703 = vpop.f32.mrb[0].mxu0
    %v704 = vadd.f32 0.0, %v703
    %v705 = vpop.f32.mrb[0].mxu0
    %v706 = vadd.f32 0.0, %v705
    %707 = vdwg.mxu0
    %708 = vmatprep.subr.mxu0 %v552
    %709 = vmatpush1.msra.mxu0 %v551
    %710 = vmatprep.subr.mxu0 0.0
    %711 = vmatpush1.msra.mxu0 0.0
    %712 = vmatprep.subr.mxu0 0.0
    %713 = vmatpush1.msra.mxu0 0.0
    %714 = vmatprep.subr.mxu0 0.0
    %715 = vmatpush1.msra.mxu0 0.0
    %716 = vmatprep.subr.mxu0 0.0
    %717 = vmatpush1.msra.mxu0 0.0
    %718 = vmatprep.subr.mxu0 0.0
    %719 = vmatpush1.msra.mxu0 0.0
    %720 = vmatprep.subr.mxu0 0.0
    %721 = vmatpush1.msra.mxu0 0.0
    %722 = vmatprep.subr.mxu0 0.0
    %723 = vmatpush1.msra.mxu0 0.0
    %724 = vmatprep.subr.mxu0 0.0
    %725 = vmatpush1.msra.mxu0 0.0
    %726 = vmatprep.subr.mxu0 0.0
    %727 = vmatpush1.msra.mxu0 0.0
    %728 = vmatprep.subr.mxu0 0.0
    %729 = vmatpush1.msra.mxu0 0.0
    %730 = vmatprep.subr.mxu0 0.0
    %731 = vmatpush1.msra.mxu0 0.0
    %732 = vmatprep.subr.mxu0 0.0
    %733 = vmatpush1.msra.mxu0 0.0
    %734 = vmatprep.subr.mxu0 0.0
    %735 = vmatpush1.msra.mxu0 0.0
    %736 = vmatprep.subr.mxu0 0.0
    %737 = vmatpush1.msra.mxu0 0.0
    %738 = vmatprep.subr.mxu0 0.0
    %739 = vmatpush1.msra.mxu0 0.0
    %740 = vmatprep.subr.mxu0 0.0
    %741 = vmatpush1.msra.mxu0 0.0
    %742 = vmatprep.subr.mxu0 0.0
    %743 = vmatpush1.msra.mxu0 0.0
    %744 = vmatprep.subr.mxu0 0.0
    %745 = vmatpush1.msra.mxu0 0.0
    %746 = vmatprep.subr.mxu0 0.0
    %747 = vmatpush1.msra.mxu0 0.0
    %748 = vmatprep.subr.mxu0 0.0
    %749 = vmatpush1.msra.mxu0 0.0
    %750 = vmatprep.subr.mxu0 0.0
    %751 = vmatpush1.msra.mxu0 0.0
    %752 = vmatprep.subr.mxu0 0.0
    %753 = vmatpush1.msra.mxu0 0.0
    %754 = vmatprep.subr.mxu0 0.0
    %755 = vmatpush1.msra.mxu0 0.0
    %756 = vmatprep.subr.mxu0 0.0
    %757 = vmatpush1.msra.mxu0 0.0
    %758 = vmatprep.subr.mxu0 0.0
    %759 = vmatpush1.msra.mxu0 0.0
    %760 = vmatprep.subr.mxu0 0.0
    %761 = vmatpush1.msra.mxu0 0.0
    %762 = vmatprep.subr.mxu0 0.0
    %763 = vmatpush1.msra.mxu0 0.0
    %764 = vmatprep.subr.mxu0 0.0
    %765 = vmatpush1.msra.mxu0 0.0
    %766 = vmatprep.subr.mxu0 0.0
    %767 = vmatpush1.msra.mxu0 0.0
    %768 = vmatprep.subr.mxu0 0.0
    %769 = vmatpush1.msra.mxu0 0.0
    %770 = vmatprep.subr.mxu0 0.0
    %771 = vmatpush1.msra.mxu0 0.0
    %772 = vmatprep.mubr.f32.mxu0 0.0
    %773 = vmatmul.mubr.f32.gmra.mrb[0].mxu0 %v564
    %v774 = vpop.f32.mrb[0].mxu0
    %v775 = vadd.f32 0.0, %v774
    %v776 = vpop.f32.mrb[0].mxu0
    %v777 = vadd.f32 0.0, %v776
    %778 = vdwg.mxu0
    %779 = vmatprep.subr.mxu0 %v545
    %780 = vmatpush1.msra.mxu0 %v553
    %781 = vmatprep.subr.mxu0 0.0
    %782 = vmatpush1.msra.mxu0 0.0
    %783 = vmatprep.subr.mxu0 0.0
    %784 = vmatpush1.msra.mxu0 0.0
    %785 = vmatprep.subr.mxu0 0.0
    %786 = vmatpush1.msra.mxu0 0.0
    %787 = vmatprep.subr.mxu0 0.0
    %788 = vmatpush1.msra.mxu0 0.0
    %789 = vmatprep.subr.mxu0 0.0
    %790 = vmatpush1.msra.mxu0 0.0
    %791 = vmatprep.subr.mxu0 0.0
    %792 = vmatpush1.msra.mxu0 0.0
    %793 = vmatprep.subr.mxu0 0.0
    %794 = vmatpush1.msra.mxu0 0.0
    %795 = vmatprep.subr.mxu0 0.0
    %796 = vmatpush1.msra.mxu0 0.0
    %797 = vmatprep.subr.mxu0 0.0
    %798 = vmatpush1.msra.mxu0 0.0
    %799 = vmatprep.subr.mxu0 0.0
    %800 = vmatpush1.msra.mxu0 0.0
    %801 = vmatprep.subr.mxu0 0.0
    %802 = vmatpush1.msra.mxu0 0.0
    %803 = vmatprep.subr.mxu0 0.0
    %804 = vmatpush1.msra.mxu0 0.0
    %805 = vmatprep.subr.mxu0 0.0
    %806 = vmatpush1.msra.mxu0 0.0
    %807 = vmatprep.subr.mxu0 0.0
    %808 = vmatpush1.msra.mxu0 0.0
    %809 = vmatprep.subr.mxu0 0.0
    %810 = vmatpush1.msra.mxu0 0.0
    %811 = vmatprep.subr.mxu0 0.0
    %812 = vmatpush1.msra.mxu0 0.0
    %813 = vmatprep.subr.mxu0 0.0
    %814 = vmatpush1.msra.mxu0 0.0
    %815 = vmatprep.subr.mxu0 0.0
    %816 = vmatpush1.msra.mxu0 0.0
    %817 = vmatprep.subr.mxu0 0.0
    %818 = vmatpush1.msra.mxu0 0.0
    %819 = vmatprep.subr.mxu0 0.0
    %820 = vmatpush1.msra.mxu0 0.0
    %821 = vmatprep.subr.mxu0 0.0
    %822 = vmatpush1.msra.mxu0 0.0
    %823 = vmatprep.subr.mxu0 0.0
    %824 = vmatpush1.msra.mxu0 0.0
    %825 = vmatprep.subr.mxu0 0.0
    %826 = vmatpush1.msra.mxu0 0.0
    %827 = vmatprep.subr.mxu0 0.0
    %828 = vmatpush1.msra.mxu0 0.0
    %829 = vmatprep.subr.mxu0 0.0
    %830 = vmatpush1.msra.mxu0 0.0
    %831 = vmatprep.subr.mxu0 0.0
    %832 = vmatpush1.msra.mxu0 0.0
    %833 = vmatprep.subr.mxu0 0.0
    %834 = vmatpush1.msra.mxu0 0.0
    %835 = vmatprep.subr.mxu0 0.0
    %836 = vmatpush1.msra.mxu0 0.0
    %837 = vmatprep.subr.mxu0 0.0
    %838 = vmatpush1.msra.mxu0 0.0
    %839 = vmatprep.subr.mxu0 0.0
    %840 = vmatpush1.msra.mxu0 0.0
    %841 = vmatprep.subr.mxu0 0.0
    %842 = vmatpush1.msra.mxu0 0.0
    %843 = vmatprep.mubr.f32.mxu0 0.0
    %844 = vmatmul.mubr.f32.gmra.mrb[0].mxu0 %v564
    %v845 = vpop.f32.mrb[0].mxu0
    %v846 = vadd.f32 0.0, %v845
    %v847 = vpop.f32.mrb[0].mxu0
    %v848 = vadd.f32 0.0, %v847
    %849 = vdwg.mxu0
    %v851 = vsel %vm562, %v511, 0
    %853 = vmatprep.subr.mxu0 %v513
    %854 = vmatpush1.msra.mxu0 %v512
    %855 = vmatprep.subr.mxu0 0.0
    %856 = vmatpush1.msra.mxu0 0.0
    %857 = vmatprep.subr.mxu0 0.0
    %858 = vmatpush1.msra.mxu0 0.0
    %859 = vmatprep.subr.mxu0 0.0
    %860 = vmatpush1.msra.mxu0 0.0
    %861 = vmatprep.subr.mxu0 0.0
    %862 = vmatpush1.msra.mxu0 0.0
    %863 = vmatprep.subr.mxu0 0.0
    %864 = vmatpush1.msra.mxu0 0.0
    %865 = vmatprep.subr.mxu0 0.0
    %866 = vmatpush1.msra.mxu0 0.0
    %867 = vmatprep.subr.mxu0 0.0
    %868 = vmatpush1.msra.mxu0 0.0
    %869 = vmatprep.subr.mxu0 0.0
    %870 = vmatpush1.msra.mxu0 0.0
    %871 = vmatprep.subr.mxu0 0.0
    %872 = vmatpush1.msra.mxu0 0.0
    %873 = vmatprep.subr.mxu0 0.0
    %874 = vmatpush1.msra.mxu0 0.0
    %875 = vmatprep.subr.mxu0 0.0
    %876 = vmatpush1.msra.mxu0 0.0
    %877 = vmatprep.subr.mxu0 0.0
    %878 = vmatpush1.msra.mxu0 0.0
    %879 = vmatprep.subr.mxu0 0.0
    %880 = vmatpush1.msra.mxu0 0.0
    %881 = vmatprep.subr.mxu0 0.0
    %882 = vmatpush1.msra.mxu0 0.0
    %883 = vmatprep.subr.mxu0 0.0
    %884 = vmatpush1.msra.mxu0 0.0
    %885 = vmatprep.subr.mxu0 0.0
    %886 = vmatpush1.msra.mxu0 0.0
    %887 = vmatprep.subr.mxu0 0.0
    %888 = vmatpush1.msra.mxu0 0.0
    %889 = vmatprep.subr.mxu0 0.0
    %890 = vmatpush1.msra.mxu0 0.0
    %891 = vmatprep.subr.mxu0 0.0
    %892 = vmatpush1.msra.mxu0 0.0
    %893 = vmatprep.subr.mxu0 0.0
    %894 = vmatpush1.msra.mxu0 0.0
    %895 = vmatprep.subr.mxu0 0.0
    %896 = vmatpush1.msra.mxu0 0.0
    %897 = vmatprep.subr.mxu0 0.0
    %898 = vmatpush1.msra.mxu0 0.0
    %899 = vmatprep.subr.mxu0 0.0
    %900 = vmatpush1.msra.mxu0 0.0
    %901 = vmatprep.subr.mxu0 0.0
    %902 = vmatpush1.msra.mxu0 0.0
    %903 = vmatprep.subr.mxu0 0.0
    %904 = vmatpush1.msra.mxu0 0.0
    %905 = vmatprep.subr.mxu0 0.0
    %906 = vmatpush1.msra.mxu0 0.0
    %907 = vmatprep.subr.mxu0 0.0
    %908 = vmatpush1.msra.mxu0 0.0
    %909 = vmatprep.subr.mxu0 0.0
    %910 = vmatpush1.msra.mxu0 0.0
    %911 = vmatprep.subr.mxu0 0.0
    %912 = vmatpush1.msra.mxu0 0.0
    %913 = vmatprep.subr.mxu0 0.0
    %914 = vmatpush1.msra.mxu0 0.0
    %915 = vmatprep.subr.mxu0 0.0
    %916 = vmatpush1.msra.mxu0 0.0
    %917 = vmatprep.mubr.f32.mxu0 0.0
    %918 = vmatmul.mubr.f32.gmra.mrb[0].mxu0 %v851
    %v919 = vpop.f32.mrb[0].mxu0
    %v920 = vadd.f32 %v633, %v919
    %v921 = vpop.f32.mrb[0].mxu0
    %v922 = vadd.f32 %v635, %v921
    %923 = vdwg.mxu0
    %924 = vmatprep.subr.mxu0 %v515
    %925 = vmatpush1.msra.mxu0 %v514
    %926 = vmatprep.subr.mxu0 0.0
    %927 = vmatpush1.msra.mxu0 0.0
    %928 = vmatprep.subr.mxu0 0.0
    %929 = vmatpush1.msra.mxu0 0.0
    %930 = vmatprep.subr.mxu0 0.0
    %931 = vmatpush1.msra.mxu0 0.0
    %932 = vmatprep.subr.mxu0 0.0
    %933 = vmatpush1.msra.mxu0 0.0
    %934 = vmatprep.subr.mxu0 0.0
    %935 = vmatpush1.msra.mxu0 0.0
    %936 = vmatprep.subr.mxu0 0.0
    %937 = vmatpush1.msra.mxu0 0.0
    %938 = vmatprep.subr.mxu0 0.0
    %939 = vmatpush1.msra.mxu0 0.0
    %940 = vmatprep.subr.mxu0 0.0
    %941 = vmatpush1.msra.mxu0 0.0
    %942 = vmatprep.subr.mxu0 0.0
    %943 = vmatpush1.msra.mxu0 0.0
    %944 = vmatprep.subr.mxu0 0.0
    %945 = vmatpush1.msra.mxu0 0.0
    %946 = vmatprep.subr.mxu0 0.0
    %947 = vmatpush1.msra.mxu0 0.0
    %948 = vmatprep.subr.mxu0 0.0
    %949 = vmatpush1.msra.mxu0 0.0
    %950 = vmatprep.subr.mxu0 0.0
    %951 = vmatpush1.msra.mxu0 0.0
    %952 = vmatprep.subr.mxu0 0.0
    %953 = vmatpush1.msra.mxu0 0.0
    %954 = vmatprep.subr.mxu0 0.0
    %955 = vmatpush1.msra.mxu0 0.0
    %956 = vmatprep.subr.mxu0 0.0
    %957 = vmatpush1.msra.mxu0 0.0
    %958 = vmatprep.subr.mxu0 0.0
    %959 = vmatpush1.msra.mxu0 0.0
    %960 = vmatprep.subr.mxu0 0.0
    %961 = vmatpush1.msra.mxu0 0.0
    %962 = vmatprep.subr.mxu0 0.0
    %963 = vmatpush1.msra.mxu0 0.0
    %964 = vmatprep.subr.mxu0 0.0
    %965 = vmatpush1.msra.mxu0 0.0
    %966 = vmatprep.subr.mxu0 0.0
    %967 = vmatpush1.msra.mxu0 0.0
    %968 = vmatprep.subr.mxu0 0.0
    %969 = vmatpush1.msra.mxu0 0.0
    %970 = vmatprep.subr.mxu0 0.0
    %971 = vmatpush1.msra.mxu0 0.0
    %972 = vmatprep.subr.mxu0 0.0
    %973 = vmatpush1.msra.mxu0 0.0
    %974 = vmatprep.subr.mxu0 0.0
    %975 = vmatpush1.msra.mxu0 0.0
    %976 = vmatprep.subr.mxu0 0.0
    %977 = vmatpush1.msra.mxu0 0.0
    %978 = vmatprep.subr.mxu0 0.0
    %979 = vmatpush1.msra.mxu0 0.0
    %980 = vmatprep.subr.mxu0 0.0
    %981 = vmatpush1.msra.mxu0 0.0
    %982 = vmatprep.subr.mxu0 0.0
    %983 = vmatpush1.msra.mxu0 0.0
    %984 = vmatprep.subr.mxu0 0.0
    %985 = vmatpush1.msra.mxu0 0.0
    %986 = vmatprep.subr.mxu0 0.0
    %987 = vmatpush1.msra.mxu0 0.0
    %988 = vmatprep.mubr.f32.mxu0 0.0
    %989 = vmatmul.mubr.f32.gmra.mrb[0].mxu0 %v851
    %v990 = vpop.f32.mrb[0].mxu0
    %v991 = vadd.f32 %v704, %v990
    %v992 = vpop.f32.mrb[0].mxu0
    %v993 = vadd.f32 %v706, %v992
    %994 = vdwg.mxu0
    %995 = vmatprep.subr.mxu0 %v517
    %996 = vmatpush1.msra.mxu0 %v516
    %997 = vmatprep.subr.mxu0 0.0
    %998 = vmatpush1.msra.mxu0 0.0
    %999 = vmatprep.subr.mxu0 0.0
    %1000 = vmatpush1.msra.mxu0 0.0
    %1001 = vmatprep.subr.mxu0 0.0
    %1002 = vmatpush1.msra.mxu0 0.0
    %1003 = vmatprep.subr.mxu0 0.0
    %1004 = vmatpush1.msra.mxu0 0.0
    %1005 = vmatprep.subr.mxu0 0.0
    %1006 = vmatpush1.msra.mxu0 0.0
    %1007 = vmatprep.subr.mxu0 0.0
    %1008 = vmatpush1.msra.mxu0 0.0
    %1009 = vmatprep.subr.mxu0 0.0
    %1010 = vmatpush1.msra.mxu0 0.0
    %1011 = vmatprep.subr.mxu0 0.0
    %1012 = vmatpush1.msra.mxu0 0.0
    %1013 = vmatprep.subr.mxu0 0.0
    %1014 = vmatpush1.msra.mxu0 0.0
    %1015 = vmatprep.subr.mxu0 0.0
    %1016 = vmatpush1.msra.mxu0 0.0
    %1017 = vmatprep.subr.mxu0 0.0
    %1018 = vmatpush1.msra.mxu0 0.0
    %1019 = vmatprep.subr.mxu0 0.0
    %1020 = vmatpush1.msra.mxu0 0.0
    %1021 = vmatprep.subr.mxu0 0.0
    %1022 = vmatpush1.msra.mxu0 0.0
    %1023 = vmatprep.subr.mxu0 0.0
    %1024 = vmatpush1.msra.mxu0 0.0
    %1025 = vmatprep.subr.mxu0 0.0
    %1026 = vmatpush1.msra.mxu0 0.0
    %1027 = vmatprep.subr.mxu0 0.0
    %1028 = vmatpush1.msra.mxu0 0.0
    %1029 = vmatprep.subr.mxu0 0.0
    %1030 = vmatpush1.msra.mxu0 0.0
    %1031 = vmatprep.subr.mxu0 0.0
    %1032 = vmatpush1.msra.mxu0 0.0
    %1033 = vmatprep.subr.mxu0 0.0
    %1034 = vmatpush1.msra.mxu0 0.0
    %1035 = vmatprep.subr.mxu0 0.0
    %1036 = vmatpush1.msra.mxu0 0.0
    %1037 = vmatprep.subr.mxu0 0.0
    %1038 = vmatpush1.msra.mxu0 0.0
    %1039 = vmatprep.subr.mxu0 0.0
    %1040 = vmatpush1.msra.mxu0 0.0
    %1041 = vmatprep.subr.mxu0 0.0
    %1042 = vmatpush1.msra.mxu0 0.0
    %1043 = vmatprep.subr.mxu0 0.0
    %1044 = vmatpush1.msra.mxu0 0.0
    %1045 = vmatprep.subr.mxu0 0.0
    %1046 = vmatpush1.msra.mxu0 0.0
    %1047 = vmatprep.subr.mxu0 0.0
    %1048 = vmatpush1.msra.mxu0 0.0
    %1049 = vmatprep.subr.mxu0 0.0
    %1050 = vmatpush1.msra.mxu0 0.0
    %1051 = vmatprep.subr.mxu0 0.0
    %1052 = vmatpush1.msra.mxu0 0.0
    %1053 = vmatprep.subr.mxu0 0.0
    %1054 = vmatpush1.msra.mxu0 0.0
    %1055 = vmatprep.subr.mxu0 0.0
    %1056 = vmatpush1.msra.mxu0 0.0
    %1057 = vmatprep.subr.mxu0 0.0
    %1058 = vmatpush1.msra.mxu0 0.0
    %1059 = vmatprep.mubr.f32.mxu0 0.0
    %1060 = vmatmul.mubr.f32.gmra.mrb[0].mxu0 %v851
    %v1061 = vpop.f32.mrb[0].mxu0
    %v1062 = vadd.f32 %v775, %v1061
    %v1063 = vpop.f32.mrb[0].mxu0
    %v1064 = vadd.f32 %v777, %v1063
    %1065 = vdwg.mxu0
    %1066 = vmatprep.subr.mxu0 %v519
    %1067 = vmatpush1.msra.mxu0 %v518
    %1068 = vmatprep.subr.mxu0 0.0
    %1069 = vmatpush1.msra.mxu0 0.0
    %1070 = vmatprep.subr.mxu0 0.0
    %1071 = vmatpush1.msra.mxu0 0.0
    %1072 = vmatprep.subr.mxu0 0.0
    %1073 = vmatpush1.msra.mxu0 0.0
    %1074 = vmatprep.subr.mxu0 0.0
    %1075 = vmatpush1.msra.mxu0 0.0
    %1076 = vmatprep.subr.mxu0 0.0
    %1077 = vmatpush1.msra.mxu0 0.0
    %1078 = vmatprep.subr.mxu0 0.0
    %1079 = vmatpush1.msra.mxu0 0.0
    %1080 = vmatprep.subr.mxu0 0.0
    %1081 = vmatpush1.msra.mxu0 0.0
    %1082 = vmatprep.subr.mxu0 0.0
    %1083 = vmatpush1.msra.mxu0 0.0
    %1084 = vmatprep.subr.mxu0 0.0
    %1085 = vmatpush1.msra.mxu0 0.0
    %1086 = vmatprep.subr.mxu0 0.0
    %1087 = vmatpush1.msra.mxu0 0.0
    %1088 = vmatprep.subr.mxu0 0.0
    %1089 = vmatpush1.msra.mxu0 0.0
    %1090 = vmatprep.subr.mxu0 0.0
    %1091 = vmatpush1.msra.mxu0 0.0
    %1092 = vmatprep.subr.mxu0 0.0
    %1093 = vmatpush1.msra.mxu0 0.0
    %1094 = vmatprep.subr.mxu0 0.0
    %1095 = vmatpush1.msra.mxu0 0.0
    %1096 = vmatprep.subr.mxu0 0.0
    %1097 = vmatpush1.msra.mxu0 0.0
    %1098 = vmatprep.subr.mxu0 0.0
    %1099 = vmatpush1.msra.mxu0 0.0
    %1100 = vmatprep.subr.mxu0 0.0
    %1101 = vmatpush1.msra.mxu0 0.0
    %1102 = vmatprep.subr.mxu0 0.0
    %1103 = vmatpush1.msra.mxu0 0.0
    %1104 = vmatprep.subr.mxu0 0.0
    %1105 = vmatpush1.msra.mxu0 0.0
    %1106 = vmatprep.subr.mxu0 0.0
    %1107 = vmatpush1.msra.mxu0 0.0
    %1108 = vmatprep.subr.mxu0 0.0
    %1109 = vmatpush1.msra.mxu0 0.0
    %1110 = vmatprep.subr.mxu0 0.0
    %1111 = vmatpush1.msra.mxu0 0.0
    %1112 = vmatprep.subr.mxu0 0.0
    %1113 = vmatpush1.msra.mxu0 0.0
    %1114 = vmatprep.subr.mxu0 0.0
    %1115 = vmatpush1.msra.mxu0 0.0
    %1116 = vmatprep.subr.mxu0 0.0
    %1117 = vmatpush1.msra.mxu0 0.0
    %1118 = vmatprep.subr.mxu0 0.0
    %1119 = vmatpush1.msra.mxu0 0.0
    %1120 = vmatprep.subr.mxu0 0.0
    %1121 = vmatpush1.msra.mxu0 0.0
    %1122 = vmatprep.subr.mxu0 0.0
    %1123 = vmatpush1.msra.mxu0 0.0
    %1124 = vmatprep.subr.mxu0 0.0
    %1125 = vmatpush1.msra.mxu0 0.0
    %1126 = vmatprep.subr.mxu0 0.0
    %1127 = vmatpush1.msra.mxu0 0.0
    %1128 = vmatprep.subr.mxu0 0.0
    %1129 = vmatpush1.msra.mxu0 0.0
    %1130 = vmatprep.mubr.f32.mxu0 0.0
    %1131 = vmatmul.mubr.f32.gmra.mrb[0].mxu0 %v851
    %v1132 = vpop.f32.mrb[0].mxu0
    %v1133 = vadd.f32 %v846, %v1132
    %v1134 = vpop.f32.mrb[0].mxu0
    %v1135 = vadd.f32 %v848, %v1134
    %1136 = vdwg.mxu0
    %s1137 = scalar_lea.vmem %s2, 16
    %v1138 = vld [vmem:[%s1137] sm:$0xff]
    %1139 = vrot.lane.b32.xlu0 %v512, 126
    %v1140 = vpop.permute.xlu0 %1139
    %1141 = vrot.lane.b32.xlu0 %v513, 126
    %v1142 = vpop.permute.xlu0 %1141
    %1143 = vrot.lane.b32.xlu0 %v514, 126
    %v1144 = vpop.permute.xlu0 %1143
    %1145 = vrot.lane.b32.xlu0 %v515, 126
    %v1146 = vpop.permute.xlu0 %1145
    %1147 = vrot.lane.b32.xlu0 %v516, 126
    %v1148 = vpop.permute.xlu0 %1147
    %1149 = vrot.lane.b32.xlu0 %v517, 126
    %v1150 = vpop.permute.xlu0 %1149
    %1151 = vrot.lane.b32.xlu0 %v518, 126
    %v1152 = vpop.permute.xlu0 %1151
    %1153 = vrot.lane.b32.xlu0 %v519, 126
    %v1154 = vpop.permute.xlu0 %1153
    %vm1155 = vcmask 1031168
    %v1156 = vsel %vm1155, %v1140, %v1142
    %v1157 = vsel %vm1155, %v1142, %v1144
    %v1158 = vsel %vm1155, %v1144, %v1146
    %v1159 = vsel %vm1155, %v1146, %v1148
    %v1160 = vsel %vm1155, %v1148, %v1150
    %v1161 = vsel %vm1155, %v1150, %v1152
    %v1162 = vsel %vm1155, %v1152, %v1154
    %v1172 = vsel %vm562, %v1138, 0
    %1174 = vmatprep.subr.mxu0 %v1157
    %1175 = vmatpush1.msra.mxu0 %v1156
    %1176 = vmatprep.subr.mxu0 0.0
    %1177 = vmatpush1.msra.mxu0 0.0
    %1178 = vmatprep.subr.mxu0 0.0
    %1179 = vmatpush1.msra.mxu0 0.0
    %1180 = vmatprep.subr.mxu0 0.0
    %1181 = vmatpush1.msra.mxu0 0.0
    %1182 = vmatprep.subr.mxu0 0.0
    %1183 = vmatpush1.msra.mxu0 0.0
    %1184 = vmatprep.subr.mxu0 0.0
    %1185 = vmatpush1.msra.mxu0 0.0
    %1186 = vmatprep.subr.mxu0 0.0
    %1187 = vmatpush1.msra.mxu0 0.0
    %1188 = vmatprep.subr.mxu0 0.0
    %1189 = vmatpush1.msra.mxu0 0.0
    %1190 = vmatprep.subr.mxu0 0.0
    %1191 = vmatpush1.msra.mxu0 0.0
    %1192 = vmatprep.subr.mxu0 0.0
    %1193 = vmatpush1.msra.mxu0 0.0
    %1194 = vmatprep.subr.mxu0 0.0
    %1195 = vmatpush1.msra.mxu0 0.0
    %1196 = vmatprep.subr.mxu0 0.0
    %1197 = vmatpush1.msra.mxu0 0.0
    %1198 = vmatprep.subr.mxu0 0.0
    %1199 = vmatpush1.msra.mxu0 0.0
    %1200 = vmatprep.subr.mxu0 0.0
    %1201 = vmatpush1.msra.mxu0 0.0
    %1202 = vmatprep.subr.mxu0 0.0
    %1203 = vmatpush1.msra.mxu0 0.0
    %1204 = vmatprep.subr.mxu0 0.0
    %1205 = vmatpush1.msra.mxu0 0.0
    %1206 = vmatprep.subr.mxu0 0.0
    %1207 = vmatpush1.msra.mxu0 0.0
    %1208 = vmatprep.subr.mxu0 0.0
    %1209 = vmatpush1.msra.mxu0 0.0
    %1210 = vmatprep.subr.mxu0 0.0
    %1211 = vmatpush1.msra.mxu0 0.0
    %1212 = vmatprep.subr.mxu0 0.0
    %1213 = vmatpush1.msra.mxu0 0.0
    %1214 = vmatprep.subr.mxu0 0.0
    %1215 = vmatpush1.msra.mxu0 0.0
    %1216 = vmatprep.subr.mxu0 0.0
    %1217 = vmatpush1.msra.mxu0 0.0
    %1218 = vmatprep.subr.mxu0 0.0
    %1219 = vmatpush1.msra.mxu0 0.0
    %1220 = vmatprep.subr.mxu0 0.0
    %1221 = vmatpush1.msra.mxu0 0.0
    %1222 = vmatprep.subr.mxu0 0.0
    %1223 = vmatpush1.msra.mxu0 0.0
    %1224 = vmatprep.subr.mxu0 0.0
    %1225 = vmatpush1.msra.mxu0 0.0
    %1226 = vmatprep.subr.mxu0 0.0
    %1227 = vmatpush1.msra.mxu0 0.0
    %1228 = vmatprep.subr.mxu0 0.0
    %1229 = vmatpush1.msra.mxu0 0.0
    %1230 = vmatprep.subr.mxu0 0.0
    %1231 = vmatpush1.msra.mxu0 0.0
    %1232 = vmatprep.subr.mxu0 0.0
    %1233 = vmatpush1.msra.mxu0 0.0
    %1234 = vmatprep.subr.mxu0 0.0
    %1235 = vmatpush1.msra.mxu0 0.0
    %1236 = vmatprep.subr.mxu0 0.0
    %1237 = vmatpush1.msra.mxu0 0.0
    %1238 = vmatprep.mubr.f32.mxu0 0.0
    %1239 = vmatmul.mubr.f32.gmra.mrb[0].mxu0 %v1172
    %v1240 = vpop.f32.mrb[0].mxu0
    %v1241 = vadd.f32 0.0, %v1240
    %v1242 = vpop.f32.mrb[0].mxu0
    %v1243 = vadd.f32 0.0, %v1242
    %1244 = vdwg.mxu0
    %1245 = vmatprep.subr.mxu0 %v1159
    %1246 = vmatpush1.msra.mxu0 %v1158
    %1247 = vmatprep.subr.mxu0 0.0
    %1248 = vmatpush1.msra.mxu0 0.0
    %1249 = vmatprep.subr.mxu0 0.0
    %1250 = vmatpush1.msra.mxu0 0.0
    %1251 = vmatprep.subr.mxu0 0.0
    %1252 = vmatpush1.msra.mxu0 0.0
    %1253 = vmatprep.subr.mxu0 0.0
    %1254 = vmatpush1.msra.mxu0 0.0
    %1255 = vmatprep.subr.mxu0 0.0
    %1256 = vmatpush1.msra.mxu0 0.0
    %1257 = vmatprep.subr.mxu0 0.0
    %1258 = vmatpush1.msra.mxu0 0.0
    %1259 = vmatprep.subr.mxu0 0.0
    %1260 = vmatpush1.msra.mxu0 0.0
    %1261 = vmatprep.subr.mxu0 0.0
    %1262 = vmatpush1.msra.mxu0 0.0
    %1263 = vmatprep.subr.mxu0 0.0
    %1264 = vmatpush1.msra.mxu0 0.0
    %1265 = vmatprep.subr.mxu0 0.0
    %1266 = vmatpush1.msra.mxu0 0.0
    %1267 = vmatprep.subr.mxu0 0.0
    %1268 = vmatpush1.msra.mxu0 0.0
    %1269 = vmatprep.subr.mxu0 0.0
    %1270 = vmatpush1.msra.mxu0 0.0
    %1271 = vmatprep.subr.mxu0 0.0
    %1272 = vmatpush1.msra.mxu0 0.0
    %1273 = vmatprep.subr.mxu0 0.0
    %1274 = vmatpush1.msra.mxu0 0.0
    %1275 = vmatprep.subr.mxu0 0.0
    %1276 = vmatpush1.msra.mxu0 0.0
    %1277 = vmatprep.subr.mxu0 0.0
    %1278 = vmatpush1.msra.mxu0 0.0
    %1279 = vmatprep.subr.mxu0 0.0
    %1280 = vmatpush1.msra.mxu0 0.0
    %1281 = vmatprep.subr.mxu0 0.0
    %1282 = vmatpush1.msra.mxu0 0.0
    %1283 = vmatprep.subr.mxu0 0.0
    %1284 = vmatpush1.msra.mxu0 0.0
    %1285 = vmatprep.subr.mxu0 0.0
    %1286 = vmatpush1.msra.mxu0 0.0
    %1287 = vmatprep.subr.mxu0 0.0
    %1288 = vmatpush1.msra.mxu0 0.0
    %1289 = vmatprep.subr.mxu0 0.0
    %1290 = vmatpush1.msra.mxu0 0.0
    %1291 = vmatprep.subr.mxu0 0.0
    %1292 = vmatpush1.msra.mxu0 0.0
    %1293 = vmatprep.subr.mxu0 0.0
    %1294 = vmatpush1.msra.mxu0 0.0
    %1295 = vmatprep.subr.mxu0 0.0
    %1296 = vmatpush1.msra.mxu0 0.0
    %1297 = vmatprep.subr.mxu0 0.0
    %1298 = vmatpush1.msra.mxu0 0.0
    %1299 = vmatprep.subr.mxu0 0.0
    %1300 = vmatpush1.msra.mxu0 0.0
    %1301 = vmatprep.subr.mxu0 0.0
    %1302 = vmatpush1.msra.mxu0 0.0
    %1303 = vmatprep.subr.mxu0 0.0
    %1304 = vmatpush1.msra.mxu0 0.0
    %1305 = vmatprep.subr.mxu0 0.0
    %1306 = vmatpush1.msra.mxu0 0.0
    %1307 = vmatprep.subr.mxu0 0.0
    %1308 = vmatpush1.msra.mxu0 0.0
    %1309 = vmatprep.mubr.f32.mxu0 0.0
    %1310 = vmatmul.mubr.f32.gmra.mrb[0].mxu0 %v1172
    %v1311 = vpop.f32.mrb[0].mxu0
    %v1312 = vadd.f32 0.0, %v1311
    %v1313 = vpop.f32.mrb[0].mxu0
    %v1314 = vadd.f32 0.0, %v1313
    %1315 = vdwg.mxu0
    %1316 = vmatprep.subr.mxu0 %v1161
    %1317 = vmatpush1.msra.mxu0 %v1160
    %1318 = vmatprep.subr.mxu0 0.0
    %1319 = vmatpush1.msra.mxu0 0.0
    %1320 = vmatprep.subr.mxu0 0.0
    %1321 = vmatpush1.msra.mxu0 0.0
    %1322 = vmatprep.subr.mxu0 0.0
    %1323 = vmatpush1.msra.mxu0 0.0
    %1324 = vmatprep.subr.mxu0 0.0
    %1325 = vmatpush1.msra.mxu0 0.0
    %1326 = vmatprep.subr.mxu0 0.0
    %1327 = vmatpush1.msra.mxu0 0.0
    %1328 = vmatprep.subr.mxu0 0.0
    %1329 = vmatpush1.msra.mxu0 0.0
    %1330 = vmatprep.subr.mxu0 0.0
    %1331 = vmatpush1.msra.mxu0 0.0
    %1332 = vmatprep.subr.mxu0 0.0
    %1333 = vmatpush1.msra.mxu0 0.0
    %1334 = vmatprep.subr.mxu0 0.0
    %1335 = vmatpush1.msra.mxu0 0.0
    %1336 = vmatprep.subr.mxu0 0.0
    %1337 = vmatpush1.msra.mxu0 0.0
    %1338 = vmatprep.subr.mxu0 0.0
    %1339 = vmatpush1.msra.mxu0 0.0
    %1340 = vmatprep.subr.mxu0 0.0
    %1341 = vmatpush1.msra.mxu0 0.0
    %1342 = vmatprep.subr.mxu0 0.0
    %1343 = vmatpush1.msra.mxu0 0.0
    %1344 = vmatprep.subr.mxu0 0.0
    %1345 = vmatpush1.msra.mxu0 0.0
    %1346 = vmatprep.subr.mxu0 0.0
    %1347 = vmatpush1.msra.mxu0 0.0
    %1348 = vmatprep.subr.mxu0 0.0
    %1349 = vmatpush1.msra.mxu0 0.0
    %1350 = vmatprep.subr.mxu0 0.0
    %1351 = vmatpush1.msra.mxu0 0.0
    %1352 = vmatprep.subr.mxu0 0.0
    %1353 = vmatpush1.msra.mxu0 0.0
    %1354 = vmatprep.subr.mxu0 0.0
    %1355 = vmatpush1.msra.mxu0 0.0
    %1356 = vmatprep.subr.mxu0 0.0
    %1357 = vmatpush1.msra.mxu0 0.0
    %1358 = vmatprep.subr.mxu0 0.0
    %1359 = vmatpush1.msra.mxu0 0.0
    %1360 = vmatprep.subr.mxu0 0.0
    %1361 = vmatpush1.msra.mxu0 0.0
    %1362 = vmatprep.subr.mxu0 0.0
    %1363 = vmatpush1.msra.mxu0 0.0
    %1364 = vmatprep.subr.mxu0 0.0
    %1365 = vmatpush1.msra.mxu0 0.0
    %1366 = vmatprep.subr.mxu0 0.0
    %1367 = vmatpush1.msra.mxu0 0.0
    %1368 = vmatprep.subr.mxu0 0.0
    %1369 = vmatpush1.msra.mxu0 0.0
    %1370 = vmatprep.subr.mxu0 0.0
    %1371 = vmatpush1.msra.mxu0 0.0
    %1372 = vmatprep.subr.mxu0 0.0
    %1373 = vmatpush1.msra.mxu0 0.0
    %1374 = vmatprep.subr.mxu0 0.0
    %1375 = vmatpush1.msra.mxu0 0.0
    %1376 = vmatprep.subr.mxu0 0.0
    %1377 = vmatpush1.msra.mxu0 0.0
    %1378 = vmatprep.subr.mxu0 0.0
    %1379 = vmatpush1.msra.mxu0 0.0
    %1380 = vmatprep.mubr.f32.mxu0 0.0
    %1381 = vmatmul.mubr.f32.gmra.mrb[0].mxu0 %v1172
    %v1382 = vpop.f32.mrb[0].mxu0
    %v1383 = vadd.f32 0.0, %v1382
    %v1384 = vpop.f32.mrb[0].mxu0
    %v1385 = vadd.f32 0.0, %v1384
    %1386 = vdwg.mxu0
    %1387 = vmatprep.subr.mxu0 %v1154
    %1388 = vmatpush1.msra.mxu0 %v1162
    %1389 = vmatprep.subr.mxu0 0.0
    %1390 = vmatpush1.msra.mxu0 0.0
    %1391 = vmatprep.subr.mxu0 0.0
    %1392 = vmatpush1.msra.mxu0 0.0
    %1393 = vmatprep.subr.mxu0 0.0
    %1394 = vmatpush1.msra.mxu0 0.0
    %1395 = vmatprep.subr.mxu0 0.0
    %1396 = vmatpush1.msra.mxu0 0.0
    %1397 = vmatprep.subr.mxu0 0.0
    %1398 = vmatpush1.msra.mxu0 0.0
    %1399 = vmatprep.subr.mxu0 0.0
    %1400 = vmatpush1.msra.mxu0 0.0
    %1401 = vmatprep.subr.mxu0 0.0
    %1402 = vmatpush1.msra.mxu0 0.0
    %1403 = vmatprep.subr.mxu0 0.0
    %1404 = vmatpush1.msra.mxu0 0.0
    %1405 = vmatprep.subr.mxu0 0.0
    %1406 = vmatpush1.msra.mxu0 0.0
    %1407 = vmatprep.subr.mxu0 0.0
    %1408 = vmatpush1.msra.mxu0 0.0
    %1409 = vmatprep.subr.mxu0 0.0
    %1410 = vmatpush1.msra.mxu0 0.0
    %1411 = vmatprep.subr.mxu0 0.0
    %1412 = vmatpush1.msra.mxu0 0.0
    %1413 = vmatprep.subr.mxu0 0.0
    %1414 = vmatpush1.msra.mxu0 0.0
    %1415 = vmatprep.subr.mxu0 0.0
    %1416 = vmatpush1.msra.mxu0 0.0
    %1417 = vmatprep.subr.mxu0 0.0
    %1418 = vmatpush1.msra.mxu0 0.0
    %1419 = vmatprep.subr.mxu0 0.0
    %1420 = vmatpush1.msra.mxu0 0.0
    %1421 = vmatprep.subr.mxu0 0.0
    %1422 = vmatpush1.msra.mxu0 0.0
    %1423 = vmatprep.subr.mxu0 0.0
    %1424 = vmatpush1.msra.mxu0 0.0
    %1425 = vmatprep.subr.mxu0 0.0
    %1426 = vmatpush1.msra.mxu0 0.0
    %1427 = vmatprep.subr.mxu0 0.0
    %1428 = vmatpush1.msra.mxu0 0.0
    %1429 = vmatprep.subr.mxu0 0.0
    %1430 = vmatpush1.msra.mxu0 0.0
    %1431 = vmatprep.subr.mxu0 0.0
    %1432 = vmatpush1.msra.mxu0 0.0
    %1433 = vmatprep.subr.mxu0 0.0
    %1434 = vmatpush1.msra.mxu0 0.0
    %1435 = vmatprep.subr.mxu0 0.0
    %1436 = vmatpush1.msra.mxu0 0.0
    %1437 = vmatprep.subr.mxu0 0.0
    %1438 = vmatpush1.msra.mxu0 0.0
    %1439 = vmatprep.subr.mxu0 0.0
    %1440 = vmatpush1.msra.mxu0 0.0
    %1441 = vmatprep.subr.mxu0 0.0
    %1442 = vmatpush1.msra.mxu0 0.0
    %1443 = vmatprep.subr.mxu0 0.0
    %1444 = vmatpush1.msra.mxu0 0.0
    %1445 = vmatprep.subr.mxu0 0.0
    %1446 = vmatpush1.msra.mxu0 0.0
    %1447 = vmatprep.subr.mxu0 0.0
    %1448 = vmatpush1.msra.mxu0 0.0
    %1449 = vmatprep.subr.mxu0 0.0
    %1450 = vmatpush1.msra.mxu0 0.0
    %1451 = vmatprep.mubr.f32.mxu0 0.0
    %1452 = vmatmul.mubr.f32.gmra.mrb[0].mxu0 %v1172
    %v1453 = vpop.f32.mrb[0].mxu0
    %v1454 = vadd.f32 0.0, %v1453
    %v1455 = vpop.f32.mrb[0].mxu0
    %v1456 = vadd.f32 0.0, %v1455
    %1457 = vdwg.mxu0
    %v1458 = vadd.f32 %v920, %v1241
    %v1459 = vadd.f32 %v922, %v1243
    %v1460 = vadd.f32 %v991, %v1312
    %v1461 = vadd.f32 %v993, %v1314
    %v1462 = vadd.f32 %v1062, %v1383
    %v1463 = vadd.f32 %v1064, %v1385
    %v1464 = vadd.f32 %v1133, %v1454
    %v1465 = vadd.f32 %v1135, %v1456
    %s1466 = scalar_lea.vmem %s2, 24
    %v1467 = vld [vmem:[%s1466] sm:$0xff]
    %v1468 = vld [vmem:[#allocation2] sm:$0xff]
    %v1469 = vld [vmem:[#allocation2 + $0x8] sm:$0xff]
    %v1470 = vld [vmem:[#allocation2 + $0x10] sm:$0xff]
    %v1471 = vld [vmem:[#allocation2 + $0x18] sm:$0xff]
    %v1472 = vld [vmem:[#allocation2 + $0x20] sm:$0xff]
    %v1473 = vld [vmem:[#allocation2 + $0x28] sm:$0xff]
    %v1474 = vld [vmem:[#allocation2 + $0x30] sm:$0xff]
    %v1475 = vld [vmem:[#allocation2 + $0x38] sm:$0xff]
    %v1476 = vld [vmem:[#allocation2 + $0x40] sm:$0xff]
    %1486 = vrot.lane.b32.xlu0 %v1468, 104
    %v1487 = vpop.permute.xlu0 %1486
    %1488 = vrot.lane.b32.xlu0 %v1469, 104
    %v1489 = vpop.permute.xlu0 %1488
    %1490 = vrot.lane.b32.xlu0 %v1470, 104
    %v1491 = vpop.permute.xlu0 %1490
    %1492 = vrot.lane.b32.xlu0 %v1471, 104
    %v1493 = vpop.permute.xlu0 %1492
    %1494 = vrot.lane.b32.xlu0 %v1472, 104
    %v1495 = vpop.permute.xlu0 %1494
    %1496 = vrot.lane.b32.xlu0 %v1473, 104
    %v1497 = vpop.permute.xlu0 %1496
    %1498 = vrot.lane.b32.xlu0 %v1474, 104
    %v1499 = vpop.permute.xlu0 %1498
    %1500 = vrot.lane.b32.xlu0 %v1475, 104
    %v1501 = vpop.permute.xlu0 %1500
    %1502 = vrot.lane.b32.xlu0 %v1476, 104
    %v1503 = vpop.permute.xlu0 %1502
    %vm1504 = vcmask 850944
    %v1505 = vsel %vm1504, %v1487, %v1489
    %v1506 = vsel %vm1504, %v1489, %v1491
    %v1507 = vsel %vm1504, %v1491, %v1493
    %v1508 = vsel %vm1504, %v1493, %v1495
    %v1509 = vsel %vm1504, %v1495, %v1497
    %v1510 = vsel %vm1504, %v1497, %v1499
    %v1511 = vsel %vm1504, %v1499, %v1501
    %v1512 = vsel %vm1504, %v1501, %v1503
    %v1522 = vsel %vm562, %v1467, 0
    %1524 = vmatprep.subr.mxu0 %v1506
    %1525 = vmatpush1.msra.mxu0 %v1505
    %1526 = vmatprep.subr.mxu0 0.0
    %1527 = vmatpush1.msra.mxu0 0.0
    %1528 = vmatprep.subr.mxu0 0.0
    %1529 = vmatpush1.msra.mxu0 0.0
    %1530 = vmatprep.subr.mxu0 0.0
    %1531 = vmatpush1.msra.mxu0 0.0
    %1532 = vmatprep.subr.mxu0 0.0
    %1533 = vmatpush1.msra.mxu0 0.0
    %1534 = vmatprep.subr.mxu0 0.0
    %1535 = vmatpush1.msra.mxu0 0.0
    %1536 = vmatprep.subr.mxu0 0.0
    %1537 = vmatpush1.msra.mxu0 0.0
    %1538 = vmatprep.subr.mxu0 0.0
    %1539 = vmatpush1.msra.mxu0 0.0
    %1540 = vmatprep.subr.mxu0 0.0
    %1541 = vmatpush1.msra.mxu0 0.0
    %1542 = vmatprep.subr.mxu0 0.0
    %1543 = vmatpush1.msra.mxu0 0.0
    %1544 = vmatprep.subr.mxu0 0.0
    %1545 = vmatpush1.msra.mxu0 0.0
    %1546 = vmatprep.subr.mxu0 0.0
    %1547 = vmatpush1.msra.mxu0 0.0
    %1548 = vmatprep.subr.mxu0 0.0
    %1549 = vmatpush1.msra.mxu0 0.0
    %1550 = vmatprep.subr.mxu0 0.0
    %1551 = vmatpush1.msra.mxu0 0.0
    %1552 = vmatprep.subr.mxu0 0.0
    %1553 = vmatpush1.msra.mxu0 0.0
    %1554 = vmatprep.subr.mxu0 0.0
    %1555 = vmatpush1.msra.mxu0 0.0
    %1556 = vmatprep.subr.mxu0 0.0
    %1557 = vmatpush1.msra.mxu0 0.0
    %1558 = vmatprep.subr.mxu0 0.0
    %1559 = vmatpush1.msra.mxu0 0.0
    %1560 = vmatprep.subr.mxu0 0.0
    %1561 = vmatpush1.msra.mxu0 0.0
    %1562 = vmatprep.subr.mxu0 0.0
    %1563 = vmatpush1.msra.mxu0 0.0
    %1564 = vmatprep.subr.mxu0 0.0
    %1565 = vmatpush1.msra.mxu0 0.0
    %1566 = vmatprep.subr.mxu0 0.0
    %1567 = vmatpush1.msra.mxu0 0.0
    %1568 = vmatprep.subr.mxu0 0.0
    %1569 = vmatpush1.msra.mxu0 0.0
    %1570 = vmatprep.subr.mxu0 0.0
    %1571 = vmatpush1.msra.mxu0 0.0
    %1572 = vmatprep.subr.mxu0 0.0
    %1573 = vmatpush1.msra.mxu0 0.0
    %1574 = vmatprep.subr.mxu0 0.0
    %1575 = vmatpush1.msra.mxu0 0.0
    %1576 = vmatprep.subr.mxu0 0.0
    %1577 = vmatpush1.msra.mxu0 0.0
    %1578 = vmatprep.subr.mxu0 0.0
    %1579 = vmatpush1.msra.mxu0 0.0
    %1580 = vmatprep.subr.mxu0 0.0
    %1581 = vmatpush1.msra.mxu0 0.0
    %1582 = vmatprep.subr.mxu0 0.0
    %1583 = vmatpush1.msra.mxu0 0.0
    %1584 = vmatprep.subr.mxu0 0.0
    %1585 = vmatpush1.msra.mxu0 0.0
    %1586 = vmatprep.subr.mxu0 0.0
    %1587 = vmatpush1.msra.mxu0 0.0
    %1588 = vmatprep.mubr.f32.mxu0 0.0
    %1589 = vmatmul.mubr.f32.gmra.mrb[0].mxu0 %v1522
    %v1590 = vpop.f32.mrb[0].mxu0
    %v1591 = vadd.f32 0.0, %v1590
    %v1592 = vpop.f32.mrb[0].mxu0
    %v1593 = vadd.f32 0.0, %v1592
    %1594 = vdwg.mxu0
    %1595 = vmatprep.subr.mxu0 %v1508
    %1596 = vmatpush1.msra.mxu0 %v1507
    %1597 = vmatprep.subr.mxu0 0.0
    %1598 = vmatpush1.msra.mxu0 0.0
    %1599 = vmatprep.subr.mxu0 0.0
    %1600 = vmatpush1.msra.mxu0 0.0
    %1601 = vmatprep.subr.mxu0 0.0
    %1602 = vmatpush1.msra.mxu0 0.0
    %1603 = vmatprep.subr.mxu0 0.0
    %1604 = vmatpush1.msra.mxu0 0.0
    %1605 = vmatprep.subr.mxu0 0.0
    %1606 = vmatpush1.msra.mxu0 0.0
    %1607 = vmatprep.subr.mxu0 0.0
    %1608 = vmatpush1.msra.mxu0 0.0
    %1609 = vmatprep.subr.mxu0 0.0
    %1610 = vmatpush1.msra.mxu0 0.0
    %1611 = vmatprep.subr.mxu0 0.0
    %1612 = vmatpush1.msra.mxu0 0.0
    %1613 = vmatprep.subr.mxu0 0.0
    %1614 = vmatpush1.msra.mxu0 0.0
    %1615 = vmatprep.subr.mxu0 0.0
    %1616 = vmatpush1.msra.mxu0 0.0
    %1617 = vmatprep.subr.mxu0 0.0
    %1618 = vmatpush1.msra.mxu0 0.0
    %1619 = vmatprep.subr.mxu0 0.0
    %1620 = vmatpush1.msra.mxu0 0.0
    %1621 = vmatprep.subr.mxu0 0.0
    %1622 = vmatpush1.msra.mxu0 0.0
    %1623 = vmatprep.subr.mxu0 0.0
    %1624 = vmatpush1.msra.mxu0 0.0
    %1625 = vmatprep.subr.mxu0 0.0
    %1626 = vmatpush1.msra.mxu0 0.0
    %1627 = vmatprep.subr.mxu0 0.0
    %1628 = vmatpush1.msra.mxu0 0.0
    %1629 = vmatprep.subr.mxu0 0.0
    %1630 = vmatpush1.msra.mxu0 0.0
    %1631 = vmatprep.subr.mxu0 0.0
    %1632 = vmatpush1.msra.mxu0 0.0
    %1633 = vmatprep.subr.mxu0 0.0
    %1634 = vmatpush1.msra.mxu0 0.0
    %1635 = vmatprep.subr.mxu0 0.0
    %1636 = vmatpush1.msra.mxu0 0.0
    %1637 = vmatprep.subr.mxu0 0.0
    %1638 = vmatpush1.msra.mxu0 0.0
    %1639 = vmatprep.subr.mxu0 0.0
    %1640 = vmatpush1.msra.mxu0 0.0
    %1641 = vmatprep.subr.mxu0 0.0
    %1642 = vmatpush1.msra.mxu0 0.0
    %1643 = vmatprep.subr.mxu0 0.0
    %1644 = vmatpush1.msra.mxu0 0.0
    %1645 = vmatprep.subr.mxu0 0.0
    %1646 = vmatpush1.msra.mxu0 0.0
    %1647 = vmatprep.subr.mxu0 0.0
    %1648 = vmatpush1.msra.mxu0 0.0
    %1649 = vmatprep.subr.mxu0 0.0
    %1650 = vmatpush1.msra.mxu0 0.0
    %1651 = vmatprep.subr.mxu0 0.0
    %1652 = vmatpush1.msra.mxu0 0.0
    %1653 = vmatprep.subr.mxu0 0.0
    %1654 = vmatpush1.msra.mxu0 0.0
    %1655 = vmatprep.subr.mxu0 0.0
    %1656 = vmatpush1.msra.mxu0 0.0
    %1657 = vmatprep.subr.mxu0 0.0
    %1658 = vmatpush1.msra.mxu0 0.0
    %1659 = vmatprep.mubr.f32.mxu0 0.0
    %1660 = vmatmul.mubr.f32.gmra.mrb[0].mxu0 %v1522
    %v1661 = vpop.f32.mrb[0].mxu0
    %v1662 = vadd.f32 0.0, %v1661
    %v1663 = vpop.f32.mrb[0].mxu0
    %v1664 = vadd.f32 0.0, %v1663
    %1665 = vdwg.mxu0
    %1666 = vmatprep.subr.mxu0 %v1510
    %1667 = vmatpush1.msra.mxu0 %v1509
    %1668 = vmatprep.subr.mxu0 0.0
    %1669 = vmatpush1.msra.mxu0 0.0
    %1670 = vmatprep.subr.mxu0 0.0
    %1671 = vmatpush1.msra.mxu0 0.0
    %1672 = vmatprep.subr.mxu0 0.0
    %1673 = vmatpush1.msra.mxu0 0.0
    %1674 = vmatprep.subr.mxu0 0.0
    %1675 = vmatpush1.msra.mxu0 0.0
    %1676 = vmatprep.subr.mxu0 0.0
    %1677 = vmatpush1.msra.mxu0 0.0
    %1678 = vmatprep.subr.mxu0 0.0
    %1679 = vmatpush1.msra.mxu0 0.0
    %1680 = vmatprep.subr.mxu0 0.0
    %1681 = vmatpush1.msra.mxu0 0.0
    %1682 = vmatprep.subr.mxu0 0.0
    %1683 = vmatpush1.msra.mxu0 0.0
    %1684 = vmatprep.subr.mxu0 0.0
    %1685 = vmatpush1.msra.mxu0 0.0
    %1686 = vmatprep.subr.mxu0 0.0
    %1687 = vmatpush1.msra.mxu0 0.0
    %1688 = vmatprep.subr.mxu0 0.0
    %1689 = vmatpush1.msra.mxu0 0.0
    %1690 = vmatprep.subr.mxu0 0.0
    %1691 = vmatpush1.msra.mxu0 0.0
    %1692 = vmatprep.subr.mxu0 0.0
    %1693 = vmatpush1.msra.mxu0 0.0
    %1694 = vmatprep.subr.mxu0 0.0
    %1695 = vmatpush1.msra.mxu0 0.0
    %1696 = vmatprep.subr.mxu0 0.0
    %1697 = vmatpush1.msra.mxu0 0.0
    %1698 = vmatprep.subr.mxu0 0.0
    %1699 = vmatpush1.msra.mxu0 0.0
    %1700 = vmatprep.subr.mxu0 0.0
    %1701 = vmatpush1.msra.mxu0 0.0
    %1702 = vmatprep.subr.mxu0 0.0
    %1703 = vmatpush1.msra.mxu0 0.0
    %1704 = vmatprep.subr.mxu0 0.0
    %1705 = vmatpush1.msra.mxu0 0.0
    %1706 = vmatprep.subr.mxu0 0.0
    %1707 = vmatpush1.msra.mxu0 0.0
    %1708 = vmatprep.subr.mxu0 0.0
    %1709 = vmatpush1.msra.mxu0 0.0
    %1710 = vmatprep.subr.mxu0 0.0
    %1711 = vmatpush1.msra.mxu0 0.0
    %1712 = vmatprep.subr.mxu0 0.0
    %1713 = vmatpush1.msra.mxu0 0.0
    %1714 = vmatprep.subr.mxu0 0.0
    %1715 = vmatpush1.msra.mxu0 0.0
    %1716 = vmatprep.subr.mxu0 0.0
    %1717 = vmatpush1.msra.mxu0 0.0
    %1718 = vmatprep.subr.mxu0 0.0
    %1719 = vmatpush1.msra.mxu0 0.0
    %1720 = vmatprep.subr.mxu0 0.0
    %1721 = vmatpush1.msra.mxu0 0.0
    %1722 = vmatprep.subr.mxu0 0.0
    %1723 = vmatpush1.msra.mxu0 0.0
    %1724 = vmatprep.subr.mxu0 0.0
    %1725 = vmatpush1.msra.mxu0 0.0
    %1726 = vmatprep.subr.mxu0 0.0
    %1727 = vmatpush1.msra.mxu0 0.0
    %1728 = vmatprep.subr.mxu0 0.0
    %1729 = vmatpush1.msra.mxu0 0.0
    %1730 = vmatprep.mubr.f32.mxu0 0.0
    %1731 = vmatmul.mubr.f32.gmra.mrb[0].mxu0 %v1522
    %v1732 = vpop.f32.mrb[0].mxu0
    %v1733 = vadd.f32 0.0, %v1732
    %v1734 = vpop.f32.mrb[0].mxu0
    %v1735 = vadd.f32 0.0, %v1734
    %1736 = vdwg.mxu0
    %1737 = vmatprep.subr.mxu0 %v1512
    %1738 = vmatpush1.msra.mxu0 %v1511
    %1739 = vmatprep.subr.mxu0 0.0
    %1740 = vmatpush1.msra.mxu0 0.0
    %1741 = vmatprep.subr.mxu0 0.0
    %1742 = vmatpush1.msra.mxu0 0.0
    %1743 = vmatprep.subr.mxu0 0.0
    %1744 = vmatpush1.msra.mxu0 0.0
    %1745 = vmatprep.subr.mxu0 0.0
    %1746 = vmatpush1.msra.mxu0 0.0
    %1747 = vmatprep.subr.mxu0 0.0
    %1748 = vmatpush1.msra.mxu0 0.0
    %1749 = vmatprep.subr.mxu0 0.0
    %1750 = vmatpush1.msra.mxu0 0.0
    %1751 = vmatprep.subr.mxu0 0.0
    %1752 = vmatpush1.msra.mxu0 0.0
    %1753 = vmatprep.subr.mxu0 0.0
    %1754 = vmatpush1.msra.mxu0 0.0
    %1755 = vmatprep.subr.mxu0 0.0
    %1756 = vmatpush1.msra.mxu0 0.0
    %1757 = vmatprep.subr.mxu0 0.0
    %1758 = vmatpush1.msra.mxu0 0.0
    %1759 = vmatprep.subr.mxu0 0.0
    %1760 = vmatpush1.msra.mxu0 0.0
    %1761 = vmatprep.subr.mxu0 0.0
    %1762 = vmatpush1.msra.mxu0 0.0
    %1763 = vmatprep.subr.mxu0 0.0
    %1764 = vmatpush1.msra.mxu0 0.0
    %1765 = vmatprep.subr.mxu0 0.0
    %1766 = vmatpush1.msra.mxu0 0.0
    %1767 = vmatprep.subr.mxu0 0.0
    %1768 = vmatpush1.msra.mxu0 0.0
    %1769 = vmatprep.subr.mxu0 0.0
    %1770 = vmatpush1.msra.mxu0 0.0
    %1771 = vmatprep.subr.mxu0 0.0
    %1772 = vmatpush1.msra.mxu0 0.0
    %1773 = vmatprep.subr.mxu0 0.0
    %1774 = vmatpush1.msra.mxu0 0.0
    %1775 = vmatprep.subr.mxu0 0.0
    %1776 = vmatpush1.msra.mxu0 0.0
    %1777 = vmatprep.subr.mxu0 0.0
    %1778 = vmatpush1.msra.mxu0 0.0
    %1779 = vmatprep.subr.mxu0 0.0
    %1780 = vmatpush1.msra.mxu0 0.0
    %1781 = vmatprep.subr.mxu0 0.0
    %1782 = vmatpush1.msra.mxu0 0.0
    %1783 = vmatprep.subr.mxu0 0.0
    %1784 = vmatpush1.msra.mxu0 0.0
    %1785 = vmatprep.subr.mxu0 0.0
    %1786 = vmatpush1.msra.mxu0 0.0
    %1787 = vmatprep.subr.mxu0 0.0
    %1788 = vmatpush1.msra.mxu0 0.0
    %1789 = vmatprep.subr.mxu0 0.0
    %1790 = vmatpush1.msra.mxu0 0.0
    %1791 = vmatprep.subr.mxu0 0.0
    %1792 = vmatpush1.msra.mxu0 0.0
    %1793 = vmatprep.subr.mxu0 0.0
    %1794 = vmatpush1.msra.mxu0 0.0
    %1795 = vmatprep.subr.mxu0 0.0
    %1796 = vmatpush1.msra.mxu0 0.0
    %1797 = vmatprep.subr.mxu0 0.0
    %1798 = vmatpush1.msra.mxu0 0.0
    %1799 = vmatprep.subr.mxu0 0.0
    %1800 = vmatpush1.msra.mxu0 0.0
    %1801 = vmatprep.mubr.f32.mxu0 0.0
    %1802 = vmatmul.mubr.f32.gmra.mrb[0].mxu0 %v1522
    %v1803 = vpop.f32.mrb[0].mxu0
    %v1804 = vadd.f32 0.0, %v1803
    %v1805 = vpop.f32.mrb[0].mxu0
    %v1806 = vadd.f32 0.0, %v1805
    %1807 = vdwg.mxu0
    %v1808 = vadd.f32 %v1458, %v1591
    %v1809 = vadd.f32 %v1459, %v1593
    %v1810 = vadd.f32 %v1460, %v1662
    %v1811 = vadd.f32 %v1461, %v1664
    %v1812 = vadd.f32 %v1462, %v1733
    %v1813 = vadd.f32 %v1463, %v1735
    %v1814 = vadd.f32 %v1464, %v1804
    %v1815 = vadd.f32 %v1465, %v1806
    %s1816 = scalar_lea.vmem %s2, 32
    %v1817 = vld [vmem:[%s1816] sm:$0xff]
    %1818 = vrot.lane.b32.xlu0 %v1468, 103
    %v1819 = vpop.permute.xlu0 %1818
    %1820 = vrot.lane.b32.xlu0 %v1469, 103
    %v1821 = vpop.permute.xlu0 %1820
    %1822 = vrot.lane.b32.xlu0 %v1470, 103
    %v1823 = vpop.permute.xlu0 %1822
    %1824 = vrot.lane.b32.xlu0 %v1471, 103
    %v1825 = vpop.permute.xlu0 %1824
    %1826 = vrot.lane.b32.xlu0 %v1472, 103
    %v1827 = vpop.permute.xlu0 %1826
    %1828 = vrot.lane.b32.xlu0 %v1473, 103
    %v1829 = vpop.permute.xlu0 %1828
    %1830 = vrot.lane.b32.xlu0 %v1474, 103
    %v1831 = vpop.permute.xlu0 %1830
    %1832 = vrot.lane.b32.xlu0 %v1475, 103
    %v1833 = vpop.permute.xlu0 %1832
    %1834 = vrot.lane.b32.xlu0 %v1476, 103
    %v1835 = vpop.permute.xlu0 %1834
    %vm1836 = vcmask 842752
    %v1837 = vsel %vm1836, %v1819, %v1821
    %v1838 = vsel %vm1836, %v1821, %v1823
    %v1839 = vsel %vm1836, %v1823, %v1825
    %v1840 = vsel %vm1836, %v1825, %v1827
    %v1841 = vsel %vm1836, %v1827, %v1829
    %v1842 = vsel %vm1836, %v1829, %v1831
    %v1843 = vsel %vm1836, %v1831, %v1833
    %v1844 = vsel %vm1836, %v1833, %v1835
    %v1854 = vsel %vm562, %v1817, 0
    %1856 = vmatprep.subr.mxu0 %v1838
    %1857 = vmatpush1.msra.mxu0 %v1837
    %1858 = vmatprep.subr.mxu0 0.0
    %1859 = vmatpush1.msra.mxu0 0.0
    %1860 = vmatprep.subr.mxu0 0.0
    %1861 = vmatpush1.msra.mxu0 0.0
    %1862 = vmatprep.subr.mxu0 0.0
    %1863 = vmatpush1.msra.mxu0 0.0
    %1864 = vmatprep.subr.mxu0 0.0
    %1865 = vmatpush1.msra.mxu0 0.0
    %1866 = vmatprep.subr.mxu0 0.0
    %1867 = vmatpush1.msra.mxu0 0.0
    %1868 = vmatprep.subr.mxu0 0.0
    %1869 = vmatpush1.msra.mxu0 0.0
    %1870 = vmatprep.subr.mxu0 0.0
    %1871 = vmatpush1.msra.mxu0 0.0
    %1872 = vmatprep.subr.mxu0 0.0
    %1873 = vmatpush1.msra.mxu0 0.0
    %1874 = vmatprep.subr.mxu0 0.0
    %1875 = vmatpush1.msra.mxu0 0.0
    %1876 = vmatprep.subr.mxu0 0.0
    %1877 = vmatpush1.msra.mxu0 0.0
    %1878 = vmatprep.subr.mxu0 0.0
    %1879 = vmatpush1.msra.mxu0 0.0
    %1880 = vmatprep.subr.mxu0 0.0
    %1881 = vmatpush1.msra.mxu0 0.0
    %1882 = vmatprep.subr.mxu0 0.0
    %1883 = vmatpush1.msra.mxu0 0.0
    %1884 = vmatprep.subr.mxu0 0.0
    %1885 = vmatpush1.msra.mxu0 0.0
    %1886 = vmatprep.subr.mxu0 0.0
    %1887 = vmatpush1.msra.mxu0 0.0
    %1888 = vmatprep.subr.mxu0 0.0
    %1889 = vmatpush1.msra.mxu0 0.0
    %1890 = vmatprep.subr.mxu0 0.0
    %1891 = vmatpush1.msra.mxu0 0.0
    %1892 = vmatprep.subr.mxu0 0.0
    %1893 = vmatpush1.msra.mxu0 0.0
    %1894 = vmatprep.subr.mxu0 0.0
    %1895 = vmatpush1.msra.mxu0 0.0
    %1896 = vmatprep.subr.mxu0 0.0
    %1897 = vmatpush1.msra.mxu0 0.0
    %1898 = vmatprep.subr.mxu0 0.0
    %1899 = vmatpush1.msra.mxu0 0.0
    %1900 = vmatprep.subr.mxu0 0.0
    %1901 = vmatpush1.msra.mxu0 0.0
    %1902 = vmatprep.subr.mxu0 0.0
    %1903 = vmatpush1.msra.mxu0 0.0
    %1904 = vmatprep.subr.mxu0 0.0
    %1905 = vmatpush1.msra.mxu0 0.0
    %1906 = vmatprep.subr.mxu0 0.0
    %1907 = vmatpush1.msra.mxu0 0.0
    %1908 = vmatprep.subr.mxu0 0.0
    %1909 = vmatpush1.msra.mxu0 0.0
    %1910 = vmatprep.subr.mxu0 0.0
    %1911 = vmatpush1.msra.mxu0 0.0
    %1912 = vmatprep.subr.mxu0 0.0
    %1913 = vmatpush1.msra.mxu0 0.0
    %1914 = vmatprep.subr.mxu0 0.0
    %1915 = vmatpush1.msra.mxu0 0.0
    %1916 = vmatprep.subr.mxu0 0.0
    %1917 = vmatpush1.msra.mxu0 0.0
    %1918 = vmatprep.subr.mxu0 0.0
    %1919 = vmatpush1.msra.mxu0 0.0
    %1920 = vmatprep.mubr.f32.mxu0 0.0
    %1921 = vmatmul.mubr.f32.gmra.mrb[0].mxu0 %v1854
    %v1922 = vpop.f32.mrb[0].mxu0
    %v1923 = vadd.f32 0.0, %v1922
    %v1924 = vpop.f32.mrb[0].mxu0
    %v1925 = vadd.f32 0.0, %v1924
    %1926 = vdwg.mxu0
    %1927 = vmatprep.subr.mxu0 %v1840
    %1928 = vmatpush1.msra.mxu0 %v1839
    %1929 = vmatprep.subr.mxu0 0.0
    %1930 = vmatpush1.msra.mxu0 0.0
    %1931 = vmatprep.subr.mxu0 0.0
    %1932 = vmatpush1.msra.mxu0 0.0
    %1933 = vmatprep.subr.mxu0 0.0
    %1934 = vmatpush1.msra.mxu0 0.0
    %1935 = vmatprep.subr.mxu0 0.0
    %1936 = vmatpush1.msra.mxu0 0.0
    %1937 = vmatprep.subr.mxu0 0.0
    %1938 = vmatpush1.msra.mxu0 0.0
    %1939 = vmatprep.subr.mxu0 0.0
    %1940 = vmatpush1.msra.mxu0 0.0
    %1941 = vmatprep.subr.mxu0 0.0
    %1942 = vmatpush1.msra.mxu0 0.0
    %1943 = vmatprep.subr.mxu0 0.0
    %1944 = vmatpush1.msra.mxu0 0.0
    %1945 = vmatprep.subr.mxu0 0.0
    %1946 = vmatpush1.msra.mxu0 0.0
    %1947 = vmatprep.subr.mxu0 0.0
    %1948 = vmatpush1.msra.mxu0 0.0
    %1949 = vmatprep.subr.mxu0 0.0
    %1950 = vmatpush1.msra.mxu0 0.0
    %1951 = vmatprep.subr.mxu0 0.0
    %1952 = vmatpush1.msra.mxu0 0.0
    %1953 = vmatprep.subr.mxu0 0.0
    %1954 = vmatpush1.msra.mxu0 0.0
    %1955 = vmatprep.subr.mxu0 0.0
    %1956 = vmatpush1.msra.mxu0 0.0
    %1957 = vmatprep.subr.mxu0 0.0
    %1958 = vmatpush1.msra.mxu0 0.0
    %1959 = vmatprep.subr.mxu0 0.0
    %1960 = vmatpush1.msra.mxu0 0.0
    %1961 = vmatprep.subr.mxu0 0.0
    %1962 = vmatpush1.msra.mxu0 0.0
    %1963 = vmatprep.subr.mxu0 0.0
    %1964 = vmatpush1.msra.mxu0 0.0
    %1965 = vmatprep.subr.mxu0 0.0
    %1966 = vmatpush1.msra.mxu0 0.0
    %1967 = vmatprep.subr.mxu0 0.0
    %1968 = vmatpush1.msra.mxu0 0.0
    %1969 = vmatprep.subr.mxu0 0.0
    %1970 = vmatpush1.msra.mxu0 0.0
    %1971 = vmatprep.subr.mxu0 0.0
    %1972 = vmatpush1.msra.mxu0 0.0
    %1973 = vmatprep.subr.mxu0 0.0
    %1974 = vmatpush1.msra.mxu0 0.0
    %1975 = vmatprep.subr.mxu0 0.0
    %1976 = vmatpush1.msra.mxu0 0.0
    %1977 = vmatprep.subr.mxu0 0.0
    %1978 = vmatpush1.msra.mxu0 0.0
    %1979 = vmatprep.subr.mxu0 0.0
    %1980 = vmatpush1.msra.mxu0 0.0
    %1981 = vmatprep.subr.mxu0 0.0
    %1982 = vmatpush1.msra.mxu0 0.0
    %1983 = vmatprep.subr.mxu0 0.0
    %1984 = vmatpush1.msra.mxu0 0.0
    %1985 = vmatprep.subr.mxu0 0.0
    %1986 = vmatpush1.msra.mxu0 0.0
    %1987 = vmatprep.subr.mxu0 0.0
    %1988 = vmatpush1.msra.mxu0 0.0
    %1989 = vmatprep.subr.mxu0 0.0
    %1990 = vmatpush1.msra.mxu0 0.0
    %1991 = vmatprep.mubr.f32.mxu0 0.0
    %1992 = vmatmul.mubr.f32.gmra.mrb[0].mxu0 %v1854
    %v1993 = vpop.f32.mrb[0].mxu0
    %v1994 = vadd.f32 0.0, %v1993
    %v1995 = vpop.f32.mrb[0].mxu0
    %v1996 = vadd.f32 0.0, %v1995
    %1997 = vdwg.mxu0
    %1998 = vmatprep.subr.mxu0 %v1842
    %1999 = vmatpush1.msra.mxu0 %v1841
    %2000 = vmatprep.subr.mxu0 0.0
    %2001 = vmatpush1.msra.mxu0 0.0
    %2002 = vmatprep.subr.mxu0 0.0
    %2003 = vmatpush1.msra.mxu0 0.0
    %2004 = vmatprep.subr.mxu0 0.0
    %2005 = vmatpush1.msra.mxu0 0.0
    %2006 = vmatprep.subr.mxu0 0.0
    %2007 = vmatpush1.msra.mxu0 0.0
    %2008 = vmatprep.subr.mxu0 0.0
    %2009 = vmatpush1.msra.mxu0 0.0
    %2010 = vmatprep.subr.mxu0 0.0
    %2011 = vmatpush1.msra.mxu0 0.0
    %2012 = vmatprep.subr.mxu0 0.0
    %2013 = vmatpush1.msra.mxu0 0.0
    %2014 = vmatprep.subr.mxu0 0.0
    %2015 = vmatpush1.msra.mxu0 0.0
    %2016 = vmatprep.subr.mxu0 0.0
    %2017 = vmatpush1.msra.mxu0 0.0
    %2018 = vmatprep.subr.mxu0 0.0
    %2019 = vmatpush1.msra.mxu0 0.0
    %2020 = vmatprep.subr.mxu0 0.0
    %2021 = vmatpush1.msra.mxu0 0.0
    %2022 = vmatprep.subr.mxu0 0.0
    %2023 = vmatpush1.msra.mxu0 0.0
    %2024 = vmatprep.subr.mxu0 0.0
    %2025 = vmatpush1.msra.mxu0 0.0
    %2026 = vmatprep.subr.mxu0 0.0
    %2027 = vmatpush1.msra.mxu0 0.0
    %2028 = vmatprep.subr.mxu0 0.0
    %2029 = vmatpush1.msra.mxu0 0.0
    %2030 = vmatprep.subr.mxu0 0.0
    %2031 = vmatpush1.msra.mxu0 0.0
    %2032 = vmatprep.subr.mxu0 0.0
    %2033 = vmatpush1.msra.mxu0 0.0
    %2034 = vmatprep.subr.mxu0 0.0
    %2035 = vmatpush1.msra.mxu0 0.0
    %2036 = vmatprep.subr.mxu0 0.0
    %2037 = vmatpush1.msra.mxu0 0.0
    %2038 = vmatprep.subr.mxu0 0.0
    %2039 = vmatpush1.msra.mxu0 0.0
    %2040 = vmatprep.subr.mxu0 0.0
    %2041 = vmatpush1.msra.mxu0 0.0
    %2042 = vmatprep.subr.mxu0 0.0
    %2043 = vmatpush1.msra.mxu0 0.0
    %2044 = vmatprep.subr.mxu0 0.0
    %2045 = vmatpush1.msra.mxu0 0.0
    %2046 = vmatprep.subr.mxu0 0.0
    %2047 = vmatpush1.msra.mxu0 0.0
    %2048 = vmatprep.subr.mxu0 0.0
    %2049 = vmatpush1.msra.mxu0 0.0
    %2050 = vmatprep.subr.mxu0 0.0
    %2051 = vmatpush1.msra.mxu0 0.0
    %2052 = vmatprep.subr.mxu0 0.0
    %2053 = vmatpush1.msra.mxu0 0.0
    %2054 = vmatprep.subr.mxu0 0.0
    %2055 = vmatpush1.msra.mxu0 0.0
    %2056 = vmatprep.subr.mxu0 0.0
    %2057 = vmatpush1.msra.mxu0 0.0
    %2058 = vmatprep.subr.mxu0 0.0
    %2059 = vmatpush1.msra.mxu0 0.0
    %2060 = vmatprep.subr.mxu0 0.0
    %2061 = vmatpush1.msra.mxu0 0.0
    %2062 = vmatprep.mubr.f32.mxu0 0.0
    %2063 = vmatmul.mubr.f32.gmra.mrb[0].mxu0 %v1854
    %v2064 = vpop.f32.mrb[0].mxu0
    %v2065 = vadd.f32 0.0, %v2064
    %v2066 = vpop.f32.mrb[0].mxu0
    %v2067 = vadd.f32 0.0, %v2066
    %2068 = vdwg.mxu0
    %2069 = vmatprep.subr.mxu0 %v1844
    %2070 = vmatpush1.msra.mxu0 %v1843
    %2071 = vmatprep.subr.mxu0 0.0
    %2072 = vmatpush1.msra.mxu0 0.0
    %2073 = vmatprep.subr.mxu0 0.0
    %2074 = vmatpush1.msra.mxu0 0.0
    %2075 = vmatprep.subr.mxu0 0.0
    %2076 = vmatpush1.msra.mxu0 0.0
    %2077 = vmatprep.subr.mxu0 0.0
    %2078 = vmatpush1.msra.mxu0 0.0
    %2079 = vmatprep.subr.mxu0 0.0
    %2080 = vmatpush1.msra.mxu0 0.0
    %2081 = vmatprep.subr.mxu0 0.0
    %2082 = vmatpush1.msra.mxu0 0.0
    %2083 = vmatprep.subr.mxu0 0.0
    %2084 = vmatpush1.msra.mxu0 0.0
    %2085 = vmatprep.subr.mxu0 0.0
    %2086 = vmatpush1.msra.mxu0 0.0
    %2087 = vmatprep.subr.mxu0 0.0
    %2088 = vmatpush1.msra.mxu0 0.0
    %2089 = vmatprep.subr.mxu0 0.0
    %2090 = vmatpush1.msra.mxu0 0.0
    %2091 = vmatprep.subr.mxu0 0.0
    %2092 = vmatpush1.msra.mxu0 0.0
    %2093 = vmatprep.subr.mxu0 0.0
    %2094 = vmatpush1.msra.mxu0 0.0
    %2095 = vmatprep.subr.mxu0 0.0
    %2096 = vmatpush1.msra.mxu0 0.0
    %2097 = vmatprep.subr.mxu0 0.0
    %2098 = vmatpush1.msra.mxu0 0.0
    %2099 = vmatprep.subr.mxu0 0.0
    %2100 = vmatpush1.msra.mxu0 0.0
    %2101 = vmatprep.subr.mxu0 0.0
    %2102 = vmatpush1.msra.mxu0 0.0
    %2103 = vmatprep.subr.mxu0 0.0
    %2104 = vmatpush1.msra.mxu0 0.0
    %2105 = vmatprep.subr.mxu0 0.0
    %2106 = vmatpush1.msra.mxu0 0.0
    %2107 = vmatprep.subr.mxu0 0.0
    %2108 = vmatpush1.msra.mxu0 0.0
    %2109 = vmatprep.subr.mxu0 0.0
    %2110 = vmatpush1.msra.mxu0 0.0
    %2111 = vmatprep.subr.mxu0 0.0
    %2112 = vmatpush1.msra.mxu0 0.0
    %2113 = vmatprep.subr.mxu0 0.0
    %2114 = vmatpush1.msra.mxu0 0.0
    %2115 = vmatprep.subr.mxu0 0.0
    %2116 = vmatpush1.msra.mxu0 0.0
    %2117 = vmatprep.subr.mxu0 0.0
    %2118 = vmatpush1.msra.mxu0 0.0
    %2119 = vmatprep.subr.mxu0 0.0
    %2120 = vmatpush1.msra.mxu0 0.0
    %2121 = vmatprep.subr.mxu0 0.0
    %2122 = vmatpush1.msra.mxu0 0.0
    %2123 = vmatprep.subr.mxu0 0.0
    %2124 = vmatpush1.msra.mxu0 0.0
    %2125 = vmatprep.subr.mxu0 0.0
    %2126 = vmatpush1.msra.mxu0 0.0
    %2127 = vmatprep.subr.mxu0 0.0
    %2128 = vmatpush1.msra.mxu0 0.0
    %2129 = vmatprep.subr.mxu0 0.0
    %2130 = vmatpush1.msra.mxu0 0.0
    %2131 = vmatprep.subr.mxu0 0.0
    %2132 = vmatpush1.msra.mxu0 0.0
    %2133 = vmatprep.mubr.f32.mxu0 0.0
    %2134 = vmatmul.mubr.f32.gmra.mrb[0].mxu0 %v1854
    %v2135 = vpop.f32.mrb[0].mxu0
    %v2136 = vadd.f32 0.0, %v2135
    %v2137 = vpop.f32.mrb[0].mxu0
    %v2138 = vadd.f32 0.0, %v2137
    %2139 = vdwg.mxu0
    %v2140 = vadd.f32 %v1808, %v1923
    %v2141 = vadd.f32 %v1809, %v1925
    %v2142 = vadd.f32 %v1810, %v1994
    %v2143 = vadd.f32 %v1811, %v1996
    %v2144 = vadd.f32 %v1812, %v2065
    %v2145 = vadd.f32 %v1813, %v2067
    %v2146 = vadd.f32 %v1814, %v2136
    %v2147 = vadd.f32 %v1815, %v2138
    %s2148 = scalar_lea.vmem %s2, 40
    %v2149 = vld [vmem:[%s2148] sm:$0xff]
    %2150 = vrot.lane.b32.xlu0 %v1468, 102
    %v2151 = vpop.permute.xlu0 %2150
    %2152 = vrot.lane.b32.xlu0 %v1469, 102
    %v2153 = vpop.permute.xlu0 %2152
    %2154 = vrot.lane.b32.xlu0 %v1470, 102
    %v2155 = vpop.permute.xlu0 %2154
    %2156 = vrot.lane.b32.xlu0 %v1471, 102
    %v2157 = vpop.permute.xlu0 %2156
    %2158 = vrot.lane.b32.xlu0 %v1472, 102
    %v2159 = vpop.permute.xlu0 %2158
    %2160 = vrot.lane.b32.xlu0 %v1473, 102
    %v2161 = vpop.permute.xlu0 %2160
    %2162 = vrot.lane.b32.xlu0 %v1474, 102
    %v2163 = vpop.permute.xlu0 %2162
    %2164 = vrot.lane.b32.xlu0 %v1475, 102
    %v2165 = vpop.permute.xlu0 %2164
    %2166 = vrot.lane.b32.xlu0 %v1476, 102
    %v2167 = vpop.permute.xlu0 %2166
    %vm2168 = vcmask 834560
    %v2169 = vsel %vm2168, %v2151, %v2153
    %v2170 = vsel %vm2168, %v2153, %v2155
    %v2171 = vsel %vm2168, %v2155, %v2157
    %v2172 = vsel %vm2168, %v2157, %v2159
    %v2173 = vsel %vm2168, %v2159, %v2161
    %v2174 = vsel %vm2168, %v2161, %v2163
    %v2175 = vsel %vm2168, %v2163, %v2165
    %v2176 = vsel %vm2168, %v2165, %v2167
    %v2186 = vsel %vm562, %v2149, 0
    %2188 = vmatprep.subr.mxu0 %v2170
    %2189 = vmatpush1.msra.mxu0 %v2169
    %2190 = vmatprep.subr.mxu0 0.0
    %2191 = vmatpush1.msra.mxu0 0.0
    %2192 = vmatprep.subr.mxu0 0.0
    %2193 = vmatpush1.msra.mxu0 0.0
    %2194 = vmatprep.subr.mxu0 0.0
    %2195 = vmatpush1.msra.mxu0 0.0
    %2196 = vmatprep.subr.mxu0 0.0
    %2197 = vmatpush1.msra.mxu0 0.0
    %2198 = vmatprep.subr.mxu0 0.0
    %2199 = vmatpush1.msra.mxu0 0.0
    %2200 = vmatprep.subr.mxu0 0.0
    %2201 = vmatpush1.msra.mxu0 0.0
    %2202 = vmatprep.subr.mxu0 0.0
    %2203 = vmatpush1.msra.mxu0 0.0
    %2204 = vmatprep.subr.mxu0 0.0
    %2205 = vmatpush1.msra.mxu0 0.0
    %2206 = vmatprep.subr.mxu0 0.0
    %2207 = vmatpush1.msra.mxu0 0.0
    %2208 = vmatprep.subr.mxu0 0.0
    %2209 = vmatpush1.msra.mxu0 0.0
    %2210 = vmatprep.subr.mxu0 0.0
    %2211 = vmatpush1.msra.mxu0 0.0
    %2212 = vmatprep.subr.mxu0 0.0
    %2213 = vmatpush1.msra.mxu0 0.0
    %2214 = vmatprep.subr.mxu0 0.0
    %2215 = vmatpush1.msra.mxu0 0.0
    %2216 = vmatprep.subr.mxu0 0.0
    %2217 = vmatpush1.msra.mxu0 0.0
    %2218 = vmatprep.subr.mxu0 0.0
    %2219 = vmatpush1.msra.mxu0 0.0
    %2220 = vmatprep.subr.mxu0 0.0
    %2221 = vmatpush1.msra.mxu0 0.0
    %2222 = vmatprep.subr.mxu0 0.0
    %2223 = vmatpush1.msra.mxu0 0.0
    %2224 = vmatprep.subr.mxu0 0.0
    %2225 = vmatpush1.msra.mxu0 0.0
    %2226 = vmatprep.subr.mxu0 0.0
    %2227 = vmatpush1.msra.mxu0 0.0
    %2228 = vmatprep.subr.mxu0 0.0
    %2229 = vmatpush1.msra.mxu0 0.0
    %2230 = vmatprep.subr.mxu0 0.0
    %2231 = vmatpush1.msra.mxu0 0.0
    %2232 = vmatprep.subr.mxu0 0.0
    %2233 = vmatpush1.msra.mxu0 0.0
    %2234 = vmatprep.subr.mxu0 0.0
    %2235 = vmatpush1.msra.mxu0 0.0
    %2236 = vmatprep.subr.mxu0 0.0
    %2237 = vmatpush1.msra.mxu0 0.0
    %2238 = vmatprep.subr.mxu0 0.0
    %2239 = vmatpush1.msra.mxu0 0.0
    %2240 = vmatprep.subr.mxu0 0.0
    %2241 = vmatpush1.msra.mxu0 0.0
    %2242 = vmatprep.subr.mxu0 0.0
    %2243 = vmatpush1.msra.mxu0 0.0
    %2244 = vmatprep.subr.mxu0 0.0
    %2245 = vmatpush1.msra.mxu0 0.0
    %2246 = vmatprep.subr.mxu0 0.0
    %2247 = vmatpush1.msra.mxu0 0.0
    %2248 = vmatprep.subr.mxu0 0.0
    %2249 = vmatpush1.msra.mxu0 0.0
    %2250 = vmatprep.subr.mxu0 0.0
    %2251 = vmatpush1.msra.mxu0 0.0
    %2252 = vmatprep.mubr.f32.mxu0 0.0
    %2253 = vmatmul.mubr.f32.gmra.mrb[0].mxu0 %v2186
    %v2254 = vpop.f32.mrb[0].mxu0
    %v2255 = vadd.f32 0.0, %v2254
    %v2256 = vpop.f32.mrb[0].mxu0
    %v2257 = vadd.f32 0.0, %v2256
    %2258 = vdwg.mxu0
    %2259 = vmatprep.subr.mxu0 %v2172
    %2260 = vmatpush1.msra.mxu0 %v2171
    %2261 = vmatprep.subr.mxu0 0.0
    %2262 = vmatpush1.msra.mxu0 0.0
    %2263 = vmatprep.subr.mxu0 0.0
    %2264 = vmatpush1.msra.mxu0 0.0
    %2265 = vmatprep.subr.mxu0 0.0
    %2266 = vmatpush1.msra.mxu0 0.0
    %2267 = vmatprep.subr.mxu0 0.0
    %2268 = vmatpush1.msra.mxu0 0.0
    %2269 = vmatprep.subr.mxu0 0.0
    %2270 = vmatpush1.msra.mxu0 0.0
    %2271 = vmatprep.subr.mxu0 0.0
    %2272 = vmatpush1.msra.mxu0 0.0
    %2273 = vmatprep.subr.mxu0 0.0
    %2274 = vmatpush1.msra.mxu0 0.0
    %2275 = vmatprep.subr.mxu0 0.0
    %2276 = vmatpush1.msra.mxu0 0.0
    %2277 = vmatprep.subr.mxu0 0.0
    %2278 = vmatpush1.msra.mxu0 0.0
    %2279 = vmatprep.subr.mxu0 0.0
    %2280 = vmatpush1.msra.mxu0 0.0
    %2281 = vmatprep.subr.mxu0 0.0
    %2282 = vmatpush1.msra.mxu0 0.0
    %2283 = vmatprep.subr.mxu0 0.0
    %2284 = vmatpush1.msra.mxu0 0.0
    %2285 = vmatprep.subr.mxu0 0.0
    %2286 = vmatpush1.msra.mxu0 0.0
    %2287 = vmatprep.subr.mxu0 0.0
    %2288 = vmatpush1.msra.mxu0 0.0
    %2289 = vmatprep.subr.mxu0 0.0
    %2290 = vmatpush1.msra.mxu0 0.0
    %2291 = vmatprep.subr.mxu0 0.0
    %2292 = vmatpush1.msra.mxu0 0.0
    %2293 = vmatprep.subr.mxu0 0.0
    %2294 = vmatpush1.msra.mxu0 0.0
    %2295 = vmatprep.subr.mxu0 0.0
    %2296 = vmatpush1.msra.mxu0 0.0
    %2297 = vmatprep.subr.mxu0 0.0
    %2298 = vmatpush1.msra.mxu0 0.0
    %2299 = vmatprep.subr.mxu0 0.0
    %2300 = vmatpush1.msra.mxu0 0.0
    %2301 = vmatprep.subr.mxu0 0.0
    %2302 = vmatpush1.msra.mxu0 0.0
    %2303 = vmatprep.subr.mxu0 0.0
    %2304 = vmatpush1.msra.mxu0 0.0
    %2305 = vmatprep.subr.mxu0 0.0
    %2306 = vmatpush1.msra.mxu0 0.0
    %2307 = vmatprep.subr.mxu0 0.0
    %2308 = vmatpush1.msra.mxu0 0.0
    %2309 = vmatprep.subr.mxu0 0.0
    %2310 = vmatpush1.msra.mxu0 0.0
    %2311 = vmatprep.subr.mxu0 0.0
    %2312 = vmatpush1.msra.mxu0 0.0
    %2313 = vmatprep.subr.mxu0 0.0
    %2314 = vmatpush1.msra.mxu0 0.0
    %2315 = vmatprep.subr.mxu0 0.0
    %2316 = vmatpush1.msra.mxu0 0.0
    %2317 = vmatprep.subr.mxu0 0.0
    %2318 = vmatpush1.msra.mxu0 0.0
    %2319 = vmatprep.subr.mxu0 0.0
    %2320 = vmatpush1.msra.mxu0 0.0
    %2321 = vmatprep.subr.mxu0 0.0
    %2322 = vmatpush1.msra.mxu0 0.0
    %2323 = vmatprep.mubr.f32.mxu0 0.0
    %2324 = vmatmul.mubr.f32.gmra.mrb[0].mxu0 %v2186
    %v2325 = vpop.f32.mrb[0].mxu0
    %v2326 = vadd.f32 0.0, %v2325
    %v2327 = vpop.f32.mrb[0].mxu0
    %v2328 = vadd.f32 0.0, %v2327
    %2329 = vdwg.mxu0
    %2330 = vmatprep.subr.mxu0 %v2174
    %2331 = vmatpush1.msra.mxu0 %v2173
    %2332 = vmatprep.subr.mxu0 0.0
    %2333 = vmatpush1.msra.mxu0 0.0
    %2334 = vmatprep.subr.mxu0 0.0
    %2335 = vmatpush1.msra.mxu0 0.0
    %2336 = vmatprep.subr.mxu0 0.0
    %2337 = vmatpush1.msra.mxu0 0.0
    %2338 = vmatprep.subr.mxu0 0.0
    %2339 = vmatpush1.msra.mxu0 0.0
    %2340 = vmatprep.subr.mxu0 0.0
    %2341 = vmatpush1.msra.mxu0 0.0
    %2342 = vmatprep.subr.mxu0 0.0
    %2343 = vmatpush1.msra.mxu0 0.0
    %2344 = vmatprep.subr.mxu0 0.0
    %2345 = vmatpush1.msra.mxu0 0.0
    %2346 = vmatprep.subr.mxu0 0.0
    %2347 = vmatpush1.msra.mxu0 0.0
    %2348 = vmatprep.subr.mxu0 0.0
    %2349 = vmatpush1.msra.mxu0 0.0
    %2350 = vmatprep.subr.mxu0 0.0
    %2351 = vmatpush1.msra.mxu0 0.0
    %2352 = vmatprep.subr.mxu0 0.0
    %2353 = vmatpush1.msra.mxu0 0.0
    %2354 = vmatprep.subr.mxu0 0.0
    %2355 = vmatpush1.msra.mxu0 0.0
    %2356 = vmatprep.subr.mxu0 0.0
    %2357 = vmatpush1.msra.mxu0 0.0
    %2358 = vmatprep.subr.mxu0 0.0
    %2359 = vmatpush1.msra.mxu0 0.0
    %2360 = vmatprep.subr.mxu0 0.0
    %2361 = vmatpush1.msra.mxu0 0.0
    %2362 = vmatprep.subr.mxu0 0.0
    %2363 = vmatpush1.msra.mxu0 0.0
    %2364 = vmatprep.subr.mxu0 0.0
    %2365 = vmatpush1.msra.mxu0 0.0
    %2366 = vmatprep.subr.mxu0 0.0
    %2367 = vmatpush1.msra.mxu0 0.0
    %2368 = vmatprep.subr.mxu0 0.0
    %2369 = vmatpush1.msra.mxu0 0.0
    %2370 = vmatprep.subr.mxu0 0.0
    %2371 = vmatpush1.msra.mxu0 0.0
    %2372 = vmatprep.subr.mxu0 0.0
    %2373 = vmatpush1.msra.mxu0 0.0
    %2374 = vmatprep.subr.mxu0 0.0
    %2375 = vmatpush1.msra.mxu0 0.0
    %2376 = vmatprep.subr.mxu0 0.0
    %2377 = vmatpush1.msra.mxu0 0.0
    %2378 = vmatprep.subr.mxu0 0.0
    %2379 = vmatpush1.msra.mxu0 0.0
    %2380 = vmatprep.subr.mxu0 0.0
    %2381 = vmatpush1.msra.mxu0 0.0
    %2382 = vmatprep.subr.mxu0 0.0
    %2383 = vmatpush1.msra.mxu0 0.0
    %2384 = vmatprep.subr.mxu0 0.0
    %2385 = vmatpush1.msra.mxu0 0.0
    %2386 = vmatprep.subr.mxu0 0.0
    %2387 = vmatpush1.msra.mxu0 0.0
    %2388 = vmatprep.subr.mxu0 0.0
    %2389 = vmatpush1.msra.mxu0 0.0
    %2390 = vmatprep.subr.mxu0 0.0
    %2391 = vmatpush1.msra.mxu0 0.0
    %2392 = vmatprep.subr.mxu0 0.0
    %2393 = vmatpush1.msra.mxu0 0.0
    %2394 = vmatprep.mubr.f32.mxu0 0.0
    %2395 = vmatmul.mubr.f32.gmra.mrb[0].mxu0 %v2186
    %v2396 = vpop.f32.mrb[0].mxu0
    %v2397 = vadd.f32 0.0, %v2396
    %v2398 = vpop.f32.mrb[0].mxu0
    %v2399 = vadd.f32 0.0, %v2398
    %2400 = vdwg.mxu0
    %2401 = vmatprep.subr.mxu0 %v2176
    %2402 = vmatpush1.msra.mxu0 %v2175
    %2403 = vmatprep.subr.mxu0 0.0
    %2404 = vmatpush1.msra.mxu0 0.0
    %2405 = vmatprep.subr.mxu0 0.0
    %2406 = vmatpush1.msra.mxu0 0.0
    %2407 = vmatprep.subr.mxu0 0.0
    %2408 = vmatpush1.msra.mxu0 0.0
    %2409 = vmatprep.subr.mxu0 0.0
    %2410 = vmatpush1.msra.mxu0 0.0
    %2411 = vmatprep.subr.mxu0 0.0
    %2412 = vmatpush1.msra.mxu0 0.0
    %2413 = vmatprep.subr.mxu0 0.0
    %2414 = vmatpush1.msra.mxu0 0.0
    %2415 = vmatprep.subr.mxu0 0.0
    %2416 = vmatpush1.msra.mxu0 0.0
    %2417 = vmatprep.subr.mxu0 0.0
    %2418 = vmatpush1.msra.mxu0 0.0
    %2419 = vmatprep.subr.mxu0 0.0
    %2420 = vmatpush1.msra.mxu0 0.0
    %2421 = vmatprep.subr.mxu0 0.0
    %2422 = vmatpush1.msra.mxu0 0.0
    %2423 = vmatprep.subr.mxu0 0.0
    %2424 = vmatpush1.msra.mxu0 0.0
    %2425 = vmatprep.subr.mxu0 0.0
    %2426 = vmatpush1.msra.mxu0 0.0
    %2427 = vmatprep.subr.mxu0 0.0
    %2428 = vmatpush1.msra.mxu0 0.0
    %2429 = vmatprep.subr.mxu0 0.0
    %2430 = vmatpush1.msra.mxu0 0.0
    %2431 = vmatprep.subr.mxu0 0.0
    %2432 = vmatpush1.msra.mxu0 0.0
    %2433 = vmatprep.subr.mxu0 0.0
    %2434 = vmatpush1.msra.mxu0 0.0
    %2435 = vmatprep.subr.mxu0 0.0
    %2436 = vmatpush1.msra.mxu0 0.0
    %2437 = vmatprep.subr.mxu0 0.0
    %2438 = vmatpush1.msra.mxu0 0.0
    %2439 = vmatprep.subr.mxu0 0.0
    %2440 = vmatpush1.msra.mxu0 0.0
    %2441 = vmatprep.subr.mxu0 0.0
    %2442 = vmatpush1.msra.mxu0 0.0
    %2443 = vmatprep.subr.mxu0 0.0
    %2444 = vmatpush1.msra.mxu0 0.0
    %2445 = vmatprep.subr.mxu0 0.0
    %2446 = vmatpush1.msra.mxu0 0.0
    %2447 = vmatprep.subr.mxu0 0.0
    %2448 = vmatpush1.msra.mxu0 0.0
    %2449 = vmatprep.subr.mxu0 0.0
    %2450 = vmatpush1.msra.mxu0 0.0
    %2451 = vmatprep.subr.mxu0 0.0
    %2452 = vmatpush1.msra.mxu0 0.0
    %2453 = vmatprep.subr.mxu0 0.0
    %2454 = vmatpush1.msra.mxu0 0.0
    %2455 = vmatprep.subr.mxu0 0.0
    %2456 = vmatpush1.msra.mxu0 0.0
    %2457 = vmatprep.subr.mxu0 0.0
    %2458 = vmatpush1.msra.mxu0 0.0
    %2459 = vmatprep.subr.mxu0 0.0
    %2460 = vmatpush1.msra.mxu0 0.0
    %2461 = vmatprep.subr.mxu0 0.0
    %2462 = vmatpush1.msra.mxu0 0.0
    %2463 = vmatprep.subr.mxu0 0.0
    %2464 = vmatpush1.msra.mxu0 0.0
    %2465 = vmatprep.mubr.f32.mxu0 0.0
    %2466 = vmatmul.mubr.f32.gmra.mrb[0].mxu0 %v2186
    %v2467 = vpop.f32.mrb[0].mxu0
    %v2468 = vadd.f32 0.0, %v2467
    %v2469 = vpop.f32.mrb[0].mxu0
    %v2470 = vadd.f32 0.0, %v2469
    %2471 = vdwg.mxu0
    %v2472 = vadd.f32 %v2140, %v2255
    %v2473 = vadd.f32 %v2141, %v2257
    %v2474 = vadd.f32 %v2142, %v2326
    %v2475 = vadd.f32 %v2143, %v2328
    %v2476 = vadd.f32 %v2144, %v2397
    %v2477 = vadd.f32 %v2145, %v2399
    %v2478 = vadd.f32 %v2146, %v2468
    %v2479 = vadd.f32 %v2147, %v2470
    %s2480 = scalar_lea.vmem %s2, 48
    %v2481 = vld [vmem:[%s2480] sm:$0xff]
    %2482 = vrot.lane.b32.xlu0 %v1468, 80
    %v2483 = vpop.permute.xlu0 %2482
    %2484 = vrot.lane.b32.xlu0 %v1469, 80
    %v2485 = vpop.permute.xlu0 %2484
    %2486 = vrot.lane.b32.xlu0 %v1470, 80
    %v2487 = vpop.permute.xlu0 %2486
    %2488 = vrot.lane.b32.xlu0 %v1471, 80
    %v2489 = vpop.permute.xlu0 %2488
    %2490 = vrot.lane.b32.xlu0 %v1472, 80
    %v2491 = vpop.permute.xlu0 %2490
    %2492 = vrot.lane.b32.xlu0 %v1473, 80
    %v2493 = vpop.permute.xlu0 %2492
    %2494 = vrot.lane.b32.xlu0 %v1474, 80
    %v2495 = vpop.permute.xlu0 %2494
    %2496 = vrot.lane.b32.xlu0 %v1475, 80
    %v2497 = vpop.permute.xlu0 %2496
    %2498 = vrot.lane.b32.xlu0 %v1476, 80
    %v2499 = vpop.permute.xlu0 %2498
    %vm2500 = vcmask 654336
    %v2501 = vsel %vm2500, %v2483, %v2485
    %v2502 = vsel %vm2500, %v2485, %v2487
    %v2503 = vsel %vm2500, %v2487, %v2489
    %v2504 = vsel %vm2500, %v2489, %v2491
    %v2505 = vsel %vm2500, %v2491, %v2493
    %v2506 = vsel %vm2500, %v2493, %v2495
    %v2507 = vsel %vm2500, %v2495, %v2497
    %v2508 = vsel %vm2500, %v2497, %v2499
    %v2518 = vsel %vm562, %v2481, 0
    %2520 = vmatprep.subr.mxu0 %v2502
    %2521 = vmatpush1.msra.mxu0 %v2501
    %2522 = vmatprep.subr.mxu0 0.0
    %2523 = vmatpush1.msra.mxu0 0.0
    %2524 = vmatprep.subr.mxu0 0.0
    %2525 = vmatpush1.msra.mxu0 0.0
    %2526 = vmatprep.subr.mxu0 0.0
    %2527 = vmatpush1.msra.mxu0 0.0
    %2528 = vmatprep.subr.mxu0 0.0
    %2529 = vmatpush1.msra.mxu0 0.0
    %2530 = vmatprep.subr.mxu0 0.0
    %2531 = vmatpush1.msra.mxu0 0.0
    %2532 = vmatprep.subr.mxu0 0.0
    %2533 = vmatpush1.msra.mxu0 0.0
    %2534 = vmatprep.subr.mxu0 0.0
    %2535 = vmatpush1.msra.mxu0 0.0
    %2536 = vmatprep.subr.mxu0 0.0
    %2537 = vmatpush1.msra.mxu0 0.0
    %2538 = vmatprep.subr.mxu0 0.0
    %2539 = vmatpush1.msra.mxu0 0.0
    %2540 = vmatprep.subr.mxu0 0.0
    %2541 = vmatpush1.msra.mxu0 0.0
    %2542 = vmatprep.subr.mxu0 0.0
    %2543 = vmatpush1.msra.mxu0 0.0
    %2544 = vmatprep.subr.mxu0 0.0
    %2545 = vmatpush1.msra.mxu0 0.0
    %2546 = vmatprep.subr.mxu0 0.0
    %2547 = vmatpush1.msra.mxu0 0.0
    %2548 = vmatprep.subr.mxu0 0.0
    %2549 = vmatpush1.msra.mxu0 0.0
    %2550 = vmatprep.subr.mxu0 0.0
    %2551 = vmatpush1.msra.mxu0 0.0
    %2552 = vmatprep.subr.mxu0 0.0
    %2553 = vmatpush1.msra.mxu0 0.0
    %2554 = vmatprep.subr.mxu0 0.0
    %2555 = vmatpush1.msra.mxu0 0.0
    %2556 = vmatprep.subr.mxu0 0.0
    %2557 = vmatpush1.msra.mxu0 0.0
    %2558 = vmatprep.subr.mxu0 0.0
    %2559 = vmatpush1.msra.mxu0 0.0
    %2560 = vmatprep.subr.mxu0 0.0
    %2561 = vmatpush1.msra.mxu0 0.0
    %2562 = vmatprep.subr.mxu0 0.0
    %2563 = vmatpush1.msra.mxu0 0.0
    %2564 = vmatprep.subr.mxu0 0.0
    %2565 = vmatpush1.msra.mxu0 0.0
    %2566 = vmatprep.subr.mxu0 0.0
    %2567 = vmatpush1.msra.mxu0 0.0
    %2568 = vmatprep.subr.mxu0 0.0
    %2569 = vmatpush1.msra.mxu0 0.0
    %2570 = vmatprep.subr.mxu0 0.0
    %2571 = vmatpush1.msra.mxu0 0.0
    %2572 = vmatprep.subr.mxu0 0.0
    %2573 = vmatpush1.msra.mxu0 0.0
    %2574 = vmatprep.subr.mxu0 0.0
    %2575 = vmatpush1.msra.mxu0 0.0
    %2576 = vmatprep.subr.mxu0 0.0
    %2577 = vmatpush1.msra.mxu0 0.0
    %2578 = vmatprep.subr.mxu0 0.0
    %2579 = vmatpush1.msra.mxu0 0.0
    %2580 = vmatprep.subr.mxu0 0.0
    %2581 = vmatpush1.msra.mxu0 0.0
    %2582 = vmatprep.subr.mxu0 0.0
    %2583 = vmatpush1.msra.mxu0 0.0
    %2584 = vmatprep.mubr.f32.mxu0 0.0
    %2585 = vmatmul.mubr.f32.gmra.mrb[0].mxu0 %v2518
    %v2586 = vpop.f32.mrb[0].mxu0
    %v2587 = vadd.f32 0.0, %v2586
    %v2588 = vpop.f32.mrb[0].mxu0
    %v2589 = vadd.f32 0.0, %v2588
    %2590 = vdwg.mxu0
    %2591 = vmatprep.subr.mxu0 %v2504
    %2592 = vmatpush1.msra.mxu0 %v2503
    %2593 = vmatprep.subr.mxu0 0.0
    %2594 = vmatpush1.msra.mxu0 0.0
    %2595 = vmatprep.subr.mxu0 0.0
    %2596 = vmatpush1.msra.mxu0 0.0
    %2597 = vmatprep.subr.mxu0 0.0
    %2598 = vmatpush1.msra.mxu0 0.0
    %2599 = vmatprep.subr.mxu0 0.0
    %2600 = vmatpush1.msra.mxu0 0.0
    %2601 = vmatprep.subr.mxu0 0.0
    %2602 = vmatpush1.msra.mxu0 0.0
    %2603 = vmatprep.subr.mxu0 0.0
    %2604 = vmatpush1.msra.mxu0 0.0
    %2605 = vmatprep.subr.mxu0 0.0
    %2606 = vmatpush1.msra.mxu0 0.0
    %2607 = vmatprep.subr.mxu0 0.0
    %2608 = vmatpush1.msra.mxu0 0.0
    %2609 = vmatprep.subr.mxu0 0.0
    %2610 = vmatpush1.msra.mxu0 0.0
    %2611 = vmatprep.subr.mxu0 0.0
    %2612 = vmatpush1.msra.mxu0 0.0
    %2613 = vmatprep.subr.mxu0 0.0
    %2614 = vmatpush1.msra.mxu0 0.0
    %2615 = vmatprep.subr.mxu0 0.0
    %2616 = vmatpush1.msra.mxu0 0.0
    %2617 = vmatprep.subr.mxu0 0.0
    %2618 = vmatpush1.msra.mxu0 0.0
    %2619 = vmatprep.subr.mxu0 0.0
    %2620 = vmatpush1.msra.mxu0 0.0
    %2621 = vmatprep.subr.mxu0 0.0
    %2622 = vmatpush1.msra.mxu0 0.0
    %2623 = vmatprep.subr.mxu0 0.0
    %2624 = vmatpush1.msra.mxu0 0.0
    %2625 = vmatprep.subr.mxu0 0.0
    %2626 = vmatpush1.msra.mxu0 0.0
    %2627 = vmatprep.subr.mxu0 0.0
    %2628 = vmatpush1.msra.mxu0 0.0
    %2629 = vmatprep.subr.mxu0 0.0
    %2630 = vmatpush1.msra.mxu0 0.0
    %2631 = vmatprep.subr.mxu0 0.0
    %2632 = vmatpush1.msra.mxu0 0.0
    %2633 = vmatprep.subr.mxu0 0.0
    %2634 = vmatpush1.msra.mxu0 0.0
    %2635 = vmatprep.subr.mxu0 0.0
    %2636 = vmatpush1.msra.mxu0 0.0
    %2637 = vmatprep.subr.mxu0 0.0
    %2638 = vmatpush1.msra.mxu0 0.0
    %2639 = vmatprep.subr.mxu0 0.0
    %2640 = vmatpush1.msra.mxu0 0.0
    %2641 = vmatprep.subr.mxu0 0.0
    %2642 = vmatpush1.msra.mxu0 0.0
    %2643 = vmatprep.subr.mxu0 0.0
    %2644 = vmatpush1.msra.mxu0 0.0
    %2645 = vmatprep.subr.mxu0 0.0
    %2646 = vmatpush1.msra.mxu0 0.0
    %2647 = vmatprep.subr.mxu0 0.0
    %2648 = vmatpush1.msra.mxu0 0.0
    %2649 = vmatprep.subr.mxu0 0.0
    %2650 = vmatpush1.msra.mxu0 0.0
    %2651 = vmatprep.subr.mxu0 0.0
    %2652 = vmatpush1.msra.mxu0 0.0
    %2653 = vmatprep.subr.mxu0 0.0
    %2654 = vmatpush1.msra.mxu0 0.0
    %2655 = vmatprep.mubr.f32.mxu0 0.0
    %2656 = vmatmul.mubr.f32.gmra.mrb[0].mxu0 %v2518
    %v2657 = vpop.f32.mrb[0].mxu0
    %v2658 = vadd.f32 0.0, %v2657
    %v2659 = vpop.f32.mrb[0].mxu0
    %v2660 = vadd.f32 0.0, %v2659
    %2661 = vdwg.mxu0
    %2662 = vmatprep.subr.mxu0 %v2506
    %2663 = vmatpush1.msra.mxu0 %v2505
    %2664 = vmatprep.subr.mxu0 0.0
    %2665 = vmatpush1.msra.mxu0 0.0
    %2666 = vmatprep.subr.mxu0 0.0
    %2667 = vmatpush1.msra.mxu0 0.0
    %2668 = vmatprep.subr.mxu0 0.0
    %2669 = vmatpush1.msra.mxu0 0.0
    %2670 = vmatprep.subr.mxu0 0.0
    %2671 = vmatpush1.msra.mxu0 0.0
    %2672 = vmatprep.subr.mxu0 0.0
    %2673 = vmatpush1.msra.mxu0 0.0
    %2674 = vmatprep.subr.mxu0 0.0
    %2675 = vmatpush1.msra.mxu0 0.0
    %2676 = vmatprep.subr.mxu0 0.0
    %2677 = vmatpush1.msra.mxu0 0.0
    %2678 = vmatprep.subr.mxu0 0.0
    %2679 = vmatpush1.msra.mxu0 0.0
    %2680 = vmatprep.subr.mxu0 0.0
    %2681 = vmatpush1.msra.mxu0 0.0
    %2682 = vmatprep.subr.mxu0 0.0
    %2683 = vmatpush1.msra.mxu0 0.0
    %2684 = vmatprep.subr.mxu0 0.0
    %2685 = vmatpush1.msra.mxu0 0.0
    %2686 = vmatprep.subr.mxu0 0.0
    %2687 = vmatpush1.msra.mxu0 0.0
    %2688 = vmatprep.subr.mxu0 0.0
    %2689 = vmatpush1.msra.mxu0 0.0
    %2690 = vmatprep.subr.mxu0 0.0
    %2691 = vmatpush1.msra.mxu0 0.0
    %2692 = vmatprep.subr.mxu0 0.0
    %2693 = vmatpush1.msra.mxu0 0.0
    %2694 = vmatprep.subr.mxu0 0.0
    %2695 = vmatpush1.msra.mxu0 0.0
    %2696 = vmatprep.subr.mxu0 0.0
    %2697 = vmatpush1.msra.mxu0 0.0
    %2698 = vmatprep.subr.mxu0 0.0
    %2699 = vmatpush1.msra.mxu0 0.0
    %2700 = vmatprep.subr.mxu0 0.0
    %2701 = vmatpush1.msra.mxu0 0.0
    %2702 = vmatprep.subr.mxu0 0.0
    %2703 = vmatpush1.msra.mxu0 0.0
    %2704 = vmatprep.subr.mxu0 0.0
    %2705 = vmatpush1.msra.mxu0 0.0
    %2706 = vmatprep.subr.mxu0 0.0
    %2707 = vmatpush1.msra.mxu0 0.0
    %2708 = vmatprep.subr.mxu0 0.0
    %2709 = vmatpush1.msra.mxu0 0.0
    %2710 = vmatprep.subr.mxu0 0.0
    %2711 = vmatpush1.msra.mxu0 0.0
    %2712 = vmatprep.subr.mxu0 0.0
    %2713 = vmatpush1.msra.mxu0 0.0
    %2714 = vmatprep.subr.mxu0 0.0
    %2715 = vmatpush1.msra.mxu0 0.0
    %2716 = vmatprep.subr.mxu0 0.0
    %2717 = vmatpush1.msra.mxu0 0.0
    %2718 = vmatprep.subr.mxu0 0.0
    %2719 = vmatpush1.msra.mxu0 0.0
    %2720 = vmatprep.subr.mxu0 0.0
    %2721 = vmatpush1.msra.mxu0 0.0
    %2722 = vmatprep.subr.mxu0 0.0
    %2723 = vmatpush1.msra.mxu0 0.0
    %2724 = vmatprep.subr.mxu0 0.0
    %2725 = vmatpush1.msra.mxu0 0.0
    %2726 = vmatprep.mubr.f32.mxu0 0.0
    %2727 = vmatmul.mubr.f32.gmra.mrb[0].mxu0 %v2518
    %v2728 = vpop.f32.mrb[0].mxu0
    %v2729 = vadd.f32 0.0, %v2728
    %v2730 = vpop.f32.mrb[0].mxu0
    %v2731 = vadd.f32 0.0, %v2730
    %2732 = vdwg.mxu0
    %2733 = vmatprep.subr.mxu0 %v2508
    %2734 = vmatpush1.msra.mxu0 %v2507
    %2735 = vmatprep.subr.mxu0 0.0
    %2736 = vmatpush1.msra.mxu0 0.0
    %2737 = vmatprep.subr.mxu0 0.0
    %2738 = vmatpush1.msra.mxu0 0.0
    %2739 = vmatprep.subr.mxu0 0.0
    %2740 = vmatpush1.msra.mxu0 0.0
    %2741 = vmatprep.subr.mxu0 0.0
    %2742 = vmatpush1.msra.mxu0 0.0
    %2743 = vmatprep.subr.mxu0 0.0
    %2744 = vmatpush1.msra.mxu0 0.0
    %2745 = vmatprep.subr.mxu0 0.0
    %2746 = vmatpush1.msra.mxu0 0.0
    %2747 = vmatprep.subr.mxu0 0.0
    %2748 = vmatpush1.msra.mxu0 0.0
    %2749 = vmatprep.subr.mxu0 0.0
    %2750 = vmatpush1.msra.mxu0 0.0
    %2751 = vmatprep.subr.mxu0 0.0
    %2752 = vmatpush1.msra.mxu0 0.0
    %2753 = vmatprep.subr.mxu0 0.0
    %2754 = vmatpush1.msra.mxu0 0.0
    %2755 = vmatprep.subr.mxu0 0.0
    %2756 = vmatpush1.msra.mxu0 0.0
    %2757 = vmatprep.subr.mxu0 0.0
    %2758 = vmatpush1.msra.mxu0 0.0
    %2759 = vmatprep.subr.mxu0 0.0
    %2760 = vmatpush1.msra.mxu0 0.0
    %2761 = vmatprep.subr.mxu0 0.0
    %2762 = vmatpush1.msra.mxu0 0.0
    %2763 = vmatprep.subr.mxu0 0.0
    %2764 = vmatpush1.msra.mxu0 0.0
    %2765 = vmatprep.subr.mxu0 0.0
    %2766 = vmatpush1.msra.mxu0 0.0
    %2767 = vmatprep.subr.mxu0 0.0
    %2768 = vmatpush1.msra.mxu0 0.0
    %2769 = vmatprep.subr.mxu0 0.0
    %2770 = vmatpush1.msra.mxu0 0.0
    %2771 = vmatprep.subr.mxu0 0.0
    %2772 = vmatpush1.msra.mxu0 0.0
    %2773 = vmatprep.subr.mxu0 0.0
    %2774 = vmatpush1.msra.mxu0 0.0
    %2775 = vmatprep.subr.mxu0 0.0
    %2776 = vmatpush1.msra.mxu0 0.0
    %2777 = vmatprep.subr.mxu0 0.0
    %2778 = vmatpush1.msra.mxu0 0.0
    %2779 = vmatprep.subr.mxu0 0.0
    %2780 = vmatpush1.msra.mxu0 0.0
    %2781 = vmatprep.subr.mxu0 0.0
    %2782 = vmatpush1.msra.mxu0 0.0
    %2783 = vmatprep.subr.mxu0 0.0
    %2784 = vmatpush1.msra.mxu0 0.0
    %2785 = vmatprep.subr.mxu0 0.0
    %2786 = vmatpush1.msra.mxu0 0.0
    %2787 = vmatprep.subr.mxu0 0.0
    %2788 = vmatpush1.msra.mxu0 0.0
    %2789 = vmatprep.subr.mxu0 0.0
    %2790 = vmatpush1.msra.mxu0 0.0
    %2791 = vmatprep.subr.mxu0 0.0
    %2792 = vmatpush1.msra.mxu0 0.0
    %2793 = vmatprep.subr.mxu0 0.0
    %2794 = vmatpush1.msra.mxu0 0.0
    %2795 = vmatprep.subr.mxu0 0.0
    %2796 = vmatpush1.msra.mxu0 0.0
    %2797 = vmatprep.mubr.f32.mxu0 0.0
    %2798 = vmatmul.mubr.f32.gmra.mrb[0].mxu0 %v2518
    %v2799 = vpop.f32.mrb[0].mxu0
    %v2800 = vadd.f32 0.0, %v2799
    %v2801 = vpop.f32.mrb[0].mxu0
    %v2802 = vadd.f32 0.0, %v2801
    %2803 = vdwg.mxu0
    %v2804 = vadd.f32 %v2472, %v2587
    %v2805 = vadd.f32 %v2473, %v2589
    %v2806 = vadd.f32 %v2474, %v2658
    %v2807 = vadd.f32 %v2475, %v2660
    %v2808 = vadd.f32 %v2476, %v2729
    %v2809 = vadd.f32 %v2477, %v2731
    %v2810 = vadd.f32 %v2478, %v2800
    %v2811 = vadd.f32 %v2479, %v2802
    %s2812 = scalar_lea.vmem %s2, 56
    %v2813 = vld [vmem:[%s2812] sm:$0xff]
    %2814 = vrot.lane.b32.xlu0 %v1468, 79
    %v2815 = vpop.permute.xlu0 %2814
    %2816 = vrot.lane.b32.xlu0 %v1469, 79
    %v2817 = vpop.permute.xlu0 %2816
    %2818 = vrot.lane.b32.xlu0 %v1470, 79
    %v2819 = vpop.permute.xlu0 %2818
    %2820 = vrot.lane.b32.xlu0 %v1471, 79
    %v2821 = vpop.permute.xlu0 %2820
    %2822 = vrot.lane.b32.xlu0 %v1472, 79
    %v2823 = vpop.permute.xlu0 %2822
    %2824 = vrot.lane.b32.xlu0 %v1473, 79
    %v2825 = vpop.permute.xlu0 %2824
    %2826 = vrot.lane.b32.xlu0 %v1474, 79
    %v2827 = vpop.permute.xlu0 %2826
    %2828 = vrot.lane.b32.xlu0 %v1475, 79
    %v2829 = vpop.permute.xlu0 %2828
    %2830 = vrot.lane.b32.xlu0 %v1476, 79
    %v2831 = vpop.permute.xlu0 %2830
    %vm2832 = vcmask 646144
    %v2833 = vsel %vm2832, %v2815, %v2817
    %v2834 = vsel %vm2832, %v2817, %v2819
    %v2835 = vsel %vm2832, %v2819, %v2821
    %v2836 = vsel %vm2832, %v2821, %v2823
    %v2837 = vsel %vm2832, %v2823, %v2825
    %v2838 = vsel %vm2832, %v2825, %v2827
    %v2839 = vsel %vm2832, %v2827, %v2829
    %v2840 = vsel %vm2832, %v2829, %v2831
    %v2850 = vsel %vm562, %v2813, 0
    %2852 = vmatprep.subr.mxu0 %v2834
    %2853 = vmatpush1.msra.mxu0 %v2833
    %2854 = vmatprep.subr.mxu0 0.0
    %2855 = vmatpush1.msra.mxu0 0.0
    %2856 = vmatprep.subr.mxu0 0.0
    %2857 = vmatpush1.msra.mxu0 0.0
    %2858 = vmatprep.subr.mxu0 0.0
    %2859 = vmatpush1.msra.mxu0 0.0
    %2860 = vmatprep.subr.mxu0 0.0
    %2861 = vmatpush1.msra.mxu0 0.0
    %2862 = vmatprep.subr.mxu0 0.0
    %2863 = vmatpush1.msra.mxu0 0.0
    %2864 = vmatprep.subr.mxu0 0.0
    %2865 = vmatpush1.msra.mxu0 0.0
    %2866 = vmatprep.subr.mxu0 0.0
    %2867 = vmatpush1.msra.mxu0 0.0
    %2868 = vmatprep.subr.mxu0 0.0
    %2869 = vmatpush1.msra.mxu0 0.0
    %2870 = vmatprep.subr.mxu0 0.0
    %2871 = vmatpush1.msra.mxu0 0.0
    %2872 = vmatprep.subr.mxu0 0.0
    %2873 = vmatpush1.msra.mxu0 0.0
    %2874 = vmatprep.subr.mxu0 0.0
    %2875 = vmatpush1.msra.mxu0 0.0
    %2876 = vmatprep.subr.mxu0 0.0
    %2877 = vmatpush1.msra.mxu0 0.0
    %2878 = vmatprep.subr.mxu0 0.0
    %2879 = vmatpush1.msra.mxu0 0.0
    %2880 = vmatprep.subr.mxu0 0.0
    %2881 = vmatpush1.msra.mxu0 0.0
    %2882 = vmatprep.subr.mxu0 0.0
    %2883 = vmatpush1.msra.mxu0 0.0
    %2884 = vmatprep.subr.mxu0 0.0
    %2885 = vmatpush1.msra.mxu0 0.0
    %2886 = vmatprep.subr.mxu0 0.0
    %2887 = vmatpush1.msra.mxu0 0.0
    %2888 = vmatprep.subr.mxu0 0.0
    %2889 = vmatpush1.msra.mxu0 0.0
    %2890 = vmatprep.subr.mxu0 0.0
    %2891 = vmatpush1.msra.mxu0 0.0
    %2892 = vmatprep.subr.mxu0 0.0
    %2893 = vmatpush1.msra.mxu0 0.0
    %2894 = vmatprep.subr.mxu0 0.0
    %2895 = vmatpush1.msra.mxu0 0.0
    %2896 = vmatprep.subr.mxu0 0.0
    %2897 = vmatpush1.msra.mxu0 0.0
    %2898 = vmatprep.subr.mxu0 0.0
    %2899 = vmatpush1.msra.mxu0 0.0
    %2900 = vmatprep.subr.mxu0 0.0
    %2901 = vmatpush1.msra.mxu0 0.0
    %2902 = vmatprep.subr.mxu0 0.0
    %2903 = vmatpush1.msra.mxu0 0.0
    %2904 = vmatprep.subr.mxu0 0.0
    %2905 = vmatpush1.msra.mxu0 0.0
    %2906 = vmatprep.subr.mxu0 0.0
    %2907 = vmatpush1.msra.mxu0 0.0
    %2908 = vmatprep.subr.mxu0 0.0
    %2909 = vmatpush1.msra.mxu0 0.0
    %2910 = vmatprep.subr.mxu0 0.0
    %2911 = vmatpush1.msra.mxu0 0.0
    %2912 = vmatprep.subr.mxu0 0.0
    %2913 = vmatpush1.msra.mxu0 0.0
    %2914 = vmatprep.subr.mxu0 0.0
    %2915 = vmatpush1.msra.mxu0 0.0
    %2916 = vmatprep.mubr.f32.mxu0 0.0
    %2917 = vmatmul.mubr.f32.gmra.mrb[0].mxu0 %v2850
    %v2918 = vpop.f32.mrb[0].mxu0
    %v2919 = vadd.f32 0.0, %v2918
    %v2920 = vpop.f32.mrb[0].mxu0
    %v2921 = vadd.f32 0.0, %v2920
    %2922 = vdwg.mxu0
    %2923 = vmatprep.subr.mxu0 %v2836
    %2924 = vmatpush1.msra.mxu0 %v2835
    %2925 = vmatprep.subr.mxu0 0.0
    %2926 = vmatpush1.msra.mxu0 0.0
    %2927 = vmatprep.subr.mxu0 0.0
    %2928 = vmatpush1.msra.mxu0 0.0
    %2929 = vmatprep.subr.mxu0 0.0
    %2930 = vmatpush1.msra.mxu0 0.0
    %2931 = vmatprep.subr.mxu0 0.0
    %2932 = vmatpush1.msra.mxu0 0.0
    %2933 = vmatprep.subr.mxu0 0.0
    %2934 = vmatpush1.msra.mxu0 0.0
    %2935 = vmatprep.subr.mxu0 0.0
    %2936 = vmatpush1.msra.mxu0 0.0
    %2937 = vmatprep.subr.mxu0 0.0
    %2938 = vmatpush1.msra.mxu0 0.0
    %2939 = vmatprep.subr.mxu0 0.0
    %2940 = vmatpush1.msra.mxu0 0.0
    %2941 = vmatprep.subr.mxu0 0.0
    %2942 = vmatpush1.msra.mxu0 0.0
    %2943 = vmatprep.subr.mxu0 0.0
    %2944 = vmatpush1.msra.mxu0 0.0
    %2945 = vmatprep.subr.mxu0 0.0
    %2946 = vmatpush1.msra.mxu0 0.0
    %2947 = vmatprep.subr.mxu0 0.0
    %2948 = vmatpush1.msra.mxu0 0.0
    %2949 = vmatprep.subr.mxu0 0.0
    %2950 = vmatpush1.msra.mxu0 0.0
    %2951 = vmatprep.subr.mxu0 0.0
    %2952 = vmatpush1.msra.mxu0 0.0
    %2953 = vmatprep.subr.mxu0 0.0
    %2954 = vmatpush1.msra.mxu0 0.0
    %2955 = vmatprep.subr.mxu0 0.0
    %2956 = vmatpush1.msra.mxu0 0.0
    %2957 = vmatprep.subr.mxu0 0.0
    %2958 = vmatpush1.msra.mxu0 0.0
    %2959 = vmatprep.subr.mxu0 0.0
    %2960 = vmatpush1.msra.mxu0 0.0
    %2961 = vmatprep.subr.mxu0 0.0
    %2962 = vmatpush1.msra.mxu0 0.0
    %2963 = vmatprep.subr.mxu0 0.0
    %2964 = vmatpush1.msra.mxu0 0.0
    %2965 = vmatprep.subr.mxu0 0.0
    %2966 = vmatpush1.msra.mxu0 0.0
    %2967 = vmatprep.subr.mxu0 0.0
    %2968 = vmatpush1.msra.mxu0 0.0
    %2969 = vmatprep.subr.mxu0 0.0
    %2970 = vmatpush1.msra.mxu0 0.0
    %2971 = vmatprep.subr.mxu0 0.0
    %2972 = vmatpush1.msra.mxu0 0.0
    %2973 = vmatprep.subr.mxu0 0.0
    %2974 = vmatpush1.msra.mxu0 0.0
    %2975 = vmatprep.subr.mxu0 0.0
    %2976 = vmatpush1.msra.mxu0 0.0
    %2977 = vmatprep.subr.mxu0 0.0
    %2978 = vmatpush1.msra.mxu0 0.0
    %2979 = vmatprep.subr.mxu0 0.0
    %2980 = vmatpush1.msra.mxu0 0.0
    %2981 = vmatprep.subr.mxu0 0.0
    %2982 = vmatpush1.msra.mxu0 0.0
    %2983 = vmatprep.subr.mxu0 0.0
    %2984 = vmatpush1.msra.mxu0 0.0
    %2985 = vmatprep.subr.mxu0 0.0
    %2986 = vmatpush1.msra.mxu0 0.0
    %2987 = vmatprep.mubr.f32.mxu0 0.0
    %2988 = vmatmul.mubr.f32.gmra.mrb[0].mxu0 %v2850
    %v2989 = vpop.f32.mrb[0].mxu0
    %v2990 = vadd.f32 0.0, %v2989
    %v2991 = vpop.f32.mrb[0].mxu0
    %v2992 = vadd.f32 0.0, %v2991
    %2993 = vdwg.mxu0
    %2994 = vmatprep.subr.mxu0 %v2838
    %2995 = vmatpush1.msra.mxu0 %v2837
    %2996 = vmatprep.subr.mxu0 0.0
    %2997 = vmatpush1.msra.mxu0 0.0
    %2998 = vmatprep.subr.mxu0 0.0
    %2999 = vmatpush1.msra.mxu0 0.0
    %3000 = vmatprep.subr.mxu0 0.0
    %3001 = vmatpush1.msra.mxu0 0.0
    %3002 = vmatprep.subr.mxu0 0.0
    %3003 = vmatpush1.msra.mxu0 0.0
    %3004 = vmatprep.subr.mxu0 0.0
    %3005 = vmatpush1.msra.mxu0 0.0
    %3006 = vmatprep.subr.mxu0 0.0
    %3007 = vmatpush1.msra.mxu0 0.0
    %3008 = vmatprep.subr.mxu0 0.0
    %3009 = vmatpush1.msra.mxu0 0.0
    %3010 = vmatprep.subr.mxu0 0.0
    %3011 = vmatpush1.msra.mxu0 0.0
    %3012 = vmatprep.subr.mxu0 0.0
    %3013 = vmatpush1.msra.mxu0 0.0
    %3014 = vmatprep.subr.mxu0 0.0
    %3015 = vmatpush1.msra.mxu0 0.0
    %3016 = vmatprep.subr.mxu0 0.0
    %3017 = vmatpush1.msra.mxu0 0.0
    %3018 = vmatprep.subr.mxu0 0.0
    %3019 = vmatpush1.msra.mxu0 0.0
    %3020 = vmatprep.subr.mxu0 0.0
    %3021 = vmatpush1.msra.mxu0 0.0
    %3022 = vmatprep.subr.mxu0 0.0
    %3023 = vmatpush1.msra.mxu0 0.0
    %3024 = vmatprep.subr.mxu0 0.0
    %3025 = vmatpush1.msra.mxu0 0.0
    %3026 = vmatprep.subr.mxu0 0.0
    %3027 = vmatpush1.msra.mxu0 0.0
    %3028 = vmatprep.subr.mxu0 0.0
    %3029 = vmatpush1.msra.mxu0 0.0
    %3030 = vmatprep.subr.mxu0 0.0
    %3031 = vmatpush1.msra.mxu0 0.0
    %3032 = vmatprep.subr.mxu0 0.0
    %3033 = vmatpush1.msra.mxu0 0.0
    %3034 = vmatprep.subr.mxu0 0.0
    %3035 = vmatpush1.msra.mxu0 0.0
    %3036 = vmatprep.subr.mxu0 0.0
    %3037 = vmatpush1.msra.mxu0 0.0
    %3038 = vmatprep.subr.mxu0 0.0
    %3039 = vmatpush1.msra.mxu0 0.0
    %3040 = vmatprep.subr.mxu0 0.0
    %3041 = vmatpush1.msra.mxu0 0.0
    %3042 = vmatprep.subr.mxu0 0.0
    %3043 = vmatpush1.msra.mxu0 0.0
    %3044 = vmatprep.subr.mxu0 0.0
    %3045 = vmatpush1.msra.mxu0 0.0
    %3046 = vmatprep.subr.mxu0 0.0
    %3047 = vmatpush1.msra.mxu0 0.0
    %3048 = vmatprep.subr.mxu0 0.0
    %3049 = vmatpush1.msra.mxu0 0.0
    %3050 = vmatprep.subr.mxu0 0.0
    %3051 = vmatpush1.msra.mxu0 0.0
    %3052 = vmatprep.subr.mxu0 0.0
    %3053 = vmatpush1.msra.mxu0 0.0
    %3054 = vmatprep.subr.mxu0 0.0
    %3055 = vmatpush1.msra.mxu0 0.0
    %3056 = vmatprep.subr.mxu0 0.0
    %3057 = vmatpush1.msra.mxu0 0.0
    %3058 = vmatprep.mubr.f32.mxu0 0.0
    %3059 = vmatmul.mubr.f32.gmra.mrb[0].mxu0 %v2850
    %v3060 = vpop.f32.mrb[0].mxu0
    %v3061 = vadd.f32 0.0, %v3060
    %v3062 = vpop.f32.mrb[0].mxu0
    %v3063 = vadd.f32 0.0, %v3062
    %3064 = vdwg.mxu0
    %3065 = vmatprep.subr.mxu0 %v2840
    %3066 = vmatpush1.msra.mxu0 %v2839
    %3067 = vmatprep.subr.mxu0 0.0
    %3068 = vmatpush1.msra.mxu0 0.0
    %3069 = vmatprep.subr.mxu0 0.0
    %3070 = vmatpush1.msra.mxu0 0.0
    %3071 = vmatprep.subr.mxu0 0.0
    %3072 = vmatpush1.msra.mxu0 0.0
    %3073 = vmatprep.subr.mxu0 0.0
    %3074 = vmatpush1.msra.mxu0 0.0
    %3075 = vmatprep.subr.mxu0 0.0
    %3076 = vmatpush1.msra.mxu0 0.0
    %3077 = vmatprep.subr.mxu0 0.0
    %3078 = vmatpush1.msra.mxu0 0.0
    %3079 = vmatprep.subr.mxu0 0.0
    %3080 = vmatpush1.msra.mxu0 0.0
    %3081 = vmatprep.subr.mxu0 0.0
    %3082 = vmatpush1.msra.mxu0 0.0
    %3083 = vmatprep.subr.mxu0 0.0
    %3084 = vmatpush1.msra.mxu0 0.0
    %3085 = vmatprep.subr.mxu0 0.0
    %3086 = vmatpush1.msra.mxu0 0.0
    %3087 = vmatprep.subr.mxu0 0.0
    %3088 = vmatpush1.msra.mxu0 0.0
    %3089 = vmatprep.subr.mxu0 0.0
    %3090 = vmatpush1.msra.mxu0 0.0
    %3091 = vmatprep.subr.mxu0 0.0
    %3092 = vmatpush1.msra.mxu0 0.0
    %3093 = vmatprep.subr.mxu0 0.0
    %3094 = vmatpush1.msra.mxu0 0.0
    %3095 = vmatprep.subr.mxu0 0.0
    %3096 = vmatpush1.msra.mxu0 0.0
    %3097 = vmatprep.subr.mxu0 0.0
    %3098 = vmatpush1.msra.mxu0 0.0
    %3099 = vmatprep.subr.mxu0 0.0
    %3100 = vmatpush1.msra.mxu0 0.0
    %3101 = vmatprep.subr.mxu0 0.0
    %3102 = vmatpush1.msra.mxu0 0.0
    %3103 = vmatprep.subr.mxu0 0.0
    %3104 = vmatpush1.msra.mxu0 0.0
    %3105 = vmatprep.subr.mxu0 0.0
    %3106 = vmatpush1.msra.mxu0 0.0
    %3107 = vmatprep.subr.mxu0 0.0
    %3108 = vmatpush1.msra.mxu0 0.0
    %3109 = vmatprep.subr.mxu0 0.0
    %3110 = vmatpush1.msra.mxu0 0.0
    %3111 = vmatprep.subr.mxu0 0.0
    %3112 = vmatpush1.msra.mxu0 0.0
    %3113 = vmatprep.subr.mxu0 0.0
    %3114 = vmatpush1.msra.mxu0 0.0
    %3115 = vmatprep.subr.mxu0 0.0
    %3116 = vmatpush1.msra.mxu0 0.0
    %3117 = vmatprep.subr.mxu0 0.0
    %3118 = vmatpush1.msra.mxu0 0.0
    %3119 = vmatprep.subr.mxu0 0.0
    %3120 = vmatpush1.msra.mxu0 0.0
    %3121 = vmatprep.subr.mxu0 0.0
    %3122 = vmatpush1.msra.mxu0 0.0
    %3123 = vmatprep.subr.mxu0 0.0
    %3124 = vmatpush1.msra.mxu0 0.0
    %3125 = vmatprep.subr.mxu0 0.0
    %3126 = vmatpush1.msra.mxu0 0.0
    %3127 = vmatprep.subr.mxu0 0.0
    %3128 = vmatpush1.msra.mxu0 0.0
    %3129 = vmatprep.mubr.f32.mxu0 0.0
    %3130 = vmatmul.mubr.f32.gmra.mrb[0].mxu0 %v2850
    %v3131 = vpop.f32.mrb[0].mxu0
    %v3132 = vadd.f32 0.0, %v3131
    %v3133 = vpop.f32.mrb[0].mxu0
    %v3134 = vadd.f32 0.0, %v3133
    %3135 = vdwg.mxu0
    %v3136 = vadd.f32 %v2804, %v2919
    %v3137 = vadd.f32 %v2805, %v2921
    %v3138 = vadd.f32 %v2806, %v2990
    %v3139 = vadd.f32 %v2807, %v2992
    %v3140 = vadd.f32 %v2808, %v3061
    %v3141 = vadd.f32 %v2809, %v3063
    %v3142 = vadd.f32 %v2810, %v3132
    %v3143 = vadd.f32 %v2811, %v3134
    %s3144 = scalar_lea.vmem %s2, 64
    %v3145 = vld [vmem:[%s3144] sm:$0xff]
    %3146 = vrot.lane.b32.xlu0 %v1468, 78
    %v3147 = vpop.permute.xlu0 %3146
    %3148 = vrot.lane.b32.xlu0 %v1469, 78
    %v3149 = vpop.permute.xlu0 %3148
    %3150 = vrot.lane.b32.xlu0 %v1470, 78
    %v3151 = vpop.permute.xlu0 %3150
    %3152 = vrot.lane.b32.xlu0 %v1471, 78
    %v3153 = vpop.permute.xlu0 %3152
    %3154 = vrot.lane.b32.xlu0 %v1472, 78
    %v3155 = vpop.permute.xlu0 %3154
    %3156 = vrot.lane.b32.xlu0 %v1473, 78
    %v3157 = vpop.permute.xlu0 %3156
    %3158 = vrot.lane.b32.xlu0 %v1474, 78
    %v3159 = vpop.permute.xlu0 %3158
    %3160 = vrot.lane.b32.xlu0 %v1475, 78
    %v3161 = vpop.permute.xlu0 %3160
    %3162 = vrot.lane.b32.xlu0 %v1476, 78
    %v3163 = vpop.permute.xlu0 %3162
    %vm3164 = vcmask 637952
    %v3165 = vsel %vm3164, %v3147, %v3149
    %v3166 = vsel %vm3164, %v3149, %v3151
    %v3167 = vsel %vm3164, %v3151, %v3153
    %v3168 = vsel %vm3164, %v3153, %v3155
    %v3169 = vsel %vm3164, %v3155, %v3157
    %v3170 = vsel %vm3164, %v3157, %v3159
    %v3171 = vsel %vm3164, %v3159, %v3161
    %v3172 = vsel %vm3164, %v3161, %v3163
    %v3182 = vsel %vm562, %v3145, 0
    %3184 = vmatprep.subr.mxu0 %v3166
    %3185 = vmatpush1.msra.mxu0 %v3165
    %3186 = vmatprep.subr.mxu0 0.0
    %3187 = vmatpush1.msra.mxu0 0.0
    %3188 = vmatprep.subr.mxu0 0.0
    %3189 = vmatpush1.msra.mxu0 0.0
    %3190 = vmatprep.subr.mxu0 0.0
    %3191 = vmatpush1.msra.mxu0 0.0
    %3192 = vmatprep.subr.mxu0 0.0
    %3193 = vmatpush1.msra.mxu0 0.0
    %3194 = vmatprep.subr.mxu0 0.0
    %3195 = vmatpush1.msra.mxu0 0.0
    %3196 = vmatprep.subr.mxu0 0.0
    %3197 = vmatpush1.msra.mxu0 0.0
    %3198 = vmatprep.subr.mxu0 0.0
    %3199 = vmatpush1.msra.mxu0 0.0
    %3200 = vmatprep.subr.mxu0 0.0
    %3201 = vmatpush1.msra.mxu0 0.0
    %3202 = vmatprep.subr.mxu0 0.0
    %3203 = vmatpush1.msra.mxu0 0.0
    %3204 = vmatprep.subr.mxu0 0.0
    %3205 = vmatpush1.msra.mxu0 0.0
    %3206 = vmatprep.subr.mxu0 0.0
    %3207 = vmatpush1.msra.mxu0 0.0
    %3208 = vmatprep.subr.mxu0 0.0
    %3209 = vmatpush1.msra.mxu0 0.0
    %3210 = vmatprep.subr.mxu0 0.0
    %3211 = vmatpush1.msra.mxu0 0.0
    %3212 = vmatprep.subr.mxu0 0.0
    %3213 = vmatpush1.msra.mxu0 0.0
    %3214 = vmatprep.subr.mxu0 0.0
    %3215 = vmatpush1.msra.mxu0 0.0
    %3216 = vmatprep.subr.mxu0 0.0
    %3217 = vmatpush1.msra.mxu0 0.0
    %3218 = vmatprep.subr.mxu0 0.0
    %3219 = vmatpush1.msra.mxu0 0.0
    %3220 = vmatprep.subr.mxu0 0.0
    %3221 = vmatpush1.msra.mxu0 0.0
    %3222 = vmatprep.subr.mxu0 0.0
    %3223 = vmatpush1.msra.mxu0 0.0
    %3224 = vmatprep.subr.mxu0 0.0
    %3225 = vmatpush1.msra.mxu0 0.0
    %3226 = vmatprep.subr.mxu0 0.0
    %3227 = vmatpush1.msra.mxu0 0.0
    %3228 = vmatprep.subr.mxu0 0.0
    %3229 = vmatpush1.msra.mxu0 0.0
    %3230 = vmatprep.subr.mxu0 0.0
    %3231 = vmatpush1.msra.mxu0 0.0
    %3232 = vmatprep.subr.mxu0 0.0
    %3233 = vmatpush1.msra.mxu0 0.0
    %3234 = vmatprep.subr.mxu0 0.0
    %3235 = vmatpush1.msra.mxu0 0.0
    %3236 = vmatprep.subr.mxu0 0.0
    %3237 = vmatpush1.msra.mxu0 0.0
    %3238 = vmatprep.subr.mxu0 0.0
    %3239 = vmatpush1.msra.mxu0 0.0
    %3240 = vmatprep.subr.mxu0 0.0
    %3241 = vmatpush1.msra.mxu0 0.0
    %3242 = vmatprep.subr.mxu0 0.0
    %3243 = vmatpush1.msra.mxu0 0.0
    %3244 = vmatprep.subr.mxu0 0.0
    %3245 = vmatpush1.msra.mxu0 0.0
    %3246 = vmatprep.subr.mxu0 0.0
    %3247 = vmatpush1.msra.mxu0 0.0
    %3248 = vmatprep.mubr.f32.mxu0 0.0
    %3249 = vmatmul.mubr.f32.gmra.mrb[0].mxu0 %v3182
    %v3250 = vpop.f32.mrb[0].mxu0
    %v3251 = vadd.f32 0.0, %v3250
    %v3252 = vpop.f32.mrb[0].mxu0
    %v3253 = vadd.f32 0.0, %v3252
    %3254 = vdwg.mxu0
    %3255 = vmatprep.subr.mxu0 %v3168
    %3256 = vmatpush1.msra.mxu0 %v3167
    %3257 = vmatprep.subr.mxu0 0.0
    %3258 = vmatpush1.msra.mxu0 0.0
    %3259 = vmatprep.subr.mxu0 0.0
    %3260 = vmatpush1.msra.mxu0 0.0
    %3261 = vmatprep.subr.mxu0 0.0
    %3262 = vmatpush1.msra.mxu0 0.0
    %3263 = vmatprep.subr.mxu0 0.0
    %3264 = vmatpush1.msra.mxu0 0.0
    %3265 = vmatprep.subr.mxu0 0.0
    %3266 = vmatpush1.msra.mxu0 0.0
    %3267 = vmatprep.subr.mxu0 0.0
    %3268 = vmatpush1.msra.mxu0 0.0
    %3269 = vmatprep.subr.mxu0 0.0
    %3270 = vmatpush1.msra.mxu0 0.0
    %3271 = vmatprep.subr.mxu0 0.0
    %3272 = vmatpush1.msra.mxu0 0.0
    %3273 = vmatprep.subr.mxu0 0.0
    %3274 = vmatpush1.msra.mxu0 0.0
    %3275 = vmatprep.subr.mxu0 0.0
    %3276 = vmatpush1.msra.mxu0 0.0
    %3277 = vmatprep.subr.mxu0 0.0
    %3278 = vmatpush1.msra.mxu0 0.0
    %3279 = vmatprep.subr.mxu0 0.0
    %3280 = vmatpush1.msra.mxu0 0.0
    %3281 = vmatprep.subr.mxu0 0.0
    %3282 = vmatpush1.msra.mxu0 0.0
    %3283 = vmatprep.subr.mxu0 0.0
    %3284 = vmatpush1.msra.mxu0 0.0
    %3285 = vmatprep.subr.mxu0 0.0
    %3286 = vmatpush1.msra.mxu0 0.0
    %3287 = vmatprep.subr.mxu0 0.0
    %3288 = vmatpush1.msra.mxu0 0.0
    %3289 = vmatprep.subr.mxu0 0.0
    %3290 = vmatpush1.msra.mxu0 0.0
    %3291 = vmatprep.subr.mxu0 0.0
    %3292 = vmatpush1.msra.mxu0 0.0
    %3293 = vmatprep.subr.mxu0 0.0
    %3294 = vmatpush1.msra.mxu0 0.0
    %3295 = vmatprep.subr.mxu0 0.0
    %3296 = vmatpush1.msra.mxu0 0.0
    %3297 = vmatprep.subr.mxu0 0.0
    %3298 = vmatpush1.msra.mxu0 0.0
    %3299 = vmatprep.subr.mxu0 0.0
    %3300 = vmatpush1.msra.mxu0 0.0
    %3301 = vmatprep.subr.mxu0 0.0
    %3302 = vmatpush1.msra.mxu0 0.0
    %3303 = vmatprep.subr.mxu0 0.0
    %3304 = vmatpush1.msra.mxu0 0.0
    %3305 = vmatprep.subr.mxu0 0.0
    %3306 = vmatpush1.msra.mxu0 0.0
    %3307 = vmatprep.subr.mxu0 0.0
    %3308 = vmatpush1.msra.mxu0 0.0
    %3309 = vmatprep.subr.mxu0 0.0
    %3310 = vmatpush1.msra.mxu0 0.0
    %3311 = vmatprep.subr.mxu0 0.0
    %3312 = vmatpush1.msra.mxu0 0.0
    %3313 = vmatprep.subr.mxu0 0.0
    %3314 = vmatpush1.msra.mxu0 0.0
    %3315 = vmatprep.subr.mxu0 0.0
    %3316 = vmatpush1.msra.mxu0 0.0
    %3317 = vmatprep.subr.mxu0 0.0
    %3318 = vmatpush1.msra.mxu0 0.0
    %3319 = vmatprep.mubr.f32.mxu0 0.0
    %3320 = vmatmul.mubr.f32.gmra.mrb[0].mxu0 %v3182
    %v3321 = vpop.f32.mrb[0].mxu0
    %v3322 = vadd.f32 0.0, %v3321
    %v3323 = vpop.f32.mrb[0].mxu0
    %v3324 = vadd.f32 0.0, %v3323
    %3325 = vdwg.mxu0
    %3326 = vmatprep.subr.mxu0 %v3170
    %3327 = vmatpush1.msra.mxu0 %v3169
    %3328 = vmatprep.subr.mxu0 0.0
    %3329 = vmatpush1.msra.mxu0 0.0
    %3330 = vmatprep.subr.mxu0 0.0
    %3331 = vmatpush1.msra.mxu0 0.0
    %3332 = vmatprep.subr.mxu0 0.0
    %3333 = vmatpush1.msra.mxu0 0.0
    %3334 = vmatprep.subr.mxu0 0.0
    %3335 = vmatpush1.msra.mxu0 0.0
    %3336 = vmatprep.subr.mxu0 0.0
    %3337 = vmatpush1.msra.mxu0 0.0
    %3338 = vmatprep.subr.mxu0 0.0
    %3339 = vmatpush1.msra.mxu0 0.0
    %3340 = vmatprep.subr.mxu0 0.0
    %3341 = vmatpush1.msra.mxu0 0.0
    %3342 = vmatprep.subr.mxu0 0.0
    %3343 = vmatpush1.msra.mxu0 0.0
    %3344 = vmatprep.subr.mxu0 0.0
    %3345 = vmatpush1.msra.mxu0 0.0
    %3346 = vmatprep.subr.mxu0 0.0
    %3347 = vmatpush1.msra.mxu0 0.0
    %3348 = vmatprep.subr.mxu0 0.0
    %3349 = vmatpush1.msra.mxu0 0.0
    %3350 = vmatprep.subr.mxu0 0.0
    %3351 = vmatpush1.msra.mxu0 0.0
    %3352 = vmatprep.subr.mxu0 0.0
    %3353 = vmatpush1.msra.mxu0 0.0
    %3354 = vmatprep.subr.mxu0 0.0
    %3355 = vmatpush1.msra.mxu0 0.0
    %3356 = vmatprep.subr.mxu0 0.0
    %3357 = vmatpush1.msra.mxu0 0.0
    %3358 = vmatprep.subr.mxu0 0.0
    %3359 = vmatpush1.msra.mxu0 0.0
    %3360 = vmatprep.subr.mxu0 0.0
    %3361 = vmatpush1.msra.mxu0 0.0
    %3362 = vmatprep.subr.mxu0 0.0
    %3363 = vmatpush1.msra.mxu0 0.0
    %3364 = vmatprep.subr.mxu0 0.0
    %3365 = vmatpush1.msra.mxu0 0.0
    %3366 = vmatprep.subr.mxu0 0.0
    %3367 = vmatpush1.msra.mxu0 0.0
    %3368 = vmatprep.subr.mxu0 0.0
    %3369 = vmatpush1.msra.mxu0 0.0
    %3370 = vmatprep.subr.mxu0 0.0
    %3371 = vmatpush1.msra.mxu0 0.0
    %3372 = vmatprep.subr.mxu0 0.0
    %3373 = vmatpush1.msra.mxu0 0.0
    %3374 = vmatprep.subr.mxu0 0.0
    %3375 = vmatpush1.msra.mxu0 0.0
    %3376 = vmatprep.subr.mxu0 0.0
    %3377 = vmatpush1.msra.mxu0 0.0
    %3378 = vmatprep.subr.mxu0 0.0
    %3379 = vmatpush1.msra.mxu0 0.0
    %3380 = vmatprep.subr.mxu0 0.0
    %3381 = vmatpush1.msra.mxu0 0.0
    %3382 = vmatprep.subr.mxu0 0.0
    %3383 = vmatpush1.msra.mxu0 0.0
    %3384 = vmatprep.subr.mxu0 0.0
    %3385 = vmatpush1.msra.mxu0 0.0
    %3386 = vmatprep.subr.mxu0 0.0
    %3387 = vmatpush1.msra.mxu0 0.0
    %3388 = vmatprep.subr.mxu0 0.0
    %3389 = vmatpush1.msra.mxu0 0.0
    %3390 = vmatprep.mubr.f32.mxu0 0.0
    %3391 = vmatmul.mubr.f32.gmra.mrb[0].mxu0 %v3182
    %v3392 = vpop.f32.mrb[0].mxu0
    %v3393 = vadd.f32 0.0, %v3392
    %v3394 = vpop.f32.mrb[0].mxu0
    %v3395 = vadd.f32 0.0, %v3394
    %3396 = vdwg.mxu0
    %3397 = vmatprep.subr.mxu0 %v3172
    %3398 = vmatpush1.msra.mxu0 %v3171
    %3399 = vmatprep.subr.mxu0 0.0
    %3400 = vmatpush1.msra.mxu0 0.0
    %3401 = vmatprep.subr.mxu0 0.0
    %3402 = vmatpush1.msra.mxu0 0.0
    %3403 = vmatprep.subr.mxu0 0.0
    %3404 = vmatpush1.msra.mxu0 0.0
    %3405 = vmatprep.subr.mxu0 0.0
    %3406 = vmatpush1.msra.mxu0 0.0
    %3407 = vmatprep.subr.mxu0 0.0
    %3408 = vmatpush1.msra.mxu0 0.0
    %3409 = vmatprep.subr.mxu0 0.0
    %3410 = vmatpush1.msra.mxu0 0.0
    %3411 = vmatprep.subr.mxu0 0.0
    %3412 = vmatpush1.msra.mxu0 0.0
    %3413 = vmatprep.subr.mxu0 0.0
    %3414 = vmatpush1.msra.mxu0 0.0
    %3415 = vmatprep.subr.mxu0 0.0
    %3416 = vmatpush1.msra.mxu0 0.0
    %3417 = vmatprep.subr.mxu0 0.0
    %3418 = vmatpush1.msra.mxu0 0.0
    %3419 = vmatprep.subr.mxu0 0.0
    %3420 = vmatpush1.msra.mxu0 0.0
    %3421 = vmatprep.subr.mxu0 0.0
    %3422 = vmatpush1.msra.mxu0 0.0
    %3423 = vmatprep.subr.mxu0 0.0
    %3424 = vmatpush1.msra.mxu0 0.0
    %3425 = vmatprep.subr.mxu0 0.0
    %3426 = vmatpush1.msra.mxu0 0.0
    %3427 = vmatprep.subr.mxu0 0.0
    %3428 = vmatpush1.msra.mxu0 0.0
    %3429 = vmatprep.subr.mxu0 0.0
    %3430 = vmatpush1.msra.mxu0 0.0
    %3431 = vmatprep.subr.mxu0 0.0
    %3432 = vmatpush1.msra.mxu0 0.0
    %3433 = vmatprep.subr.mxu0 0.0
    %3434 = vmatpush1.msra.mxu0 0.0
    %3435 = vmatprep.subr.mxu0 0.0
    %3436 = vmatpush1.msra.mxu0 0.0
    %3437 = vmatprep.subr.mxu0 0.0
    %3438 = vmatpush1.msra.mxu0 0.0
    %3439 = vmatprep.subr.mxu0 0.0
    %3440 = vmatpush1.msra.mxu0 0.0
    %3441 = vmatprep.subr.mxu0 0.0
    %3442 = vmatpush1.msra.mxu0 0.0
    %3443 = vmatprep.subr.mxu0 0.0
    %3444 = vmatpush1.msra.mxu0 0.0
    %3445 = vmatprep.subr.mxu0 0.0
    %3446 = vmatpush1.msra.mxu0 0.0
    %3447 = vmatprep.subr.mxu0 0.0
    %3448 = vmatpush1.msra.mxu0 0.0
    %3449 = vmatprep.subr.mxu0 0.0
    %3450 = vmatpush1.msra.mxu0 0.0
    %3451 = vmatprep.subr.mxu0 0.0
    %3452 = vmatpush1.msra.mxu0 0.0
    %3453 = vmatprep.subr.mxu0 0.0
    %3454 = vmatpush1.msra.mxu0 0.0
    %3455 = vmatprep.subr.mxu0 0.0
    %3456 = vmatpush1.msra.mxu0 0.0
    %3457 = vmatprep.subr.mxu0 0.0
    %3458 = vmatpush1.msra.mxu0 0.0
    %3459 = vmatprep.subr.mxu0 0.0
    %3460 = vmatpush1.msra.mxu0 0.0
    %3461 = vmatprep.mubr.f32.mxu0 0.0
    %3462 = vmatmul.mubr.f32.gmra.mrb[0].mxu0 %v3182
    %v3463 = vpop.f32.mrb[0].mxu0
    %v3464 = vadd.f32 0.0, %v3463
    %v3465 = vpop.f32.mrb[0].mxu0
    %v3466 = vadd.f32 0.0, %v3465
    %3467 = vdwg.mxu0
    %v3468 = vadd.f32 %v3136, %v3251
    %v3469 = vadd.f32 %v3137, %v3253
    %v3470 = vadd.f32 %v3138, %v3322
    %v3471 = vadd.f32 %v3139, %v3324
    %v3472 = vadd.f32 %v3140, %v3393
    %v3473 = vadd.f32 %v3141, %v3395
    %v3474 = vadd.f32 %v3142, %v3464
    %v3475 = vadd.f32 %v3143, %v3466
    %v3476 = vld [vmem:[%s4] sm:$0xff]
    %3478 = vset.pattern.permute.xlu0 1
    %3479 = vperm.xlu0 %3478, %v3476
    %v3480 = vpop.permute.xlu0 %3479
    %v3482 = vadd.f32 %v3468, %v3480
    %v3483 = vadd.f32 %v3469, %v3480
    %v3484 = vadd.f32 %v3470, %v3480
    %v3485 = vadd.f32 %v3471, %v3480
    %v3486 = vadd.f32 %v3472, %v3480
    %v3487 = vadd.f32 %v3473, %v3480
    %v3488 = vadd.f32 %v3474, %v3480
    %v3489 = vadd.f32 %v3475, %v3480
    %v3490 = vmul.f32 %v3482, 0.2
    %v3491 = vmul.f32 %v3483, 0.2
    %v3492 = vmul.f32 %v3484, 0.2
    %v3493 = vmul.f32 %v3485, 0.2
    %v3494 = vmul.f32 %v3486, 0.2
    %v3495 = vmul.f32 %v3487, 0.2
    %v3496 = vmul.f32 %v3488, 0.2
    %v3497 = vmul.f32 %v3489, 0.2
    %v3498 = vmax.f32 %v3482, %v3490
    %v3499 = vmax.f32 %v3483, %v3491
    %v3500 = vmax.f32 %v3484, %v3492
    %v3501 = vmax.f32 %v3485, %v3493
    %v3502 = vmax.f32 %v3486, %v3494
    %v3503 = vmax.f32 %v3487, %v3495
    %v3504 = vmax.f32 %v3488, %v3496
    %v3505 = vmax.f32 %v3489, %v3497
    %v3506 = vld [vmem:[%s5] sm:$0xff]
    %v3507 = vld [vmem:[%s5 + $0x8] sm:$0x1]
    %v3510 = vlaneseq
    %v3511 = vshrl.u32 %v3510, 7
    %v3512 = vsub.s32 0, %v3511
    %v3513 = vrot.slane %v3506, %v3512
    %v3514 = vlaneseq
    %v3515 = vshrl.u32 %v3514, 7
    %v3516 = vsub.s32 1, %v3515
    %v3517 = vrot.slane %v3506, %v3516
    %v3518 = vlaneseq
    %v3519 = vshrl.u32 %v3518, 7
    %v3520 = vsub.s32 2, %v3519
    %v3521 = vrot.slane %v3506, %v3520
    %v3522 = vlaneseq
    %v3523 = vshrl.u32 %v3522, 7
    %v3524 = vsub.s32 3, %v3523
    %v3525 = vrot.slane %v3506, %v3524
    %v3526 = vlaneseq
    %v3527 = vshrl.u32 %v3526, 7
    %v3528 = vsub.s32 4, %v3527
    %v3529 = vrot.slane %v3506, %v3528
    %v3530 = vlaneseq
    %v3531 = vshrl.u32 %v3530, 7
    %v3532 = vsub.s32 5, %v3531
    %v3533 = vrot.slane %v3506, %v3532
    %v3534 = vlaneseq
    %v3535 = vshrl.u32 %v3534, 7
    %v3536 = vsub.s32 6, %v3535
    %v3537 = vrot.slane %v3506, %v3536
    %v3538 = vlaneseq
    %v3539 = vshrl.u32 %v3538, 7
    %v3540 = vsub.s32 7, %v3539
    %v3541 = vrot.slane %v3506, %v3540
    %v3542 = vlaneseq
    %v3543 = vshrl.u32 %v3542, 7
    %v3544 = vsub.s32 0, %v3543
    %v3545 = vrot.slane %v3507, %v3544
    %3546 = vrot.lane.b32.xlu0 %v3513, 103
    %v3547 = vpop.permute.xlu0 %3546
    %3548 = vrot.lane.b32.xlu0 %v3517, 103
    %v3549 = vpop.permute.xlu0 %3548
    %3550 = vrot.lane.b32.xlu0 %v3521, 103
    %v3551 = vpop.permute.xlu0 %3550
    %3552 = vrot.lane.b32.xlu0 %v3525, 103
    %v3553 = vpop.permute.xlu0 %3552
    %3554 = vrot.lane.b32.xlu0 %v3529, 103
    %v3555 = vpop.permute.xlu0 %3554
    %3556 = vrot.lane.b32.xlu0 %v3533, 103
    %v3557 = vpop.permute.xlu0 %3556
    %3558 = vrot.lane.b32.xlu0 %v3537, 103
    %v3559 = vpop.permute.xlu0 %3558
    %3560 = vrot.lane.b32.xlu0 %v3541, 103
    %v3561 = vpop.permute.xlu0 %3560
    %3562 = vrot.lane.b32.xlu0 %v3545, 103
    %v3563 = vpop.permute.xlu0 %3562
    %v3564 = vsel %vm1836, %v3547, %v3549
    %v3565 = vsel %vm1836, %v3549, %v3551
    %v3566 = vsel %vm1836, %v3551, %v3553
    %v3567 = vsel %vm1836, %v3553, %v3555
    %v3568 = vsel %vm1836, %v3555, %v3557
    %v3569 = vsel %vm1836, %v3557, %v3559
    %v3570 = vsel %vm1836, %v3559, %v3561
    %v3571 = vsel %vm1836, %v3561, %v3563
    %v3580 = vmul.f32 %v3498, %v3564
    %v3581 = vmul.f32 %v3499, %v3565
    %v3582 = vmul.f32 %v3500, %v3566
    %v3583 = vmul.f32 %v3501, %v3567
    %v3584 = vmul.f32 %v3502, %v3568
    %v3585 = vmul.f32 %v3503, %v3569
    %v3586 = vmul.f32 %v3504, %v3570
    %v3587 = vmul.f32 %v3505, %v3571
    %v3588 = vld [vmem:[%s0] sm:$0xff]
    %v3589 = vld [vmem:[%s0 + $0x8] sm:$0xff]
    %v3590 = vld [vmem:[%s0 + $0x10] sm:$0xff]
    %v3591 = vld [vmem:[%s0 + $0x18] sm:$0xff]
    %v3592 = vld [vmem:[%s0 + $0x20] sm:$0xf]
    %v3593 = vld [vmem:[%s6] sm:$0xff]
    %v3599 = vcombine.high %v3588, %v3588
    %v3600 = vcombine.high %v3589, %v3589
    %v3601 = vcombine.high %v3590, %v3590
    %v3602 = vcombine.high %v3591, %v3591
    %3603 = vrot.lane.b32.xlu0 %v3588, 78
    %v3604 = vpop.permute.xlu0 %3603
    %3605 = vrot.lane.b32.xlu0 %v3599, 78
    %v3606 = vpop.permute.xlu0 %3605
    %3607 = vrot.lane.b32.xlu0 %v3589, 78
    %v3608 = vpop.permute.xlu0 %3607
    %3609 = vrot.lane.b32.xlu0 %v3600, 78
    %v3610 = vpop.permute.xlu0 %3609
    %3611 = vrot.lane.b32.xlu0 %v3590, 78
    %v3612 = vpop.permute.xlu0 %3611
    %3613 = vrot.lane.b32.xlu0 %v3601, 78
    %v3614 = vpop.permute.xlu0 %3613
    %3615 = vrot.lane.b32.xlu0 %v3591, 78
    %v3616 = vpop.permute.xlu0 %3615
    %3617 = vrot.lane.b32.xlu0 %v3602, 78
    %v3618 = vpop.permute.xlu0 %3617
    %3619 = vrot.lane.b32.xlu0 %v3592, 78
    %v3620 = vpop.permute.xlu0 %3619
    %v3621 = vsel %vm3164, %v3604, %v3606
    %v3622 = vsel %vm3164, %v3606, %v3608
    %v3623 = vsel %vm3164, %v3608, %v3610
    %v3624 = vsel %vm3164, %v3610, %v3612
    %v3625 = vsel %vm3164, %v3612, %v3614
    %v3626 = vsel %vm3164, %v3614, %v3616
    %v3627 = vsel %vm3164, %v3616, %v3618
    %v3628 = vsel %vm3164, %v3618, %v3620
    %v3630 = vsel %vm48, %v3593, 0
    %v3632 = vsel %vm52, %v3621, 0
    %v3634 = vsel %vm52, %v3622, 0
    %v3636 = vsel %vm52, %v3623, 0
    %v3638 = vsel %vm52, %v3624, 0
    %v3640 = vsel %vm52, %v3625, 0
    %v3642 = vsel %vm52, %v3626, 0
    %v3644 = vsel %vm52, %v3627, 0
    %v3646 = vsel %vm52, %v3628, 0
    %3648 = vmatprep.subr.mxu0 %v3634
    %3649 = vmatpush1.msra.mxu0 %v3632
    %3650 = vmatprep.subr.mxu0 0.0
    %3651 = vmatpush1.msra.mxu0 0.0
    %3652 = vmatprep.subr.mxu0 0.0
    %3653 = vmatpush1.msra.mxu0 0.0
    %3654 = vmatprep.subr.mxu0 0.0
    %3655 = vmatpush1.msra.mxu0 0.0
    %3656 = vmatprep.subr.mxu0 0.0
    %3657 = vmatpush1.msra.mxu0 0.0
    %3658 = vmatprep.subr.mxu0 0.0
    %3659 = vmatpush1.msra.mxu0 0.0
    %3660 = vmatprep.subr.mxu0 0.0
    %3661 = vmatpush1.msra.mxu0 0.0
    %3662 = vmatprep.subr.mxu0 0.0
    %3663 = vmatpush1.msra.mxu0 0.0
    %3664 = vmatprep.subr.mxu0 0.0
    %3665 = vmatpush1.msra.mxu0 0.0
    %3666 = vmatprep.subr.mxu0 0.0
    %3667 = vmatpush1.msra.mxu0 0.0
    %3668 = vmatprep.subr.mxu0 0.0
    %3669 = vmatpush1.msra.mxu0 0.0
    %3670 = vmatprep.subr.mxu0 0.0
    %3671 = vmatpush1.msra.mxu0 0.0
    %3672 = vmatprep.subr.mxu0 0.0
    %3673 = vmatpush1.msra.mxu0 0.0
    %3674 = vmatprep.subr.mxu0 0.0
    %3675 = vmatpush1.msra.mxu0 0.0
    %3676 = vmatprep.subr.mxu0 0.0
    %3677 = vmatpush1.msra.mxu0 0.0
    %3678 = vmatprep.subr.mxu0 0.0
    %3679 = vmatpush1.msra.mxu0 0.0
    %3680 = vmatprep.subr.mxu0 0.0
    %3681 = vmatpush1.msra.mxu0 0.0
    %3682 = vmatprep.subr.mxu0 0.0
    %3683 = vmatpush1.msra.mxu0 0.0
    %3684 = vmatprep.subr.mxu0 0.0
    %3685 = vmatpush1.msra.mxu0 0.0
    %3686 = vmatprep.subr.mxu0 0.0
    %3687 = vmatpush1.msra.mxu0 0.0
    %3688 = vmatprep.subr.mxu0 0.0
    %3689 = vmatpush1.msra.mxu0 0.0
    %3690 = vmatprep.subr.mxu0 0.0
    %3691 = vmatpush1.msra.mxu0 0.0
    %3692 = vmatprep.subr.mxu0 0.0
    %3693 = vmatpush1.msra.mxu0 0.0
    %3694 = vmatprep.subr.mxu0 0.0
    %3695 = vmatpush1.msra.mxu0 0.0
    %3696 = vmatprep.subr.mxu0 0.0
    %3697 = vmatpush1.msra.mxu0 0.0
    %3698 = vmatprep.subr.mxu0 0.0
    %3699 = vmatpush1.msra.mxu0 0.0
    %3700 = vmatprep.subr.mxu0 0.0
    %3701 = vmatpush1.msra.mxu0 0.0
    %3702 = vmatprep.subr.mxu0 0.0
    %3703 = vmatpush1.msra.mxu0 0.0
    %3704 = vmatprep.subr.mxu0 0.0
    %3705 = vmatpush1.msra.mxu0 0.0
    %3706 = vmatprep.subr.mxu0 0.0
    %3707 = vmatpush1.msra.mxu0 0.0
    %3708 = vmatprep.subr.mxu0 0.0
    %3709 = vmatpush1.msra.mxu0 0.0
    %3710 = vmatprep.subr.mxu0 0.0
    %3711 = vmatpush1.msra.mxu0 0.0
    %3712 = vmatprep.mubr.f32.mxu0 0.0
    %3713 = vmatmul.mubr.f32.gmra.mrb[0].mxu0 %v3630
    %v3714 = vpop.f32.mrb[0].mxu0
    %v3715 = vadd.f32 0.0, %v3714
    %v3716 = vpop.f32.mrb[0].mxu0
    %v3717 = vadd.f32 0.0, %v3716
    %3718 = vdwg.mxu0
    %3719 = vmatprep.subr.mxu0 %v3638
    %3720 = vmatpush1.msra.mxu0 %v3636
    %3721 = vmatprep.subr.mxu0 0.0
    %3722 = vmatpush1.msra.mxu0 0.0
    %3723 = vmatprep.subr.mxu0 0.0
    %3724 = vmatpush1.msra.mxu0 0.0
    %3725 = vmatprep.subr.mxu0 0.0
    %3726 = vmatpush1.msra.mxu0 0.0
    %3727 = vmatprep.subr.mxu0 0.0
    %3728 = vmatpush1.msra.mxu0 0.0
    %3729 = vmatprep.subr.mxu0 0.0
    %3730 = vmatpush1.msra.mxu0 0.0
    %3731 = vmatprep.subr.mxu0 0.0
    %3732 = vmatpush1.msra.mxu0 0.0
    %3733 = vmatprep.subr.mxu0 0.0
    %3734 = vmatpush1.msra.mxu0 0.0
    %3735 = vmatprep.subr.mxu0 0.0
    %3736 = vmatpush1.msra.mxu0 0.0
    %3737 = vmatprep.subr.mxu0 0.0
    %3738 = vmatpush1.msra.mxu0 0.0
    %3739 = vmatprep.subr.mxu0 0.0
    %3740 = vmatpush1.msra.mxu0 0.0
    %3741 = vmatprep.subr.mxu0 0.0
    %3742 = vmatpush1.msra.mxu0 0.0
    %3743 = vmatprep.subr.mxu0 0.0
    %3744 = vmatpush1.msra.mxu0 0.0
    %3745 = vmatprep.subr.mxu0 0.0
    %3746 = vmatpush1.msra.mxu0 0.0
    %3747 = vmatprep.subr.mxu0 0.0
    %3748 = vmatpush1.msra.mxu0 0.0
    %3749 = vmatprep.subr.mxu0 0.0
    %3750 = vmatpush1.msra.mxu0 0.0
    %3751 = vmatprep.subr.mxu0 0.0
    %3752 = vmatpush1.msra.mxu0 0.0
    %3753 = vmatprep.subr.mxu0 0.0
    %3754 = vmatpush1.msra.mxu0 0.0
    %3755 = vmatprep.subr.mxu0 0.0
    %3756 = vmatpush1.msra.mxu0 0.0
    %3757 = vmatprep.subr.mxu0 0.0
    %3758 = vmatpush1.msra.mxu0 0.0
    %3759 = vmatprep.subr.mxu0 0.0
    %3760 = vmatpush1.msra.mxu0 0.0
    %3761 = vmatprep.subr.mxu0 0.0
    %3762 = vmatpush1.msra.mxu0 0.0
    %3763 = vmatprep.subr.mxu0 0.0
    %3764 = vmatpush1.msra.mxu0 0.0
    %3765 = vmatprep.subr.mxu0 0.0
    %3766 = vmatpush1.msra.mxu0 0.0
    %3767 = vmatprep.subr.mxu0 0.0
    %3768 = vmatpush1.msra.mxu0 0.0
    %3769 = vmatprep.subr.mxu0 0.0
    %3770 = vmatpush1.msra.mxu0 0.0
    %3771 = vmatprep.subr.mxu0 0.0
    %3772 = vmatpush1.msra.mxu0 0.0
    %3773 = vmatprep.subr.mxu0 0.0
    %3774 = vmatpush1.msra.mxu0 0.0
    %3775 = vmatprep.subr.mxu0 0.0
    %3776 = vmatpush1.msra.mxu0 0.0
    %3777 = vmatprep.subr.mxu0 0.0
    %3778 = vmatpush1.msra.mxu0 0.0
    %3779 = vmatprep.subr.mxu0 0.0
    %3780 = vmatpush1.msra.mxu0 0.0
    %3781 = vmatprep.subr.mxu0 0.0
    %3782 = vmatpush1.msra.mxu0 0.0
    %3783 = vmatprep.mubr.f32.mxu0 0.0
    %3784 = vmatmul.mubr.f32.gmra.mrb[0].mxu0 %v3630
    %v3785 = vpop.f32.mrb[0].mxu0
    %v3786 = vadd.f32 0.0, %v3785
    %v3787 = vpop.f32.mrb[0].mxu0
    %v3788 = vadd.f32 0.0, %v3787
    %3789 = vdwg.mxu0
    %3790 = vmatprep.subr.mxu0 %v3642
    %3791 = vmatpush1.msra.mxu0 %v3640
    %3792 = vmatprep.subr.mxu0 0.0
    %3793 = vmatpush1.msra.mxu0 0.0
    %3794 = vmatprep.subr.mxu0 0.0
    %3795 = vmatpush1.msra.mxu0 0.0
    %3796 = vmatprep.subr.mxu0 0.0
    %3797 = vmatpush1.msra.mxu0 0.0
    %3798 = vmatprep.subr.mxu0 0.0
    %3799 = vmatpush1.msra.mxu0 0.0
    %3800 = vmatprep.subr.mxu0 0.0
    %3801 = vmatpush1.msra.mxu0 0.0
    %3802 = vmatprep.subr.mxu0 0.0
    %3803 = vmatpush1.msra.mxu0 0.0
    %3804 = vmatprep.subr.mxu0 0.0
    %3805 = vmatpush1.msra.mxu0 0.0
    %3806 = vmatprep.subr.mxu0 0.0
    %3807 = vmatpush1.msra.mxu0 0.0
    %3808 = vmatprep.subr.mxu0 0.0
    %3809 = vmatpush1.msra.mxu0 0.0
    %3810 = vmatprep.subr.mxu0 0.0
    %3811 = vmatpush1.msra.mxu0 0.0
    %3812 = vmatprep.subr.mxu0 0.0
    %3813 = vmatpush1.msra.mxu0 0.0
    %3814 = vmatprep.subr.mxu0 0.0
    %3815 = vmatpush1.msra.mxu0 0.0
    %3816 = vmatprep.subr.mxu0 0.0
    %3817 = vmatpush1.msra.mxu0 0.0
    %3818 = vmatprep.subr.mxu0 0.0
    %3819 = vmatpush1.msra.mxu0 0.0
    %3820 = vmatprep.subr.mxu0 0.0
    %3821 = vmatpush1.msra.mxu0 0.0
    %3822 = vmatprep.subr.mxu0 0.0
    %3823 = vmatpush1.msra.mxu0 0.0
    %3824 = vmatprep.subr.mxu0 0.0
    %3825 = vmatpush1.msra.mxu0 0.0
    %3826 = vmatprep.subr.mxu0 0.0
    %3827 = vmatpush1.msra.mxu0 0.0
    %3828 = vmatprep.subr.mxu0 0.0
    %3829 = vmatpush1.msra.mxu0 0.0
    %3830 = vmatprep.subr.mxu0 0.0
    %3831 = vmatpush1.msra.mxu0 0.0
    %3832 = vmatprep.subr.mxu0 0.0
    %3833 = vmatpush1.msra.mxu0 0.0
    %3834 = vmatprep.subr.mxu0 0.0
    %3835 = vmatpush1.msra.mxu0 0.0
    %3836 = vmatprep.subr.mxu0 0.0
    %3837 = vmatpush1.msra.mxu0 0.0
    %3838 = vmatprep.subr.mxu0 0.0
    %3839 = vmatpush1.msra.mxu0 0.0
    %3840 = vmatprep.subr.mxu0 0.0
    %3841 = vmatpush1.msra.mxu0 0.0
    %3842 = vmatprep.subr.mxu0 0.0
    %3843 = vmatpush1.msra.mxu0 0.0
    %3844 = vmatprep.subr.mxu0 0.0
    %3845 = vmatpush1.msra.mxu0 0.0
    %3846 = vmatprep.subr.mxu0 0.0
    %3847 = vmatpush1.msra.mxu0 0.0
    %3848 = vmatprep.subr.mxu0 0.0
    %3849 = vmatpush1.msra.mxu0 0.0
    %3850 = vmatprep.subr.mxu0 0.0
    %3851 = vmatpush1.msra.mxu0 0.0
    %3852 = vmatprep.subr.mxu0 0.0
    %3853 = vmatpush1.msra.mxu0 0.0
    %3854 = vmatprep.mubr.f32.mxu0 0.0
    %3855 = vmatmul.mubr.f32.gmra.mrb[0].mxu0 %v3630
    %v3856 = vpop.f32.mrb[0].mxu0
    %v3857 = vadd.f32 0.0, %v3856
    %v3858 = vpop.f32.mrb[0].mxu0
    %v3859 = vadd.f32 0.0, %v3858
    %3860 = vdwg.mxu0
    %3861 = vmatprep.subr.mxu0 %v3646
    %3862 = vmatpush1.msra.mxu0 %v3644
    %3863 = vmatprep.subr.mxu0 0.0
    %3864 = vmatpush1.msra.mxu0 0.0
    %3865 = vmatprep.subr.mxu0 0.0
    %3866 = vmatpush1.msra.mxu0 0.0
    %3867 = vmatprep.subr.mxu0 0.0
    %3868 = vmatpush1.msra.mxu0 0.0
    %3869 = vmatprep.subr.mxu0 0.0
    %3870 = vmatpush1.msra.mxu0 0.0
    %3871 = vmatprep.subr.mxu0 0.0
    %3872 = vmatpush1.msra.mxu0 0.0
    %3873 = vmatprep.subr.mxu0 0.0
    %3874 = vmatpush1.msra.mxu0 0.0
    %3875 = vmatprep.subr.mxu0 0.0
    %3876 = vmatpush1.msra.mxu0 0.0
    %3877 = vmatprep.subr.mxu0 0.0
    %3878 = vmatpush1.msra.mxu0 0.0
    %3879 = vmatprep.subr.mxu0 0.0
    %3880 = vmatpush1.msra.mxu0 0.0
    %3881 = vmatprep.subr.mxu0 0.0
    %3882 = vmatpush1.msra.mxu0 0.0
    %3883 = vmatprep.subr.mxu0 0.0
    %3884 = vmatpush1.msra.mxu0 0.0
    %3885 = vmatprep.subr.mxu0 0.0
    %3886 = vmatpush1.msra.mxu0 0.0
    %3887 = vmatprep.subr.mxu0 0.0
    %3888 = vmatpush1.msra.mxu0 0.0
    %3889 = vmatprep.subr.mxu0 0.0
    %3890 = vmatpush1.msra.mxu0 0.0
    %3891 = vmatprep.subr.mxu0 0.0
    %3892 = vmatpush1.msra.mxu0 0.0
    %3893 = vmatprep.subr.mxu0 0.0
    %3894 = vmatpush1.msra.mxu0 0.0
    %3895 = vmatprep.subr.mxu0 0.0
    %3896 = vmatpush1.msra.mxu0 0.0
    %3897 = vmatprep.subr.mxu0 0.0
    %3898 = vmatpush1.msra.mxu0 0.0
    %3899 = vmatprep.subr.mxu0 0.0
    %3900 = vmatpush1.msra.mxu0 0.0
    %3901 = vmatprep.subr.mxu0 0.0
    %3902 = vmatpush1.msra.mxu0 0.0
    %3903 = vmatprep.subr.mxu0 0.0
    %3904 = vmatpush1.msra.mxu0 0.0
    %3905 = vmatprep.subr.mxu0 0.0
    %3906 = vmatpush1.msra.mxu0 0.0
    %3907 = vmatprep.subr.mxu0 0.0
    %3908 = vmatpush1.msra.mxu0 0.0
    %3909 = vmatprep.subr.mxu0 0.0
    %3910 = vmatpush1.msra.mxu0 0.0
    %3911 = vmatprep.subr.mxu0 0.0
    %3912 = vmatpush1.msra.mxu0 0.0
    %3913 = vmatprep.subr.mxu0 0.0
    %3914 = vmatpush1.msra.mxu0 0.0
    %3915 = vmatprep.subr.mxu0 0.0
    %3916 = vmatpush1.msra.mxu0 0.0
    %3917 = vmatprep.subr.mxu0 0.0
    %3918 = vmatpush1.msra.mxu0 0.0
    %3919 = vmatprep.subr.mxu0 0.0
    %3920 = vmatpush1.msra.mxu0 0.0
    %3921 = vmatprep.subr.mxu0 0.0
    %3922 = vmatpush1.msra.mxu0 0.0
    %3923 = vmatprep.subr.mxu0 0.0
    %3924 = vmatpush1.msra.mxu0 0.0
    %3925 = vmatprep.mubr.f32.mxu0 0.0
    %3926 = vmatmul.mubr.f32.gmra.mrb[0].mxu0 %v3630
    %v3927 = vpop.f32.mrb[0].mxu0
    %v3928 = vadd.f32 0.0, %v3927
    %v3929 = vpop.f32.mrb[0].mxu0
    %v3930 = vadd.f32 0.0, %v3929
    %3931 = vdwg.mxu0
    %3932 = vst [vmem:[#allocation2] sm:$0xff] %v3580
    %3933 = vst [vmem:[#allocation2 + $0x8] sm:$0xff] %v3581
    %3934 = vst [vmem:[#allocation2 + $0x10] sm:$0xff] %v3582
    %3935 = vst [vmem:[#allocation2 + $0x18] sm:$0xff] %v3583
    %3936 = vst [vmem:[#allocation2 + $0x20] sm:$0xff] %v3584
    %3937 = vst [vmem:[#allocation2 + $0x28] sm:$0xff] %v3585
    %3938 = vst [vmem:[#allocation2 + $0x30] sm:$0xff] %v3586
    %vm3939 = vcmask 900096
    %3940 = vst.msk [vmem:[#allocation2 + $0x38] sm:$0xff] %vm3939, %v3587
    %v3941 = vld [vmem:[%s3] sm:$0xff]
    %v3942 = vld [vmem:[#allocation2] sm:$0xff]
    %v3943 = vld [vmem:[#allocation2 + $0x8] sm:$0xff]
    %v3944 = vld [vmem:[#allocation2 + $0x10] sm:$0xff]
    %v3945 = vld [vmem:[#allocation2 + $0x18] sm:$0xff]
    %v3946 = vld [vmem:[#allocation2 + $0x20] sm:$0xff]
    %v3947 = vld [vmem:[#allocation2 + $0x28] sm:$0xff]
    %v3948 = vld [vmem:[#allocation2 + $0x30] sm:$0xff]
    %v3949 = vld [vmem:[#allocation2 + $0x38] sm:$0xff]
    %s3950 = scalar_lea.vmem %s3, 8
    %v3951 = vld [vmem:[%s3950] sm:$0xff]
    %3960 = vrot.lane.b32.xlu0 %v3942, 127
    %v3961 = vpop.permute.xlu0 %3960
    %3962 = vrot.lane.b32.xlu0 %v3943, 127
    %v3963 = vpop.permute.xlu0 %3962
    %3964 = vrot.lane.b32.xlu0 %v3944, 127
    %v3965 = vpop.permute.xlu0 %3964
    %3966 = vrot.lane.b32.xlu0 %v3945, 127
    %v3967 = vpop.permute.xlu0 %3966
    %3968 = vrot.lane.b32.xlu0 %v3946, 127
    %v3969 = vpop.permute.xlu0 %3968
    %3970 = vrot.lane.b32.xlu0 %v3947, 127
    %v3971 = vpop.permute.xlu0 %3970
    %3972 = vrot.lane.b32.xlu0 %v3948, 127
    %v3973 = vpop.permute.xlu0 %3972
    %3974 = vrot.lane.b32.xlu0 %v3949, 127
    %v3975 = vpop.permute.xlu0 %3974
    %v3976 = vsel %vm546, %v3961, %v3963
    %v3977 = vsel %vm546, %v3963, %v3965
    %v3978 = vsel %vm546, %v3965, %v3967
    %v3979 = vsel %vm546, %v3967, %v3969
    %v3980 = vsel %vm546, %v3969, %v3971
    %v3981 = vsel %vm546, %v3971, %v3973
    %v3982 = vsel %vm546, %v3973, %v3975
    %v3992 = vsel %vm562, %v3951, 0
    %3994 = vmatprep.subr.mxu0 %v3977
    %3995 = vmatpush1.msra.mxu0 %v3976
    %3996 = vmatprep.subr.mxu0 0.0
    %3997 = vmatpush1.msra.mxu0 0.0
    %3998 = vmatprep.subr.mxu0 0.0
    %3999 = vmatpush1.msra.mxu0 0.0
    %4000 = vmatprep.subr.mxu0 0.0
    %4001 = vmatpush1.msra.mxu0 0.0
    %4002 = vmatprep.subr.mxu0 0.0
    %4003 = vmatpush1.msra.mxu0 0.0
    %4004 = vmatprep.subr.mxu0 0.0
    %4005 = vmatpush1.msra.mxu0 0.0
    %4006 = vmatprep.subr.mxu0 0.0
    %4007 = vmatpush1.msra.mxu0 0.0
    %4008 = vmatprep.subr.mxu0 0.0
    %4009 = vmatpush1.msra.mxu0 0.0
    %4010 = vmatprep.subr.mxu0 0.0
    %4011 = vmatpush1.msra.mxu0 0.0
    %4012 = vmatprep.subr.mxu0 0.0
    %4013 = vmatpush1.msra.mxu0 0.0
    %4014 = vmatprep.subr.mxu0 0.0
    %4015 = vmatpush1.msra.mxu0 0.0
    %4016 = vmatprep.subr.mxu0 0.0
    %4017 = vmatpush1.msra.mxu0 0.0
    %4018 = vmatprep.subr.mxu0 0.0
    %4019 = vmatpush1.msra.mxu0 0.0
    %4020 = vmatprep.subr.mxu0 0.0
    %4021 = vmatpush1.msra.mxu0 0.0
    %4022 = vmatprep.subr.mxu0 0.0
    %4023 = vmatpush1.msra.mxu0 0.0
    %4024 = vmatprep.subr.mxu0 0.0
    %4025 = vmatpush1.msra.mxu0 0.0
    %4026 = vmatprep.subr.mxu0 0.0
    %4027 = vmatpush1.msra.mxu0 0.0
    %4028 = vmatprep.subr.mxu0 0.0
    %4029 = vmatpush1.msra.mxu0 0.0
    %4030 = vmatprep.subr.mxu0 0.0
    %4031 = vmatpush1.msra.mxu0 0.0
    %4032 = vmatprep.subr.mxu0 0.0
    %4033 = vmatpush1.msra.mxu0 0.0
    %4034 = vmatprep.subr.mxu0 0.0
    %4035 = vmatpush1.msra.mxu0 0.0
    %4036 = vmatprep.subr.mxu0 0.0
    %4037 = vmatpush1.msra.mxu0 0.0
    %4038 = vmatprep.subr.mxu0 0.0
    %4039 = vmatpush1.msra.mxu0 0.0
    %4040 = vmatprep.subr.mxu0 0.0
    %4041 = vmatpush1.msra.mxu0 0.0
    %4042 = vmatprep.subr.mxu0 0.0
    %4043 = vmatpush1.msra.mxu0 0.0
    %4044 = vmatprep.subr.mxu0 0.0
    %4045 = vmatpush1.msra.mxu0 0.0
    %4046 = vmatprep.subr.mxu0 0.0
    %4047 = vmatpush1.msra.mxu0 0.0
    %4048 = vmatprep.subr.mxu0 0.0
    %4049 = vmatpush1.msra.mxu0 0.0
    %4050 = vmatprep.subr.mxu0 0.0
    %4051 = vmatpush1.msra.mxu0 0.0
    %4052 = vmatprep.subr.mxu0 0.0
    %4053 = vmatpush1.msra.mxu0 0.0
    %4054 = vmatprep.subr.mxu0 0.0
    %4055 = vmatpush1.msra.mxu0 0.0
    %4056 = vmatprep.subr.mxu0 0.0
    %4057 = vmatpush1.msra.mxu0 0.0
    %4058 = vmatprep.mubr.f32.mxu0 0.0
    %4059 = vmatmul.mubr.f32.gmra.mrb[0].mxu0 %v3992
    %v4060 = vpop.f32.mrb[0].mxu0
    %v4061 = vadd.f32 0.0, %v4060
    %v4062 = vpop.f32.mrb[0].mxu0
    %v4063 = vadd.f32 0.0, %v4062
    %4064 = vdwg.mxu0
    %4065 = vmatprep.subr.mxu0 %v3979
    %4066 = vmatpush1.msra.mxu0 %v3978
    %4067 = vmatprep.subr.mxu0 0.0
    %4068 = vmatpush1.msra.mxu0 0.0
    %4069 = vmatprep.subr.mxu0 0.0
    %4070 = vmatpush1.msra.mxu0 0.0
    %4071 = vmatprep.subr.mxu0 0.0
    %4072 = vmatpush1.msra.mxu0 0.0
    %4073 = vmatprep.subr.mxu0 0.0
    %4074 = vmatpush1.msra.mxu0 0.0
    %4075 = vmatprep.subr.mxu0 0.0
    %4076 = vmatpush1.msra.mxu0 0.0
    %4077 = vmatprep.subr.mxu0 0.0
    %4078 = vmatpush1.msra.mxu0 0.0
    %4079 = vmatprep.subr.mxu0 0.0
    %4080 = vmatpush1.msra.mxu0 0.0
    %4081 = vmatprep.subr.mxu0 0.0
    %4082 = vmatpush1.msra.mxu0 0.0
    %4083 = vmatprep.subr.mxu0 0.0
    %4084 = vmatpush1.msra.mxu0 0.0
    %4085 = vmatprep.subr.mxu0 0.0
    %4086 = vmatpush1.msra.mxu0 0.0
    %4087 = vmatprep.subr.mxu0 0.0
    %4088 = vmatpush1.msra.mxu0 0.0
    %4089 = vmatprep.subr.mxu0 0.0
    %4090 = vmatpush1.msra.mxu0 0.0
    %4091 = vmatprep.subr.mxu0 0.0
    %4092 = vmatpush1.msra.mxu0 0.0
    %4093 = vmatprep.subr.mxu0 0.0
    %4094 = vmatpush1.msra.mxu0 0.0
    %4095 = vmatprep.subr.mxu0 0.0
    %4096 = vmatpush1.msra.mxu0 0.0
    %4097 = vmatprep.subr.mxu0 0.0
    %4098 = vmatpush1.msra.mxu0 0.0
    %4099 = vmatprep.subr.mxu0 0.0
    %4100 = vmatpush1.msra.mxu0 0.0
    %4101 = vmatprep.subr.mxu0 0.0
    %4102 = vmatpush1.msra.mxu0 0.0
    %4103 = vmatprep.subr.mxu0 0.0
    %4104 = vmatpush1.msra.mxu0 0.0
    %4105 = vmatprep.subr.mxu0 0.0
    %4106 = vmatpush1.msra.mxu0 0.0
    %4107 = vmatprep.subr.mxu0 0.0
    %4108 = vmatpush1.msra.mxu0 0.0
    %4109 = vmatprep.subr.mxu0 0.0
    %4110 = vmatpush1.msra.mxu0 0.0
    %4111 = vmatprep.subr.mxu0 0.0
    %4112 = vmatpush1.msra.mxu0 0.0
    %4113 = vmatprep.subr.mxu0 0.0
    %4114 = vmatpush1.msra.mxu0 0.0
    %4115 = vmatprep.subr.mxu0 0.0
    %4116 = vmatpush1.msra.mxu0 0.0
    %4117 = vmatprep.subr.mxu0 0.0
    %4118 = vmatpush1.msra.mxu0 0.0
    %4119 = vmatprep.subr.mxu0 0.0
    %4120 = vmatpush1.msra.mxu0 0.0
    %4121 = vmatprep.subr.mxu0 0.0
    %4122 = vmatpush1.msra.mxu0 0.0
    %4123 = vmatprep.subr.mxu0 0.0
    %4124 = vmatpush1.msra.mxu0 0.0
    %4125 = vmatprep.subr.mxu0 0.0
    %4126 = vmatpush1.msra.mxu0 0.0
    %4127 = vmatprep.subr.mxu0 0.0
    %4128 = vmatpush1.msra.mxu0 0.0
    %4129 = vmatprep.mubr.f32.mxu0 0.0
    %4130 = vmatmul.mubr.f32.gmra.mrb[0].mxu0 %v3992
    %v4131 = vpop.f32.mrb[0].mxu0
    %v4132 = vadd.f32 0.0, %v4131
    %v4133 = vpop.f32.mrb[0].mxu0
    %v4134 = vadd.f32 0.0, %v4133
    %4135 = vdwg.mxu0
    %4136 = vmatprep.subr.mxu0 %v3981
    %4137 = vmatpush1.msra.mxu0 %v3980
    %4138 = vmatprep.subr.mxu0 0.0
    %4139 = vmatpush1.msra.mxu0 0.0
    %4140 = vmatprep.subr.mxu0 0.0
    %4141 = vmatpush1.msra.mxu0 0.0
    %4142 = vmatprep.subr.mxu0 0.0
    %4143 = vmatpush1.msra.mxu0 0.0
    %4144 = vmatprep.subr.mxu0 0.0
    %4145 = vmatpush1.msra.mxu0 0.0
    %4146 = vmatprep.subr.mxu0 0.0
    %4147 = vmatpush1.msra.mxu0 0.0
    %4148 = vmatprep.subr.mxu0 0.0
    %4149 = vmatpush1.msra.mxu0 0.0
    %4150 = vmatprep.subr.mxu0 0.0
    %4151 = vmatpush1.msra.mxu0 0.0
    %4152 = vmatprep.subr.mxu0 0.0
    %4153 = vmatpush1.msra.mxu0 0.0
    %4154 = vmatprep.subr.mxu0 0.0
    %4155 = vmatpush1.msra.mxu0 0.0
    %4156 = vmatprep.subr.mxu0 0.0
    %4157 = vmatpush1.msra.mxu0 0.0
    %4158 = vmatprep.subr.mxu0 0.0
    %4159 = vmatpush1.msra.mxu0 0.0
    %4160 = vmatprep.subr.mxu0 0.0
    %4161 = vmatpush1.msra.mxu0 0.0
    %4162 = vmatprep.subr.mxu0 0.0
    %4163 = vmatpush1.msra.mxu0 0.0
    %4164 = vmatprep.subr.mxu0 0.0
    %4165 = vmatpush1.msra.mxu0 0.0
    %4166 = vmatprep.subr.mxu0 0.0
    %4167 = vmatpush1.msra.mxu0 0.0
    %4168 = vmatprep.subr.mxu0 0.0
    %4169 = vmatpush1.msra.mxu0 0.0
    %4170 = vmatprep.subr.mxu0 0.0
    %4171 = vmatpush1.msra.mxu0 0.0
    %4172 = vmatprep.subr.mxu0 0.0
    %4173 = vmatpush1.msra.mxu0 0.0
    %4174 = vmatprep.subr.mxu0 0.0
    %4175 = vmatpush1.msra.mxu0 0.0
    %4176 = vmatprep.subr.mxu0 0.0
    %4177 = vmatpush1.msra.mxu0 0.0
    %4178 = vmatprep.subr.mxu0 0.0
    %4179 = vmatpush1.msra.mxu0 0.0
    %4180 = vmatprep.subr.mxu0 0.0
    %4181 = vmatpush1.msra.mxu0 0.0
    %4182 = vmatprep.subr.mxu0 0.0
    %4183 = vmatpush1.msra.mxu0 0.0
    %4184 = vmatprep.subr.mxu0 0.0
    %4185 = vmatpush1.msra.mxu0 0.0
    %4186 = vmatprep.subr.mxu0 0.0
    %4187 = vmatpush1.msra.mxu0 0.0
    %4188 = vmatprep.subr.mxu0 0.0
    %4189 = vmatpush1.msra.mxu0 0.0
    %4190 = vmatprep.subr.mxu0 0.0
    %4191 = vmatpush1.msra.mxu0 0.0
    %4192 = vmatprep.subr.mxu0 0.0
    %4193 = vmatpush1.msra.mxu0 0.0
    %4194 = vmatprep.subr.mxu0 0.0
    %4195 = vmatpush1.msra.mxu0 0.0
    %4196 = vmatprep.subr.mxu0 0.0
    %4197 = vmatpush1.msra.mxu0 0.0
    %4198 = vmatprep.subr.mxu0 0.0
    %4199 = vmatpush1.msra.mxu0 0.0
    %4200 = vmatprep.mubr.f32.mxu0 0.0
    %4201 = vmatmul.mubr.f32.gmra.mrb[0].mxu0 %v3992
    %v4202 = vpop.f32.mrb[0].mxu0
    %v4203 = vadd.f32 0.0, %v4202
    %v4204 = vpop.f32.mrb[0].mxu0
    %v4205 = vadd.f32 0.0, %v4204
    %4206 = vdwg.mxu0
    %4207 = vmatprep.subr.mxu0 %v3975
    %4208 = vmatpush1.msra.mxu0 %v3982
    %4209 = vmatprep.subr.mxu0 0.0
    %4210 = vmatpush1.msra.mxu0 0.0
    %4211 = vmatprep.subr.mxu0 0.0
    %4212 = vmatpush1.msra.mxu0 0.0
    %4213 = vmatprep.subr.mxu0 0.0
    %4214 = vmatpush1.msra.mxu0 0.0
    %4215 = vmatprep.subr.mxu0 0.0
    %4216 = vmatpush1.msra.mxu0 0.0
    %4217 = vmatprep.subr.mxu0 0.0
    %4218 = vmatpush1.msra.mxu0 0.0
    %4219 = vmatprep.subr.mxu0 0.0
    %4220 = vmatpush1.msra.mxu0 0.0
    %4221 = vmatprep.subr.mxu0 0.0
    %4222 = vmatpush1.msra.mxu0 0.0
    %4223 = vmatprep.subr.mxu0 0.0
    %4224 = vmatpush1.msra.mxu0 0.0
    %4225 = vmatprep.subr.mxu0 0.0
    %4226 = vmatpush1.msra.mxu0 0.0
    %4227 = vmatprep.subr.mxu0 0.0
    %4228 = vmatpush1.msra.mxu0 0.0
    %4229 = vmatprep.subr.mxu0 0.0
    %4230 = vmatpush1.msra.mxu0 0.0
    %4231 = vmatprep.subr.mxu0 0.0
    %4232 = vmatpush1.msra.mxu0 0.0
    %4233 = vmatprep.subr.mxu0 0.0
    %4234 = vmatpush1.msra.mxu0 0.0
    %4235 = vmatprep.subr.mxu0 0.0
    %4236 = vmatpush1.msra.mxu0 0.0
    %4237 = vmatprep.subr.mxu0 0.0
    %4238 = vmatpush1.msra.mxu0 0.0
    %4239 = vmatprep.subr.mxu0 0.0
    %4240 = vmatpush1.msra.mxu0 0.0
    %4241 = vmatprep.subr.mxu0 0.0
    %4242 = vmatpush1.msra.mxu0 0.0
    %4243 = vmatprep.subr.mxu0 0.0
    %4244 = vmatpush1.msra.mxu0 0.0
    %4245 = vmatprep.subr.mxu0 0.0
    %4246 = vmatpush1.msra.mxu0 0.0
    %4247 = vmatprep.subr.mxu0 0.0
    %4248 = vmatpush1.msra.mxu0 0.0
    %4249 = vmatprep.subr.mxu0 0.0
    %4250 = vmatpush1.msra.mxu0 0.0
    %4251 = vmatprep.subr.mxu0 0.0
    %4252 = vmatpush1.msra.mxu0 0.0
    %4253 = vmatprep.subr.mxu0 0.0
    %4254 = vmatpush1.msra.mxu0 0.0
    %4255 = vmatprep.subr.mxu0 0.0
    %4256 = vmatpush1.msra.mxu0 0.0
    %4257 = vmatprep.subr.mxu0 0.0
    %4258 = vmatpush1.msra.mxu0 0.0
    %4259 = vmatprep.subr.mxu0 0.0
    %4260 = vmatpush1.msra.mxu0 0.0
    %4261 = vmatprep.subr.mxu0 0.0
    %4262 = vmatpush1.msra.mxu0 0.0
    %4263 = vmatprep.subr.mxu0 0.0
    %4264 = vmatpush1.msra.mxu0 0.0
    %4265 = vmatprep.subr.mxu0 0.0
    %4266 = vmatpush1.msra.mxu0 0.0
    %4267 = vmatprep.subr.mxu0 0.0
    %4268 = vmatpush1.msra.mxu0 0.0
    %4269 = vmatprep.subr.mxu0 0.0
    %4270 = vmatpush1.msra.mxu0 0.0
    %4271 = vmatprep.mubr.f32.mxu0 0.0
    %4272 = vmatmul.mubr.f32.gmra.mrb[0].mxu0 %v3992
    %v4273 = vpop.f32.mrb[0].mxu0
    %v4274 = vadd.f32 0.0, %v4273
    %v4275 = vpop.f32.mrb[0].mxu0
    %v4276 = vadd.f32 0.0, %v4275
    %4277 = vdwg.mxu0
    %v4279 = vsel %vm562, %v3941, 0
    %4281 = vmatprep.subr.mxu0 %v3943
    %4282 = vmatpush1.msra.mxu0 %v3942
    %4283 = vmatprep.subr.mxu0 0.0
    %4284 = vmatpush1.msra.mxu0 0.0
    %4285 = vmatprep.subr.mxu0 0.0
    %4286 = vmatpush1.msra.mxu0 0.0
    %4287 = vmatprep.subr.mxu0 0.0
    %4288 = vmatpush1.msra.mxu0 0.0
    %4289 = vmatprep.subr.mxu0 0.0
    %4290 = vmatpush1.msra.mxu0 0.0
    %4291 = vmatprep.subr.mxu0 0.0
    %4292 = vmatpush1.msra.mxu0 0.0
    %4293 = vmatprep.subr.mxu0 0.0
    %4294 = vmatpush1.msra.mxu0 0.0
    %4295 = vmatprep.subr.mxu0 0.0
    %4296 = vmatpush1.msra.mxu0 0.0
    %4297 = vmatprep.subr.mxu0 0.0
    %4298 = vmatpush1.msra.mxu0 0.0
    %4299 = vmatprep.subr.mxu0 0.0
    %4300 = vmatpush1.msra.mxu0 0.0
    %4301 = vmatprep.subr.mxu0 0.0
    %4302 = vmatpush1.msra.mxu0 0.0
    %4303 = vmatprep.subr.mxu0 0.0
    %4304 = vmatpush1.msra.mxu0 0.0
    %4305 = vmatprep.subr.mxu0 0.0
    %4306 = vmatpush1.msra.mxu0 0.0
    %4307 = vmatprep.subr.mxu0 0.0
    %4308 = vmatpush1.msra.mxu0 0.0
    %4309 = vmatprep.subr.mxu0 0.0
    %4310 = vmatpush1.msra.mxu0 0.0
    %4311 = vmatprep.subr.mxu0 0.0
    %4312 = vmatpush1.msra.mxu0 0.0
    %4313 = vmatprep.subr.mxu0 0.0
    %4314 = vmatpush1.msra.mxu0 0.0
    %4315 = vmatprep.subr.mxu0 0.0
    %4316 = vmatpush1.msra.mxu0 0.0
    %4317 = vmatprep.subr.mxu0 0.0
    %4318 = vmatpush1.msra.mxu0 0.0
    %4319 = vmatprep.subr.mxu0 0.0
    %4320 = vmatpush1.msra.mxu0 0.0
    %4321 = vmatprep.subr.mxu0 0.0
    %4322 = vmatpush1.msra.mxu0 0.0
    %4323 = vmatprep.subr.mxu0 0.0
    %4324 = vmatpush1.msra.mxu0 0.0
    %4325 = vmatprep.subr.mxu0 0.0
    %4326 = vmatpush1.msra.mxu0 0.0
    %4327 = vmatprep.subr.mxu0 0.0
    %4328 = vmatpush1.msra.mxu0 0.0
    %4329 = vmatprep.subr.mxu0 0.0
    %4330 = vmatpush1.msra.mxu0 0.0
    %4331 = vmatprep.subr.mxu0 0.0
    %4332 = vmatpush1.msra.mxu0 0.0
    %4333 = vmatprep.subr.mxu0 0.0
    %4334 = vmatpush1.msra.mxu0 0.0
    %4335 = vmatprep.subr.mxu0 0.0
    %4336 = vmatpush1.msra.mxu0 0.0
    %4337 = vmatprep.subr.mxu0 0.0
    %4338 = vmatpush1.msra.mxu0 0.0
    %4339 = vmatprep.subr.mxu0 0.0
    %4340 = vmatpush1.msra.mxu0 0.0
    %4341 = vmatprep.subr.mxu0 0.0
    %4342 = vmatpush1.msra.mxu0 0.0
    %4343 = vmatprep.subr.mxu0 0.0
    %4344 = vmatpush1.msra.mxu0 0.0
    %4345 = vmatprep.mubr.f32.mxu0 0.0
    %4346 = vmatmul.mubr.f32.gmra.mrb[0].mxu0 %v4279
    %v4347 = vpop.f32.mrb[0].mxu0
    %v4348 = vadd.f32 %v4061, %v4347
    %v4349 = vpop.f32.mrb[0].mxu0
    %v4350 = vadd.f32 %v4063, %v4349
    %4351 = vdwg.mxu0
    %4352 = vmatprep.subr.mxu0 %v3945
    %4353 = vmatpush1.msra.mxu0 %v3944
    %4354 = vmatprep.subr.mxu0 0.0
    %4355 = vmatpush1.msra.mxu0 0.0
    %4356 = vmatprep.subr.mxu0 0.0
    %4357 = vmatpush1.msra.mxu0 0.0
    %4358 = vmatprep.subr.mxu0 0.0
    %4359 = vmatpush1.msra.mxu0 0.0
    %4360 = vmatprep.subr.mxu0 0.0
    %4361 = vmatpush1.msra.mxu0 0.0
    %4362 = vmatprep.subr.mxu0 0.0
    %4363 = vmatpush1.msra.mxu0 0.0
    %4364 = vmatprep.subr.mxu0 0.0
    %4365 = vmatpush1.msra.mxu0 0.0
    %4366 = vmatprep.subr.mxu0 0.0
    %4367 = vmatpush1.msra.mxu0 0.0
    %4368 = vmatprep.subr.mxu0 0.0
    %4369 = vmatpush1.msra.mxu0 0.0
    %4370 = vmatprep.subr.mxu0 0.0
    %4371 = vmatpush1.msra.mxu0 0.0
    %4372 = vmatprep.subr.mxu0 0.0
    %4373 = vmatpush1.msra.mxu0 0.0
    %4374 = vmatprep.subr.mxu0 0.0
    %4375 = vmatpush1.msra.mxu0 0.0
    %4376 = vmatprep.subr.mxu0 0.0
    %4377 = vmatpush1.msra.mxu0 0.0
    %4378 = vmatprep.subr.mxu0 0.0
    %4379 = vmatpush1.msra.mxu0 0.0
    %4380 = vmatprep.subr.mxu0 0.0
    %4381 = vmatpush1.msra.mxu0 0.0
    %4382 = vmatprep.subr.mxu0 0.0
    %4383 = vmatpush1.msra.mxu0 0.0
    %4384 = vmatprep.subr.mxu0 0.0
    %4385 = vmatpush1.msra.mxu0 0.0
    %4386 = vmatprep.subr.mxu0 0.0
    %4387 = vmatpush1.msra.mxu0 0.0
    %4388 = vmatprep.subr.mxu0 0.0
    %4389 = vmatpush1.msra.mxu0 0.0
    %4390 = vmatprep.subr.mxu0 0.0
    %4391 = vmatpush1.msra.mxu0 0.0
    %4392 = vmatprep.subr.mxu0 0.0
    %4393 = vmatpush1.msra.mxu0 0.0
    %4394 = vmatprep.subr.mxu0 0.0
    %4395 = vmatpush1.msra.mxu0 0.0
    %4396 = vmatprep.subr.mxu0 0.0
    %4397 = vmatpush1.msra.mxu0 0.0
    %4398 = vmatprep.subr.mxu0 0.0
    %4399 = vmatpush1.msra.mxu0 0.0
    %4400 = vmatprep.subr.mxu0 0.0
    %4401 = vmatpush1.msra.mxu0 0.0
    %4402 = vmatprep.subr.mxu0 0.0
    %4403 = vmatpush1.msra.mxu0 0.0
    %4404 = vmatprep.subr.mxu0 0.0
    %4405 = vmatpush1.msra.mxu0 0.0
    %4406 = vmatprep.subr.mxu0 0.0
    %4407 = vmatpush1.msra.mxu0 0.0
    %4408 = vmatprep.subr.mxu0 0.0
    %4409 = vmatpush1.msra.mxu0 0.0
    %4410 = vmatprep.subr.mxu0 0.0
    %4411 = vmatpush1.msra.mxu0 0.0
    %4412 = vmatprep.subr.mxu0 0.0
    %4413 = vmatpush1.msra.mxu0 0.0
    %4414 = vmatprep.subr.mxu0 0.0
    %4415 = vmatpush1.msra.mxu0 0.0
    %4416 = vmatprep.mubr.f32.mxu0 0.0
    %4417 = vmatmul.mubr.f32.gmra.mrb[0].mxu0 %v4279
    %v4418 = vpop.f32.mrb[0].mxu0
    %v4419 = vadd.f32 %v4132, %v4418
    %v4420 = vpop.f32.mrb[0].mxu0
    %v4421 = vadd.f32 %v4134, %v4420
    %4422 = vdwg.mxu0
    %4423 = vmatprep.subr.mxu0 %v3947
    %4424 = vmatpush1.msra.mxu0 %v3946
    %4425 = vmatprep.subr.mxu0 0.0
    %4426 = vmatpush1.msra.mxu0 0.0
    %4427 = vmatprep.subr.mxu0 0.0
    %4428 = vmatpush1.msra.mxu0 0.0
    %4429 = vmatprep.subr.mxu0 0.0
    %4430 = vmatpush1.msra.mxu0 0.0
    %4431 = vmatprep.subr.mxu0 0.0
    %4432 = vmatpush1.msra.mxu0 0.0
    %4433 = vmatprep.subr.mxu0 0.0
    %4434 = vmatpush1.msra.mxu0 0.0
    %4435 = vmatprep.subr.mxu0 0.0
    %4436 = vmatpush1.msra.mxu0 0.0
    %4437 = vmatprep.subr.mxu0 0.0
    %4438 = vmatpush1.msra.mxu0 0.0
    %4439 = vmatprep.subr.mxu0 0.0
    %4440 = vmatpush1.msra.mxu0 0.0
    %4441 = vmatprep.subr.mxu0 0.0
    %4442 = vmatpush1.msra.mxu0 0.0
    %4443 = vmatprep.subr.mxu0 0.0
    %4444 = vmatpush1.msra.mxu0 0.0
    %4445 = vmatprep.subr.mxu0 0.0
    %4446 = vmatpush1.msra.mxu0 0.0
    %4447 = vmatprep.subr.mxu0 0.0
    %4448 = vmatpush1.msra.mxu0 0.0
    %4449 = vmatprep.subr.mxu0 0.0
    %4450 = vmatpush1.msra.mxu0 0.0
    %4451 = vmatprep.subr.mxu0 0.0
    %4452 = vmatpush1.msra.mxu0 0.0
    %4453 = vmatprep.subr.mxu0 0.0
    %4454 = vmatpush1.msra.mxu0 0.0
    %4455 = vmatprep.subr.mxu0 0.0
    %4456 = vmatpush1.msra.mxu0 0.0
    %4457 = vmatprep.subr.mxu0 0.0
    %4458 = vmatpush1.msra.mxu0 0.0
    %4459 = vmatprep.subr.mxu0 0.0
    %4460 = vmatpush1.msra.mxu0 0.0
    %4461 = vmatprep.subr.mxu0 0.0
    %4462 = vmatpush1.msra.mxu0 0.0
    %4463 = vmatprep.subr.mxu0 0.0
    %4464 = vmatpush1.msra.mxu0 0.0
    %4465 = vmatprep.subr.mxu0 0.0
    %4466 = vmatpush1.msra.mxu0 0.0
    %4467 = vmatprep.subr.mxu0 0.0
    %4468 = vmatpush1.msra.mxu0 0.0
    %4469 = vmatprep.subr.mxu0 0.0
    %4470 = vmatpush1.msra.mxu0 0.0
    %4471 = vmatprep.subr.mxu0 0.0
    %4472 = vmatpush1.msra.mxu0 0.0
    %4473 = vmatprep.subr.mxu0 0.0
    %4474 = vmatpush1.msra.mxu0 0.0
    %4475 = vmatprep.subr.mxu0 0.0
    %4476 = vmatpush1.msra.mxu0 0.0
    %4477 = vmatprep.subr.mxu0 0.0
    %4478 = vmatpush1.msra.mxu0 0.0
    %4479 = vmatprep.subr.mxu0 0.0
    %4480 = vmatpush1.msra.mxu0 0.0
    %4481 = vmatprep.subr.mxu0 0.0
    %4482 = vmatpush1.msra.mxu0 0.0
    %4483 = vmatprep.subr.mxu0 0.0
    %4484 = vmatpush1.msra.mxu0 0.0
    %4485 = vmatprep.subr.mxu0 0.0
    %4486 = vmatpush1.msra.mxu0 0.0
    %4487 = vmatprep.mubr.f32.mxu0 0.0
    %4488 = vmatmul.mubr.f32.gmra.mrb[0].mxu0 %v4279
    %v4489 = vpop.f32.mrb[0].mxu0
    %v4490 = vadd.f32 %v4203, %v4489
    %v4491 = vpop.f32.mrb[0].mxu0
    %v4492 = vadd.f32 %v4205, %v4491
    %4493 = vdwg.mxu0
    %4494 = vmatprep.subr.mxu0 %v3949
    %4495 = vmatpush1.msra.mxu0 %v3948
    %4496 = vmatprep.subr.mxu0 0.0
    %4497 = vmatpush1.msra.mxu0 0.0
    %4498 = vmatprep.subr.mxu0 0.0
    %4499 = vmatpush1.msra.mxu0 0.0
    %4500 = vmatprep.subr.mxu0 0.0
    %4501 = vmatpush1.msra.mxu0 0.0
    %4502 = vmatprep.subr.mxu0 0.0
    %4503 = vmatpush1.msra.mxu0 0.0
    %4504 = vmatprep.subr.mxu0 0.0
    %4505 = vmatpush1.msra.mxu0 0.0
    %4506 = vmatprep.subr.mxu0 0.0
    %4507 = vmatpush1.msra.mxu0 0.0
    %4508 = vmatprep.subr.mxu0 0.0
    %4509 = vmatpush1.msra.mxu0 0.0
    %4510 = vmatprep.subr.mxu0 0.0
    %4511 = vmatpush1.msra.mxu0 0.0
    %4512 = vmatprep.subr.mxu0 0.0
    %4513 = vmatpush1.msra.mxu0 0.0
    %4514 = vmatprep.subr.mxu0 0.0
    %4515 = vmatpush1.msra.mxu0 0.0
    %4516 = vmatprep.subr.mxu0 0.0
    %4517 = vmatpush1.msra.mxu0 0.0
    %4518 = vmatprep.subr.mxu0 0.0
    %4519 = vmatpush1.msra.mxu0 0.0
    %4520 = vmatprep.subr.mxu0 0.0
    %4521 = vmatpush1.msra.mxu0 0.0
    %4522 = vmatprep.subr.mxu0 0.0
    %4523 = vmatpush1.msra.mxu0 0.0
    %4524 = vmatprep.subr.mxu0 0.0
    %4525 = vmatpush1.msra.mxu0 0.0
    %4526 = vmatprep.subr.mxu0 0.0
    %4527 = vmatpush1.msra.mxu0 0.0
    %4528 = vmatprep.subr.mxu0 0.0
    %4529 = vmatpush1.msra.mxu0 0.0
    %4530 = vmatprep.subr.mxu0 0.0
    %4531 = vmatpush1.msra.mxu0 0.0
    %4532 = vmatprep.subr.mxu0 0.0
    %4533 = vmatpush1.msra.mxu0 0.0
    %4534 = vmatprep.subr.mxu0 0.0
    %4535 = vmatpush1.msra.mxu0 0.0
    %4536 = vmatprep.subr.mxu0 0.0
    %4537 = vmatpush1.msra.mxu0 0.0
    %4538 = vmatprep.subr.mxu0 0.0
    %4539 = vmatpush1.msra.mxu0 0.0
    %4540 = vmatprep.subr.mxu0 0.0
    %4541 = vmatpush1.msra.mxu0 0.0
    %4542 = vmatprep.subr.mxu0 0.0
    %4543 = vmatpush1.msra.mxu0 0.0
    %4544 = vmatprep.subr.mxu0 0.0
    %4545 = vmatpush1.msra.mxu0 0.0
    %4546 = vmatprep.subr.mxu0 0.0
    %4547 = vmatpush1.msra.mxu0 0.0
    %4548 = vmatprep.subr.mxu0 0.0
    %4549 = vmatpush1.msra.mxu0 0.0
    %4550 = vmatprep.subr.mxu0 0.0
    %4551 = vmatpush1.msra.mxu0 0.0
    %4552 = vmatprep.subr.mxu0 0.0
    %4553 = vmatpush1.msra.mxu0 0.0
    %4554 = vmatprep.subr.mxu0 0.0
    %4555 = vmatpush1.msra.mxu0 0.0
    %4556 = vmatprep.subr.mxu0 0.0
    %4557 = vmatpush1.msra.mxu0 0.0
    %4558 = vmatprep.mubr.f32.mxu0 0.0
    %4559 = vmatmul.mubr.f32.gmra.mrb[0].mxu0 %v4279
    %v4560 = vpop.f32.mrb[0].mxu0
    %v4561 = vadd.f32 %v4274, %v4560
    %v4562 = vpop.f32.mrb[0].mxu0
    %v4563 = vadd.f32 %v4276, %v4562
    %4564 = vdwg.mxu0
    %s4565 = scalar_lea.vmem %s3, 16
    %v4566 = vld [vmem:[%s4565] sm:$0xff]
    %4567 = vrot.lane.b32.xlu0 %v3942, 126
    %v4568 = vpop.permute.xlu0 %4567
    %4569 = vrot.lane.b32.xlu0 %v3943, 126
    %v4570 = vpop.permute.xlu0 %4569
    %4571 = vrot.lane.b32.xlu0 %v3944, 126
    %v4572 = vpop.permute.xlu0 %4571
    %4573 = vrot.lane.b32.xlu0 %v3945, 126
    %v4574 = vpop.permute.xlu0 %4573
    %4575 = vrot.lane.b32.xlu0 %v3946, 126
    %v4576 = vpop.permute.xlu0 %4575
    %4577 = vrot.lane.b32.xlu0 %v3947, 126
    %v4578 = vpop.permute.xlu0 %4577
    %4579 = vrot.lane.b32.xlu0 %v3948, 126
    %v4580 = vpop.permute.xlu0 %4579
    %4581 = vrot.lane.b32.xlu0 %v3949, 126
    %v4582 = vpop.permute.xlu0 %4581
    %v4583 = vsel %vm1155, %v4568, %v4570
    %v4584 = vsel %vm1155, %v4570, %v4572
    %v4585 = vsel %vm1155, %v4572, %v4574
    %v4586 = vsel %vm1155, %v4574, %v4576
    %v4587 = vsel %vm1155, %v4576, %v4578
    %v4588 = vsel %vm1155, %v4578, %v4580
    %v4589 = vsel %vm1155, %v4580, %v4582
    %v4599 = vsel %vm562, %v4566, 0
    %4601 = vmatprep.subr.mxu0 %v4584
    %4602 = vmatpush1.msra.mxu0 %v4583
    %4603 = vmatprep.subr.mxu0 0.0
    %4604 = vmatpush1.msra.mxu0 0.0
    %4605 = vmatprep.subr.mxu0 0.0
    %4606 = vmatpush1.msra.mxu0 0.0
    %4607 = vmatprep.subr.mxu0 0.0
    %4608 = vmatpush1.msra.mxu0 0.0
    %4609 = vmatprep.subr.mxu0 0.0
    %4610 = vmatpush1.msra.mxu0 0.0
    %4611 = vmatprep.subr.mxu0 0.0
    %4612 = vmatpush1.msra.mxu0 0.0
    %4613 = vmatprep.subr.mxu0 0.0
    %4614 = vmatpush1.msra.mxu0 0.0
    %4615 = vmatprep.subr.mxu0 0.0
    %4616 = vmatpush1.msra.mxu0 0.0
    %4617 = vmatprep.subr.mxu0 0.0
    %4618 = vmatpush1.msra.mxu0 0.0
    %4619 = vmatprep.subr.mxu0 0.0
    %4620 = vmatpush1.msra.mxu0 0.0
    %4621 = vmatprep.subr.mxu0 0.0
    %4622 = vmatpush1.msra.mxu0 0.0
    %4623 = vmatprep.subr.mxu0 0.0
    %4624 = vmatpush1.msra.mxu0 0.0
    %4625 = vmatprep.subr.mxu0 0.0
    %4626 = vmatpush1.msra.mxu0 0.0
    %4627 = vmatprep.subr.mxu0 0.0
    %4628 = vmatpush1.msra.mxu0 0.0
    %4629 = vmatprep.subr.mxu0 0.0
    %4630 = vmatpush1.msra.mxu0 0.0
    %4631 = vmatprep.subr.mxu0 0.0
    %4632 = vmatpush1.msra.mxu0 0.0
    %4633 = vmatprep.subr.mxu0 0.0
    %4634 = vmatpush1.msra.mxu0 0.0
    %4635 = vmatprep.subr.mxu0 0.0
    %4636 = vmatpush1.msra.mxu0 0.0
    %4637 = vmatprep.subr.mxu0 0.0
    %4638 = vmatpush1.msra.mxu0 0.0
    %4639 = vmatprep.subr.mxu0 0.0
    %4640 = vmatpush1.msra.mxu0 0.0
    %4641 = vmatprep.subr.mxu0 0.0
    %4642 = vmatpush1.msra.mxu0 0.0
    %4643 = vmatprep.subr.mxu0 0.0
    %4644 = vmatpush1.msra.mxu0 0.0
    %4645 = vmatprep.subr.mxu0 0.0
    %4646 = vmatpush1.msra.mxu0 0.0
    %4647 = vmatprep.subr.mxu0 0.0
    %4648 = vmatpush1.msra.mxu0 0.0
    %4649 = vmatprep.subr.mxu0 0.0
    %4650 = vmatpush1.msra.mxu0 0.0
    %4651 = vmatprep.subr.mxu0 0.0
    %4652 = vmatpush1.msra.mxu0 0.0
    %4653 = vmatprep.subr.mxu0 0.0
    %4654 = vmatpush1.msra.mxu0 0.0
    %4655 = vmatprep.subr.mxu0 0.0
    %4656 = vmatpush1.msra.mxu0 0.0
    %4657 = vmatprep.subr.mxu0 0.0
    %4658 = vmatpush1.msra.mxu0 0.0
    %4659 = vmatprep.subr.mxu0 0.0
    %4660 = vmatpush1.msra.mxu0 0.0
    %4661 = vmatprep.subr.mxu0 0.0
    %4662 = vmatpush1.msra.mxu0 0.0
    %4663 = vmatprep.subr.mxu0 0.0
    %4664 = vmatpush1.msra.mxu0 0.0
    %4665 = vmatprep.mubr.f32.mxu0 0.0
    %4666 = vmatmul.mubr.f32.gmra.mrb[0].mxu0 %v4599
    %v4667 = vpop.f32.mrb[0].mxu0
    %v4668 = vadd.f32 0.0, %v4667
    %v4669 = vpop.f32.mrb[0].mxu0
    %v4670 = vadd.f32 0.0, %v4669
    %4671 = vdwg.mxu0
    %4672 = vmatprep.subr.mxu0 %v4586
    %4673 = vmatpush1.msra.mxu0 %v4585
    %4674 = vmatprep.subr.mxu0 0.0
    %4675 = vmatpush1.msra.mxu0 0.0
    %4676 = vmatprep.subr.mxu0 0.0
    %4677 = vmatpush1.msra.mxu0 0.0
    %4678 = vmatprep.subr.mxu0 0.0
    %4679 = vmatpush1.msra.mxu0 0.0
    %4680 = vmatprep.subr.mxu0 0.0
    %4681 = vmatpush1.msra.mxu0 0.0
    %4682 = vmatprep.subr.mxu0 0.0
    %4683 = vmatpush1.msra.mxu0 0.0
    %4684 = vmatprep.subr.mxu0 0.0
    %4685 = vmatpush1.msra.mxu0 0.0
    %4686 = vmatprep.subr.mxu0 0.0
    %4687 = vmatpush1.msra.mxu0 0.0
    %4688 = vmatprep.subr.mxu0 0.0
    %4689 = vmatpush1.msra.mxu0 0.0
    %4690 = vmatprep.subr.mxu0 0.0
    %4691 = vmatpush1.msra.mxu0 0.0
    %4692 = vmatprep.subr.mxu0 0.0
    %4693 = vmatpush1.msra.mxu0 0.0
    %4694 = vmatprep.subr.mxu0 0.0
    %4695 = vmatpush1.msra.mxu0 0.0
    %4696 = vmatprep.subr.mxu0 0.0
    %4697 = vmatpush1.msra.mxu0 0.0
    %4698 = vmatprep.subr.mxu0 0.0
    %4699 = vmatpush1.msra.mxu0 0.0
    %4700 = vmatprep.subr.mxu0 0.0
    %4701 = vmatpush1.msra.mxu0 0.0
    %4702 = vmatprep.subr.mxu0 0.0
    %4703 = vmatpush1.msra.mxu0 0.0
    %4704 = vmatprep.subr.mxu0 0.0
    %4705 = vmatpush1.msra.mxu0 0.0
    %4706 = vmatprep.subr.mxu0 0.0
    %4707 = vmatpush1.msra.mxu0 0.0
    %4708 = vmatprep.subr.mxu0 0.0
    %4709 = vmatpush1.msra.mxu0 0.0
    %4710 = vmatprep.subr.mxu0 0.0
    %4711 = vmatpush1.msra.mxu0 0.0
    %4712 = vmatprep.subr.mxu0 0.0
    %4713 = vmatpush1.msra.mxu0 0.0
    %4714 = vmatprep.subr.mxu0 0.0
    %4715 = vmatpush1.msra.mxu0 0.0
    %4716 = vmatprep.subr.mxu0 0.0
    %4717 = vmatpush1.msra.mxu0 0.0
    %4718 = vmatprep.subr.mxu0 0.0
    %4719 = vmatpush1.msra.mxu0 0.0
    %4720 = vmatprep.subr.mxu0 0.0
    %4721 = vmatpush1.msra.mxu0 0.0
    %4722 = vmatprep.subr.mxu0 0.0
    %4723 = vmatpush1.msra.mxu0 0.0
    %4724 = vmatprep.subr.mxu0 0.0
    %4725 = vmatpush1.msra.mxu0 0.0
    %4726 = vmatprep.subr.mxu0 0.0
    %4727 = vmatpush1.msra.mxu0 0.0
    %4728 = vmatprep.subr.mxu0 0.0
    %4729 = vmatpush1.msra.mxu0 0.0
    %4730 = vmatprep.subr.mxu0 0.0
    %4731 = vmatpush1.msra.mxu0 0.0
    %4732 = vmatprep.subr.mxu0 0.0
    %4733 = vmatpush1.msra.mxu0 0.0
    %4734 = vmatprep.subr.mxu0 0.0
    %4735 = vmatpush1.msra.mxu0 0.0
    %4736 = vmatprep.mubr.f32.mxu0 0.0
    %4737 = vmatmul.mubr.f32.gmra.mrb[0].mxu0 %v4599
    %v4738 = vpop.f32.mrb[0].mxu0
    %v4739 = vadd.f32 0.0, %v4738
    %v4740 = vpop.f32.mrb[0].mxu0
    %v4741 = vadd.f32 0.0, %v4740
    %4742 = vdwg.mxu0
    %4743 = vmatprep.subr.mxu0 %v4588
    %4744 = vmatpush1.msra.mxu0 %v4587
    %4745 = vmatprep.subr.mxu0 0.0
    %4746 = vmatpush1.msra.mxu0 0.0
    %4747 = vmatprep.subr.mxu0 0.0
    %4748 = vmatpush1.msra.mxu0 0.0
    %4749 = vmatprep.subr.mxu0 0.0
    %4750 = vmatpush1.msra.mxu0 0.0
    %4751 = vmatprep.subr.mxu0 0.0
    %4752 = vmatpush1.msra.mxu0 0.0
    %4753 = vmatprep.subr.mxu0 0.0
    %4754 = vmatpush1.msra.mxu0 0.0
    %4755 = vmatprep.subr.mxu0 0.0
    %4756 = vmatpush1.msra.mxu0 0.0
    %4757 = vmatprep.subr.mxu0 0.0
    %4758 = vmatpush1.msra.mxu0 0.0
    %4759 = vmatprep.subr.mxu0 0.0
    %4760 = vmatpush1.msra.mxu0 0.0
    %4761 = vmatprep.subr.mxu0 0.0
    %4762 = vmatpush1.msra.mxu0 0.0
    %4763 = vmatprep.subr.mxu0 0.0
    %4764 = vmatpush1.msra.mxu0 0.0
    %4765 = vmatprep.subr.mxu0 0.0
    %4766 = vmatpush1.msra.mxu0 0.0
    %4767 = vmatprep.subr.mxu0 0.0
    %4768 = vmatpush1.msra.mxu0 0.0
    %4769 = vmatprep.subr.mxu0 0.0
    %4770 = vmatpush1.msra.mxu0 0.0
    %4771 = vmatprep.subr.mxu0 0.0
    %4772 = vmatpush1.msra.mxu0 0.0
    %4773 = vmatprep.subr.mxu0 0.0
    %4774 = vmatpush1.msra.mxu0 0.0
    %4775 = vmatprep.subr.mxu0 0.0
    %4776 = vmatpush1.msra.mxu0 0.0
    %4777 = vmatprep.subr.mxu0 0.0
    %4778 = vmatpush1.msra.mxu0 0.0
    %4779 = vmatprep.subr.mxu0 0.0
    %4780 = vmatpush1.msra.mxu0 0.0
    %4781 = vmatprep.subr.mxu0 0.0
    %4782 = vmatpush1.msra.mxu0 0.0
    %4783 = vmatprep.subr.mxu0 0.0
    %4784 = vmatpush1.msra.mxu0 0.0
    %4785 = vmatprep.subr.mxu0 0.0
    %4786 = vmatpush1.msra.mxu0 0.0
    %4787 = vmatprep.subr.mxu0 0.0
    %4788 = vmatpush1.msra.mxu0 0.0
    %4789 = vmatprep.subr.mxu0 0.0
    %4790 = vmatpush1.msra.mxu0 0.0
    %4791 = vmatprep.subr.mxu0 0.0
    %4792 = vmatpush1.msra.mxu0 0.0
    %4793 = vmatprep.subr.mxu0 0.0
    %4794 = vmatpush1.msra.mxu0 0.0
    %4795 = vmatprep.subr.mxu0 0.0
    %4796 = vmatpush1.msra.mxu0 0.0
    %4797 = vmatprep.subr.mxu0 0.0
    %4798 = vmatpush1.msra.mxu0 0.0
    %4799 = vmatprep.subr.mxu0 0.0
    %4800 = vmatpush1.msra.mxu0 0.0
    %4801 = vmatprep.subr.mxu0 0.0
    %4802 = vmatpush1.msra.mxu0 0.0
    %4803 = vmatprep.subr.mxu0 0.0
    %4804 = vmatpush1.msra.mxu0 0.0
    %4805 = vmatprep.subr.mxu0 0.0
    %4806 = vmatpush1.msra.mxu0 0.0
    %4807 = vmatprep.mubr.f32.mxu0 0.0
    %4808 = vmatmul.mubr.f32.gmra.mrb[0].mxu0 %v4599
    %v4809 = vpop.f32.mrb[0].mxu0
    %v4810 = vadd.f32 0.0, %v4809
    %v4811 = vpop.f32.mrb[0].mxu0
    %v4812 = vadd.f32 0.0, %v4811
    %4813 = vdwg.mxu0
    %4814 = vmatprep.subr.mxu0 %v4582
    %4815 = vmatpush1.msra.mxu0 %v4589
    %4816 = vmatprep.subr.mxu0 0.0
    %4817 = vmatpush1.msra.mxu0 0.0
    %4818 = vmatprep.subr.mxu0 0.0
    %4819 = vmatpush1.msra.mxu0 0.0
    %4820 = vmatprep.subr.mxu0 0.0
    %4821 = vmatpush1.msra.mxu0 0.0
    %4822 = vmatprep.subr.mxu0 0.0
    %4823 = vmatpush1.msra.mxu0 0.0
    %4824 = vmatprep.subr.mxu0 0.0
    %4825 = vmatpush1.msra.mxu0 0.0
    %4826 = vmatprep.subr.mxu0 0.0
    %4827 = vmatpush1.msra.mxu0 0.0
    %4828 = vmatprep.subr.mxu0 0.0
    %4829 = vmatpush1.msra.mxu0 0.0
    %4830 = vmatprep.subr.mxu0 0.0
    %4831 = vmatpush1.msra.mxu0 0.0
    %4832 = vmatprep.subr.mxu0 0.0
    %4833 = vmatpush1.msra.mxu0 0.0
    %4834 = vmatprep.subr.mxu0 0.0
    %4835 = vmatpush1.msra.mxu0 0.0
    %4836 = vmatprep.subr.mxu0 0.0
    %4837 = vmatpush1.msra.mxu0 0.0
    %4838 = vmatprep.subr.mxu0 0.0
    %4839 = vmatpush1.msra.mxu0 0.0
    %4840 = vmatprep.subr.mxu0 0.0
    %4841 = vmatpush1.msra.mxu0 0.0
    %4842 = vmatprep.subr.mxu0 0.0
    %4843 = vmatpush1.msra.mxu0 0.0
    %4844 = vmatprep.subr.mxu0 0.0
    %4845 = vmatpush1.msra.mxu0 0.0
    %4846 = vmatprep.subr.mxu0 0.0
    %4847 = vmatpush1.msra.mxu0 0.0
    %4848 = vmatprep.subr.mxu0 0.0
    %4849 = vmatpush1.msra.mxu0 0.0
    %4850 = vmatprep.subr.mxu0 0.0
    %4851 = vmatpush1.msra.mxu0 0.0
    %4852 = vmatprep.subr.mxu0 0.0
    %4853 = vmatpush1.msra.mxu0 0.0
    %4854 = vmatprep.subr.mxu0 0.0
    %4855 = vmatpush1.msra.mxu0 0.0
    %4856 = vmatprep.subr.mxu0 0.0
    %4857 = vmatpush1.msra.mxu0 0.0
    %4858 = vmatprep.subr.mxu0 0.0
    %4859 = vmatpush1.msra.mxu0 0.0
    %4860 = vmatprep.subr.mxu0 0.0
    %4861 = vmatpush1.msra.mxu0 0.0
    %4862 = vmatprep.subr.mxu0 0.0
    %4863 = vmatpush1.msra.mxu0 0.0
    %4864 = vmatprep.subr.mxu0 0.0
    %4865 = vmatpush1.msra.mxu0 0.0
    %4866 = vmatprep.subr.mxu0 0.0
    %4867 = vmatpush1.msra.mxu0 0.0
    %4868 = vmatprep.subr.mxu0 0.0
    %4869 = vmatpush1.msra.mxu0 0.0
    %4870 = vmatprep.subr.mxu0 0.0
    %4871 = vmatpush1.msra.mxu0 0.0
    %4872 = vmatprep.subr.mxu0 0.0
    %4873 = vmatpush1.msra.mxu0 0.0
    %4874 = vmatprep.subr.mxu0 0.0
    %4875 = vmatpush1.msra.mxu0 0.0
    %4876 = vmatprep.subr.mxu0 0.0
    %4877 = vmatpush1.msra.mxu0 0.0
    %4878 = vmatprep.mubr.f32.mxu0 0.0
    %4879 = vmatmul.mubr.f32.gmra.mrb[0].mxu0 %v4599
    %v4880 = vpop.f32.mrb[0].mxu0
    %v4881 = vadd.f32 0.0, %v4880
    %v4882 = vpop.f32.mrb[0].mxu0
    %v4883 = vadd.f32 0.0, %v4882
    %4884 = vdwg.mxu0
    %v4885 = vadd.f32 %v4348, %v4668
    %v4886 = vadd.f32 %v4350, %v4670
    %v4887 = vadd.f32 %v4419, %v4739
    %v4888 = vadd.f32 %v4421, %v4741
    %v4889 = vadd.f32 %v4490, %v4810
    %v4890 = vadd.f32 %v4492, %v4812
    %v4891 = vadd.f32 %v4561, %v4881
    %v4892 = vadd.f32 %v4563, %v4883
    %s4893 = scalar_lea.vmem %s3, 24
    %v4894 = vld [vmem:[%s4893] sm:$0xff]
    %v4895 = vld [vmem:[#allocation2] sm:$0xff]
    %v4896 = vld [vmem:[#allocation2 + $0x8] sm:$0xff]
    %v4897 = vld [vmem:[#allocation2 + $0x10] sm:$0xff]
    %v4898 = vld [vmem:[#allocation2 + $0x18] sm:$0xff]
    %v4899 = vld [vmem:[#allocation2 + $0x20] sm:$0xff]
    %v4900 = vld [vmem:[#allocation2 + $0x28] sm:$0xff]
    %v4901 = vld [vmem:[#allocation2 + $0x30] sm:$0xff]
    %v4902 = vld [vmem:[#allocation2 + $0x38] sm:$0xff]
    %v4903 = vld [vmem:[#allocation2 + $0x40] sm:$0xff]
    %4913 = vrot.lane.b32.xlu0 %v4895, 104
    %v4914 = vpop.permute.xlu0 %4913
    %4915 = vrot.lane.b32.xlu0 %v4896, 104
    %v4916 = vpop.permute.xlu0 %4915
    %4917 = vrot.lane.b32.xlu0 %v4897, 104
    %v4918 = vpop.permute.xlu0 %4917
    %4919 = vrot.lane.b32.xlu0 %v4898, 104
    %v4920 = vpop.permute.xlu0 %4919
    %4921 = vrot.lane.b32.xlu0 %v4899, 104
    %v4922 = vpop.permute.xlu0 %4921
    %4923 = vrot.lane.b32.xlu0 %v4900, 104
    %v4924 = vpop.permute.xlu0 %4923
    %4925 = vrot.lane.b32.xlu0 %v4901, 104
    %v4926 = vpop.permute.xlu0 %4925
    %4927 = vrot.lane.b32.xlu0 %v4902, 104
    %v4928 = vpop.permute.xlu0 %4927
    %4929 = vrot.lane.b32.xlu0 %v4903, 104
    %v4930 = vpop.permute.xlu0 %4929
    %v4931 = vsel %vm1504, %v4914, %v4916
    %v4932 = vsel %vm1504, %v4916, %v4918
    %v4933 = vsel %vm1504, %v4918, %v4920
    %v4934 = vsel %vm1504, %v4920, %v4922
    %v4935 = vsel %vm1504, %v4922, %v4924
    %v4936 = vsel %vm1504, %v4924, %v4926
    %v4937 = vsel %vm1504, %v4926, %v4928
    %v4938 = vsel %vm1504, %v4928, %v4930
    %v4948 = vsel %vm562, %v4894, 0
    %4950 = vmatprep.subr.mxu0 %v4932
    %4951 = vmatpush1.msra.mxu0 %v4931
    %4952 = vmatprep.subr.mxu0 0.0
    %4953 = vmatpush1.msra.mxu0 0.0
    %4954 = vmatprep.subr.mxu0 0.0
    %4955 = vmatpush1.msra.mxu0 0.0
    %4956 = vmatprep.subr.mxu0 0.0
    %4957 = vmatpush1.msra.mxu0 0.0
    %4958 = vmatprep.subr.mxu0 0.0
    %4959 = vmatpush1.msra.mxu0 0.0
    %4960 = vmatprep.subr.mxu0 0.0
    %4961 = vmatpush1.msra.mxu0 0.0
    %4962 = vmatprep.subr.mxu0 0.0
    %4963 = vmatpush1.msra.mxu0 0.0
    %4964 = vmatprep.subr.mxu0 0.0
    %4965 = vmatpush1.msra.mxu0 0.0
    %4966 = vmatprep.subr.mxu0 0.0
    %4967 = vmatpush1.msra.mxu0 0.0
    %4968 = vmatprep.subr.mxu0 0.0
    %4969 = vmatpush1.msra.mxu0 0.0
    %4970 = vmatprep.subr.mxu0 0.0
    %4971 = vmatpush1.msra.mxu0 0.0
    %4972 = vmatprep.subr.mxu0 0.0
    %4973 = vmatpush1.msra.mxu0 0.0
    %4974 = vmatprep.subr.mxu0 0.0
    %4975 = vmatpush1.msra.mxu0 0.0
    %4976 = vmatprep.subr.mxu0 0.0
    %4977 = vmatpush1.msra.mxu0 0.0
    %4978 = vmatprep.subr.mxu0 0.0
    %4979 = vmatpush1.msra.mxu0 0.0
    %4980 = vmatprep.subr.mxu0 0.0
    %4981 = vmatpush1.msra.mxu0 0.0
    %4982 = vmatprep.subr.mxu0 0.0
    %4983 = vmatpush1.msra.mxu0 0.0
    %4984 = vmatprep.subr.mxu0 0.0
    %4985 = vmatpush1.msra.mxu0 0.0
    %4986 = vmatprep.subr.mxu0 0.0
    %4987 = vmatpush1.msra.mxu0 0.0
    %4988 = vmatprep.subr.mxu0 0.0
    %4989 = vmatpush1.msra.mxu0 0.0
    %4990 = vmatprep.subr.mxu0 0.0
    %4991 = vmatpush1.msra.mxu0 0.0
    %4992 = vmatprep.subr.mxu0 0.0
    %4993 = vmatpush1.msra.mxu0 0.0
    %4994 = vmatprep.subr.mxu0 0.0
    %4995 = vmatpush1.msra.mxu0 0.0
    %4996 = vmatprep.subr.mxu0 0.0
    %4997 = vmatpush1.msra.mxu0 0.0
    %4998 = vmatprep.subr.mxu0 0.0
    %4999 = vmatpush1.msra.mxu0 0.0
    %5000 = vmatprep.subr.mxu0 0.0
    %5001 = vmatpush1.msra.mxu0 0.0
    %5002 = vmatprep.subr.mxu0 0.0
    %5003 = vmatpush1.msra.mxu0 0.0
    %5004 = vmatprep.subr.mxu0 0.0
    %5005 = vmatpush1.msra.mxu0 0.0
    %5006 = vmatprep.subr.mxu0 0.0
    %5007 = vmatpush1.msra.mxu0 0.0
    %5008 = vmatprep.subr.mxu0 0.0
    %5009 = vmatpush1.msra.mxu0 0.0
    %5010 = vmatprep.subr.mxu0 0.0
    %5011 = vmatpush1.msra.mxu0 0.0
    %5012 = vmatprep.subr.mxu0 0.0
    %5013 = vmatpush1.msra.mxu0 0.0
    %5014 = vmatprep.mubr.f32.mxu0 0.0
    %5015 = vmatmul.mubr.f32.gmra.mrb[0].mxu0 %v4948
    %v5016 = vpop.f32.mrb[0].mxu0
    %v5017 = vadd.f32 0.0, %v5016
    %v5018 = vpop.f32.mrb[0].mxu0
    %v5019 = vadd.f32 0.0, %v5018
    %5020 = vdwg.mxu0
    %5021 = vmatprep.subr.mxu0 %v4934
    %5022 = vmatpush1.msra.mxu0 %v4933
    %5023 = vmatprep.subr.mxu0 0.0
    %5024 = vmatpush1.msra.mxu0 0.0
    %5025 = vmatprep.subr.mxu0 0.0
    %5026 = vmatpush1.msra.mxu0 0.0
    %5027 = vmatprep.subr.mxu0 0.0
    %5028 = vmatpush1.msra.mxu0 0.0
    %5029 = vmatprep.subr.mxu0 0.0
    %5030 = vmatpush1.msra.mxu0 0.0
    %5031 = vmatprep.subr.mxu0 0.0
    %5032 = vmatpush1.msra.mxu0 0.0
    %5033 = vmatprep.subr.mxu0 0.0
    %5034 = vmatpush1.msra.mxu0 0.0
    %5035 = vmatprep.subr.mxu0 0.0
    %5036 = vmatpush1.msra.mxu0 0.0
    %5037 = vmatprep.subr.mxu0 0.0
    %5038 = vmatpush1.msra.mxu0 0.0
    %5039 = vmatprep.subr.mxu0 0.0
    %5040 = vmatpush1.msra.mxu0 0.0
    %5041 = vmatprep.subr.mxu0 0.0
    %5042 = vmatpush1.msra.mxu0 0.0
    %5043 = vmatprep.subr.mxu0 0.0
    %5044 = vmatpush1.msra.mxu0 0.0
    %5045 = vmatprep.subr.mxu0 0.0
    %5046 = vmatpush1.msra.mxu0 0.0
    %5047 = vmatprep.subr.mxu0 0.0
    %5048 = vmatpush1.msra.mxu0 0.0
    %5049 = vmatprep.subr.mxu0 0.0
    %5050 = vmatpush1.msra.mxu0 0.0
    %5051 = vmatprep.subr.mxu0 0.0
    %5052 = vmatpush1.msra.mxu0 0.0
    %5053 = vmatprep.subr.mxu0 0.0
    %5054 = vmatpush1.msra.mxu0 0.0
    %5055 = vmatprep.subr.mxu0 0.0
    %5056 = vmatpush1.msra.mxu0 0.0
    %5057 = vmatprep.subr.mxu0 0.0
    %5058 = vmatpush1.msra.mxu0 0.0
    %5059 = vmatprep.subr.mxu0 0.0
    %5060 = vmatpush1.msra.mxu0 0.0
    %5061 = vmatprep.subr.mxu0 0.0
    %5062 = vmatpush1.msra.mxu0 0.0
    %5063 = vmatprep.subr.mxu0 0.0
    %5064 = vmatpush1.msra.mxu0 0.0
    %5065 = vmatprep.subr.mxu0 0.0
    %5066 = vmatpush1.msra.mxu0 0.0
    %5067 = vmatprep.subr.mxu0 0.0
    %5068 = vmatpush1.msra.mxu0 0.0
    %5069 = vmatprep.subr.mxu0 0.0
    %5070 = vmatpush1.msra.mxu0 0.0
    %5071 = vmatprep.subr.mxu0 0.0
    %5072 = vmatpush1.msra.mxu0 0.0
    %5073 = vmatprep.subr.mxu0 0.0
    %5074 = vmatpush1.msra.mxu0 0.0
    %5075 = vmatprep.subr.mxu0 0.0
    %5076 = vmatpush1.msra.mxu0 0.0
    %5077 = vmatprep.subr.mxu0 0.0
    %5078 = vmatpush1.msra.mxu0 0.0
    %5079 = vmatprep.subr.mxu0 0.0
    %5080 = vmatpush1.msra.mxu0 0.0
    %5081 = vmatprep.subr.mxu0 0.0
    %5082 = vmatpush1.msra.mxu0 0.0
    %5083 = vmatprep.subr.mxu0 0.0
    %5084 = vmatpush1.msra.mxu0 0.0
    %5085 = vmatprep.mubr.f32.mxu0 0.0
    %5086 = vmatmul.mubr.f32.gmra.mrb[0].mxu0 %v4948
    %v5087 = vpop.f32.mrb[0].mxu0
    %v5088 = vadd.f32 0.0, %v5087
    %v5089 = vpop.f32.mrb[0].mxu0
    %v5090 = vadd.f32 0.0, %v5089
    %5091 = vdwg.mxu0
    %5092 = vmatprep.subr.mxu0 %v4936
    %5093 = vmatpush1.msra.mxu0 %v4935
    %5094 = vmatprep.subr.mxu0 0.0
    %5095 = vmatpush1.msra.mxu0 0.0
    %5096 = vmatprep.subr.mxu0 0.0
    %5097 = vmatpush1.msra.mxu0 0.0
    %5098 = vmatprep.subr.mxu0 0.0
    %5099 = vmatpush1.msra.mxu0 0.0
    %5100 = vmatprep.subr.mxu0 0.0
    %5101 = vmatpush1.msra.mxu0 0.0
    %5102 = vmatprep.subr.mxu0 0.0
    %5103 = vmatpush1.msra.mxu0 0.0
    %5104 = vmatprep.subr.mxu0 0.0
    %5105 = vmatpush1.msra.mxu0 0.0
    %5106 = vmatprep.subr.mxu0 0.0
    %5107 = vmatpush1.msra.mxu0 0.0
    %5108 = vmatprep.subr.mxu0 0.0
    %5109 = vmatpush1.msra.mxu0 0.0
    %5110 = vmatprep.subr.mxu0 0.0
    %5111 = vmatpush1.msra.mxu0 0.0
    %5112 = vmatprep.subr.mxu0 0.0
    %5113 = vmatpush1.msra.mxu0 0.0
    %5114 = vmatprep.subr.mxu0 0.0
    %5115 = vmatpush1.msra.mxu0 0.0
    %5116 = vmatprep.subr.mxu0 0.0
    %5117 = vmatpush1.msra.mxu0 0.0
    %5118 = vmatprep.subr.mxu0 0.0
    %5119 = vmatpush1.msra.mxu0 0.0
    %5120 = vmatprep.subr.mxu0 0.0
    %5121 = vmatpush1.msra.mxu0 0.0
    %5122 = vmatprep.subr.mxu0 0.0
    %5123 = vmatpush1.msra.mxu0 0.0
    %5124 = vmatprep.subr.mxu0 0.0
    %5125 = vmatpush1.msra.mxu0 0.0
    %5126 = vmatprep.subr.mxu0 0.0
    %5127 = vmatpush1.msra.mxu0 0.0
    %5128 = vmatprep.subr.mxu0 0.0
    %5129 = vmatpush1.msra.mxu0 0.0
    %5130 = vmatprep.subr.mxu0 0.0
    %5131 = vmatpush1.msra.mxu0 0.0
    %5132 = vmatprep.subr.mxu0 0.0
    %5133 = vmatpush1.msra.mxu0 0.0
    %5134 = vmatprep.subr.mxu0 0.0
    %5135 = vmatpush1.msra.mxu0 0.0
    %5136 = vmatprep.subr.mxu0 0.0
    %5137 = vmatpush1.msra.mxu0 0.0
    %5138 = vmatprep.subr.mxu0 0.0
    %5139 = vmatpush1.msra.mxu0 0.0
    %5140 = vmatprep.subr.mxu0 0.0
    %5141 = vmatpush1.msra.mxu0 0.0
    %5142 = vmatprep.subr.mxu0 0.0
    %5143 = vmatpush1.msra.mxu0 0.0
    %5144 = vmatprep.subr.mxu0 0.0
    %5145 = vmatpush1.msra.mxu0 0.0
    %5146 = vmatprep.subr.mxu0 0.0
    %5147 = vmatpush1.msra.mxu0 0.0
    %5148 = vmatprep.subr.mxu0 0.0
    %5149 = vmatpush1.msra.mxu0 0.0
    %5150 = vmatprep.subr.mxu0 0.0
    %5151 = vmatpush1.msra.mxu0 0.0
    %5152 = vmatprep.subr.mxu0 0.0
    %5153 = vmatpush1.msra.mxu0 0.0
    %5154 = vmatprep.subr.mxu0 0.0
    %5155 = vmatpush1.msra.mxu0 0.0
    %5156 = vmatprep.mubr.f32.mxu0 0.0
    %5157 = vmatmul.mubr.f32.gmra.mrb[0].mxu0 %v4948
    %v5158 = vpop.f32.mrb[0].mxu0
    %v5159 = vadd.f32 0.0, %v5158
    %v5160 = vpop.f32.mrb[0].mxu0
    %v5161 = vadd.f32 0.0, %v5160
    %5162 = vdwg.mxu0
    %5163 = vmatprep.subr.mxu0 %v4938
    %5164 = vmatpush1.msra.mxu0 %v4937
    %5165 = vmatprep.subr.mxu0 0.0
    %5166 = vmatpush1.msra.mxu0 0.0
    %5167 = vmatprep.subr.mxu0 0.0
    %5168 = vmatpush1.msra.mxu0 0.0
    %5169 = vmatprep.subr.mxu0 0.0
    %5170 = vmatpush1.msra.mxu0 0.0
    %5171 = vmatprep.subr.mxu0 0.0
    %5172 = vmatpush1.msra.mxu0 0.0
    %5173 = vmatprep.subr.mxu0 0.0
    %5174 = vmatpush1.msra.mxu0 0.0
    %5175 = vmatprep.subr.mxu0 0.0
    %5176 = vmatpush1.msra.mxu0 0.0
    %5177 = vmatprep.subr.mxu0 0.0
    %5178 = vmatpush1.msra.mxu0 0.0
    %5179 = vmatprep.subr.mxu0 0.0
    %5180 = vmatpush1.msra.mxu0 0.0
    %5181 = vmatprep.subr.mxu0 0.0
    %5182 = vmatpush1.msra.mxu0 0.0
    %5183 = vmatprep.subr.mxu0 0.0
    %5184 = vmatpush1.msra.mxu0 0.0
    %5185 = vmatprep.subr.mxu0 0.0
    %5186 = vmatpush1.msra.mxu0 0.0
    %5187 = vmatprep.subr.mxu0 0.0
    %5188 = vmatpush1.msra.mxu0 0.0
    %5189 = vmatprep.subr.mxu0 0.0
    %5190 = vmatpush1.msra.mxu0 0.0
    %5191 = vmatprep.subr.mxu0 0.0
    %5192 = vmatpush1.msra.mxu0 0.0
    %5193 = vmatprep.subr.mxu0 0.0
    %5194 = vmatpush1.msra.mxu0 0.0
    %5195 = vmatprep.subr.mxu0 0.0
    %5196 = vmatpush1.msra.mxu0 0.0
    %5197 = vmatprep.subr.mxu0 0.0
    %5198 = vmatpush1.msra.mxu0 0.0
    %5199 = vmatprep.subr.mxu0 0.0
    %5200 = vmatpush1.msra.mxu0 0.0
    %5201 = vmatprep.subr.mxu0 0.0
    %5202 = vmatpush1.msra.mxu0 0.0
    %5203 = vmatprep.subr.mxu0 0.0
    %5204 = vmatpush1.msra.mxu0 0.0
    %5205 = vmatprep.subr.mxu0 0.0
    %5206 = vmatpush1.msra.mxu0 0.0
    %5207 = vmatprep.subr.mxu0 0.0
    %5208 = vmatpush1.msra.mxu0 0.0
    %5209 = vmatprep.subr.mxu0 0.0
    %5210 = vmatpush1.msra.mxu0 0.0
    %5211 = vmatprep.subr.mxu0 0.0
    %5212 = vmatpush1.msra.mxu0 0.0
    %5213 = vmatprep.subr.mxu0 0.0
    %5214 = vmatpush1.msra.mxu0 0.0
    %5215 = vmatprep.subr.mxu0 0.0
    %5216 = vmatpush1.msra.mxu0 0.0
    %5217 = vmatprep.subr.mxu0 0.0
    %5218 = vmatpush1.msra.mxu0 0.0
    %5219 = vmatprep.subr.mxu0 0.0
    %5220 = vmatpush1.msra.mxu0 0.0
    %5221 = vmatprep.subr.mxu0 0.0
    %5222 = vmatpush1.msra.mxu0 0.0
    %5223 = vmatprep.subr.mxu0 0.0
    %5224 = vmatpush1.msra.mxu0 0.0
    %5225 = vmatprep.subr.mxu0 0.0
    %5226 = vmatpush1.msra.mxu0 0.0
    %5227 = vmatprep.mubr.f32.mxu0 0.0
    %5228 = vmatmul.mubr.f32.gmra.mrb[0].mxu0 %v4948
    %v5229 = vpop.f32.mrb[0].mxu0
    %v5230 = vadd.f32 0.0, %v5229
    %v5231 = vpop.f32.mrb[0].mxu0
    %v5232 = vadd.f32 0.0, %v5231
    %5233 = vdwg.mxu0
    %v5234 = vadd.f32 %v4885, %v5017
    %v5235 = vadd.f32 %v4886, %v5019
    %v5236 = vadd.f32 %v4887, %v5088
    %v5237 = vadd.f32 %v4888, %v5090
    %v5238 = vadd.f32 %v4889, %v5159
    %v5239 = vadd.f32 %v4890, %v5161
    %v5240 = vadd.f32 %v4891, %v5230
    %v5241 = vadd.f32 %v4892, %v5232
    %s5242 = scalar_lea.vmem %s3, 32
    %v5243 = vld [vmem:[%s5242] sm:$0xff]
    %5244 = vrot.lane.b32.xlu0 %v4895, 103
    %v5245 = vpop.permute.xlu0 %5244
    %5246 = vrot.lane.b32.xlu0 %v4896, 103
    %v5247 = vpop.permute.xlu0 %5246
    %5248 = vrot.lane.b32.xlu0 %v4897, 103
    %v5249 = vpop.permute.xlu0 %5248
    %5250 = vrot.lane.b32.xlu0 %v4898, 103
    %v5251 = vpop.permute.xlu0 %5250
    %5252 = vrot.lane.b32.xlu0 %v4899, 103
    %v5253 = vpop.permute.xlu0 %5252
    %5254 = vrot.lane.b32.xlu0 %v4900, 103
    %v5255 = vpop.permute.xlu0 %5254
    %5256 = vrot.lane.b32.xlu0 %v4901, 103
    %v5257 = vpop.permute.xlu0 %5256
    %5258 = vrot.lane.b32.xlu0 %v4902, 103
    %v5259 = vpop.permute.xlu0 %5258
    %5260 = vrot.lane.b32.xlu0 %v4903, 103
    %v5261 = vpop.permute.xlu0 %5260
    %v5262 = vsel %vm1836, %v5245, %v5247
    %v5263 = vsel %vm1836, %v5247, %v5249
    %v5264 = vsel %vm1836, %v5249, %v5251
    %v5265 = vsel %vm1836, %v5251, %v5253
    %v5266 = vsel %vm1836, %v5253, %v5255
    %v5267 = vsel %vm1836, %v5255, %v5257
    %v5268 = vsel %vm1836, %v5257, %v5259
    %v5269 = vsel %vm1836, %v5259, %v5261
    %v5279 = vsel %vm562, %v5243, 0
    %5281 = vmatprep.subr.mxu0 %v5263
    %5282 = vmatpush1.msra.mxu0 %v5262
    %5283 = vmatprep.subr.mxu0 0.0
    %5284 = vmatpush1.msra.mxu0 0.0
    %5285 = vmatprep.subr.mxu0 0.0
    %5286 = vmatpush1.msra.mxu0 0.0
    %5287 = vmatprep.subr.mxu0 0.0
    %5288 = vmatpush1.msra.mxu0 0.0
    %5289 = vmatprep.subr.mxu0 0.0
    %5290 = vmatpush1.msra.mxu0 0.0
    %5291 = vmatprep.subr.mxu0 0.0
    %5292 = vmatpush1.msra.mxu0 0.0
    %5293 = vmatprep.subr.mxu0 0.0
    %5294 = vmatpush1.msra.mxu0 0.0
    %5295 = vmatprep.subr.mxu0 0.0
    %5296 = vmatpush1.msra.mxu0 0.0
    %5297 = vmatprep.subr.mxu0 0.0
    %5298 = vmatpush1.msra.mxu0 0.0
    %5299 = vmatprep.subr.mxu0 0.0
    %5300 = vmatpush1.msra.mxu0 0.0
    %5301 = vmatprep.subr.mxu0 0.0
    %5302 = vmatpush1.msra.mxu0 0.0
    %5303 = vmatprep.subr.mxu0 0.0
    %5304 = vmatpush1.msra.mxu0 0.0
    %5305 = vmatprep.subr.mxu0 0.0
    %5306 = vmatpush1.msra.mxu0 0.0
    %5307 = vmatprep.subr.mxu0 0.0
    %5308 = vmatpush1.msra.mxu0 0.0
    %5309 = vmatprep.subr.mxu0 0.0
    %5310 = vmatpush1.msra.mxu0 0.0
    %5311 = vmatprep.subr.mxu0 0.0
    %5312 = vmatpush1.msra.mxu0 0.0
    %5313 = vmatprep.subr.mxu0 0.0
    %5314 = vmatpush1.msra.mxu0 0.0
    %5315 = vmatprep.subr.mxu0 0.0
    %5316 = vmatpush1.msra.mxu0 0.0
    %5317 = vmatprep.subr.mxu0 0.0
    %5318 = vmatpush1.msra.mxu0 0.0
    %5319 = vmatprep.subr.mxu0 0.0
    %5320 = vmatpush1.msra.mxu0 0.0
    %5321 = vmatprep.subr.mxu0 0.0
    %5322 = vmatpush1.msra.mxu0 0.0
    %5323 = vmatprep.subr.mxu0 0.0
    %5324 = vmatpush1.msra.mxu0 0.0
    %5325 = vmatprep.subr.mxu0 0.0
    %5326 = vmatpush1.msra.mxu0 0.0
    %5327 = vmatprep.subr.mxu0 0.0
    %5328 = vmatpush1.msra.mxu0 0.0
    %5329 = vmatprep.subr.mxu0 0.0
    %5330 = vmatpush1.msra.mxu0 0.0
    %5331 = vmatprep.subr.mxu0 0.0
    %5332 = vmatpush1.msra.mxu0 0.0
    %5333 = vmatprep.subr.mxu0 0.0
    %5334 = vmatpush1.msra.mxu0 0.0
    %5335 = vmatprep.subr.mxu0 0.0
    %5336 = vmatpush1.msra.mxu0 0.0
    %5337 = vmatprep.subr.mxu0 0.0
    %5338 = vmatpush1.msra.mxu0 0.0
    %5339 = vmatprep.subr.mxu0 0.0
    %5340 = vmatpush1.msra.mxu0 0.0
    %5341 = vmatprep.subr.mxu0 0.0
    %5342 = vmatpush1.msra.mxu0 0.0
    %5343 = vmatprep.subr.mxu0 0.0
    %5344 = vmatpush1.msra.mxu0 0.0
    %5345 = vmatprep.mubr.f32.mxu0 0.0
    %5346 = vmatmul.mubr.f32.gmra.mrb[0].mxu0 %v5279
    %v5347 = vpop.f32.mrb[0].mxu0
    %v5348 = vadd.f32 0.0, %v5347
    %v5349 = vpop.f32.mrb[0].mxu0
    %v5350 = vadd.f32 0.0, %v5349
    %5351 = vdwg.mxu0
    %5352 = vmatprep.subr.mxu0 %v5265
    %5353 = vmatpush1.msra.mxu0 %v5264
    %5354 = vmatprep.subr.mxu0 0.0
    %5355 = vmatpush1.msra.mxu0 0.0
    %5356 = vmatprep.subr.mxu0 0.0
    %5357 = vmatpush1.msra.mxu0 0.0
    %5358 = vmatprep.subr.mxu0 0.0
    %5359 = vmatpush1.msra.mxu0 0.0
    %5360 = vmatprep.subr.mxu0 0.0
    %5361 = vmatpush1.msra.mxu0 0.0
    %5362 = vmatprep.subr.mxu0 0.0
    %5363 = vmatpush1.msra.mxu0 0.0
    %5364 = vmatprep.subr.mxu0 0.0
    %5365 = vmatpush1.msra.mxu0 0.0
    %5366 = vmatprep.subr.mxu0 0.0
    %5367 = vmatpush1.msra.mxu0 0.0
    %5368 = vmatprep.subr.mxu0 0.0
    %5369 = vmatpush1.msra.mxu0 0.0
    %5370 = vmatprep.subr.mxu0 0.0
    %5371 = vmatpush1.msra.mxu0 0.0
    %5372 = vmatprep.subr.mxu0 0.0
    %5373 = vmatpush1.msra.mxu0 0.0
    %5374 = vmatprep.subr.mxu0 0.0
    %5375 = vmatpush1.msra.mxu0 0.0
    %5376 = vmatprep.subr.mxu0 0.0
    %5377 = vmatpush1.msra.mxu0 0.0
    %5378 = vmatprep.subr.mxu0 0.0
    %5379 = vmatpush1.msra.mxu0 0.0
    %5380 = vmatprep.subr.mxu0 0.0
    %5381 = vmatpush1.msra.mxu0 0.0
    %5382 = vmatprep.subr.mxu0 0.0
    %5383 = vmatpush1.msra.mxu0 0.0
    %5384 = vmatprep.subr.mxu0 0.0
    %5385 = vmatpush1.msra.mxu0 0.0
    %5386 = vmatprep.subr.mxu0 0.0
    %5387 = vmatpush1.msra.mxu0 0.0
    %5388 = vmatprep.subr.mxu0 0.0
    %5389 = vmatpush1.msra.mxu0 0.0
    %5390 = vmatprep.subr.mxu0 0.0
    %5391 = vmatpush1.msra.mxu0 0.0
    %5392 = vmatprep.subr.mxu0 0.0
    %5393 = vmatpush1.msra.mxu0 0.0
    %5394 = vmatprep.subr.mxu0 0.0
    %5395 = vmatpush1.msra.mxu0 0.0
    %5396 = vmatprep.subr.mxu0 0.0
    %5397 = vmatpush1.msra.mxu0 0.0
    %5398 = vmatprep.subr.mxu0 0.0
    %5399 = vmatpush1.msra.mxu0 0.0
    %5400 = vmatprep.subr.mxu0 0.0
    %5401 = vmatpush1.msra.mxu0 0.0
    %5402 = vmatprep.subr.mxu0 0.0
    %5403 = vmatpush1.msra.mxu0 0.0
    %5404 = vmatprep.subr.mxu0 0.0
    %5405 = vmatpush1.msra.mxu0 0.0
    %5406 = vmatprep.subr.mxu0 0.0
    %5407 = vmatpush1.msra.mxu0 0.0
    %5408 = vmatprep.subr.mxu0 0.0
    %5409 = vmatpush1.msra.mxu0 0.0
    %5410 = vmatprep.subr.mxu0 0.0
    %5411 = vmatpush1.msra.mxu0 0.0
    %5412 = vmatprep.subr.mxu0 0.0
    %5413 = vmatpush1.msra.mxu0 0.0
    %5414 = vmatprep.subr.mxu0 0.0
    %5415 = vmatpush1.msra.mxu0 0.0
    %5416 = vmatprep.mubr.f32.mxu0 0.0
    %5417 = vmatmul.mubr.f32.gmra.mrb[0].mxu0 %v5279
    %v5418 = vpop.f32.mrb[0].mxu0
    %v5419 = vadd.f32 0.0, %v5418
    %v5420 = vpop.f32.mrb[0].mxu0
    %v5421 = vadd.f32 0.0, %v5420
    %5422 = vdwg.mxu0
    %5423 = vmatprep.subr.mxu0 %v5267
    %5424 = vmatpush1.msra.mxu0 %v5266
    %5425 = vmatprep.subr.mxu0 0.0
    %5426 = vmatpush1.msra.mxu0 0.0
    %5427 = vmatprep.subr.mxu0 0.0
    %5428 = vmatpush1.msra.mxu0 0.0
    %5429 = vmatprep.subr.mxu0 0.0
    %5430 = vmatpush1.msra.mxu0 0.0
    %5431 = vmatprep.subr.mxu0 0.0
    %5432 = vmatpush1.msra.mxu0 0.0
    %5433 = vmatprep.subr.mxu0 0.0
    %5434 = vmatpush1.msra.mxu0 0.0
    %5435 = vmatprep.subr.mxu0 0.0
    %5436 = vmatpush1.msra.mxu0 0.0
    %5437 = vmatprep.subr.mxu0 0.0
    %5438 = vmatpush1.msra.mxu0 0.0
    %5439 = vmatprep.subr.mxu0 0.0
    %5440 = vmatpush1.msra.mxu0 0.0
    %5441 = vmatprep.subr.mxu0 0.0
    %5442 = vmatpush1.msra.mxu0 0.0
    %5443 = vmatprep.subr.mxu0 0.0
    %5444 = vmatpush1.msra.mxu0 0.0
    %5445 = vmatprep.subr.mxu0 0.0
    %5446 = vmatpush1.msra.mxu0 0.0
    %5447 = vmatprep.subr.mxu0 0.0
    %5448 = vmatpush1.msra.mxu0 0.0
    %5449 = vmatprep.subr.mxu0 0.0
    %5450 = vmatpush1.msra.mxu0 0.0
    %5451 = vmatprep.subr.mxu0 0.0
    %5452 = vmatpush1.msra.mxu0 0.0
    %5453 = vmatprep.subr.mxu0 0.0
    %5454 = vmatpush1.msra.mxu0 0.0
    %5455 = vmatprep.subr.mxu0 0.0
    %5456 = vmatpush1.msra.mxu0 0.0
    %5457 = vmatprep.subr.mxu0 0.0
    %5458 = vmatpush1.msra.mxu0 0.0
    %5459 = vmatprep.subr.mxu0 0.0
    %5460 = vmatpush1.msra.mxu0 0.0
    %5461 = vmatprep.subr.mxu0 0.0
    %5462 = vmatpush1.msra.mxu0 0.0
    %5463 = vmatprep.subr.mxu0 0.0
    %5464 = vmatpush1.msra.mxu0 0.0
    %5465 = vmatprep.subr.mxu0 0.0
    %5466 = vmatpush1.msra.mxu0 0.0
    %5467 = vmatprep.subr.mxu0 0.0
    %5468 = vmatpush1.msra.mxu0 0.0
    %5469 = vmatprep.subr.mxu0 0.0
    %5470 = vmatpush1.msra.mxu0 0.0
    %5471 = vmatprep.subr.mxu0 0.0
    %5472 = vmatpush1.msra.mxu0 0.0
    %5473 = vmatprep.subr.mxu0 0.0
    %5474 = vmatpush1.msra.mxu0 0.0
    %5475 = vmatprep.subr.mxu0 0.0
    %5476 = vmatpush1.msra.mxu0 0.0
    %5477 = vmatprep.subr.mxu0 0.0
    %5478 = vmatpush1.msra.mxu0 0.0
    %5479 = vmatprep.subr.mxu0 0.0
    %5480 = vmatpush1.msra.mxu0 0.0
    %5481 = vmatprep.subr.mxu0 0.0
    %5482 = vmatpush1.msra.mxu0 0.0
    %5483 = vmatprep.subr.mxu0 0.0
    %5484 = vmatpush1.msra.mxu0 0.0
    %5485 = vmatprep.subr.mxu0 0.0
    %5486 = vmatpush1.msra.mxu0 0.0
    %5487 = vmatprep.mubr.f32.mxu0 0.0
    %5488 = vmatmul.mubr.f32.gmra.mrb[0].mxu0 %v5279
    %v5489 = vpop.f32.mrb[0].mxu0
    %v5490 = vadd.f32 0.0, %v5489
    %v5491 = vpop.f32.mrb[0].mxu0
    %v5492 = vadd.f32 0.0, %v5491
    %5493 = vdwg.mxu0
    %5494 = vmatprep.subr.mxu0 %v5269
    %5495 = vmatpush1.msra.mxu0 %v5268
    %5496 = vmatprep.subr.mxu0 0.0
    %5497 = vmatpush1.msra.mxu0 0.0
    %5498 = vmatprep.subr.mxu0 0.0
    %5499 = vmatpush1.msra.mxu0 0.0
    %5500 = vmatprep.subr.mxu0 0.0
    %5501 = vmatpush1.msra.mxu0 0.0
    %5502 = vmatprep.subr.mxu0 0.0
    %5503 = vmatpush1.msra.mxu0 0.0
    %5504 = vmatprep.subr.mxu0 0.0
    %5505 = vmatpush1.msra.mxu0 0.0
    %5506 = vmatprep.subr.mxu0 0.0
    %5507 = vmatpush1.msra.mxu0 0.0
    %5508 = vmatprep.subr.mxu0 0.0
    %5509 = vmatpush1.msra.mxu0 0.0
    %5510 = vmatprep.subr.mxu0 0.0
    %5511 = vmatpush1.msra.mxu0 0.0
    %5512 = vmatprep.subr.mxu0 0.0
    %5513 = vmatpush1.msra.mxu0 0.0
    %5514 = vmatprep.subr.mxu0 0.0
    %5515 = vmatpush1.msra.mxu0 0.0
    %5516 = vmatprep.subr.mxu0 0.0
    %5517 = vmatpush1.msra.mxu0 0.0
    %5518 = vmatprep.subr.mxu0 0.0
    %5519 = vmatpush1.msra.mxu0 0.0
    %5520 = vmatprep.subr.mxu0 0.0
    %5521 = vmatpush1.msra.mxu0 0.0
    %5522 = vmatprep.subr.mxu0 0.0
    %5523 = vmatpush1.msra.mxu0 0.0
    %5524 = vmatprep.subr.mxu0 0.0
    %5525 = vmatpush1.msra.mxu0 0.0
    %5526 = vmatprep.subr.mxu0 0.0
    %5527 = vmatpush1.msra.mxu0 0.0
    %5528 = vmatprep.subr.mxu0 0.0
    %5529 = vmatpush1.msra.mxu0 0.0
    %5530 = vmatprep.subr.mxu0 0.0
    %5531 = vmatpush1.msra.mxu0 0.0
    %5532 = vmatprep.subr.mxu0 0.0
    %5533 = vmatpush1.msra.mxu0 0.0
    %5534 = vmatprep.subr.mxu0 0.0
    %5535 = vmatpush1.msra.mxu0 0.0
    %5536 = vmatprep.subr.mxu0 0.0
    %5537 = vmatpush1.msra.mxu0 0.0
    %5538 = vmatprep.subr.mxu0 0.0
    %5539 = vmatpush1.msra.mxu0 0.0
    %5540 = vmatprep.subr.mxu0 0.0
    %5541 = vmatpush1.msra.mxu0 0.0
    %5542 = vmatprep.subr.mxu0 0.0
    %5543 = vmatpush1.msra.mxu0 0.0
    %5544 = vmatprep.subr.mxu0 0.0
    %5545 = vmatpush1.msra.mxu0 0.0
    %5546 = vmatprep.subr.mxu0 0.0
    %5547 = vmatpush1.msra.mxu0 0.0
    %5548 = vmatprep.subr.mxu0 0.0
    %5549 = vmatpush1.msra.mxu0 0.0
    %5550 = vmatprep.subr.mxu0 0.0
    %5551 = vmatpush1.msra.mxu0 0.0
    %5552 = vmatprep.subr.mxu0 0.0
    %5553 = vmatpush1.msra.mxu0 0.0
    %5554 = vmatprep.subr.mxu0 0.0
    %5555 = vmatpush1.msra.mxu0 0.0
    %5556 = vmatprep.subr.mxu0 0.0
    %5557 = vmatpush1.msra.mxu0 0.0
    %5558 = vmatprep.mubr.f32.mxu0 0.0
    %5559 = vmatmul.mubr.f32.gmra.mrb[0].mxu0 %v5279
    %v5560 = vpop.f32.mrb[0].mxu0
    %v5561 = vadd.f32 0.0, %v5560
    %v5562 = vpop.f32.mrb[0].mxu0
    %v5563 = vadd.f32 0.0, %v5562
    %5564 = vdwg.mxu0
    %v5565 = vadd.f32 %v5234, %v5348
    %v5566 = vadd.f32 %v5235, %v5350
    %v5567 = vadd.f32 %v5236, %v5419
    %v5568 = vadd.f32 %v5237, %v5421
    %v5569 = vadd.f32 %v5238, %v5490
    %v5570 = vadd.f32 %v5239, %v5492
    %v5571 = vadd.f32 %v5240, %v5561
    %v5572 = vadd.f32 %v5241, %v5563
    %s5573 = scalar_lea.vmem %s3, 40
    %v5574 = vld [vmem:[%s5573] sm:$0xff]
    %5575 = vrot.lane.b32.xlu0 %v4895, 102
    %v5576 = vpop.permute.xlu0 %5575
    %5577 = vrot.lane.b32.xlu0 %v4896, 102
    %v5578 = vpop.permute.xlu0 %5577
    %5579 = vrot.lane.b32.xlu0 %v4897, 102
    %v5580 = vpop.permute.xlu0 %5579
    %5581 = vrot.lane.b32.xlu0 %v4898, 102
    %v5582 = vpop.permute.xlu0 %5581
    %5583 = vrot.lane.b32.xlu0 %v4899, 102
    %v5584 = vpop.permute.xlu0 %5583
    %5585 = vrot.lane.b32.xlu0 %v4900, 102
    %v5586 = vpop.permute.xlu0 %5585
    %5587 = vrot.lane.b32.xlu0 %v4901, 102
    %v5588 = vpop.permute.xlu0 %5587
    %5589 = vrot.lane.b32.xlu0 %v4902, 102
    %v5590 = vpop.permute.xlu0 %5589
    %5591 = vrot.lane.b32.xlu0 %v4903, 102
    %v5592 = vpop.permute.xlu0 %5591
    %v5593 = vsel %vm2168, %v5576, %v5578
    %v5594 = vsel %vm2168, %v5578, %v5580
    %v5595 = vsel %vm2168, %v5580, %v5582
    %v5596 = vsel %vm2168, %v5582, %v5584
    %v5597 = vsel %vm2168, %v5584, %v5586
    %v5598 = vsel %vm2168, %v5586, %v5588
    %v5599 = vsel %vm2168, %v5588, %v5590
    %v5600 = vsel %vm2168, %v5590, %v5592
    %v5610 = vsel %vm562, %v5574, 0
    %5612 = vmatprep.subr.mxu0 %v5594
    %5613 = vmatpush1.msra.mxu0 %v5593
    %5614 = vmatprep.subr.mxu0 0.0
    %5615 = vmatpush1.msra.mxu0 0.0
    %5616 = vmatprep.subr.mxu0 0.0
    %5617 = vmatpush1.msra.mxu0 0.0
    %5618 = vmatprep.subr.mxu0 0.0
    %5619 = vmatpush1.msra.mxu0 0.0
    %5620 = vmatprep.subr.mxu0 0.0
    %5621 = vmatpush1.msra.mxu0 0.0
    %5622 = vmatprep.subr.mxu0 0.0
    %5623 = vmatpush1.msra.mxu0 0.0
    %5624 = vmatprep.subr.mxu0 0.0
    %5625 = vmatpush1.msra.mxu0 0.0
    %5626 = vmatprep.subr.mxu0 0.0
    %5627 = vmatpush1.msra.mxu0 0.0
    %5628 = vmatprep.subr.mxu0 0.0
    %5629 = vmatpush1.msra.mxu0 0.0
    %5630 = vmatprep.subr.mxu0 0.0
    %5631 = vmatpush1.msra.mxu0 0.0
    %5632 = vmatprep.subr.mxu0 0.0
    %5633 = vmatpush1.msra.mxu0 0.0
    %5634 = vmatprep.subr.mxu0 0.0
    %5635 = vmatpush1.msra.mxu0 0.0
    %5636 = vmatprep.subr.mxu0 0.0
    %5637 = vmatpush1.msra.mxu0 0.0
    %5638 = vmatprep.subr.mxu0 0.0
    %5639 = vmatpush1.msra.mxu0 0.0
    %5640 = vmatprep.subr.mxu0 0.0
    %5641 = vmatpush1.msra.mxu0 0.0
    %5642 = vmatprep.subr.mxu0 0.0
    %5643 = vmatpush1.msra.mxu0 0.0
    %5644 = vmatprep.subr.mxu0 0.0
    %5645 = vmatpush1.msra.mxu0 0.0
    %5646 = vmatprep.subr.mxu0 0.0
    %5647 = vmatpush1.msra.mxu0 0.0
    %5648 = vmatprep.subr.mxu0 0.0
    %5649 = vmatpush1.msra.mxu0 0.0
    %5650 = vmatprep.subr.mxu0 0.0
    %5651 = vmatpush1.msra.mxu0 0.0
    %5652 = vmatprep.subr.mxu0 0.0
    %5653 = vmatpush1.msra.mxu0 0.0
    %5654 = vmatprep.subr.mxu0 0.0
    %5655 = vmatpush1.msra.mxu0 0.0
    %5656 = vmatprep.subr.mxu0 0.0
    %5657 = vmatpush1.msra.mxu0 0.0
    %5658 = vmatprep.subr.mxu0 0.0
    %5659 = vmatpush1.msra.mxu0 0.0
    %5660 = vmatprep.subr.mxu0 0.0
    %5661 = vmatpush1.msra.mxu0 0.0
    %5662 = vmatprep.subr.mxu0 0.0
    %5663 = vmatpush1.msra.mxu0 0.0
    %5664 = vmatprep.subr.mxu0 0.0
    %5665 = vmatpush1.msra.mxu0 0.0
    %5666 = vmatprep.subr.mxu0 0.0
    %5667 = vmatpush1.msra.mxu0 0.0
    %5668 = vmatprep.subr.mxu0 0.0
    %5669 = vmatpush1.msra.mxu0 0.0
    %5670 = vmatprep.subr.mxu0 0.0
    %5671 = vmatpush1.msra.mxu0 0.0
    %5672 = vmatprep.subr.mxu0 0.0
    %5673 = vmatpush1.msra.mxu0 0.0
    %5674 = vmatprep.subr.mxu0 0.0
    %5675 = vmatpush1.msra.mxu0 0.0
    %5676 = vmatprep.mubr.f32.mxu0 0.0
    %5677 = vmatmul.mubr.f32.gmra.mrb[0].mxu0 %v5610
    %v5678 = vpop.f32.mrb[0].mxu0
    %v5679 = vadd.f32 0.0, %v5678
    %v5680 = vpop.f32.mrb[0].mxu0
    %v5681 = vadd.f32 0.0, %v5680
    %5682 = vdwg.mxu0
    %5683 = vmatprep.subr.mxu0 %v5596
    %5684 = vmatpush1.msra.mxu0 %v5595
    %5685 = vmatprep.subr.mxu0 0.0
    %5686 = vmatpush1.msra.mxu0 0.0
    %5687 = vmatprep.subr.mxu0 0.0
    %5688 = vmatpush1.msra.mxu0 0.0
    %5689 = vmatprep.subr.mxu0 0.0
    %5690 = vmatpush1.msra.mxu0 0.0
    %5691 = vmatprep.subr.mxu0 0.0
    %5692 = vmatpush1.msra.mxu0 0.0
    %5693 = vmatprep.subr.mxu0 0.0
    %5694 = vmatpush1.msra.mxu0 0.0
    %5695 = vmatprep.subr.mxu0 0.0
    %5696 = vmatpush1.msra.mxu0 0.0
    %5697 = vmatprep.subr.mxu0 0.0
    %5698 = vmatpush1.msra.mxu0 0.0
    %5699 = vmatprep.subr.mxu0 0.0
    %5700 = vmatpush1.msra.mxu0 0.0
    %5701 = vmatprep.subr.mxu0 0.0
    %5702 = vmatpush1.msra.mxu0 0.0
    %5703 = vmatprep.subr.mxu0 0.0
    %5704 = vmatpush1.msra.mxu0 0.0
    %5705 = vmatprep.subr.mxu0 0.0
    %5706 = vmatpush1.msra.mxu0 0.0
    %5707 = vmatprep.subr.mxu0 0.0
    %5708 = vmatpush1.msra.mxu0 0.0
    %5709 = vmatprep.subr.mxu0 0.0
    %5710 = vmatpush1.msra.mxu0 0.0
    %5711 = vmatprep.subr.mxu0 0.0
    %5712 = vmatpush1.msra.mxu0 0.0
    %5713 = vmatprep.subr.mxu0 0.0
    %5714 = vmatpush1.msra.mxu0 0.0
    %5715 = vmatprep.subr.mxu0 0.0
    %5716 = vmatpush1.msra.mxu0 0.0
    %5717 = vmatprep.subr.mxu0 0.0
    %5718 = vmatpush1.msra.mxu0 0.0
    %5719 = vmatprep.subr.mxu0 0.0
    %5720 = vmatpush1.msra.mxu0 0.0
    %5721 = vmatprep.subr.mxu0 0.0
    %5722 = vmatpush1.msra.mxu0 0.0
    %5723 = vmatprep.subr.mxu0 0.0
    %5724 = vmatpush1.msra.mxu0 0.0
    %5725 = vmatprep.subr.mxu0 0.0
    %5726 = vmatpush1.msra.mxu0 0.0
    %5727 = vmatprep.subr.mxu0 0.0
    %5728 = vmatpush1.msra.mxu0 0.0
    %5729 = vmatprep.subr.mxu0 0.0
    %5730 = vmatpush1.msra.mxu0 0.0
    %5731 = vmatprep.subr.mxu0 0.0
    %5732 = vmatpush1.msra.mxu0 0.0
    %5733 = vmatprep.subr.mxu0 0.0
    %5734 = vmatpush1.msra.mxu0 0.0
    %5735 = vmatprep.subr.mxu0 0.0
    %5736 = vmatpush1.msra.mxu0 0.0
    %5737 = vmatprep.subr.mxu0 0.0
    %5738 = vmatpush1.msra.mxu0 0.0
    %5739 = vmatprep.subr.mxu0 0.0
    %5740 = vmatpush1.msra.mxu0 0.0
    %5741 = vmatprep.subr.mxu0 0.0
    %5742 = vmatpush1.msra.mxu0 0.0
    %5743 = vmatprep.subr.mxu0 0.0
    %5744 = vmatpush1.msra.mxu0 0.0
    %5745 = vmatprep.subr.mxu0 0.0
    %5746 = vmatpush1.msra.mxu0 0.0
    %5747 = vmatprep.mubr.f32.mxu0 0.0
    %5748 = vmatmul.mubr.f32.gmra.mrb[0].mxu0 %v5610
    %v5749 = vpop.f32.mrb[0].mxu0
    %v5750 = vadd.f32 0.0, %v5749
    %v5751 = vpop.f32.mrb[0].mxu0
    %v5752 = vadd.f32 0.0, %v5751
    %5753 = vdwg.mxu0
    %5754 = vmatprep.subr.mxu0 %v5598
    %5755 = vmatpush1.msra.mxu0 %v5597
    %5756 = vmatprep.subr.mxu0 0.0
    %5757 = vmatpush1.msra.mxu0 0.0
    %5758 = vmatprep.subr.mxu0 0.0
    %5759 = vmatpush1.msra.mxu0 0.0
    %5760 = vmatprep.subr.mxu0 0.0
    %5761 = vmatpush1.msra.mxu0 0.0
    %5762 = vmatprep.subr.mxu0 0.0
    %5763 = vmatpush1.msra.mxu0 0.0
    %5764 = vmatprep.subr.mxu0 0.0
    %5765 = vmatpush1.msra.mxu0 0.0
    %5766 = vmatprep.subr.mxu0 0.0
    %5767 = vmatpush1.msra.mxu0 0.0
    %5768 = vmatprep.subr.mxu0 0.0
    %5769 = vmatpush1.msra.mxu0 0.0
    %5770 = vmatprep.subr.mxu0 0.0
    %5771 = vmatpush1.msra.mxu0 0.0
    %5772 = vmatprep.subr.mxu0 0.0
    %5773 = vmatpush1.msra.mxu0 0.0
    %5774 = vmatprep.subr.mxu0 0.0
    %5775 = vmatpush1.msra.mxu0 0.0
    %5776 = vmatprep.subr.mxu0 0.0
    %5777 = vmatpush1.msra.mxu0 0.0
    %5778 = vmatprep.subr.mxu0 0.0
    %5779 = vmatpush1.msra.mxu0 0.0
    %5780 = vmatprep.subr.mxu0 0.0
    %5781 = vmatpush1.msra.mxu0 0.0
    %5782 = vmatprep.subr.mxu0 0.0
    %5783 = vmatpush1.msra.mxu0 0.0
    %5784 = vmatprep.subr.mxu0 0.0
    %5785 = vmatpush1.msra.mxu0 0.0
    %5786 = vmatprep.subr.mxu0 0.0
    %5787 = vmatpush1.msra.mxu0 0.0
    %5788 = vmatprep.subr.mxu0 0.0
    %5789 = vmatpush1.msra.mxu0 0.0
    %5790 = vmatprep.subr.mxu0 0.0
    %5791 = vmatpush1.msra.mxu0 0.0
    %5792 = vmatprep.subr.mxu0 0.0
    %5793 = vmatpush1.msra.mxu0 0.0
    %5794 = vmatprep.subr.mxu0 0.0
    %5795 = vmatpush1.msra.mxu0 0.0
    %5796 = vmatprep.subr.mxu0 0.0
    %5797 = vmatpush1.msra.mxu0 0.0
    %5798 = vmatprep.subr.mxu0 0.0
    %5799 = vmatpush1.msra.mxu0 0.0
    %5800 = vmatprep.subr.mxu0 0.0
    %5801 = vmatpush1.msra.mxu0 0.0
    %5802 = vmatprep.subr.mxu0 0.0
    %5803 = vmatpush1.msra.mxu0 0.0
    %5804 = vmatprep.subr.mxu0 0.0
    %5805 = vmatpush1.msra.mxu0 0.0
    %5806 = vmatprep.subr.mxu0 0.0
    %5807 = vmatpush1.msra.mxu0 0.0
    %5808 = vmatprep.subr.mxu0 0.0
    %5809 = vmatpush1.msra.mxu0 0.0
    %5810 = vmatprep.subr.mxu0 0.0
    %5811 = vmatpush1.msra.mxu0 0.0
    %5812 = vmatprep.subr.mxu0 0.0
    %5813 = vmatpush1.msra.mxu0 0.0
    %5814 = vmatprep.subr.mxu0 0.0
    %5815 = vmatpush1.msra.mxu0 0.0
    %5816 = vmatprep.subr.mxu0 0.0
    %5817 = vmatpush1.msra.mxu0 0.0
    %5818 = vmatprep.mubr.f32.mxu0 0.0
    %5819 = vmatmul.mubr.f32.gmra.mrb[0].mxu0 %v5610
    %v5820 = vpop.f32.mrb[0].mxu0
    %v5821 = vadd.f32 0.0, %v5820
    %v5822 = vpop.f32.mrb[0].mxu0
    %v5823 = vadd.f32 0.0, %v5822
    %5824 = vdwg.mxu0
    %5825 = vmatprep.subr.mxu0 %v5600
    %5826 = vmatpush1.msra.mxu0 %v5599
    %5827 = vmatprep.subr.mxu0 0.0
    %5828 = vmatpush1.msra.mxu0 0.0
    %5829 = vmatprep.subr.mxu0 0.0
    %5830 = vmatpush1.msra.mxu0 0.0
    %5831 = vmatprep.subr.mxu0 0.0
    %5832 = vmatpush1.msra.mxu0 0.0
    %5833 = vmatprep.subr.mxu0 0.0
    %5834 = vmatpush1.msra.mxu0 0.0
    %5835 = vmatprep.subr.mxu0 0.0
    %5836 = vmatpush1.msra.mxu0 0.0
    %5837 = vmatprep.subr.mxu0 0.0
    %5838 = vmatpush1.msra.mxu0 0.0
    %5839 = vmatprep.subr.mxu0 0.0
    %5840 = vmatpush1.msra.mxu0 0.0
    %5841 = vmatprep.subr.mxu0 0.0
    %5842 = vmatpush1.msra.mxu0 0.0
    %5843 = vmatprep.subr.mxu0 0.0
    %5844 = vmatpush1.msra.mxu0 0.0
    %5845 = vmatprep.subr.mxu0 0.0
    %5846 = vmatpush1.msra.mxu0 0.0
    %5847 = vmatprep.subr.mxu0 0.0
    %5848 = vmatpush1.msra.mxu0 0.0
    %5849 = vmatprep.subr.mxu0 0.0
    %5850 = vmatpush1.msra.mxu0 0.0
    %5851 = vmatprep.subr.mxu0 0.0
    %5852 = vmatpush1.msra.mxu0 0.0
    %5853 = vmatprep.subr.mxu0 0.0
    %5854 = vmatpush1.msra.mxu0 0.0
    %5855 = vmatprep.subr.mxu0 0.0
    %5856 = vmatpush1.msra.mxu0 0.0
    %5857 = vmatprep.subr.mxu0 0.0
    %5858 = vmatpush1.msra.mxu0 0.0
    %5859 = vmatprep.subr.mxu0 0.0
    %5860 = vmatpush1.msra.mxu0 0.0
    %5861 = vmatprep.subr.mxu0 0.0
    %5862 = vmatpush1.msra.mxu0 0.0
    %5863 = vmatprep.subr.mxu0 0.0
    %5864 = vmatpush1.msra.mxu0 0.0
    %5865 = vmatprep.subr.mxu0 0.0
    %5866 = vmatpush1.msra.mxu0 0.0
    %5867 = vmatprep.subr.mxu0 0.0
    %5868 = vmatpush1.msra.mxu0 0.0
    %5869 = vmatprep.subr.mxu0 0.0
    %5870 = vmatpush1.msra.mxu0 0.0
    %5871 = vmatprep.subr.mxu0 0.0
    %5872 = vmatpush1.msra.mxu0 0.0
    %5873 = vmatprep.subr.mxu0 0.0
    %5874 = vmatpush1.msra.mxu0 0.0
    %5875 = vmatprep.subr.mxu0 0.0
    %5876 = vmatpush1.msra.mxu0 0.0
    %5877 = vmatprep.subr.mxu0 0.0
    %5878 = vmatpush1.msra.mxu0 0.0
    %5879 = vmatprep.subr.mxu0 0.0
    %5880 = vmatpush1.msra.mxu0 0.0
    %5881 = vmatprep.subr.mxu0 0.0
    %5882 = vmatpush1.msra.mxu0 0.0
    %5883 = vmatprep.subr.mxu0 0.0
    %5884 = vmatpush1.msra.mxu0 0.0
    %5885 = vmatprep.subr.mxu0 0.0
    %5886 = vmatpush1.msra.mxu0 0.0
    %5887 = vmatprep.subr.mxu0 0.0
    %5888 = vmatpush1.msra.mxu0 0.0
    %5889 = vmatprep.mubr.f32.mxu0 0.0
    %5890 = vmatmul.mubr.f32.gmra.mrb[0].mxu0 %v5610
    %v5891 = vpop.f32.mrb[0].mxu0
    %v5892 = vadd.f32 0.0, %v5891
    %v5893 = vpop.f32.mrb[0].mxu0
    %v5894 = vadd.f32 0.0, %v5893
    %5895 = vdwg.mxu0
    %v5896 = vadd.f32 %v5565, %v5679
    %v5897 = vadd.f32 %v5566, %v5681
    %v5898 = vadd.f32 %v5567, %v5750
    %v5899 = vadd.f32 %v5568, %v5752
    %v5900 = vadd.f32 %v5569, %v5821
    %v5901 = vadd.f32 %v5570, %v5823
    %v5902 = vadd.f32 %v5571, %v5892
    %v5903 = vadd.f32 %v5572, %v5894
    %s5904 = scalar_lea.vmem %s3, 48
    %v5905 = vld [vmem:[%s5904] sm:$0xff]
    %5906 = vrot.lane.b32.xlu0 %v4895, 80
    %v5907 = vpop.permute.xlu0 %5906
    %5908 = vrot.lane.b32.xlu0 %v4896, 80
    %v5909 = vpop.permute.xlu0 %5908
    %5910 = vrot.lane.b32.xlu0 %v4897, 80
    %v5911 = vpop.permute.xlu0 %5910
    %5912 = vrot.lane.b32.xlu0 %v4898, 80
    %v5913 = vpop.permute.xlu0 %5912
    %5914 = vrot.lane.b32.xlu0 %v4899, 80
    %v5915 = vpop.permute.xlu0 %5914
    %5916 = vrot.lane.b32.xlu0 %v4900, 80
    %v5917 = vpop.permute.xlu0 %5916
    %5918 = vrot.lane.b32.xlu0 %v4901, 80
    %v5919 = vpop.permute.xlu0 %5918
    %5920 = vrot.lane.b32.xlu0 %v4902, 80
    %v5921 = vpop.permute.xlu0 %5920
    %5922 = vrot.lane.b32.xlu0 %v4903, 80
    %v5923 = vpop.permute.xlu0 %5922
    %v5924 = vsel %vm2500, %v5907, %v5909
    %v5925 = vsel %vm2500, %v5909, %v5911
    %v5926 = vsel %vm2500, %v5911, %v5913
    %v5927 = vsel %vm2500, %v5913, %v5915
    %v5928 = vsel %vm2500, %v5915, %v5917
    %v5929 = vsel %vm2500, %v5917, %v5919
    %v5930 = vsel %vm2500, %v5919, %v5921
    %v5931 = vsel %vm2500, %v5921, %v5923
    %v5941 = vsel %vm562, %v5905, 0
    %5943 = vmatprep.subr.mxu0 %v5925
    %5944 = vmatpush1.msra.mxu0 %v5924
    %5945 = vmatprep.subr.mxu0 0.0
    %5946 = vmatpush1.msra.mxu0 0.0
    %5947 = vmatprep.subr.mxu0 0.0
    %5948 = vmatpush1.msra.mxu0 0.0
    %5949 = vmatprep.subr.mxu0 0.0
    %5950 = vmatpush1.msra.mxu0 0.0
    %5951 = vmatprep.subr.mxu0 0.0
    %5952 = vmatpush1.msra.mxu0 0.0
    %5953 = vmatprep.subr.mxu0 0.0
    %5954 = vmatpush1.msra.mxu0 0.0
    %5955 = vmatprep.subr.mxu0 0.0
    %5956 = vmatpush1.msra.mxu0 0.0
    %5957 = vmatprep.subr.mxu0 0.0
    %5958 = vmatpush1.msra.mxu0 0.0
    %5959 = vmatprep.subr.mxu0 0.0
    %5960 = vmatpush1.msra.mxu0 0.0
    %5961 = vmatprep.subr.mxu0 0.0
    %5962 = vmatpush1.msra.mxu0 0.0
    %5963 = vmatprep.subr.mxu0 0.0
    %5964 = vmatpush1.msra.mxu0 0.0
    %5965 = vmatprep.subr.mxu0 0.0
    %5966 = vmatpush1.msra.mxu0 0.0
    %5967 = vmatprep.subr.mxu0 0.0
    %5968 = vmatpush1.msra.mxu0 0.0
    %5969 = vmatprep.subr.mxu0 0.0
    %5970 = vmatpush1.msra.mxu0 0.0
    %5971 = vmatprep.subr.mxu0 0.0
    %5972 = vmatpush1.msra.mxu0 0.0
    %5973 = vmatprep.subr.mxu0 0.0
    %5974 = vmatpush1.msra.mxu0 0.0
    %5975 = vmatprep.subr.mxu0 0.0
    %5976 = vmatpush1.msra.mxu0 0.0
    %5977 = vmatprep.subr.mxu0 0.0
    %5978 = vmatpush1.msra.mxu0 0.0
    %5979 = vmatprep.subr.mxu0 0.0
    %5980 = vmatpush1.msra.mxu0 0.0
    %5981 = vmatprep.subr.mxu0 0.0
    %5982 = vmatpush1.msra.mxu0 0.0
    %5983 = vmatprep.subr.mxu0 0.0
    %5984 = vmatpush1.msra.mxu0 0.0
    %5985 = vmatprep.subr.mxu0 0.0
    %5986 = vmatpush1.msra.mxu0 0.0
    %5987 = vmatprep.subr.mxu0 0.0
    %5988 = vmatpush1.msra.mxu0 0.0
    %5989 = vmatprep.subr.mxu0 0.0
    %5990 = vmatpush1.msra.mxu0 0.0
    %5991 = vmatprep.subr.mxu0 0.0
    %5992 = vmatpush1.msra.mxu0 0.0
    %5993 = vmatprep.subr.mxu0 0.0
    %5994 = vmatpush1.msra.mxu0 0.0
    %5995 = vmatprep.subr.mxu0 0.0
    %5996 = vmatpush1.msra.mxu0 0.0
    %5997 = vmatprep.subr.mxu0 0.0
    %5998 = vmatpush1.msra.mxu0 0.0
    %5999 = vmatprep.subr.mxu0 0.0
    %6000 = vmatpush1.msra.mxu0 0.0
    %6001 = vmatprep.subr.mxu0 0.0
    %6002 = vmatpush1.msra.mxu0 0.0
    %6003 = vmatprep.subr.mxu0 0.0
    %6004 = vmatpush1.msra.mxu0 0.0
    %6005 = vmatprep.subr.mxu0 0.0
    %6006 = vmatpush1.msra.mxu0 0.0
    %6007 = vmatprep.mubr.f32.mxu0 0.0
    %6008 = vmatmul.mubr.f32.gmra.mrb[0].mxu0 %v5941
    %v6009 = vpop.f32.mrb[0].mxu0
    %v6010 = vadd.f32 0.0, %v6009
    %v6011 = vpop.f32.mrb[0].mxu0
    %v6012 = vadd.f32 0.0, %v6011
    %6013 = vdwg.mxu0
    %6014 = vmatprep.subr.mxu0 %v5927
    %6015 = vmatpush1.msra.mxu0 %v5926
    %6016 = vmatprep.subr.mxu0 0.0
    %6017 = vmatpush1.msra.mxu0 0.0
    %6018 = vmatprep.subr.mxu0 0.0
    %6019 = vmatpush1.msra.mxu0 0.0
    %6020 = vmatprep.subr.mxu0 0.0
    %6021 = vmatpush1.msra.mxu0 0.0
    %6022 = vmatprep.subr.mxu0 0.0
    %6023 = vmatpush1.msra.mxu0 0.0
    %6024 = vmatprep.subr.mxu0 0.0
    %6025 = vmatpush1.msra.mxu0 0.0
    %6026 = vmatprep.subr.mxu0 0.0
    %6027 = vmatpush1.msra.mxu0 0.0
    %6028 = vmatprep.subr.mxu0 0.0
    %6029 = vmatpush1.msra.mxu0 0.0
    %6030 = vmatprep.subr.mxu0 0.0
    %6031 = vmatpush1.msra.mxu0 0.0
    %6032 = vmatprep.subr.mxu0 0.0
    %6033 = vmatpush1.msra.mxu0 0.0
    %6034 = vmatprep.subr.mxu0 0.0
    %6035 = vmatpush1.msra.mxu0 0.0
    %6036 = vmatprep.subr.mxu0 0.0
    %6037 = vmatpush1.msra.mxu0 0.0
    %6038 = vmatprep.subr.mxu0 0.0
    %6039 = vmatpush1.msra.mxu0 0.0
    %6040 = vmatprep.subr.mxu0 0.0
    %6041 = vmatpush1.msra.mxu0 0.0
    %6042 = vmatprep.subr.mxu0 0.0
    %6043 = vmatpush1.msra.mxu0 0.0
    %6044 = vmatprep.subr.mxu0 0.0
    %6045 = vmatpush1.msra.mxu0 0.0
    %6046 = vmatprep.subr.mxu0 0.0
    %6047 = vmatpush1.msra.mxu0 0.0
    %6048 = vmatprep.subr.mxu0 0.0
    %6049 = vmatpush1.msra.mxu0 0.0
    %6050 = vmatprep.subr.mxu0 0.0
    %6051 = vmatpush1.msra.mxu0 0.0
    %6052 = vmatprep.subr.mxu0 0.0
    %6053 = vmatpush1.msra.mxu0 0.0
    %6054 = vmatprep.subr.mxu0 0.0
    %6055 = vmatpush1.msra.mxu0 0.0
    %6056 = vmatprep.subr.mxu0 0.0
    %6057 = vmatpush1.msra.mxu0 0.0
    %6058 = vmatprep.subr.mxu0 0.0
    %6059 = vmatpush1.msra.mxu0 0.0
    %6060 = vmatprep.subr.mxu0 0.0
    %6061 = vmatpush1.msra.mxu0 0.0
    %6062 = vmatprep.subr.mxu0 0.0
    %6063 = vmatpush1.msra.mxu0 0.0
    %6064 = vmatprep.subr.mxu0 0.0
    %6065 = vmatpush1.msra.mxu0 0.0
    %6066 = vmatprep.subr.mxu0 0.0
    %6067 = vmatpush1.msra.mxu0 0.0
    %6068 = vmatprep.subr.mxu0 0.0
    %6069 = vmatpush1.msra.mxu0 0.0
    %6070 = vmatprep.subr.mxu0 0.0
    %6071 = vmatpush1.msra.mxu0 0.0
    %6072 = vmatprep.subr.mxu0 0.0
    %6073 = vmatpush1.msra.mxu0 0.0
    %6074 = vmatprep.subr.mxu0 0.0
    %6075 = vmatpush1.msra.mxu0 0.0
    %6076 = vmatprep.subr.mxu0 0.0
    %6077 = vmatpush1.msra.mxu0 0.0
    %6078 = vmatprep.mubr.f32.mxu0 0.0
    %6079 = vmatmul.mubr.f32.gmra.mrb[0].mxu0 %v5941
    %v6080 = vpop.f32.mrb[0].mxu0
    %v6081 = vadd.f32 0.0, %v6080
    %v6082 = vpop.f32.mrb[0].mxu0
    %v6083 = vadd.f32 0.0, %v6082
    %6084 = vdwg.mxu0
    %6085 = vmatprep.subr.mxu0 %v5929
    %6086 = vmatpush1.msra.mxu0 %v5928
    %6087 = vmatprep.subr.mxu0 0.0
    %6088 = vmatpush1.msra.mxu0 0.0
    %6089 = vmatprep.subr.mxu0 0.0
    %6090 = vmatpush1.msra.mxu0 0.0
    %6091 = vmatprep.subr.mxu0 0.0
    %6092 = vmatpush1.msra.mxu0 0.0
    %6093 = vmatprep.subr.mxu0 0.0
    %6094 = vmatpush1.msra.mxu0 0.0
    %6095 = vmatprep.subr.mxu0 0.0
    %6096 = vmatpush1.msra.mxu0 0.0
    %6097 = vmatprep.subr.mxu0 0.0
    %6098 = vmatpush1.msra.mxu0 0.0
    %6099 = vmatprep.subr.mxu0 0.0
    %6100 = vmatpush1.msra.mxu0 0.0
    %6101 = vmatprep.subr.mxu0 0.0
    %6102 = vmatpush1.msra.mxu0 0.0
    %6103 = vmatprep.subr.mxu0 0.0
    %6104 = vmatpush1.msra.mxu0 0.0
    %6105 = vmatprep.subr.mxu0 0.0
    %6106 = vmatpush1.msra.mxu0 0.0
    %6107 = vmatprep.subr.mxu0 0.0
    %6108 = vmatpush1.msra.mxu0 0.0
    %6109 = vmatprep.subr.mxu0 0.0
    %6110 = vmatpush1.msra.mxu0 0.0
    %6111 = vmatprep.subr.mxu0 0.0
    %6112 = vmatpush1.msra.mxu0 0.0
    %6113 = vmatprep.subr.mxu0 0.0
    %6114 = vmatpush1.msra.mxu0 0.0
    %6115 = vmatprep.subr.mxu0 0.0
    %6116 = vmatpush1.msra.mxu0 0.0
    %6117 = vmatprep.subr.mxu0 0.0
    %6118 = vmatpush1.msra.mxu0 0.0
    %6119 = vmatprep.subr.mxu0 0.0
    %6120 = vmatpush1.msra.mxu0 0.0
    %6121 = vmatprep.subr.mxu0 0.0
    %6122 = vmatpush1.msra.mxu0 0.0
    %6123 = vmatprep.subr.mxu0 0.0
    %6124 = vmatpush1.msra.mxu0 0.0
    %6125 = vmatprep.subr.mxu0 0.0
    %6126 = vmatpush1.msra.mxu0 0.0
    %6127 = vmatprep.subr.mxu0 0.0
    %6128 = vmatpush1.msra.mxu0 0.0
    %6129 = vmatprep.subr.mxu0 0.0
    %6130 = vmatpush1.msra.mxu0 0.0
    %6131 = vmatprep.subr.mxu0 0.0
    %6132 = vmatpush1.msra.mxu0 0.0
    %6133 = vmatprep.subr.mxu0 0.0
    %6134 = vmatpush1.msra.mxu0 0.0
    %6135 = vmatprep.subr.mxu0 0.0
    %6136 = vmatpush1.msra.mxu0 0.0
    %6137 = vmatprep.subr.mxu0 0.0
    %6138 = vmatpush1.msra.mxu0 0.0
    %6139 = vmatprep.subr.mxu0 0.0
    %6140 = vmatpush1.msra.mxu0 0.0
    %6141 = vmatprep.subr.mxu0 0.0
    %6142 = vmatpush1.msra.mxu0 0.0
    %6143 = vmatprep.subr.mxu0 0.0
    %6144 = vmatpush1.msra.mxu0 0.0
    %6145 = vmatprep.subr.mxu0 0.0
    %6146 = vmatpush1.msra.mxu0 0.0
    %6147 = vmatprep.subr.mxu0 0.0
    %6148 = vmatpush1.msra.mxu0 0.0
    %6149 = vmatprep.mubr.f32.mxu0 0.0
    %6150 = vmatmul.mubr.f32.gmra.mrb[0].mxu0 %v5941
    %v6151 = vpop.f32.mrb[0].mxu0
    %v6152 = vadd.f32 0.0, %v6151
    %v6153 = vpop.f32.mrb[0].mxu0
    %v6154 = vadd.f32 0.0, %v6153
    %6155 = vdwg.mxu0
    %6156 = vmatprep.subr.mxu0 %v5931
    %6157 = vmatpush1.msra.mxu0 %v5930
    %6158 = vmatprep.subr.mxu0 0.0
    %6159 = vmatpush1.msra.mxu0 0.0
    %6160 = vmatprep.subr.mxu0 0.0
    %6161 = vmatpush1.msra.mxu0 0.0
    %6162 = vmatprep.subr.mxu0 0.0
    %6163 = vmatpush1.msra.mxu0 0.0
    %6164 = vmatprep.subr.mxu0 0.0
    %6165 = vmatpush1.msra.mxu0 0.0
    %6166 = vmatprep.subr.mxu0 0.0
    %6167 = vmatpush1.msra.mxu0 0.0
    %6168 = vmatprep.subr.mxu0 0.0
    %6169 = vmatpush1.msra.mxu0 0.0
    %6170 = vmatprep.subr.mxu0 0.0
    %6171 = vmatpush1.msra.mxu0 0.0
    %6172 = vmatprep.subr.mxu0 0.0
    %6173 = vmatpush1.msra.mxu0 0.0
    %6174 = vmatprep.subr.mxu0 0.0
    %6175 = vmatpush1.msra.mxu0 0.0
    %6176 = vmatprep.subr.mxu0 0.0
    %6177 = vmatpush1.msra.mxu0 0.0
    %6178 = vmatprep.subr.mxu0 0.0
    %6179 = vmatpush1.msra.mxu0 0.0
    %6180 = vmatprep.subr.mxu0 0.0
    %6181 = vmatpush1.msra.mxu0 0.0
    %6182 = vmatprep.subr.mxu0 0.0
    %6183 = vmatpush1.msra.mxu0 0.0
    %6184 = vmatprep.subr.mxu0 0.0
    %6185 = vmatpush1.msra.mxu0 0.0
    %6186 = vmatprep.subr.mxu0 0.0
    %6187 = vmatpush1.msra.mxu0 0.0
    %6188 = vmatprep.subr.mxu0 0.0
    %6189 = vmatpush1.msra.mxu0 0.0
    %6190 = vmatprep.subr.mxu0 0.0
    %6191 = vmatpush1.msra.mxu0 0.0
    %6192 = vmatprep.subr.mxu0 0.0
    %6193 = vmatpush1.msra.mxu0 0.0
    %6194 = vmatprep.subr.mxu0 0.0
    %6195 = vmatpush1.msra.mxu0 0.0
    %6196 = vmatprep.subr.mxu0 0.0
    %6197 = vmatpush1.msra.mxu0 0.0
    %6198 = vmatprep.subr.mxu0 0.0
    %6199 = vmatpush1.msra.mxu0 0.0
    %6200 = vmatprep.subr.mxu0 0.0
    %6201 = vmatpush1.msra.mxu0 0.0
    %6202 = vmatprep.subr.mxu0 0.0
    %6203 = vmatpush1.msra.mxu0 0.0
    %6204 = vmatprep.subr.mxu0 0.0
    %6205 = vmatpush1.msra.mxu0 0.0
    %6206 = vmatprep.subr.mxu0 0.0
    %6207 = vmatpush1.msra.mxu0 0.0
    %6208 = vmatprep.subr.mxu0 0.0
    %6209 = vmatpush1.msra.mxu0 0.0
    %6210 = vmatprep.subr.mxu0 0.0
    %6211 = vmatpush1.msra.mxu0 0.0
    %6212 = vmatprep.subr.mxu0 0.0
    %6213 = vmatpush1.msra.mxu0 0.0
    %6214 = vmatprep.subr.mxu0 0.0
    %6215 = vmatpush1.msra.mxu0 0.0
    %6216 = vmatprep.subr.mxu0 0.0
    %6217 = vmatpush1.msra.mxu0 0.0
    %6218 = vmatprep.subr.mxu0 0.0
    %6219 = vmatpush1.msra.mxu0 0.0
    %6220 = vmatprep.mubr.f32.mxu0 0.0
    %6221 = vmatmul.mubr.f32.gmra.mrb[0].mxu0 %v5941
    %v6222 = vpop.f32.mrb[0].mxu0
    %v6223 = vadd.f32 0.0, %v6222
    %v6224 = vpop.f32.mrb[0].mxu0
    %v6225 = vadd.f32 0.0, %v6224
    %6226 = vdwg.mxu0
    %v6227 = vadd.f32 %v5896, %v6010
    %v6228 = vadd.f32 %v5897, %v6012
    %v6229 = vadd.f32 %v5898, %v6081
    %v6230 = vadd.f32 %v5899, %v6083
    %v6231 = vadd.f32 %v5900, %v6152
    %v6232 = vadd.f32 %v5901, %v6154
    %v6233 = vadd.f32 %v5902, %v6223
    %v6234 = vadd.f32 %v5903, %v6225
    %s6235 = scalar_lea.vmem %s3, 56
    %v6236 = vld [vmem:[%s6235] sm:$0xff]
    %6237 = vrot.lane.b32.xlu0 %v4895, 79
    %v6238 = vpop.permute.xlu0 %6237
    %6239 = vrot.lane.b32.xlu0 %v4896, 79
    %v6240 = vpop.permute.xlu0 %6239
    %6241 = vrot.lane.b32.xlu0 %v4897, 79
    %v6242 = vpop.permute.xlu0 %6241
    %6243 = vrot.lane.b32.xlu0 %v4898, 79
    %v6244 = vpop.permute.xlu0 %6243
    %6245 = vrot.lane.b32.xlu0 %v4899, 79
    %v6246 = vpop.permute.xlu0 %6245
    %6247 = vrot.lane.b32.xlu0 %v4900, 79
    %v6248 = vpop.permute.xlu0 %6247
    %6249 = vrot.lane.b32.xlu0 %v4901, 79
    %v6250 = vpop.permute.xlu0 %6249
    %6251 = vrot.lane.b32.xlu0 %v4902, 79
    %v6252 = vpop.permute.xlu0 %6251
    %6253 = vrot.lane.b32.xlu0 %v4903, 79
    %v6254 = vpop.permute.xlu0 %6253
    %v6255 = vsel %vm2832, %v6238, %v6240
    %v6256 = vsel %vm2832, %v6240, %v6242
    %v6257 = vsel %vm2832, %v6242, %v6244
    %v6258 = vsel %vm2832, %v6244, %v6246
    %v6259 = vsel %vm2832, %v6246, %v6248
    %v6260 = vsel %vm2832, %v6248, %v6250
    %v6261 = vsel %vm2832, %v6250, %v6252
    %v6262 = vsel %vm2832, %v6252, %v6254
    %v6272 = vsel %vm562, %v6236, 0
    %6274 = vmatprep.subr.mxu0 %v6256
    %6275 = vmatpush1.msra.mxu0 %v6255
    %6276 = vmatprep.subr.mxu0 0.0
    %6277 = vmatpush1.msra.mxu0 0.0
    %6278 = vmatprep.subr.mxu0 0.0
    %6279 = vmatpush1.msra.mxu0 0.0
    %6280 = vmatprep.subr.mxu0 0.0
    %6281 = vmatpush1.msra.mxu0 0.0
    %6282 = vmatprep.subr.mxu0 0.0
    %6283 = vmatpush1.msra.mxu0 0.0
    %6284 = vmatprep.subr.mxu0 0.0
    %6285 = vmatpush1.msra.mxu0 0.0
    %6286 = vmatprep.subr.mxu0 0.0
    %6287 = vmatpush1.msra.mxu0 0.0
    %6288 = vmatprep.subr.mxu0 0.0
    %6289 = vmatpush1.msra.mxu0 0.0
    %6290 = vmatprep.subr.mxu0 0.0
    %6291 = vmatpush1.msra.mxu0 0.0
    %6292 = vmatprep.subr.mxu0 0.0
    %6293 = vmatpush1.msra.mxu0 0.0
    %6294 = vmatprep.subr.mxu0 0.0
    %6295 = vmatpush1.msra.mxu0 0.0
    %6296 = vmatprep.subr.mxu0 0.0
    %6297 = vmatpush1.msra.mxu0 0.0
    %6298 = vmatprep.subr.mxu0 0.0
    %6299 = vmatpush1.msra.mxu0 0.0
    %6300 = vmatprep.subr.mxu0 0.0
    %6301 = vmatpush1.msra.mxu0 0.0
    %6302 = vmatprep.subr.mxu0 0.0
    %6303 = vmatpush1.msra.mxu0 0.0
    %6304 = vmatprep.subr.mxu0 0.0
    %6305 = vmatpush1.msra.mxu0 0.0
    %6306 = vmatprep.subr.mxu0 0.0
    %6307 = vmatpush1.msra.mxu0 0.0
    %6308 = vmatprep.subr.mxu0 0.0
    %6309 = vmatpush1.msra.mxu0 0.0
    %6310 = vmatprep.subr.mxu0 0.0
    %6311 = vmatpush1.msra.mxu0 0.0
    %6312 = vmatprep.subr.mxu0 0.0
    %6313 = vmatpush1.msra.mxu0 0.0
    %6314 = vmatprep.subr.mxu0 0.0
    %6315 = vmatpush1.msra.mxu0 0.0
    %6316 = vmatprep.subr.mxu0 0.0
    %6317 = vmatpush1.msra.mxu0 0.0
    %6318 = vmatprep.subr.mxu0 0.0
    %6319 = vmatpush1.msra.mxu0 0.0
    %6320 = vmatprep.subr.mxu0 0.0
    %6321 = vmatpush1.msra.mxu0 0.0
    %6322 = vmatprep.subr.mxu0 0.0
    %6323 = vmatpush1.msra.mxu0 0.0
    %6324 = vmatprep.subr.mxu0 0.0
    %6325 = vmatpush1.msra.mxu0 0.0
    %6326 = vmatprep.subr.mxu0 0.0
    %6327 = vmatpush1.msra.mxu0 0.0
    %6328 = vmatprep.subr.mxu0 0.0
    %6329 = vmatpush1.msra.mxu0 0.0
    %6330 = vmatprep.subr.mxu0 0.0
    %6331 = vmatpush1.msra.mxu0 0.0
    %6332 = vmatprep.subr.mxu0 0.0
    %6333 = vmatpush1.msra.mxu0 0.0
    %6334 = vmatprep.subr.mxu0 0.0
    %6335 = vmatpush1.msra.mxu0 0.0
    %6336 = vmatprep.subr.mxu0 0.0
    %6337 = vmatpush1.msra.mxu0 0.0
    %6338 = vmatprep.mubr.f32.mxu0 0.0
    %6339 = vmatmul.mubr.f32.gmra.mrb[0].mxu0 %v6272
    %v6340 = vpop.f32.mrb[0].mxu0
    %v6341 = vadd.f32 0.0, %v6340
    %v6342 = vpop.f32.mrb[0].mxu0
    %v6343 = vadd.f32 0.0, %v6342
    %6344 = vdwg.mxu0
    %6345 = vmatprep.subr.mxu0 %v6258
    %6346 = vmatpush1.msra.mxu0 %v6257
    %6347 = vmatprep.subr.mxu0 0.0
    %6348 = vmatpush1.msra.mxu0 0.0
    %6349 = vmatprep.subr.mxu0 0.0
    %6350 = vmatpush1.msra.mxu0 0.0
    %6351 = vmatprep.subr.mxu0 0.0
    %6352 = vmatpush1.msra.mxu0 0.0
    %6353 = vmatprep.subr.mxu0 0.0
    %6354 = vmatpush1.msra.mxu0 0.0
    %6355 = vmatprep.subr.mxu0 0.0
    %6356 = vmatpush1.msra.mxu0 0.0
    %6357 = vmatprep.subr.mxu0 0.0
    %6358 = vmatpush1.msra.mxu0 0.0
    %6359 = vmatprep.subr.mxu0 0.0
    %6360 = vmatpush1.msra.mxu0 0.0
    %6361 = vmatprep.subr.mxu0 0.0
    %6362 = vmatpush1.msra.mxu0 0.0
    %6363 = vmatprep.subr.mxu0 0.0
    %6364 = vmatpush1.msra.mxu0 0.0
    %6365 = vmatprep.subr.mxu0 0.0
    %6366 = vmatpush1.msra.mxu0 0.0
    %6367 = vmatprep.subr.mxu0 0.0
    %6368 = vmatpush1.msra.mxu0 0.0
    %6369 = vmatprep.subr.mxu0 0.0
    %6370 = vmatpush1.msra.mxu0 0.0
    %6371 = vmatprep.subr.mxu0 0.0
    %6372 = vmatpush1.msra.mxu0 0.0
    %6373 = vmatprep.subr.mxu0 0.0
    %6374 = vmatpush1.msra.mxu0 0.0
    %6375 = vmatprep.subr.mxu0 0.0
    %6376 = vmatpush1.msra.mxu0 0.0
    %6377 = vmatprep.subr.mxu0 0.0
    %6378 = vmatpush1.msra.mxu0 0.0
    %6379 = vmatprep.subr.mxu0 0.0
    %6380 = vmatpush1.msra.mxu0 0.0
    %6381 = vmatprep.subr.mxu0 0.0
    %6382 = vmatpush1.msra.mxu0 0.0
    %6383 = vmatprep.subr.mxu0 0.0
    %6384 = vmatpush1.msra.mxu0 0.0
    %6385 = vmatprep.subr.mxu0 0.0
    %6386 = vmatpush1.msra.mxu0 0.0
    %6387 = vmatprep.subr.mxu0 0.0
    %6388 = vmatpush1.msra.mxu0 0.0
    %6389 = vmatprep.subr.mxu0 0.0
    %6390 = vmatpush1.msra.mxu0 0.0
    %6391 = vmatprep.subr.mxu0 0.0
    %6392 = vmatpush1.msra.mxu0 0.0
    %6393 = vmatprep.subr.mxu0 0.0
    %6394 = vmatpush1.msra.mxu0 0.0
    %6395 = vmatprep.subr.mxu0 0.0
    %6396 = vmatpush1.msra.mxu0 0.0
    %6397 = vmatprep.subr.mxu0 0.0
    %6398 = vmatpush1.msra.mxu0 0.0
    %6399 = vmatprep.subr.mxu0 0.0
    %6400 = vmatpush1.msra.mxu0 0.0
    %6401 = vmatprep.subr.mxu0 0.0
    %6402 = vmatpush1.msra.mxu0 0.0
    %6403 = vmatprep.subr.mxu0 0.0
    %6404 = vmatpush1.msra.mxu0 0.0
    %6405 = vmatprep.subr.mxu0 0.0
    %6406 = vmatpush1.msra.mxu0 0.0
    %6407 = vmatprep.subr.mxu0 0.0
    %6408 = vmatpush1.msra.mxu0 0.0
    %6409 = vmatprep.mubr.f32.mxu0 0.0
    %6410 = vmatmul.mubr.f32.gmra.mrb[0].mxu0 %v6272
    %v6411 = vpop.f32.mrb[0].mxu0
    %v6412 = vadd.f32 0.0, %v6411
    %v6413 = vpop.f32.mrb[0].mxu0
    %v6414 = vadd.f32 0.0, %v6413
    %6415 = vdwg.mxu0
    %6416 = vmatprep.subr.mxu0 %v6260
    %6417 = vmatpush1.msra.mxu0 %v6259
    %6418 = vmatprep.subr.mxu0 0.0
    %6419 = vmatpush1.msra.mxu0 0.0
    %6420 = vmatprep.subr.mxu0 0.0
    %6421 = vmatpush1.msra.mxu0 0.0
    %6422 = vmatprep.subr.mxu0 0.0
    %6423 = vmatpush1.msra.mxu0 0.0
    %6424 = vmatprep.subr.mxu0 0.0
    %6425 = vmatpush1.msra.mxu0 0.0
    %6426 = vmatprep.subr.mxu0 0.0
    %6427 = vmatpush1.msra.mxu0 0.0
    %6428 = vmatprep.subr.mxu0 0.0
    %6429 = vmatpush1.msra.mxu0 0.0
    %6430 = vmatprep.subr.mxu0 0.0
    %6431 = vmatpush1.msra.mxu0 0.0
    %6432 = vmatprep.subr.mxu0 0.0
    %6433 = vmatpush1.msra.mxu0 0.0
    %6434 = vmatprep.subr.mxu0 0.0
    %6435 = vmatpush1.msra.mxu0 0.0
    %6436 = vmatprep.subr.mxu0 0.0
    %6437 = vmatpush1.msra.mxu0 0.0
    %6438 = vmatprep.subr.mxu0 0.0
    %6439 = vmatpush1.msra.mxu0 0.0
    %6440 = vmatprep.subr.mxu0 0.0
    %6441 = vmatpush1.msra.mxu0 0.0
    %6442 = vmatprep.subr.mxu0 0.0
    %6443 = vmatpush1.msra.mxu0 0.0
    %6444 = vmatprep.subr.mxu0 0.0
    %6445 = vmatpush1.msra.mxu0 0.0
    %6446 = vmatprep.subr.mxu0 0.0
    %6447 = vmatpush1.msra.mxu0 0.0
    %6448 = vmatprep.subr.mxu0 0.0
    %6449 = vmatpush1.msra.mxu0 0.0
    %6450 = vmatprep.subr.mxu0 0.0
    %6451 = vmatpush1.msra.mxu0 0.0
    %6452 = vmatprep.subr.mxu0 0.0
    %6453 = vmatpush1.msra.mxu0 0.0
    %6454 = vmatprep.subr.mxu0 0.0
    %6455 = vmatpush1.msra.mxu0 0.0
    %6456 = vmatprep.subr.mxu0 0.0
    %6457 = vmatpush1.msra.mxu0 0.0
    %6458 = vmatprep.subr.mxu0 0.0
    %6459 = vmatpush1.msra.mxu0 0.0
    %6460 = vmatprep.subr.mxu0 0.0
    %6461 = vmatpush1.msra.mxu0 0.0
    %6462 = vmatprep.subr.mxu0 0.0
    %6463 = vmatpush1.msra.mxu0 0.0
    %6464 = vmatprep.subr.mxu0 0.0
    %6465 = vmatpush1.msra.mxu0 0.0
    %6466 = vmatprep.subr.mxu0 0.0
    %6467 = vmatpush1.msra.mxu0 0.0
    %6468 = vmatprep.subr.mxu0 0.0
    %6469 = vmatpush1.msra.mxu0 0.0
    %6470 = vmatprep.subr.mxu0 0.0
    %6471 = vmatpush1.msra.mxu0 0.0
    %6472 = vmatprep.subr.mxu0 0.0
    %6473 = vmatpush1.msra.mxu0 0.0
    %6474 = vmatprep.subr.mxu0 0.0
    %6475 = vmatpush1.msra.mxu0 0.0
    %6476 = vmatprep.subr.mxu0 0.0
    %6477 = vmatpush1.msra.mxu0 0.0
    %6478 = vmatprep.subr.mxu0 0.0
    %6479 = vmatpush1.msra.mxu0 0.0
    %6480 = vmatprep.mubr.f32.mxu0 0.0
    %6481 = vmatmul.mubr.f32.gmra.mrb[0].mxu0 %v6272
    %v6482 = vpop.f32.mrb[0].mxu0
    %v6483 = vadd.f32 0.0, %v6482
    %v6484 = vpop.f32.mrb[0].mxu0
    %v6485 = vadd.f32 0.0, %v6484
    %6486 = vdwg.mxu0
    %6487 = vmatprep.subr.mxu0 %v6262
    %6488 = vmatpush1.msra.mxu0 %v6261
    %6489 = vmatprep.subr.mxu0 0.0
    %6490 = vmatpush1.msra.mxu0 0.0
    %6491 = vmatprep.subr.mxu0 0.0
    %6492 = vmatpush1.msra.mxu0 0.0
    %6493 = vmatprep.subr.mxu0 0.0
    %6494 = vmatpush1.msra.mxu0 0.0
    %6495 = vmatprep.subr.mxu0 0.0
    %6496 = vmatpush1.msra.mxu0 0.0
    %6497 = vmatprep.subr.mxu0 0.0
    %6498 = vmatpush1.msra.mxu0 0.0
    %6499 = vmatprep.subr.mxu0 0.0
    %6500 = vmatpush1.msra.mxu0 0.0
    %6501 = vmatprep.subr.mxu0 0.0
    %6502 = vmatpush1.msra.mxu0 0.0
    %6503 = vmatprep.subr.mxu0 0.0
    %6504 = vmatpush1.msra.mxu0 0.0
    %6505 = vmatprep.subr.mxu0 0.0
    %6506 = vmatpush1.msra.mxu0 0.0
    %6507 = vmatprep.subr.mxu0 0.0
    %6508 = vmatpush1.msra.mxu0 0.0
    %6509 = vmatprep.subr.mxu0 0.0
    %6510 = vmatpush1.msra.mxu0 0.0
    %6511 = vmatprep.subr.mxu0 0.0
    %6512 = vmatpush1.msra.mxu0 0.0
    %6513 = vmatprep.subr.mxu0 0.0
    %6514 = vmatpush1.msra.mxu0 0.0
    %6515 = vmatprep.subr.mxu0 0.0
    %6516 = vmatpush1.msra.mxu0 0.0
    %6517 = vmatprep.subr.mxu0 0.0
    %6518 = vmatpush1.msra.mxu0 0.0
    %6519 = vmatprep.subr.mxu0 0.0
    %6520 = vmatpush1.msra.mxu0 0.0
    %6521 = vmatprep.subr.mxu0 0.0
    %6522 = vmatpush1.msra.mxu0 0.0
    %6523 = vmatprep.subr.mxu0 0.0
    %6524 = vmatpush1.msra.mxu0 0.0
    %6525 = vmatprep.subr.mxu0 0.0
    %6526 = vmatpush1.msra.mxu0 0.0
    %6527 = vmatprep.subr.mxu0 0.0
    %6528 = vmatpush1.msra.mxu0 0.0
    %6529 = vmatprep.subr.mxu0 0.0
    %6530 = vmatpush1.msra.mxu0 0.0
    %6531 = vmatprep.subr.mxu0 0.0
    %6532 = vmatpush1.msra.mxu0 0.0
    %6533 = vmatprep.subr.mxu0 0.0
    %6534 = vmatpush1.msra.mxu0 0.0
    %6535 = vmatprep.subr.mxu0 0.0
    %6536 = vmatpush1.msra.mxu0 0.0
    %6537 = vmatprep.subr.mxu0 0.0
    %6538 = vmatpush1.msra.mxu0 0.0
    %6539 = vmatprep.subr.mxu0 0.0
    %6540 = vmatpush1.msra.mxu0 0.0
    %6541 = vmatprep.subr.mxu0 0.0
    %6542 = vmatpush1.msra.mxu0 0.0
    %6543 = vmatprep.subr.mxu0 0.0
    %6544 = vmatpush1.msra.mxu0 0.0
    %6545 = vmatprep.subr.mxu0 0.0
    %6546 = vmatpush1.msra.mxu0 0.0
    %6547 = vmatprep.subr.mxu0 0.0
    %6548 = vmatpush1.msra.mxu0 0.0
    %6549 = vmatprep.subr.mxu0 0.0
    %6550 = vmatpush1.msra.mxu0 0.0
    %6551 = vmatprep.mubr.f32.mxu0 0.0
    %6552 = vmatmul.mubr.f32.gmra.mrb[0].mxu0 %v6272
    %v6553 = vpop.f32.mrb[0].mxu0
    %v6554 = vadd.f32 0.0, %v6553
    %v6555 = vpop.f32.mrb[0].mxu0
    %v6556 = vadd.f32 0.0, %v6555
    %6557 = vdwg.mxu0
    %v6558 = vadd.f32 %v6227, %v6341
    %v6559 = vadd.f32 %v6228, %v6343
    %v6560 = vadd.f32 %v6229, %v6412
    %v6561 = vadd.f32 %v6230, %v6414
    %v6562 = vadd.f32 %v6231, %v6483
    %v6563 = vadd.f32 %v6232, %v6485
    %v6564 = vadd.f32 %v6233, %v6554
    %v6565 = vadd.f32 %v6234, %v6556
    %s6566 = scalar_lea.vmem %s3, 64
    %v6567 = vld [vmem:[%s6566] sm:$0xff]
    %6568 = vrot.lane.b32.xlu0 %v4895, 78
    %v6569 = vpop.permute.xlu0 %6568
    %6570 = vrot.lane.b32.xlu0 %v4896, 78
    %v6571 = vpop.permute.xlu0 %6570
    %6572 = vrot.lane.b32.xlu0 %v4897, 78
    %v6573 = vpop.permute.xlu0 %6572
    %6574 = vrot.lane.b32.xlu0 %v4898, 78
    %v6575 = vpop.permute.xlu0 %6574
    %6576 = vrot.lane.b32.xlu0 %v4899, 78
    %v6577 = vpop.permute.xlu0 %6576
    %6578 = vrot.lane.b32.xlu0 %v4900, 78
    %v6579 = vpop.permute.xlu0 %6578
    %6580 = vrot.lane.b32.xlu0 %v4901, 78
    %v6581 = vpop.permute.xlu0 %6580
    %6582 = vrot.lane.b32.xlu0 %v4902, 78
    %v6583 = vpop.permute.xlu0 %6582
    %6584 = vrot.lane.b32.xlu0 %v4903, 78
    %v6585 = vpop.permute.xlu0 %6584
    %v6586 = vsel %vm3164, %v6569, %v6571
    %v6587 = vsel %vm3164, %v6571, %v6573
    %v6588 = vsel %vm3164, %v6573, %v6575
    %v6589 = vsel %vm3164, %v6575, %v6577
    %v6590 = vsel %vm3164, %v6577, %v6579
    %v6591 = vsel %vm3164, %v6579, %v6581
    %v6592 = vsel %vm3164, %v6581, %v6583
    %v6593 = vsel %vm3164, %v6583, %v6585
    %v6603 = vsel %vm562, %v6567, 0
    %6605 = vmatprep.subr.mxu0 %v6587
    %6606 = vmatpush1.msra.mxu0 %v6586
    %6607 = vmatprep.subr.mxu0 0.0
    %6608 = vmatpush1.msra.mxu0 0.0
    %6609 = vmatprep.subr.mxu0 0.0
    %6610 = vmatpush1.msra.mxu0 0.0
    %6611 = vmatprep.subr.mxu0 0.0
    %6612 = vmatpush1.msra.mxu0 0.0
    %6613 = vmatprep.subr.mxu0 0.0
    %6614 = vmatpush1.msra.mxu0 0.0
    %6615 = vmatprep.subr.mxu0 0.0
    %6616 = vmatpush1.msra.mxu0 0.0
    %6617 = vmatprep.subr.mxu0 0.0
    %6618 = vmatpush1.msra.mxu0 0.0
    %6619 = vmatprep.subr.mxu0 0.0
    %6620 = vmatpush1.msra.mxu0 0.0
    %6621 = vmatprep.subr.mxu0 0.0
    %6622 = vmatpush1.msra.mxu0 0.0
    %6623 = vmatprep.subr.mxu0 0.0
    %6624 = vmatpush1.msra.mxu0 0.0
    %6625 = vmatprep.subr.mxu0 0.0
    %6626 = vmatpush1.msra.mxu0 0.0
    %6627 = vmatprep.subr.mxu0 0.0
    %6628 = vmatpush1.msra.mxu0 0.0
    %6629 = vmatprep.subr.mxu0 0.0
    %6630 = vmatpush1.msra.mxu0 0.0
    %6631 = vmatprep.subr.mxu0 0.0
    %6632 = vmatpush1.msra.mxu0 0.0
    %6633 = vmatprep.subr.mxu0 0.0
    %6634 = vmatpush1.msra.mxu0 0.0
    %6635 = vmatprep.subr.mxu0 0.0
    %6636 = vmatpush1.msra.mxu0 0.0
    %6637 = vmatprep.subr.mxu0 0.0
    %6638 = vmatpush1.msra.mxu0 0.0
    %6639 = vmatprep.subr.mxu0 0.0
    %6640 = vmatpush1.msra.mxu0 0.0
    %6641 = vmatprep.subr.mxu0 0.0
    %6642 = vmatpush1.msra.mxu0 0.0
    %6643 = vmatprep.subr.mxu0 0.0
    %6644 = vmatpush1.msra.mxu0 0.0
    %6645 = vmatprep.subr.mxu0 0.0
    %6646 = vmatpush1.msra.mxu0 0.0
    %6647 = vmatprep.subr.mxu0 0.0
    %6648 = vmatpush1.msra.mxu0 0.0
    %6649 = vmatprep.subr.mxu0 0.0
    %6650 = vmatpush1.msra.mxu0 0.0
    %6651 = vmatprep.subr.mxu0 0.0
    %6652 = vmatpush1.msra.mxu0 0.0
    %6653 = vmatprep.subr.mxu0 0.0
    %6654 = vmatpush1.msra.mxu0 0.0
    %6655 = vmatprep.subr.mxu0 0.0
    %6656 = vmatpush1.msra.mxu0 0.0
    %6657 = vmatprep.subr.mxu0 0.0
    %6658 = vmatpush1.msra.mxu0 0.0
    %6659 = vmatprep.subr.mxu0 0.0
    %6660 = vmatpush1.msra.mxu0 0.0
    %6661 = vmatprep.subr.mxu0 0.0
    %6662 = vmatpush1.msra.mxu0 0.0
    %6663 = vmatprep.subr.mxu0 0.0
    %6664 = vmatpush1.msra.mxu0 0.0
    %6665 = vmatprep.subr.mxu0 0.0
    %6666 = vmatpush1.msra.mxu0 0.0
    %6667 = vmatprep.subr.mxu0 0.0
    %6668 = vmatpush1.msra.mxu0 0.0
    %6669 = vmatprep.mubr.f32.mxu0 0.0
    %6670 = vmatmul.mubr.f32.gmra.mrb[0].mxu0 %v6603
    %v6671 = vpop.f32.mrb[0].mxu0
    %v6672 = vadd.f32 0.0, %v6671
    %v6673 = vpop.f32.mrb[0].mxu0
    %v6674 = vadd.f32 0.0, %v6673
    %6675 = vdwg.mxu0
    %6676 = vmatprep.subr.mxu0 %v6589
    %6677 = vmatpush1.msra.mxu0 %v6588
    %6678 = vmatprep.subr.mxu0 0.0
    %6679 = vmatpush1.msra.mxu0 0.0
    %6680 = vmatprep.subr.mxu0 0.0
    %6681 = vmatpush1.msra.mxu0 0.0
    %6682 = vmatprep.subr.mxu0 0.0
    %6683 = vmatpush1.msra.mxu0 0.0
    %6684 = vmatprep.subr.mxu0 0.0
    %6685 = vmatpush1.msra.mxu0 0.0
    %6686 = vmatprep.subr.mxu0 0.0
    %6687 = vmatpush1.msra.mxu0 0.0
    %6688 = vmatprep.subr.mxu0 0.0
    %6689 = vmatpush1.msra.mxu0 0.0
    %6690 = vmatprep.subr.mxu0 0.0
    %6691 = vmatpush1.msra.mxu0 0.0
    %6692 = vmatprep.subr.mxu0 0.0
    %6693 = vmatpush1.msra.mxu0 0.0
    %6694 = vmatprep.subr.mxu0 0.0
    %6695 = vmatpush1.msra.mxu0 0.0
    %6696 = vmatprep.subr.mxu0 0.0
    %6697 = vmatpush1.msra.mxu0 0.0
    %6698 = vmatprep.subr.mxu0 0.0
    %6699 = vmatpush1.msra.mxu0 0.0
    %6700 = vmatprep.subr.mxu0 0.0
    %6701 = vmatpush1.msra.mxu0 0.0
    %6702 = vmatprep.subr.mxu0 0.0
    %6703 = vmatpush1.msra.mxu0 0.0
    %6704 = vmatprep.subr.mxu0 0.0
    %6705 = vmatpush1.msra.mxu0 0.0
    %6706 = vmatprep.subr.mxu0 0.0
    %6707 = vmatpush1.msra.mxu0 0.0
    %6708 = vmatprep.subr.mxu0 0.0
    %6709 = vmatpush1.msra.mxu0 0.0
    %6710 = vmatprep.subr.mxu0 0.0
    %6711 = vmatpush1.msra.mxu0 0.0
    %6712 = vmatprep.subr.mxu0 0.0
    %6713 = vmatpush1.msra.mxu0 0.0
    %6714 = vmatprep.subr.mxu0 0.0
    %6715 = vmatpush1.msra.mxu0 0.0
    %6716 = vmatprep.subr.mxu0 0.0
    %6717 = vmatpush1.msra.mxu0 0.0
    %6718 = vmatprep.subr.mxu0 0.0
    %6719 = vmatpush1.msra.mxu0 0.0
    %6720 = vmatprep.subr.mxu0 0.0
    %6721 = vmatpush1.msra.mxu0 0.0
    %6722 = vmatprep.subr.mxu0 0.0
    %6723 = vmatpush1.msra.mxu0 0.0
    %6724 = vmatprep.subr.mxu0 0.0
    %6725 = vmatpush1.msra.mxu0 0.0
    %6726 = vmatprep.subr.mxu0 0.0
    %6727 = vmatpush1.msra.mxu0 0.0
    %6728 = vmatprep.subr.mxu0 0.0
    %6729 = vmatpush1.msra.mxu0 0.0
    %6730 = vmatprep.subr.mxu0 0.0
    %6731 = vmatpush1.msra.mxu0 0.0
    %6732 = vmatprep.subr.mxu0 0.0
    %6733 = vmatpush1.msra.mxu0 0.0
    %6734 = vmatprep.subr.mxu0 0.0
    %6735 = vmatpush1.msra.mxu0 0.0
    %6736 = vmatprep.subr.mxu0 0.0
    %6737 = vmatpush1.msra.mxu0 0.0
    %6738 = vmatprep.subr.mxu0 0.0
    %6739 = vmatpush1.msra.mxu0 0.0
    %6740 = vmatprep.mubr.f32.mxu0 0.0
    %6741 = vmatmul.mubr.f32.gmra.mrb[0].mxu0 %v6603
    %v6742 = vpop.f32.mrb[0].mxu0
    %v6743 = vadd.f32 0.0, %v6742
    %v6744 = vpop.f32.mrb[0].mxu0
    %v6745 = vadd.f32 0.0, %v6744
    %6746 = vdwg.mxu0
    %6747 = vmatprep.subr.mxu0 %v6591
    %6748 = vmatpush1.msra.mxu0 %v6590
    %6749 = vmatprep.subr.mxu0 0.0
    %6750 = vmatpush1.msra.mxu0 0.0
    %6751 = vmatprep.subr.mxu0 0.0
    %6752 = vmatpush1.msra.mxu0 0.0
    %6753 = vmatprep.subr.mxu0 0.0
    %6754 = vmatpush1.msra.mxu0 0.0
    %6755 = vmatprep.subr.mxu0 0.0
    %6756 = vmatpush1.msra.mxu0 0.0
    %6757 = vmatprep.subr.mxu0 0.0
    %6758 = vmatpush1.msra.mxu0 0.0
    %6759 = vmatprep.subr.mxu0 0.0
    %6760 = vmatpush1.msra.mxu0 0.0
    %6761 = vmatprep.subr.mxu0 0.0
    %6762 = vmatpush1.msra.mxu0 0.0
    %6763 = vmatprep.subr.mxu0 0.0
    %6764 = vmatpush1.msra.mxu0 0.0
    %6765 = vmatprep.subr.mxu0 0.0
    %6766 = vmatpush1.msra.mxu0 0.0
    %6767 = vmatprep.subr.mxu0 0.0
    %6768 = vmatpush1.msra.mxu0 0.0
    %6769 = vmatprep.subr.mxu0 0.0
    %6770 = vmatpush1.msra.mxu0 0.0
    %6771 = vmatprep.subr.mxu0 0.0
    %6772 = vmatpush1.msra.mxu0 0.0
    %6773 = vmatprep.subr.mxu0 0.0
    %6774 = vmatpush1.msra.mxu0 0.0
    %6775 = vmatprep.subr.mxu0 0.0
    %6776 = vmatpush1.msra.mxu0 0.0
    %6777 = vmatprep.subr.mxu0 0.0
    %6778 = vmatpush1.msra.mxu0 0.0
    %6779 = vmatprep.subr.mxu0 0.0
    %6780 = vmatpush1.msra.mxu0 0.0
    %6781 = vmatprep.subr.mxu0 0.0
    %6782 = vmatpush1.msra.mxu0 0.0
    %6783 = vmatprep.subr.mxu0 0.0
    %6784 = vmatpush1.msra.mxu0 0.0
    %6785 = vmatprep.subr.mxu0 0.0
    %6786 = vmatpush1.msra.mxu0 0.0
    %6787 = vmatprep.subr.mxu0 0.0
    %6788 = vmatpush1.msra.mxu0 0.0
    %6789 = vmatprep.subr.mxu0 0.0
    %6790 = vmatpush1.msra.mxu0 0.0
    %6791 = vmatprep.subr.mxu0 0.0
    %6792 = vmatpush1.msra.mxu0 0.0
    %6793 = vmatprep.subr.mxu0 0.0
    %6794 = vmatpush1.msra.mxu0 0.0
    %6795 = vmatprep.subr.mxu0 0.0
    %6796 = vmatpush1.msra.mxu0 0.0
    %6797 = vmatprep.subr.mxu0 0.0
    %6798 = vmatpush1.msra.mxu0 0.0
    %6799 = vmatprep.subr.mxu0 0.0
    %6800 = vmatpush1.msra.mxu0 0.0
    %6801 = vmatprep.subr.mxu0 0.0
    %6802 = vmatpush1.msra.mxu0 0.0
    %6803 = vmatprep.subr.mxu0 0.0
    %6804 = vmatpush1.msra.mxu0 0.0
    %6805 = vmatprep.subr.mxu0 0.0
    %6806 = vmatpush1.msra.mxu0 0.0
    %6807 = vmatprep.subr.mxu0 0.0
    %6808 = vmatpush1.msra.mxu0 0.0
    %6809 = vmatprep.subr.mxu0 0.0
    %6810 = vmatpush1.msra.mxu0 0.0
    %6811 = vmatprep.mubr.f32.mxu0 0.0
    %6812 = vmatmul.mubr.f32.gmra.mrb[0].mxu0 %v6603
    %v6813 = vpop.f32.mrb[0].mxu0
    %v6814 = vadd.f32 0.0, %v6813
    %v6815 = vpop.f32.mrb[0].mxu0
    %v6816 = vadd.f32 0.0, %v6815
    %6817 = vdwg.mxu0
    %6818 = vmatprep.subr.mxu0 %v6593
    %6819 = vmatpush1.msra.mxu0 %v6592
    %6820 = vmatprep.subr.mxu0 0.0
    %6821 = vmatpush1.msra.mxu0 0.0
    %6822 = vmatprep.subr.mxu0 0.0
    %6823 = vmatpush1.msra.mxu0 0.0
    %6824 = vmatprep.subr.mxu0 0.0
    %6825 = vmatpush1.msra.mxu0 0.0
    %6826 = vmatprep.subr.mxu0 0.0
    %6827 = vmatpush1.msra.mxu0 0.0
    %6828 = vmatprep.subr.mxu0 0.0
    %6829 = vmatpush1.msra.mxu0 0.0
    %6830 = vmatprep.subr.mxu0 0.0
    %6831 = vmatpush1.msra.mxu0 0.0
    %6832 = vmatprep.subr.mxu0 0.0
    %6833 = vmatpush1.msra.mxu0 0.0
    %6834 = vmatprep.subr.mxu0 0.0
    %6835 = vmatpush1.msra.mxu0 0.0
    %6836 = vmatprep.subr.mxu0 0.0
    %6837 = vmatpush1.msra.mxu0 0.0
    %6838 = vmatprep.subr.mxu0 0.0
    %6839 = vmatpush1.msra.mxu0 0.0
    %6840 = vmatprep.subr.mxu0 0.0
    %6841 = vmatpush1.msra.mxu0 0.0
    %6842 = vmatprep.subr.mxu0 0.0
    %6843 = vmatpush1.msra.mxu0 0.0
    %6844 = vmatprep.subr.mxu0 0.0
    %6845 = vmatpush1.msra.mxu0 0.0
    %6846 = vmatprep.subr.mxu0 0.0
    %6847 = vmatpush1.msra.mxu0 0.0
    %6848 = vmatprep.subr.mxu0 0.0
    %6849 = vmatpush1.msra.mxu0 0.0
    %6850 = vmatprep.subr.mxu0 0.0
    %6851 = vmatpush1.msra.mxu0 0.0
    %6852 = vmatprep.subr.mxu0 0.0
    %6853 = vmatpush1.msra.mxu0 0.0
    %6854 = vmatprep.subr.mxu0 0.0
    %6855 = vmatpush1.msra.mxu0 0.0
    %6856 = vmatprep.subr.mxu0 0.0
    %6857 = vmatpush1.msra.mxu0 0.0
    %6858 = vmatprep.subr.mxu0 0.0
    %6859 = vmatpush1.msra.mxu0 0.0
    %6860 = vmatprep.subr.mxu0 0.0
    %6861 = vmatpush1.msra.mxu0 0.0
    %6862 = vmatprep.subr.mxu0 0.0
    %6863 = vmatpush1.msra.mxu0 0.0
    %6864 = vmatprep.subr.mxu0 0.0
    %6865 = vmatpush1.msra.mxu0 0.0
    %6866 = vmatprep.subr.mxu0 0.0
    %6867 = vmatpush1.msra.mxu0 0.0
    %6868 = vmatprep.subr.mxu0 0.0
    %6869 = vmatpush1.msra.mxu0 0.0
    %6870 = vmatprep.subr.mxu0 0.0
    %6871 = vmatpush1.msra.mxu0 0.0
    %6872 = vmatprep.subr.mxu0 0.0
    %6873 = vmatpush1.msra.mxu0 0.0
    %6874 = vmatprep.subr.mxu0 0.0
    %6875 = vmatpush1.msra.mxu0 0.0
    %6876 = vmatprep.subr.mxu0 0.0
    %6877 = vmatpush1.msra.mxu0 0.0
    %6878 = vmatprep.subr.mxu0 0.0
    %6879 = vmatpush1.msra.mxu0 0.0
    %6880 = vmatprep.subr.mxu0 0.0
    %6881 = vmatpush1.msra.mxu0 0.0
    %6882 = vmatprep.mubr.f32.mxu0 0.0
    %6883 = vmatmul.mubr.f32.gmra.mrb[0].mxu0 %v6603
    %v6884 = vpop.f32.mrb[0].mxu0
    %v6885 = vadd.f32 0.0, %v6884
    %v6886 = vpop.f32.mrb[0].mxu0
    %v6887 = vadd.f32 0.0, %v6886
    %6888 = vdwg.mxu0
    %v6889 = vadd.f32 %v6558, %v6672
    %v6890 = vadd.f32 %v6559, %v6674
    %v6891 = vadd.f32 %v6560, %v6743
    %v6892 = vadd.f32 %v6561, %v6745
    %v6893 = vadd.f32 %v6562, %v6814
    %v6894 = vadd.f32 %v6563, %v6816
    %v6895 = vadd.f32 %v6564, %v6885
    %v6896 = vadd.f32 %v6565, %v6887
    %v6897 = vld [vmem:[%s4] sm:$0xff]
    %6899 = vset.pattern.permute.xlu0 2
    %6900 = vperm.xlu0 %6899, %v6897
    %v6901 = vpop.permute.xlu0 %6900
    %v6903 = vadd.f32 %v6889, %v6901
    %v6904 = vadd.f32 %v6890, %v6901
    %v6905 = vadd.f32 %v6891, %v6901
    %v6906 = vadd.f32 %v6892, %v6901
    %v6907 = vadd.f32 %v6893, %v6901
    %v6908 = vadd.f32 %v6894, %v6901
    %v6909 = vadd.f32 %v6895, %v6901
    %v6910 = vadd.f32 %v6896, %v6901
    %v6911 = vadd.f32 %v6903, %v3715
    %v6912 = vadd.f32 %v6904, %v3717
    %v6913 = vadd.f32 %v6905, %v3786
    %v6914 = vadd.f32 %v6906, %v3788
    %v6915 = vadd.f32 %v6907, %v3857
    %v6916 = vadd.f32 %v6908, %v3859
    %v6917 = vadd.f32 %v6909, %v3928
    %v6918 = vadd.f32 %v6910, %v3930
    %v6919 = vmul.f32 %v6911, 0.2
    %v6920 = vmul.f32 %v6912, 0.2
    %v6921 = vmul.f32 %v6913, 0.2
    %v6922 = vmul.f32 %v6914, 0.2
    %v6923 = vmul.f32 %v6915, 0.2
    %v6924 = vmul.f32 %v6916, 0.2
    %v6925 = vmul.f32 %v6917, 0.2
    %v6926 = vmul.f32 %v6918, 0.2
    %v6927 = vmax.f32 %v6911, %v6919
    %v6928 = vmax.f32 %v6912, %v6920
    %v6929 = vmax.f32 %v6913, %v6921
    %v6930 = vmax.f32 %v6914, %v6922
    %v6931 = vmax.f32 %v6915, %v6923
    %v6932 = vmax.f32 %v6916, %v6924
    %v6933 = vmax.f32 %v6917, %v6925
    %v6934 = vmax.f32 %v6918, %v6926
    %6935 = vst [vmem:[#allocation3] sm:$0xff] %v6927
    %6936 = vst [vmem:[#allocation3 + $0x8] sm:$0xff] %v6928
    %6937 = vst [vmem:[#allocation3 + $0x10] sm:$0xff] %v6929
    %6938 = vst [vmem:[#allocation3 + $0x18] sm:$0xff] %v6930
    %6939 = vst [vmem:[#allocation3 + $0x20] sm:$0xff] %v6931
    %6940 = vst [vmem:[#allocation3 + $0x28] sm:$0xff] %v6932
    %6941 = vst [vmem:[#allocation3 + $0x30] sm:$0xff] %v6933
    %6942 = vst.msk [vmem:[#allocation3 + $0x38] sm:$0xff] %vm3939, %v6934
    // Predicated region
    $region30: #{tpu_custom_call.1} parent=1 // pred_check
      _
    $region31: #{tpu_custom_call.1} parent=1 // pred_check_branch
      %6944 = sbr.rel (0) target = $region33
    $region32: #{tpu_custom_call.1} parent=1 // pred_region
      %s6946 = ssub.s32 1152, 1152
      %6947 = vsyncadd [#allocation4], %s6946
      %s6949 = sshll.u32 [#allocation3], 4
      %s6950 = int_to_ptr.vmem [resolvable:$true] %s6949
      %6952 = dma.vmem_to_hbm [thread:$0]  %s6950, 1152, %s7, [#allocation4]
    $region33: #{tpu_custom_call.1} parent=1 // pred_fallthru
      _
    // Predicated region
    $region34: #{tpu_custom_call.1} parent=1 // pred_check
      _
    $region35: #{tpu_custom_call.1} parent=1 // pred_check_branch
      %6954 = sbr.rel (0) target = $region37
    $region36: #{tpu_custom_call.1} parent=1 // pred_region
      %6955 = dma.done [#allocation4], 1152
    $region37: #{tpu_custom_call.1} parent=1 // pred_fallthru
      _
    %6956 = vsyncpa [#allocation4], 1

</llo_original>
